<compile_context>
chip_gen: v5e
topology: v5e:2x2
jax: 0.10.0
libtpu: 0.0.40
codegen_flags: <defaults>
</compile_context>

<pallas_src>
import jax
import jax.numpy as jnp
from jax.experimental import pallas as pl
from jax.experimental.pallas import tpu as pltpu


def conv1d_tanh_kernel(x_ref, w_ref, b_ref, o_ref):
    # x_ref: (bpg, Cin, L_in)  f32   -- native NCL input block (bpg batches)
    # w_ref: (K*Cout, Cin)     bf16  -- row index = k*Cout + co, value = W[co, ci, k]
    # b_ref: (Cout, 1)         f32
    # o_ref: (bpg, Cout, L_out) f32  -- lane-dense output (L_out on lanes)
    bpg = o_ref.shape[0]
    Cout = o_ref.shape[1]
    L_out = o_ref.shape[2]
    K = w_ref.shape[0] // Cout

    w = w_ref[...]                                             # (K*Cout, Cin) bf16
    # Hoisted single broadcast of the bias (accumulator init, no separate add).
    bias = jnp.broadcast_to(b_ref[...], (Cout, L_out))         # (Cout, L_out) f32

    # Static unroll over the batches in this grid step: the whole body is one
    # basic block, so the scheduler overlaps batch b+1's MXU matmul (and its
    # bf16 cast) with batch b's VPU/XLU epilogue.
    for b in range(bpg):
        # Cast activations to bf16 in VMEM (cheap VPU pass, no extra HBM traffic).
        x_bf = x_ref[b].astype(jnp.bfloat16)                   # (Cin, L_in)

        # One wide MXU matmul, f32 accumulation: (K*Cout, Cin) @ (Cin, L_in).
        y = jnp.dot(w, x_bf, preferred_element_type=jnp.float32)

        # K small shifted adds on (Cout, L_out) tiles:
        #   out[co, t] += Y[k*Cout + co, t + k]
        acc = bias
        for k in range(K):
            acc = acc + y[k * Cout:(k + 1) * Cout, k:k + L_out]

        o_ref[b] = jnp.tanh(acc).astype(o_ref.dtype)


def pack_conv1d_tanh_params(weight_oik, bias, matmul_dtype=jnp.bfloat16):
    """One-time parameter prep (hoisted out of the per-forward hot path).

    weight_oik: (Cout, Cin, K) f32 (PyTorch Conv1d layout); bias: (Cout,).
    Returns (w_packed (K*Cout, Cin) bf16, bias (Cout, 1) f32).
    """
    Cout, Cin, K = weight_oik.shape
    w_packed = jnp.transpose(weight_oik, (2, 0, 1)).reshape(K * Cout, Cin)
    return w_packed.astype(matmul_dtype), bias.reshape(Cout, 1).astype(jnp.float32)


def _default_batches_per_step(B):
    """Pick batches-per-grid-step from the device generation.

    v7x has 2 TensorCores per chip: keep 1 batch per parallel grid step so
    megacore sharding fills both cores. Single-TC v5e/v6e: merge 2 batches into
    one kernel body for cross-batch MXU/VPU overlap.
    """
    try:
        kind = jax.devices()[0].device_kind.lower()
    except Exception:  # pragma: no cover - be robust on exotic runtimes
        kind = ""
    if "7" in kind:          # TPU v7x / TPU7x
        return 1
    return 2 if B % 2 == 0 else 1


def conv1d_tanh(x_ncl, w_packed, b_col, K, batches_per_step=None):
    """x_ncl: (B, Cin, L_in) f32; w_packed: (K*Cout, Cin) bf16; b_col: (Cout, 1).

    Returns (B, Cout, L_out) f32 with L_out = L_in - K + 1 (VALID conv, stride 1).
    """
    B, Cin, L_in = x_ncl.shape
    KC = w_packed.shape[0]
    Cout = KC // K
    L_out = L_in - K + 1

    bpg = batches_per_step if batches_per_step is not None else _default_batches_per_step(B)
    if B % bpg != 0:
        bpg = 1
    grid = (B // bpg,)

    cost = pl.CostEstimate(
        flops=2 * B * K * Cout * Cin * L_in,
        bytes_accessed=B * Cin * L_in * 4 + KC * Cin * 2 + B * Cout * L_out * 4,
        transcendentals=B * Cout * L_out,
    )

    return pl.pallas_call(
        conv1d_tanh_kernel,
        out_shape=jax.ShapeDtypeStruct((B, Cout, L_out), jnp.float32),
        grid=grid,
        in_specs=[
            pl.BlockSpec((bpg, Cin, L_in), lambda g: (g, 0, 0)),   # native NCL x
            pl.BlockSpec((KC, Cin), lambda g: (0, 0)),             # packed weights
            pl.BlockSpec((Cout, 1), lambda g: (0, 0)),             # bias column
        ],
        out_specs=pl.BlockSpec((bpg, Cout, L_out), lambda g: (g, 0, 0)),
        compiler_params=pltpu.CompilerParams(
            dimension_semantics=("parallel",)),
        cost_estimate=cost,
    )(x_ncl, w_packed, b_col)


if __name__ == "__main__":
    # Small shapes consistent with the module: Cin/Cout/K fixed by __init__,
    # batch and length shrunk (L_in=140 -> L_out=128, lane-dense output).
    B, Cin, Cout, K, L_in = 2, 1000, 64, 13, 140
    L_out = L_in - K + 1

    key = jax.random.PRNGKey(0)
    kx, kw, kb = jax.random.split(key, 3)

    x = jax.random.normal(kx, (B, Cin, L_in), dtype=jnp.float32)
    fan_in = Cin * K
    bound = 1.0 / (fan_in ** 0.5)
    weight = jax.random.uniform(kw, (Cout, Cin, K), jnp.float32, -bound, bound)
    bias = jax.random.uniform(kb, (Cout,), jnp.float32, -bound, bound)

    # One-time parameter packing (not in the per-call hot path).
    w_packed, b_col = pack_conv1d_tanh_params(weight, bias)

    out = conv1d_tanh(x, w_packed, b_col, K)
    out = jax.block_until_ready(out)
    assert out.shape == (B, Cout, L_out), out.shape

    # Reference 1: same bf16 matmul inputs, f32 accumulation (tight check).
    ref_bf = jax.lax.conv_general_dilated(
        x.astype(jnp.bfloat16), weight.astype(jnp.bfloat16),
        window_strides=(1,), padding="VALID",
        dimension_numbers=("NCH", "OIH", "NCH"),
        preferred_element_type=jnp.float32,
    ) + bias[None, :, None]
    ref_bf = jnp.tanh(ref_bf)
    err_bf = float(jnp.max(jnp.abs(out - ref_bf)))
    assert err_bf < 5e-3, err_bf

    # Reference 2: full f32 conv (loose check covering bf16 input quantization).
    ref32 = jax.lax.conv_general_dilated(
        x, weight, window_strides=(1,), padding="VALID",
        dimension_numbers=("NCH", "OIH", "NCH"),
    ) + bias[None, :, None]
    ref32 = jnp.tanh(ref32)
    err32 = float(jnp.max(jnp.abs(out - ref32)))
    assert err32 < 3e-2, err32

    print("KERNEL_OK")
</pallas_src>

<mosaic_0001>
module attributes {stable_mosaic.version = 11 : i64} {
  func.func @conv1d_tanh_kernel(%arg0: i32, %arg1: memref<2x1000x140xf32, #tpu.memory_space<vmem>>, %arg2: memref<832x1000xbf16, #tpu.memory_space<vmem>>, %arg3: memref<64x1xf32, #tpu.memory_space<vmem>>, %arg4: memref<2x64x128xf32, #tpu.memory_space<vmem>>) attributes {dimension_semantics = [#tpu.dimension_semantics<parallel>], iteration_bounds = array<i64: 1>, scalar_prefetch = 0 : i64, scratch_operands = 0 : i64, tpu.core_type = #tpu.core_type<tc>, window_params = [{transform_indices = @transform_0, window_bounds = array<i64: 2, 1000, 140>}, {pipeline_mode = #tpu.pipeline_mode<synchronous>, transform_indices = @transform_1, window_bounds = array<i64: 832, 1000>}, {pipeline_mode = #tpu.pipeline_mode<synchronous>, transform_indices = @transform_2, window_bounds = array<i64: 64, 1>}, {transform_indices = @transform_3, window_bounds = array<i64: 2, 64, 128>}]} {
    %c0 = arith.constant 0 : index
    %c0_0 = arith.constant 0 : index
    %0 = vector.load %arg2[%c0, %c0_0] : memref<832x1000xbf16, #tpu.memory_space<vmem>>, vector<832x1000xbf16>
    %c0_1 = arith.constant 0 : index
    %c0_2 = arith.constant 0 : index
    %1 = vector.load %arg3[%c0_1, %c0_2] : memref<64x1xf32, #tpu.memory_space<vmem>>, vector<64x1xf32>
    %2 = vector.shape_cast %1 : vector<64x1xf32> to vector<64x1xf32>
    %3 = vector.broadcast %2 : vector<64x1xf32> to vector<64x128xf32>
    %c0_3 = arith.constant 0 : index
    %c0_4 = arith.constant 0 : index
    %c0_5 = arith.constant 0 : index
    %4 = vector.load %arg1[%c0_3, %c0_4, %c0_5] : memref<2x1000x140xf32, #tpu.memory_space<vmem>>, vector<1x1000x140xf32>
    %5 = vector.shape_cast %4 : vector<1x1000x140xf32> to vector<1000x140xf32>
    %6 = arith.truncf %5 : vector<1000x140xf32> to vector<1000x140xbf16>
    %cst = arith.constant dense<0.000000e+00> : vector<832x140xf32>
    %7 = tpu.matmul %0, %6, %cst {dimension_numbers = #tpu.dot_dimension_numbers<[1], [0], [0], [1], [0, 0, 1, 1], [], []>} : vector<832x1000xbf16>, vector<1000x140xbf16>, vector<832x140xf32> -> vector<832x140xf32>
    %8 = vector.extract_strided_slice %7 {offsets = [0, 0], sizes = [64, 128], strides = [1, 1]} : vector<832x140xf32> to vector<64x128xf32>
    %9 = arith.addf %3, %8 : vector<64x128xf32>
    %10 = vector.extract_strided_slice %7 {offsets = [64, 1], sizes = [64, 128], strides = [1, 1]} : vector<832x140xf32> to vector<64x128xf32>
    %11 = arith.addf %9, %10 : vector<64x128xf32>
    %12 = vector.extract_strided_slice %7 {offsets = [128, 2], sizes = [64, 128], strides = [1, 1]} : vector<832x140xf32> to vector<64x128xf32>
    %13 = arith.addf %11, %12 : vector<64x128xf32>
    %14 = vector.extract_strided_slice %7 {offsets = [192, 3], sizes = [64, 128], strides = [1, 1]} : vector<832x140xf32> to vector<64x128xf32>
    %15 = arith.addf %13, %14 : vector<64x128xf32>
    %16 = vector.extract_strided_slice %7 {offsets = [256, 4], sizes = [64, 128], strides = [1, 1]} : vector<832x140xf32> to vector<64x128xf32>
    %17 = arith.addf %15, %16 : vector<64x128xf32>
    %18 = vector.extract_strided_slice %7 {offsets = [320, 5], sizes = [64, 128], strides = [1, 1]} : vector<832x140xf32> to vector<64x128xf32>
    %19 = arith.addf %17, %18 : vector<64x128xf32>
    %20 = vector.extract_strided_slice %7 {offsets = [384, 6], sizes = [64, 128], strides = [1, 1]} : vector<832x140xf32> to vector<64x128xf32>
    %21 = arith.addf %19, %20 : vector<64x128xf32>
    %22 = vector.extract_strided_slice %7 {offsets = [448, 7], sizes = [64, 128], strides = [1, 1]} : vector<832x140xf32> to vector<64x128xf32>
    %23 = arith.addf %21, %22 : vector<64x128xf32>
    %24 = vector.extract_strided_slice %7 {offsets = [512, 8], sizes = [64, 128], strides = [1, 1]} : vector<832x140xf32> to vector<64x128xf32>
    %25 = arith.addf %23, %24 : vector<64x128xf32>
    %26 = vector.extract_strided_slice %7 {offsets = [576, 9], sizes = [64, 128], strides = [1, 1]} : vector<832x140xf32> to vector<64x128xf32>
    %27 = arith.addf %25, %26 : vector<64x128xf32>
    %28 = vector.extract_strided_slice %7 {offsets = [640, 10], sizes = [64, 128], strides = [1, 1]} : vector<832x140xf32> to vector<64x128xf32>
    %29 = arith.addf %27, %28 : vector<64x128xf32>
    %30 = vector.extract_strided_slice %7 {offsets = [704, 11], sizes = [64, 128], strides = [1, 1]} : vector<832x140xf32> to vector<64x128xf32>
    %31 = arith.addf %29, %30 : vector<64x128xf32>
    %32 = vector.extract_strided_slice %7 {offsets = [768, 12], sizes = [64, 128], strides = [1, 1]} : vector<832x140xf32> to vector<64x128xf32>
    %33 = arith.addf %31, %32 : vector<64x128xf32>
    %34 = math.tanh %33 : vector<64x128xf32>
    %c0_6 = arith.constant 0 : index
    %c0_7 = arith.constant 0 : index
    %c0_8 = arith.constant 0 : index
    %35 = vector.load %arg4[%c0_6, %c0_7, %c0_8] : memref<2x64x128xf32, #tpu.memory_space<vmem>>, vector<1x64x128xf32>
    %36 = vector.shape_cast %35 : vector<1x64x128xf32> to vector<64x128xf32>
    %37 = vector.shape_cast %34 : vector<64x128xf32> to vector<1x64x128xf32>
    tpu.vector_store %arg4[%c0_6, %c0_7, %c0_8], %37 {strides = array<i32>} : memref<2x64x128xf32, #tpu.memory_space<vmem>>, vector<1x64x128xf32>,
    %c1 = arith.constant 1 : index
    %c0_9 = arith.constant 0 : index
    %c0_10 = arith.constant 0 : index
    %38 = vector.load %arg1[%c1, %c0_9, %c0_10] : memref<2x1000x140xf32, #tpu.memory_space<vmem>>, vector<1x1000x140xf32>
    %39 = vector.shape_cast %38 : vector<1x1000x140xf32> to vector<1000x140xf32>
    %40 = arith.truncf %39 : vector<1000x140xf32> to vector<1000x140xbf16>
    %cst_11 = arith.constant dense<0.000000e+00> : vector<832x140xf32>
    %41 = tpu.matmul %0, %40, %cst_11 {dimension_numbers = #tpu.dot_dimension_numbers<[1], [0], [0], [1], [0, 0, 1, 1], [], []>} : vector<832x1000xbf16>, vector<1000x140xbf16>, vector<832x140xf32> -> vector<832x140xf32>
    %42 = vector.extract_strided_slice %41 {offsets = [0, 0], sizes = [64, 128], strides = [1, 1]} : vector<832x140xf32> to vector<64x128xf32>
    %43 = arith.addf %3, %42 : vector<64x128xf32>
    %44 = vector.extract_strided_slice %41 {offsets = [64, 1], sizes = [64, 128], strides = [1, 1]} : vector<832x140xf32> to vector<64x128xf32>
    %45 = arith.addf %43, %44 : vector<64x128xf32>
    %46 = vector.extract_strided_slice %41 {offsets = [128, 2], sizes = [64, 128], strides = [1, 1]} : vector<832x140xf32> to vector<64x128xf32>
    %47 = arith.addf %45, %46 : vector<64x128xf32>
    %48 = vector.extract_strided_slice %41 {offsets = [192, 3], sizes = [64, 128], strides = [1, 1]} : vector<832x140xf32> to vector<64x128xf32>
    %49 = arith.addf %47, %48 : vector<64x128xf32>
    %50 = vector.extract_strided_slice %41 {offsets = [256, 4], sizes = [64, 128], strides = [1, 1]} : vector<832x140xf32> to vector<64x128xf32>
    %51 = arith.addf %49, %50 : vector<64x128xf32>
    %52 = vector.extract_strided_slice %41 {offsets = [320, 5], sizes = [64, 128], strides = [1, 1]} : vector<832x140xf32> to vector<64x128xf32>
    %53 = arith.addf %51, %52 : vector<64x128xf32>
    %54 = vector.extract_strided_slice %41 {offsets = [384, 6], sizes = [64, 128], strides = [1, 1]} : vector<832x140xf32> to vector<64x128xf32>
    %55 = arith.addf %53, %54 : vector<64x128xf32>
    %56 = vector.extract_strided_slice %41 {offsets = [448, 7], sizes = [64, 128], strides = [1, 1]} : vector<832x140xf32> to vector<64x128xf32>
    %57 = arith.addf %55, %56 : vector<64x128xf32>
    %58 = vector.extract_strided_slice %41 {offsets = [512, 8], sizes = [64, 128], strides = [1, 1]} : vector<832x140xf32> to vector<64x128xf32>
    %59 = arith.addf %57, %58 : vector<64x128xf32>
    %60 = vector.extract_strided_slice %41 {offsets = [576, 9], sizes = [64, 128], strides = [1, 1]} : vector<832x140xf32> to vector<64x128xf32>
    %61 = arith.addf %59, %60 : vector<64x128xf32>
    %62 = vector.extract_strided_slice %41 {offsets = [640, 10], sizes = [64, 128], strides = [1, 1]} : vector<832x140xf32> to vector<64x128xf32>
    %63 = arith.addf %61, %62 : vector<64x128xf32>
    %64 = vector.extract_strided_slice %41 {offsets = [704, 11], sizes = [64, 128], strides = [1, 1]} : vector<832x140xf32> to vector<64x128xf32>
    %65 = arith.addf %63, %64 : vector<64x128xf32>
    %66 = vector.extract_strided_slice %41 {offsets = [768, 12], sizes = [64, 128], strides = [1, 1]} : vector<832x140xf32> to vector<64x128xf32>
    %67 = arith.addf %65, %66 : vector<64x128xf32>
    %68 = math.tanh %67 : vector<64x128xf32>
    %c1_12 = arith.constant 1 : index
    %c0_13 = arith.constant 0 : index
    %c0_14 = arith.constant 0 : index
    %69 = vector.load %arg4[%c1_12, %c0_13, %c0_14] : memref<2x64x128xf32, #tpu.memory_space<vmem>>, vector<1x64x128xf32>
    %70 = vector.shape_cast %69 : vector<1x64x128xf32> to vector<64x128xf32>
    %71 = vector.shape_cast %68 : vector<64x128xf32> to vector<1x64x128xf32>
    tpu.vector_store %arg4[%c1_12, %c0_13, %c0_14], %71 {strides = array<i32>} : memref<2x64x128xf32, #tpu.memory_space<vmem>>, vector<1x64x128xf32>,
    return
  }
  func.func @transform_0(%arg0: i32) -> (i32, i32, i32) {
    %c0_i32 = arith.constant 0 : i32
    %c0_i32_0 = arith.constant 0 : i32
    %c0_i32_1 = arith.constant 0 : i32
    return %arg0, %c0_i32, %c0_i32_0 : i32, i32, i32
  }
  func.func @transform_1(%arg0: i32) -> (i32, i32) {
    %c0_i32 = arith.constant 0 : i32
    %c0_i32_0 = arith.constant 0 : i32
    %c0_i32_1 = arith.constant 0 : i32
    return %c0_i32, %c0_i32_0 : i32, i32
  }
  func.func @transform_2(%arg0: i32) -> (i32, i32) {
    %c0_i32 = arith.constant 0 : i32
    %c0_i32_0 = arith.constant 0 : i32
    %c0_i32_1 = arith.constant 0 : i32
    return %c0_i32, %c0_i32_0 : i32, i32
  }
  func.func @transform_3(%arg0: i32) -> (i32, i32, i32) {
    %c0_i32 = arith.constant 0 : i32
    %c0_i32_0 = arith.constant 0 : i32
    %c0_i32_1 = arith.constant 0 : i32
    return %arg0, %c0_i32, %c0_i32_0 : i32, i32, i32
  }
}

</mosaic_0001>

<llo_original>
// kernel: tpu_custom_call.1
$region0: #{tpu_custom_call.1}
  #allocation0 [shape = 'u32[]', space=smem, size = 0x4, offset = 0x4, fixed_abs, tag = 'smem constant byte address 0x4 - core index']
  #allocation1 [shape = 'u32[72,128]{1,0:T(1,128)}', space=vmem, size = 0x9000, scoped, tag = 'internal scratch']
  %s0 = inlined_call_operand.vmem [shape: f32[2,1000,140], index: 0, kind: input, shape index: {}]
  %s1 = inlined_call_operand.vmem [shape: bf16[832,1000], index: 1, kind: input, shape index: {}]
  %s2 = inlined_call_operand.vmem [shape: f32[64,1], index: 2, kind: input, shape index: {}]
  %s3 = inlined_call_operand.hbm [shape: f32[2,64,128], index: 3, kind: output, shape index: {}]
  %s4 = sld [smem:[#allocation0]]
  $region22: #{tpu_custom_call.1} parent=0
    _
  %s6 = ssub.s32 1, %s4
  %s7 = scalar_select 0, %s6, %s4
  $region1: #{tpu_custom_call.1} parent=0
    #allocation2 [shape = 'u8[65536]{0}', space=vmem, size = 0x10000, scoped, tag = 'output window, operand 0, single buffered']
    #allocation3 [shape = 's32[1]{0}', space=sflag, size = 0x4, scoped, tag = 'scoped memory for tpu_custom_call.1']
    %8 = vsyncpa [#allocation3], 0
    // Predicated region
    $region2: #{tpu_custom_call.1} parent=1 // pred_check
      _
    $region3: #{tpu_custom_call.1} parent=1 // pred_check_branch
      %10 = sbr.rel (0) target = $region5
    $region4: #{tpu_custom_call.1} parent=1 // pred_region
      _
    $region5: #{tpu_custom_call.1} parent=1 // pred_fallthru
      _
    // Predicated region
    $region6: #{tpu_custom_call.1} parent=1 // pred_check
      _
    $region7: #{tpu_custom_call.1} parent=1 // pred_check_branch
      %12 = sbr.rel (0) target = $region9
    $region8: #{tpu_custom_call.1} parent=1 // pred_region
      _
    $region9: #{tpu_custom_call.1} parent=1 // pred_fallthru
      _
    // Predicated region
    $region10: #{tpu_custom_call.1} parent=1 // pred_check
      _
    $region11: #{tpu_custom_call.1} parent=1 // pred_check_branch
      %14 = sbr.rel (0) target = $region13
    $region12: #{tpu_custom_call.1} parent=1 // pred_region
      _
    $region13: #{tpu_custom_call.1} parent=1 // pred_fallthru
      _
    %v16 = vld [vmem:[%s1] sm:$0xff]
    %v17 = vld [vmem:[%s1 + $0x8] sm:$0xff]
    %v18 = vld [vmem:[%s1 + $0x10] sm:$0xff]
    %v19 = vld [vmem:[%s1 + $0x18] sm:$0xff]
    %v20 = vld [vmem:[%s1 + $0x20] sm:$0xff]
    %v21 = vld [vmem:[%s1 + $0x28] sm:$0xff]
    %v22 = vld [vmem:[%s1 + $0x30] sm:$0xff]
    %v23 = vld [vmem:[%s1 + $0x38] sm:$0xff]
    %v24 = vld [vmem:[%s1 + $0x40] sm:$0xff]
    %v25 = vld [vmem:[%s1 + $0x48] sm:$0xff]
    %v26 = vld [vmem:[%s1 + $0x50] sm:$0xff]
    %v27 = vld [vmem:[%s1 + $0x58] sm:$0xff]
    %v28 = vld [vmem:[%s1 + $0x60] sm:$0xff]
    %v29 = vld [vmem:[%s1 + $0x68] sm:$0xff]
    %v30 = vld [vmem:[%s1 + $0x70] sm:$0xff]
    %v31 = vld [vmem:[%s1 + $0x78] sm:$0xff]
    %v32 = vld [vmem:[%s1 + $0x80] sm:$0xff]
    %v33 = vld [vmem:[%s1 + $0x88] sm:$0xff]
    %v34 = vld [vmem:[%s1 + $0x90] sm:$0xff]
    %v35 = vld [vmem:[%s1 + $0x98] sm:$0xff]
    %v36 = vld [vmem:[%s1 + $0xa0] sm:$0xff]
    %v37 = vld [vmem:[%s1 + $0xa8] sm:$0xff]
    %v38 = vld [vmem:[%s1 + $0xb0] sm:$0xff]
    %v39 = vld [vmem:[%s1 + $0xb8] sm:$0xff]
    %v40 = vld [vmem:[%s1 + $0xc0] sm:$0xff]
    %v41 = vld [vmem:[%s1 + $0xc8] sm:$0xff]
    %v42 = vld [vmem:[%s1 + $0xd0] sm:$0xff]
    %v43 = vld [vmem:[%s1 + $0xd8] sm:$0xff]
    %v44 = vld [vmem:[%s1 + $0xe0] sm:$0xff]
    %v45 = vld [vmem:[%s1 + $0xe8] sm:$0xff]
    %v46 = vld [vmem:[%s1 + $0xf0] sm:$0xff]
    %v47 = vld [vmem:[%s1 + $0xf8] sm:$0xff]
    %v48 = vld [vmem:[%s1 + $0x100] sm:$0xff]
    %v49 = vld [vmem:[%s1 + $0x108] sm:$0xff]
    %v50 = vld [vmem:[%s1 + $0x110] sm:$0xff]
    %v51 = vld [vmem:[%s1 + $0x118] sm:$0xff]
    %v52 = vld [vmem:[%s1 + $0x120] sm:$0xff]
    %v53 = vld [vmem:[%s1 + $0x128] sm:$0xff]
    %v54 = vld [vmem:[%s1 + $0x130] sm:$0xff]
    %v55 = vld [vmem:[%s1 + $0x138] sm:$0xff]
    %v56 = vld [vmem:[%s1 + $0x140] sm:$0xff]
    %v57 = vld [vmem:[%s1 + $0x148] sm:$0xff]
    %v58 = vld [vmem:[%s1 + $0x150] sm:$0xff]
    %v59 = vld [vmem:[%s1 + $0x158] sm:$0xff]
    %v60 = vld [vmem:[%s1 + $0x160] sm:$0xff]
    %v61 = vld [vmem:[%s1 + $0x168] sm:$0xff]
    %v62 = vld [vmem:[%s1 + $0x170] sm:$0xff]
    %v63 = vld [vmem:[%s1 + $0x178] sm:$0xff]
    %v64 = vld [vmem:[%s1 + $0x180] sm:$0xff]
    %v65 = vld [vmem:[%s1 + $0x188] sm:$0xff]
    %v66 = vld [vmem:[%s1 + $0x190] sm:$0xff]
    %v67 = vld [vmem:[%s1 + $0x198] sm:$0xff]
    %v68 = vld [vmem:[%s1 + $0x1a0] sm:$0xff]
    %v69 = vld [vmem:[%s1 + $0x1a8] sm:$0xff]
    %v70 = vld [vmem:[%s1 + $0x1b0] sm:$0xff]
    %v71 = vld [vmem:[%s1 + $0x1b8] sm:$0xff]
    %v72 = vld [vmem:[%s1 + $0x1c0] sm:$0xff]
    %v73 = vld [vmem:[%s1 + $0x1c8] sm:$0xff]
    %v74 = vld [vmem:[%s1 + $0x1d0] sm:$0xff]
    %v75 = vld [vmem:[%s1 + $0x1d8] sm:$0xff]
    %v76 = vld [vmem:[%s1 + $0x1e0] sm:$0xff]
    %v77 = vld [vmem:[%s1 + $0x1e8] sm:$0xff]
    %v78 = vld [vmem:[%s1 + $0x1f0] sm:$0xff]
    %v79 = vld [vmem:[%s1 + $0x1f8] sm:$0xff]
    %v80 = vld [vmem:[%s1 + $0x200] sm:$0xff]
    %v81 = vld [vmem:[%s1 + $0x208] sm:$0xff]
    %v82 = vld [vmem:[%s1 + $0x210] sm:$0xff]
    %v83 = vld [vmem:[%s1 + $0x218] sm:$0xff]
    %v84 = vld [vmem:[%s1 + $0x220] sm:$0xff]
    %v85 = vld [vmem:[%s1 + $0x228] sm:$0xff]
    %v86 = vld [vmem:[%s1 + $0x230] sm:$0xff]
    %v87 = vld [vmem:[%s1 + $0x238] sm:$0xff]
    %v88 = vld [vmem:[%s1 + $0x240] sm:$0xff]
    %v89 = vld [vmem:[%s1 + $0x248] sm:$0xff]
    %v90 = vld [vmem:[%s1 + $0x250] sm:$0xff]
    %v91 = vld [vmem:[%s1 + $0x258] sm:$0xff]
    %v92 = vld [vmem:[%s1 + $0x260] sm:$0xff]
    %v93 = vld [vmem:[%s1 + $0x268] sm:$0xff]
    %v94 = vld [vmem:[%s1 + $0x270] sm:$0xff]
    %v95 = vld [vmem:[%s1 + $0x278] sm:$0xff]
    %v96 = vld [vmem:[%s1 + $0x280] sm:$0xff]
    %v97 = vld [vmem:[%s1 + $0x288] sm:$0xff]
    %v98 = vld [vmem:[%s1 + $0x290] sm:$0xff]
    %v99 = vld [vmem:[%s1 + $0x298] sm:$0xff]
    %v100 = vld [vmem:[%s1 + $0x2a0] sm:$0xff]
    %v101 = vld [vmem:[%s1 + $0x2a8] sm:$0xff]
    %v102 = vld [vmem:[%s1 + $0x2b0] sm:$0xff]
    %v103 = vld [vmem:[%s1 + $0x2b8] sm:$0xff]
    %v104 = vld [vmem:[%s1 + $0x2c0] sm:$0xff]
    %v105 = vld [vmem:[%s1 + $0x2c8] sm:$0xff]
    %v106 = vld [vmem:[%s1 + $0x2d0] sm:$0xff]
    %v107 = vld [vmem:[%s1 + $0x2d8] sm:$0xff]
    %v108 = vld [vmem:[%s1 + $0x2e0] sm:$0xff]
    %v109 = vld [vmem:[%s1 + $0x2e8] sm:$0xff]
    %v110 = vld [vmem:[%s1 + $0x2f0] sm:$0xff]
    %v111 = vld [vmem:[%s1 + $0x2f8] sm:$0xff]
    %v112 = vld [vmem:[%s1 + $0x300] sm:$0xff]
    %v113 = vld [vmem:[%s1 + $0x308] sm:$0xff]
    %v114 = vld [vmem:[%s1 + $0x310] sm:$0xff]
    %v115 = vld [vmem:[%s1 + $0x318] sm:$0xff]
    %v116 = vld [vmem:[%s1 + $0x320] sm:$0xff]
    %v117 = vld [vmem:[%s1 + $0x328] sm:$0xff]
    %v118 = vld [vmem:[%s1 + $0x330] sm:$0xff]
    %v119 = vld [vmem:[%s1 + $0x338] sm:$0xff]
    %v120 = vld [vmem:[%s1 + $0x340] sm:$0xff]
    %v121 = vld [vmem:[%s1 + $0x348] sm:$0xff]
    %v122 = vld [vmem:[%s1 + $0x350] sm:$0xff]
    %v123 = vld [vmem:[%s1 + $0x358] sm:$0xff]
    %v124 = vld [vmem:[%s1 + $0x360] sm:$0xff]
    %v125 = vld [vmem:[%s1 + $0x368] sm:$0xff]
    %v126 = vld [vmem:[%s1 + $0x370] sm:$0xff]
    %v127 = vld [vmem:[%s1 + $0x378] sm:$0xff]
    %v128 = vld [vmem:[%s1 + $0x380] sm:$0xff]
    %v129 = vld [vmem:[%s1 + $0x388] sm:$0xff]
    %v130 = vld [vmem:[%s1 + $0x390] sm:$0xff]
    %v131 = vld [vmem:[%s1 + $0x398] sm:$0xff]
    %v132 = vld [vmem:[%s1 + $0x3a0] sm:$0xff]
    %v133 = vld [vmem:[%s1 + $0x3a8] sm:$0xff]
    %v134 = vld [vmem:[%s1 + $0x3b0] sm:$0xff]
    %v135 = vld [vmem:[%s1 + $0x3b8] sm:$0xff]
    %v136 = vld [vmem:[%s1 + $0x3c0] sm:$0xff]
    %v137 = vld [vmem:[%s1 + $0x3c8] sm:$0xff]
    %v138 = vld [vmem:[%s1 + $0x3d0] sm:$0xff]
    %v139 = vld [vmem:[%s1 + $0x3d8] sm:$0xff]
    %v140 = vld [vmem:[%s1 + $0x3e0] sm:$0xff]
    %v141 = vld [vmem:[%s1 + $0x3e8] sm:$0xff]
    %v142 = vld [vmem:[%s1 + $0x3f0] sm:$0xff]
    %v143 = vld [vmem:[%s1 + $0x3f8] sm:$0xff]
    %v144 = vld [vmem:[%s1 + $0x400] sm:$0xff]
    %v145 = vld [vmem:[%s1 + $0x408] sm:$0xff]
    %v146 = vld [vmem:[%s1 + $0x410] sm:$0xff]
    %v147 = vld [vmem:[%s1 + $0x418] sm:$0xff]
    %v148 = vld [vmem:[%s1 + $0x420] sm:$0xff]
    %v149 = vld [vmem:[%s1 + $0x428] sm:$0xff]
    %v150 = vld [vmem:[%s1 + $0x430] sm:$0xff]
    %v151 = vld [vmem:[%s1 + $0x438] sm:$0xff]
    %v152 = vld [vmem:[%s1 + $0x440] sm:$0xff]
    %v153 = vld [vmem:[%s1 + $0x448] sm:$0xff]
    %v154 = vld [vmem:[%s1 + $0x450] sm:$0xff]
    %v155 = vld [vmem:[%s1 + $0x458] sm:$0xff]
    %v156 = vld [vmem:[%s1 + $0x460] sm:$0xff]
    %v157 = vld [vmem:[%s1 + $0x468] sm:$0xff]
    %v158 = vld [vmem:[%s1 + $0x470] sm:$0xff]
    %v159 = vld [vmem:[%s1 + $0x478] sm:$0xff]
    %v160 = vld [vmem:[%s1 + $0x480] sm:$0xff]
    %v161 = vld [vmem:[%s1 + $0x488] sm:$0xff]
    %v162 = vld [vmem:[%s1 + $0x490] sm:$0xff]
    %v163 = vld [vmem:[%s1 + $0x498] sm:$0xff]
    %v164 = vld [vmem:[%s1 + $0x4a0] sm:$0xff]
    %v165 = vld [vmem:[%s1 + $0x4a8] sm:$0xff]
    %v166 = vld [vmem:[%s1 + $0x4b0] sm:$0xff]
    %v167 = vld [vmem:[%s1 + $0x4b8] sm:$0xff]
    %v168 = vld [vmem:[%s1 + $0x4c0] sm:$0xff]
    %v169 = vld [vmem:[%s1 + $0x4c8] sm:$0xff]
    %v170 = vld [vmem:[%s1 + $0x4d0] sm:$0xff]
    %v171 = vld [vmem:[%s1 + $0x4d8] sm:$0xff]
    %v172 = vld [vmem:[%s1 + $0x4e0] sm:$0xff]
    %v173 = vld [vmem:[%s1 + $0x4e8] sm:$0xff]
    %v174 = vld [vmem:[%s1 + $0x4f0] sm:$0xff]
    %v175 = vld [vmem:[%s1 + $0x4f8] sm:$0xff]
    %v176 = vld [vmem:[%s1 + $0x500] sm:$0xff]
    %v177 = vld [vmem:[%s1 + $0x508] sm:$0xff]
    %v178 = vld [vmem:[%s1 + $0x510] sm:$0xff]
    %v179 = vld [vmem:[%s1 + $0x518] sm:$0xff]
    %v180 = vld [vmem:[%s1 + $0x520] sm:$0xff]
    %v181 = vld [vmem:[%s1 + $0x528] sm:$0xff]
    %v182 = vld [vmem:[%s1 + $0x530] sm:$0xff]
    %v183 = vld [vmem:[%s1 + $0x538] sm:$0xff]
    %v184 = vld [vmem:[%s1 + $0x540] sm:$0xff]
    %v185 = vld [vmem:[%s1 + $0x548] sm:$0xff]
    %v186 = vld [vmem:[%s1 + $0x550] sm:$0xff]
    %v187 = vld [vmem:[%s1 + $0x558] sm:$0xff]
    %v188 = vld [vmem:[%s1 + $0x560] sm:$0xff]
    %v189 = vld [vmem:[%s1 + $0x568] sm:$0xff]
    %v190 = vld [vmem:[%s1 + $0x570] sm:$0xff]
    %v191 = vld [vmem:[%s1 + $0x578] sm:$0xff]
    %v192 = vld [vmem:[%s1 + $0x580] sm:$0xff]
    %v193 = vld [vmem:[%s1 + $0x588] sm:$0xff]
    %v194 = vld [vmem:[%s1 + $0x590] sm:$0xff]
    %v195 = vld [vmem:[%s1 + $0x598] sm:$0xff]
    %v196 = vld [vmem:[%s1 + $0x5a0] sm:$0xff]
    %v197 = vld [vmem:[%s1 + $0x5a8] sm:$0xff]
    %v198 = vld [vmem:[%s1 + $0x5b0] sm:$0xff]
    %v199 = vld [vmem:[%s1 + $0x5b8] sm:$0xff]
    %v200 = vld [vmem:[%s1 + $0x5c0] sm:$0xff]
    %v201 = vld [vmem:[%s1 + $0x5c8] sm:$0xff]
    %v202 = vld [vmem:[%s1 + $0x5d0] sm:$0xff]
    %v203 = vld [vmem:[%s1 + $0x5d8] sm:$0xff]
    %v204 = vld [vmem:[%s1 + $0x5e0] sm:$0xff]
    %v205 = vld [vmem:[%s1 + $0x5e8] sm:$0xff]
    %v206 = vld [vmem:[%s1 + $0x5f0] sm:$0xff]
    %v207 = vld [vmem:[%s1 + $0x5f8] sm:$0xff]
    %v208 = vld [vmem:[%s1 + $0x600] sm:$0xff]
    %v209 = vld [vmem:[%s1 + $0x608] sm:$0xff]
    %v210 = vld [vmem:[%s1 + $0x610] sm:$0xff]
    %v211 = vld [vmem:[%s1 + $0x618] sm:$0xff]
    %v212 = vld [vmem:[%s1 + $0x620] sm:$0xff]
    %v213 = vld [vmem:[%s1 + $0x628] sm:$0xff]
    %v214 = vld [vmem:[%s1 + $0x630] sm:$0xff]
    %v215 = vld [vmem:[%s1 + $0x638] sm:$0xff]
    %v216 = vld [vmem:[%s1 + $0x640] sm:$0xff]
    %v217 = vld [vmem:[%s1 + $0x648] sm:$0xff]
    %v218 = vld [vmem:[%s1 + $0x650] sm:$0xff]
    %v219 = vld [vmem:[%s1 + $0x658] sm:$0xff]
    %v220 = vld [vmem:[%s1 + $0x660] sm:$0xff]
    %v221 = vld [vmem:[%s1 + $0x668] sm:$0xff]
    %v222 = vld [vmem:[%s1 + $0x670] sm:$0xff]
    %v223 = vld [vmem:[%s1 + $0x678] sm:$0xff]
    %v224 = vld [vmem:[%s1 + $0x680] sm:$0xff]
    %v225 = vld [vmem:[%s1 + $0x688] sm:$0xff]
    %v226 = vld [vmem:[%s1 + $0x690] sm:$0xff]
    %v227 = vld [vmem:[%s1 + $0x698] sm:$0xff]
    %v228 = vld [vmem:[%s1 + $0x6a0] sm:$0xff]
    %v229 = vld [vmem:[%s1 + $0x6a8] sm:$0xff]
    %v230 = vld [vmem:[%s1 + $0x6b0] sm:$0xff]
    %v231 = vld [vmem:[%s1 + $0x6b8] sm:$0xff]
    %v232 = vld [vmem:[%s1 + $0x6c0] sm:$0xff]
    %v233 = vld [vmem:[%s1 + $0x6c8] sm:$0xff]
    %v234 = vld [vmem:[%s1 + $0x6d0] sm:$0xff]
    %v235 = vld [vmem:[%s1 + $0x6d8] sm:$0xff]
    %v236 = vld [vmem:[%s1 + $0x6e0] sm:$0xff]
    %v237 = vld [vmem:[%s1 + $0x6e8] sm:$0xff]
    %v238 = vld [vmem:[%s1 + $0x6f0] sm:$0xff]
    %v239 = vld [vmem:[%s1 + $0x6f8] sm:$0xff]
    %v240 = vld [vmem:[%s1 + $0x700] sm:$0xff]
    %v241 = vld [vmem:[%s1 + $0x708] sm:$0xff]
    %v242 = vld [vmem:[%s1 + $0x710] sm:$0xff]
    %v243 = vld [vmem:[%s1 + $0x718] sm:$0xff]
    %v244 = vld [vmem:[%s1 + $0x720] sm:$0xff]
    %v245 = vld [vmem:[%s1 + $0x728] sm:$0xff]
    %v246 = vld [vmem:[%s1 + $0x730] sm:$0xff]
    %v247 = vld [vmem:[%s1 + $0x738] sm:$0xff]
    %v248 = vld [vmem:[%s1 + $0x740] sm:$0xff]
    %v249 = vld [vmem:[%s1 + $0x748] sm:$0xff]
    %v250 = vld [vmem:[%s1 + $0x750] sm:$0xff]
    %v251 = vld [vmem:[%s1 + $0x758] sm:$0xff]
    %v252 = vld [vmem:[%s1 + $0x760] sm:$0xff]
    %v253 = vld [vmem:[%s1 + $0x768] sm:$0xff]
    %v254 = vld [vmem:[%s1 + $0x770] sm:$0xff]
    %v255 = vld [vmem:[%s1 + $0x778] sm:$0xff]
    %v256 = vld [vmem:[%s1 + $0x780] sm:$0xff]
    %v257 = vld [vmem:[%s1 + $0x788] sm:$0xff]
    %v258 = vld [vmem:[%s1 + $0x790] sm:$0xff]
    %v259 = vld [vmem:[%s1 + $0x798] sm:$0xff]
    %v260 = vld [vmem:[%s1 + $0x7a0] sm:$0xff]
    %v261 = vld [vmem:[%s1 + $0x7a8] sm:$0xff]
    %v262 = vld [vmem:[%s1 + $0x7b0] sm:$0xff]
    %v263 = vld [vmem:[%s1 + $0x7b8] sm:$0xff]
    %v264 = vld [vmem:[%s1 + $0x7c0] sm:$0xff]
    %v265 = vld [vmem:[%s1 + $0x7c8] sm:$0xff]
    %v266 = vld [vmem:[%s1 + $0x7d0] sm:$0xff]
    %v267 = vld [vmem:[%s1 + $0x7d8] sm:$0xff]
    %v268 = vld [vmem:[%s1 + $0x7e0] sm:$0xff]
    %v269 = vld [vmem:[%s1 + $0x7e8] sm:$0xff]
    %v270 = vld [vmem:[%s1 + $0x7f0] sm:$0xff]
    %v271 = vld [vmem:[%s1 + $0x7f8] sm:$0xff]
    %v272 = vld [vmem:[%s1 + $0x800] sm:$0xff]
    %v273 = vld [vmem:[%s1 + $0x808] sm:$0xff]
    %v274 = vld [vmem:[%s1 + $0x810] sm:$0xff]
    %v275 = vld [vmem:[%s1 + $0x818] sm:$0xff]
    %v276 = vld [vmem:[%s1 + $0x820] sm:$0xff]
    %v277 = vld [vmem:[%s1 + $0x828] sm:$0xff]
    %v278 = vld [vmem:[%s1 + $0x830] sm:$0xff]
    %v279 = vld [vmem:[%s1 + $0x838] sm:$0xff]
    %v280 = vld [vmem:[%s1 + $0x840] sm:$0xff]
    %v281 = vld [vmem:[%s1 + $0x848] sm:$0xff]
    %v282 = vld [vmem:[%s1 + $0x850] sm:$0xff]
    %v283 = vld [vmem:[%s1 + $0x858] sm:$0xff]
    %v284 = vld [vmem:[%s1 + $0x860] sm:$0xff]
    %v285 = vld [vmem:[%s1 + $0x868] sm:$0xff]
    %v286 = vld [vmem:[%s1 + $0x870] sm:$0xff]
    %v287 = vld [vmem:[%s1 + $0x878] sm:$0xff]
    %v288 = vld [vmem:[%s1 + $0x880] sm:$0xff]
    %v289 = vld [vmem:[%s1 + $0x888] sm:$0xff]
    %v290 = vld [vmem:[%s1 + $0x890] sm:$0xff]
    %v291 = vld [vmem:[%s1 + $0x898] sm:$0xff]
    %v292 = vld [vmem:[%s1 + $0x8a0] sm:$0xff]
    %v293 = vld [vmem:[%s1 + $0x8a8] sm:$0xff]
    %v294 = vld [vmem:[%s1 + $0x8b0] sm:$0xff]
    %v295 = vld [vmem:[%s1 + $0x8b8] sm:$0xff]
    %v296 = vld [vmem:[%s1 + $0x8c0] sm:$0xff]
    %v297 = vld [vmem:[%s1 + $0x8c8] sm:$0xff]
    %v298 = vld [vmem:[%s1 + $0x8d0] sm:$0xff]
    %v299 = vld [vmem:[%s1 + $0x8d8] sm:$0xff]
    %v300 = vld [vmem:[%s1 + $0x8e0] sm:$0xff]
    %v301 = vld [vmem:[%s1 + $0x8e8] sm:$0xff]
    %v302 = vld [vmem:[%s1 + $0x8f0] sm:$0xff]
    %v303 = vld [vmem:[%s1 + $0x8f8] sm:$0xff]
    %v304 = vld [vmem:[%s1 + $0x900] sm:$0xff]
    %v305 = vld [vmem:[%s1 + $0x908] sm:$0xff]
    %v306 = vld [vmem:[%s1 + $0x910] sm:$0xff]
    %v307 = vld [vmem:[%s1 + $0x918] sm:$0xff]
    %v308 = vld [vmem:[%s1 + $0x920] sm:$0xff]
    %v309 = vld [vmem:[%s1 + $0x928] sm:$0xff]
    %v310 = vld [vmem:[%s1 + $0x930] sm:$0xff]
    %v311 = vld [vmem:[%s1 + $0x938] sm:$0xff]
    %v312 = vld [vmem:[%s1 + $0x940] sm:$0xff]
    %v313 = vld [vmem:[%s1 + $0x948] sm:$0xff]
    %v314 = vld [vmem:[%s1 + $0x950] sm:$0xff]
    %v315 = vld [vmem:[%s1 + $0x958] sm:$0xff]
    %v316 = vld [vmem:[%s1 + $0x960] sm:$0xff]
    %v317 = vld [vmem:[%s1 + $0x968] sm:$0xff]
    %v318 = vld [vmem:[%s1 + $0x970] sm:$0xff]
    %v319 = vld [vmem:[%s1 + $0x978] sm:$0xff]
    %v320 = vld [vmem:[%s1 + $0x980] sm:$0xff]
    %v321 = vld [vmem:[%s1 + $0x988] sm:$0xff]
    %v322 = vld [vmem:[%s1 + $0x990] sm:$0xff]
    %v323 = vld [vmem:[%s1 + $0x998] sm:$0xff]
    %v324 = vld [vmem:[%s1 + $0x9a0] sm:$0xff]
    %v325 = vld [vmem:[%s1 + $0x9a8] sm:$0xff]
    %v326 = vld [vmem:[%s1 + $0x9b0] sm:$0xff]
    %v327 = vld [vmem:[%s1 + $0x9b8] sm:$0xff]
    %v328 = vld [vmem:[%s1 + $0x9c0] sm:$0xff]
    %v329 = vld [vmem:[%s1 + $0x9c8] sm:$0xff]
    %v330 = vld [vmem:[%s1 + $0x9d0] sm:$0xff]
    %v331 = vld [vmem:[%s1 + $0x9d8] sm:$0xff]
    %v332 = vld [vmem:[%s1 + $0x9e0] sm:$0xff]
    %v333 = vld [vmem:[%s1 + $0x9e8] sm:$0xff]
    %v334 = vld [vmem:[%s1 + $0x9f0] sm:$0xff]
    %v335 = vld [vmem:[%s1 + $0x9f8] sm:$0xff]
    %v336 = vld [vmem:[%s1 + $0xa00] sm:$0xff]
    %v337 = vld [vmem:[%s1 + $0xa08] sm:$0xff]
    %v338 = vld [vmem:[%s1 + $0xa10] sm:$0xff]
    %v339 = vld [vmem:[%s1 + $0xa18] sm:$0xff]
    %v340 = vld [vmem:[%s1 + $0xa20] sm:$0xff]
    %v341 = vld [vmem:[%s1 + $0xa28] sm:$0xff]
    %v342 = vld [vmem:[%s1 + $0xa30] sm:$0xff]
    %v343 = vld [vmem:[%s1 + $0xa38] sm:$0xff]
    %v344 = vld [vmem:[%s1 + $0xa40] sm:$0xff]
    %v345 = vld [vmem:[%s1 + $0xa48] sm:$0xff]
    %v346 = vld [vmem:[%s1 + $0xa50] sm:$0xff]
    %v347 = vld [vmem:[%s1 + $0xa58] sm:$0xff]
    %v348 = vld [vmem:[%s1 + $0xa60] sm:$0xff]
    %v349 = vld [vmem:[%s1 + $0xa68] sm:$0xff]
    %v350 = vld [vmem:[%s1 + $0xa70] sm:$0xff]
    %v351 = vld [vmem:[%s1 + $0xa78] sm:$0xff]
    %v352 = vld [vmem:[%s1 + $0xa80] sm:$0xff]
    %v353 = vld [vmem:[%s1 + $0xa88] sm:$0xff]
    %v354 = vld [vmem:[%s1 + $0xa90] sm:$0xff]
    %v355 = vld [vmem:[%s1 + $0xa98] sm:$0xff]
    %v356 = vld [vmem:[%s1 + $0xaa0] sm:$0xff]
    %v357 = vld [vmem:[%s1 + $0xaa8] sm:$0xff]
    %v358 = vld [vmem:[%s1 + $0xab0] sm:$0xff]
    %v359 = vld [vmem:[%s1 + $0xab8] sm:$0xff]
    %v360 = vld [vmem:[%s1 + $0xac0] sm:$0xff]
    %v361 = vld [vmem:[%s1 + $0xac8] sm:$0xff]
    %v362 = vld [vmem:[%s1 + $0xad0] sm:$0xff]
    %v363 = vld [vmem:[%s1 + $0xad8] sm:$0xff]
    %v364 = vld [vmem:[%s1 + $0xae0] sm:$0xff]
    %v365 = vld [vmem:[%s1 + $0xae8] sm:$0xff]
    %v366 = vld [vmem:[%s1 + $0xaf0] sm:$0xff]
    %v367 = vld [vmem:[%s1 + $0xaf8] sm:$0xff]
    %v368 = vld [vmem:[%s1 + $0xb00] sm:$0xff]
    %v369 = vld [vmem:[%s1 + $0xb08] sm:$0xff]
    %v370 = vld [vmem:[%s1 + $0xb10] sm:$0xff]
    %v371 = vld [vmem:[%s1 + $0xb18] sm:$0xff]
    %v372 = vld [vmem:[%s1 + $0xb20] sm:$0xff]
    %v373 = vld [vmem:[%s1 + $0xb28] sm:$0xff]
    %v374 = vld [vmem:[%s1 + $0xb30] sm:$0xff]
    %v375 = vld [vmem:[%s1 + $0xb38] sm:$0xff]
    %v376 = vld [vmem:[%s1 + $0xb40] sm:$0xff]
    %v377 = vld [vmem:[%s1 + $0xb48] sm:$0xff]
    %v378 = vld [vmem:[%s1 + $0xb50] sm:$0xff]
    %v379 = vld [vmem:[%s1 + $0xb58] sm:$0xff]
    %v380 = vld [vmem:[%s1 + $0xb60] sm:$0xff]
    %v381 = vld [vmem:[%s1 + $0xb68] sm:$0xff]
    %v382 = vld [vmem:[%s1 + $0xb70] sm:$0xff]
    %v383 = vld [vmem:[%s1 + $0xb78] sm:$0xff]
    %v384 = vld [vmem:[%s1 + $0xb80] sm:$0xff]
    %v385 = vld [vmem:[%s1 + $0xb88] sm:$0xff]
    %v386 = vld [vmem:[%s1 + $0xb90] sm:$0xff]
    %v387 = vld [vmem:[%s1 + $0xb98] sm:$0xff]
    %v388 = vld [vmem:[%s1 + $0xba0] sm:$0xff]
    %v389 = vld [vmem:[%s1 + $0xba8] sm:$0xff]
    %v390 = vld [vmem:[%s1 + $0xbb0] sm:$0xff]
    %v391 = vld [vmem:[%s1 + $0xbb8] sm:$0xff]
    %v392 = vld [vmem:[%s1 + $0xbc0] sm:$0xff]
    %v393 = vld [vmem:[%s1 + $0xbc8] sm:$0xff]
    %v394 = vld [vmem:[%s1 + $0xbd0] sm:$0xff]
    %v395 = vld [vmem:[%s1 + $0xbd8] sm:$0xff]
    %v396 = vld [vmem:[%s1 + $0xbe0] sm:$0xff]
    %v397 = vld [vmem:[%s1 + $0xbe8] sm:$0xff]
    %v398 = vld [vmem:[%s1 + $0xbf0] sm:$0xff]
    %v399 = vld [vmem:[%s1 + $0xbf8] sm:$0xff]
    %v400 = vld [vmem:[%s1 + $0xc00] sm:$0xff]
    %v401 = vld [vmem:[%s1 + $0xc08] sm:$0xff]
    %v402 = vld [vmem:[%s1 + $0xc10] sm:$0xff]
    %v403 = vld [vmem:[%s1 + $0xc18] sm:$0xff]
    %v404 = vld [vmem:[%s1 + $0xc20] sm:$0xff]
    %v405 = vld [vmem:[%s1 + $0xc28] sm:$0xff]
    %v406 = vld [vmem:[%s1 + $0xc30] sm:$0xff]
    %v407 = vld [vmem:[%s1 + $0xc38] sm:$0xff]
    %v408 = vld [vmem:[%s1 + $0xc40] sm:$0xff]
    %v409 = vld [vmem:[%s1 + $0xc48] sm:$0xff]
    %v410 = vld [vmem:[%s1 + $0xc50] sm:$0xff]
    %v411 = vld [vmem:[%s1 + $0xc58] sm:$0xff]
    %v412 = vld [vmem:[%s1 + $0xc60] sm:$0xff]
    %v413 = vld [vmem:[%s1 + $0xc68] sm:$0xff]
    %v414 = vld [vmem:[%s1 + $0xc70] sm:$0xff]
    %v415 = vld [vmem:[%s1 + $0xc78] sm:$0xff]
    %v416 = vld [vmem:[%s1 + $0xc80] sm:$0xff]
    %v417 = vld [vmem:[%s1 + $0xc88] sm:$0xff]
    %v418 = vld [vmem:[%s1 + $0xc90] sm:$0xff]
    %v419 = vld [vmem:[%s1 + $0xc98] sm:$0xff]
    %v420 = vld [vmem:[%s1 + $0xca0] sm:$0xff]
    %v421 = vld [vmem:[%s1 + $0xca8] sm:$0xff]
    %v422 = vld [vmem:[%s1 + $0xcb0] sm:$0xff]
    %v423 = vld [vmem:[%s1 + $0xcb8] sm:$0xff]
    %v424 = vld [vmem:[%s1 + $0xcc0] sm:$0xff]
    %v425 = vld [vmem:[%s1 + $0xcc8] sm:$0xff]
    %v426 = vld [vmem:[%s1 + $0xcd0] sm:$0xff]
    %v427 = vld [vmem:[%s1 + $0xcd8] sm:$0xff]
    %v428 = vld [vmem:[%s1 + $0xce0] sm:$0xff]
    %v429 = vld [vmem:[%s1 + $0xce8] sm:$0xff]
    %v430 = vld [vmem:[%s1 + $0xcf0] sm:$0xff]
    %v431 = vld [vmem:[%s1 + $0xcf8] sm:$0xff]
    %v432 = vld [vmem:[%s2] sm:$0xff]
    %v433 = vld [vmem:[%s2 + $0x8] sm:$0xff]
    %v434 = vld [vmem:[%s2 + $0x10] sm:$0xff]
    %v435 = vld [vmem:[%s2 + $0x18] sm:$0xff]
    %v436 = vld [vmem:[%s2 + $0x20] sm:$0xff]
    %v437 = vld [vmem:[%s2 + $0x28] sm:$0xff]
    %v438 = vld [vmem:[%s2 + $0x30] sm:$0xff]
    %v439 = vld [vmem:[%s2 + $0x38] sm:$0xff]
    %441 = vset.pattern.permute.xlu0 0
    %442 = vperm.xlu0 %441, %v432
    %v443 = vpop.permute.xlu0 %442
    %446 = vset.pattern.permute.xlu0 0
    %447 = vperm.xlu0 %446, %v433
    %v448 = vpop.permute.xlu0 %447
    %451 = vset.pattern.permute.xlu0 0
    %452 = vperm.xlu0 %451, %v434
    %v453 = vpop.permute.xlu0 %452
    %456 = vset.pattern.permute.xlu0 0
    %457 = vperm.xlu0 %456, %v435
    %v458 = vpop.permute.xlu0 %457
    %461 = vset.pattern.permute.xlu0 0
    %462 = vperm.xlu0 %461, %v436
    %v463 = vpop.permute.xlu0 %462
    %466 = vset.pattern.permute.xlu0 0
    %467 = vperm.xlu0 %466, %v437
    %v468 = vpop.permute.xlu0 %467
    %471 = vset.pattern.permute.xlu0 0
    %472 = vperm.xlu0 %471, %v438
    %v473 = vpop.permute.xlu0 %472
    %476 = vset.pattern.permute.xlu0 0
    %477 = vperm.xlu0 %476, %v439
    %v478 = vpop.permute.xlu0 %477
    %v480 = vld [vmem:[%s0] sm:$0xff]
    %v481 = vld [vmem:[%s0 + $0x8] sm:$0xff]
    %v482 = vld [vmem:[%s0 + $0x10] sm:$0xff]
    %v483 = vld [vmem:[%s0 + $0x18] sm:$0xff]
    %v484 = vld [vmem:[%s0 + $0x20] sm:$0xff]
    %v485 = vld [vmem:[%s0 + $0x28] sm:$0xff]
    %v486 = vld [vmem:[%s0 + $0x30] sm:$0xff]
    %v487 = vld [vmem:[%s0 + $0x38] sm:$0xff]
    %v488 = vld [vmem:[%s0 + $0x40] sm:$0xff]
    %v489 = vld [vmem:[%s0 + $0x48] sm:$0xff]
    %v490 = vld [vmem:[%s0 + $0x50] sm:$0xff]
    %v491 = vld [vmem:[%s0 + $0x58] sm:$0xff]
    %v492 = vld [vmem:[%s0 + $0x60] sm:$0xff]
    %v493 = vld [vmem:[%s0 + $0x68] sm:$0xff]
    %v494 = vld [vmem:[%s0 + $0x70] sm:$0xff]
    %v495 = vld [vmem:[%s0 + $0x78] sm:$0xff]
    %v496 = vld [vmem:[%s0 + $0x80] sm:$0xff]
    %v497 = vld [vmem:[%s0 + $0x88] sm:$0xff]
    %v498 = vld [vmem:[%s0 + $0x90] sm:$0xff]
    %v499 = vld [vmem:[%s0 + $0x98] sm:$0xff]
    %v500 = vld [vmem:[%s0 + $0xa0] sm:$0xff]
    %v501 = vld [vmem:[%s0 + $0xa8] sm:$0xff]
    %v502 = vld [vmem:[%s0 + $0xb0] sm:$0xff]
    %v503 = vld [vmem:[%s0 + $0xb8] sm:$0xff]
    %v504 = vld [vmem:[%s0 + $0xc0] sm:$0xff]
    %v505 = vld [vmem:[%s0 + $0xc8] sm:$0xff]
    %v506 = vld [vmem:[%s0 + $0xd0] sm:$0xff]
    %v507 = vld [vmem:[%s0 + $0xd8] sm:$0xff]
    %v508 = vld [vmem:[%s0 + $0xe0] sm:$0xff]
    %v509 = vld [vmem:[%s0 + $0xe8] sm:$0xff]
    %v510 = vld [vmem:[%s0 + $0xf0] sm:$0xff]
    %v511 = vld [vmem:[%s0 + $0xf8] sm:$0xff]
    %v512 = vld [vmem:[%s0 + $0x100] sm:$0xff]
    %v513 = vld [vmem:[%s0 + $0x108] sm:$0xff]
    %v514 = vld [vmem:[%s0 + $0x110] sm:$0xff]
    %v515 = vld [vmem:[%s0 + $0x118] sm:$0xff]
    %v516 = vld [vmem:[%s0 + $0x120] sm:$0xff]
    %v517 = vld [vmem:[%s0 + $0x128] sm:$0xff]
    %v518 = vld [vmem:[%s0 + $0x130] sm:$0xff]
    %v519 = vld [vmem:[%s0 + $0x138] sm:$0xff]
    %v520 = vld [vmem:[%s0 + $0x140] sm:$0xff]
    %v521 = vld [vmem:[%s0 + $0x148] sm:$0xff]
    %v522 = vld [vmem:[%s0 + $0x150] sm:$0xff]
    %v523 = vld [vmem:[%s0 + $0x158] sm:$0xff]
    %v524 = vld [vmem:[%s0 + $0x160] sm:$0xff]
    %v525 = vld [vmem:[%s0 + $0x168] sm:$0xff]
    %v526 = vld [vmem:[%s0 + $0x170] sm:$0xff]
    %v527 = vld [vmem:[%s0 + $0x178] sm:$0xff]
    %v528 = vld [vmem:[%s0 + $0x180] sm:$0xff]
    %v529 = vld [vmem:[%s0 + $0x188] sm:$0xff]
    %v530 = vld [vmem:[%s0 + $0x190] sm:$0xff]
    %v531 = vld [vmem:[%s0 + $0x198] sm:$0xff]
    %v532 = vld [vmem:[%s0 + $0x1a0] sm:$0xff]
    %v533 = vld [vmem:[%s0 + $0x1a8] sm:$0xff]
    %v534 = vld [vmem:[%s0 + $0x1b0] sm:$0xff]
    %v535 = vld [vmem:[%s0 + $0x1b8] sm:$0xff]
    %v536 = vld [vmem:[%s0 + $0x1c0] sm:$0xff]
    %v537 = vld [vmem:[%s0 + $0x1c8] sm:$0xff]
    %v538 = vld [vmem:[%s0 + $0x1d0] sm:$0xff]
    %v539 = vld [vmem:[%s0 + $0x1d8] sm:$0xff]
    %v540 = vld [vmem:[%s0 + $0x1e0] sm:$0xff]
    %v541 = vld [vmem:[%s0 + $0x1e8] sm:$0xff]
    %v542 = vld [vmem:[%s0 + $0x1f0] sm:$0xff]
    %v543 = vld [vmem:[%s0 + $0x1f8] sm:$0xff]
    %v544 = vld [vmem:[%s0 + $0x200] sm:$0xff]
    %v545 = vld [vmem:[%s0 + $0x208] sm:$0xff]
    %v546 = vld [vmem:[%s0 + $0x210] sm:$0xff]
    %v547 = vld [vmem:[%s0 + $0x218] sm:$0xff]
    %v548 = vld [vmem:[%s0 + $0x220] sm:$0xff]
    %v549 = vld [vmem:[%s0 + $0x228] sm:$0xff]
    %v550 = vld [vmem:[%s0 + $0x230] sm:$0xff]
    %v551 = vld [vmem:[%s0 + $0x238] sm:$0xff]
    %v552 = vld [vmem:[%s0 + $0x240] sm:$0xff]
    %v553 = vld [vmem:[%s0 + $0x248] sm:$0xff]
    %v554 = vld [vmem:[%s0 + $0x250] sm:$0xff]
    %v555 = vld [vmem:[%s0 + $0x258] sm:$0xff]
    %v556 = vld [vmem:[%s0 + $0x260] sm:$0xff]
    %v557 = vld [vmem:[%s0 + $0x268] sm:$0xff]
    %v558 = vld [vmem:[%s0 + $0x270] sm:$0xff]
    %v559 = vld [vmem:[%s0 + $0x278] sm:$0xff]
    %v560 = vld [vmem:[%s0 + $0x280] sm:$0xff]
    %v561 = vld [vmem:[%s0 + $0x288] sm:$0xff]
    %v562 = vld [vmem:[%s0 + $0x290] sm:$0xff]
    %v563 = vld [vmem:[%s0 + $0x298] sm:$0xff]
    %v564 = vld [vmem:[%s0 + $0x2a0] sm:$0xff]
    %v565 = vld [vmem:[%s0 + $0x2a8] sm:$0xff]
    %v566 = vld [vmem:[%s0 + $0x2b0] sm:$0xff]
    %v567 = vld [vmem:[%s0 + $0x2b8] sm:$0xff]
    %v568 = vld [vmem:[%s0 + $0x2c0] sm:$0xff]
    %v569 = vld [vmem:[%s0 + $0x2c8] sm:$0xff]
    %v570 = vld [vmem:[%s0 + $0x2d0] sm:$0xff]
    %v571 = vld [vmem:[%s0 + $0x2d8] sm:$0xff]
    %v572 = vld [vmem:[%s0 + $0x2e0] sm:$0xff]
    %v573 = vld [vmem:[%s0 + $0x2e8] sm:$0xff]
    %v574 = vld [vmem:[%s0 + $0x2f0] sm:$0xff]
    %v575 = vld [vmem:[%s0 + $0x2f8] sm:$0xff]
    %v576 = vld [vmem:[%s0 + $0x300] sm:$0xff]
    %v577 = vld [vmem:[%s0 + $0x308] sm:$0xff]
    %v578 = vld [vmem:[%s0 + $0x310] sm:$0xff]
    %v579 = vld [vmem:[%s0 + $0x318] sm:$0xff]
    %v580 = vld [vmem:[%s0 + $0x320] sm:$0xff]
    %v581 = vld [vmem:[%s0 + $0x328] sm:$0xff]
    %v582 = vld [vmem:[%s0 + $0x330] sm:$0xff]
    %v583 = vld [vmem:[%s0 + $0x338] sm:$0xff]
    %v584 = vld [vmem:[%s0 + $0x340] sm:$0xff]
    %v585 = vld [vmem:[%s0 + $0x348] sm:$0xff]
    %v586 = vld [vmem:[%s0 + $0x350] sm:$0xff]
    %v587 = vld [vmem:[%s0 + $0x358] sm:$0xff]
    %v588 = vld [vmem:[%s0 + $0x360] sm:$0xff]
    %v589 = vld [vmem:[%s0 + $0x368] sm:$0xff]
    %v590 = vld [vmem:[%s0 + $0x370] sm:$0xff]
    %v591 = vld [vmem:[%s0 + $0x378] sm:$0xff]
    %v592 = vld [vmem:[%s0 + $0x380] sm:$0xff]
    %v593 = vld [vmem:[%s0 + $0x388] sm:$0xff]
    %v594 = vld [vmem:[%s0 + $0x390] sm:$0xff]
    %v595 = vld [vmem:[%s0 + $0x398] sm:$0xff]
    %v596 = vld [vmem:[%s0 + $0x3a0] sm:$0xff]
    %v597 = vld [vmem:[%s0 + $0x3a8] sm:$0xff]
    %v598 = vld [vmem:[%s0 + $0x3b0] sm:$0xff]
    %v599 = vld [vmem:[%s0 + $0x3b8] sm:$0xff]
    %v600 = vld [vmem:[%s0 + $0x3c0] sm:$0xff]
    %v601 = vld [vmem:[%s0 + $0x3c8] sm:$0xff]
    %v602 = vld [vmem:[%s0 + $0x3d0] sm:$0xff]
    %v603 = vld [vmem:[%s0 + $0x3d8] sm:$0xff]
    %v604 = vld [vmem:[%s0 + $0x3e0] sm:$0xff]
    %v605 = vld [vmem:[%s0 + $0x3e8] sm:$0xff]
    %v606 = vld [vmem:[%s0 + $0x3f0] sm:$0xff]
    %v607 = vld [vmem:[%s0 + $0x3f8] sm:$0xff]
    %v608 = vld [vmem:[%s0 + $0x400] sm:$0xff]
    %v609 = vld [vmem:[%s0 + $0x408] sm:$0xff]
    %v610 = vld [vmem:[%s0 + $0x410] sm:$0xff]
    %v611 = vld [vmem:[%s0 + $0x418] sm:$0xff]
    %v612 = vld [vmem:[%s0 + $0x420] sm:$0xff]
    %v613 = vld [vmem:[%s0 + $0x428] sm:$0xff]
    %v614 = vld [vmem:[%s0 + $0x430] sm:$0xff]
    %v615 = vld [vmem:[%s0 + $0x438] sm:$0xff]
    %v616 = vld [vmem:[%s0 + $0x440] sm:$0xff]
    %v617 = vld [vmem:[%s0 + $0x448] sm:$0xff]
    %v618 = vld [vmem:[%s0 + $0x450] sm:$0xff]
    %v619 = vld [vmem:[%s0 + $0x458] sm:$0xff]
    %v620 = vld [vmem:[%s0 + $0x460] sm:$0xff]
    %v621 = vld [vmem:[%s0 + $0x468] sm:$0xff]
    %v622 = vld [vmem:[%s0 + $0x470] sm:$0xff]
    %v623 = vld [vmem:[%s0 + $0x478] sm:$0xff]
    %v624 = vld [vmem:[%s0 + $0x480] sm:$0xff]
    %v625 = vld [vmem:[%s0 + $0x488] sm:$0xff]
    %v626 = vld [vmem:[%s0 + $0x490] sm:$0xff]
    %v627 = vld [vmem:[%s0 + $0x498] sm:$0xff]
    %v628 = vld [vmem:[%s0 + $0x4a0] sm:$0xff]
    %v629 = vld [vmem:[%s0 + $0x4a8] sm:$0xff]
    %v630 = vld [vmem:[%s0 + $0x4b0] sm:$0xff]
    %v631 = vld [vmem:[%s0 + $0x4b8] sm:$0xff]
    %v632 = vld [vmem:[%s0 + $0x4c0] sm:$0xff]
    %v633 = vld [vmem:[%s0 + $0x4c8] sm:$0xff]
    %v634 = vld [vmem:[%s0 + $0x4d0] sm:$0xff]
    %v635 = vld [vmem:[%s0 + $0x4d8] sm:$0xff]
    %v636 = vld [vmem:[%s0 + $0x4e0] sm:$0xff]
    %v637 = vld [vmem:[%s0 + $0x4e8] sm:$0xff]
    %v638 = vld [vmem:[%s0 + $0x4f0] sm:$0xff]
    %v639 = vld [vmem:[%s0 + $0x4f8] sm:$0xff]
    %v640 = vld [vmem:[%s0 + $0x500] sm:$0xff]
    %v641 = vld [vmem:[%s0 + $0x508] sm:$0xff]
    %v642 = vld [vmem:[%s0 + $0x510] sm:$0xff]
    %v643 = vld [vmem:[%s0 + $0x518] sm:$0xff]
    %v644 = vld [vmem:[%s0 + $0x520] sm:$0xff]
    %v645 = vld [vmem:[%s0 + $0x528] sm:$0xff]
    %v646 = vld [vmem:[%s0 + $0x530] sm:$0xff]
    %v647 = vld [vmem:[%s0 + $0x538] sm:$0xff]
    %v648 = vld [vmem:[%s0 + $0x540] sm:$0xff]
    %v649 = vld [vmem:[%s0 + $0x548] sm:$0xff]
    %v650 = vld [vmem:[%s0 + $0x550] sm:$0xff]
    %v651 = vld [vmem:[%s0 + $0x558] sm:$0xff]
    %v652 = vld [vmem:[%s0 + $0x560] sm:$0xff]
    %v653 = vld [vmem:[%s0 + $0x568] sm:$0xff]
    %v654 = vld [vmem:[%s0 + $0x570] sm:$0xff]
    %v655 = vld [vmem:[%s0 + $0x578] sm:$0xff]
    %v656 = vld [vmem:[%s0 + $0x580] sm:$0xff]
    %v657 = vld [vmem:[%s0 + $0x588] sm:$0xff]
    %v658 = vld [vmem:[%s0 + $0x590] sm:$0xff]
    %v659 = vld [vmem:[%s0 + $0x598] sm:$0xff]
    %v660 = vld [vmem:[%s0 + $0x5a0] sm:$0xff]
    %v661 = vld [vmem:[%s0 + $0x5a8] sm:$0xff]
    %v662 = vld [vmem:[%s0 + $0x5b0] sm:$0xff]
    %v663 = vld [vmem:[%s0 + $0x5b8] sm:$0xff]
    %v664 = vld [vmem:[%s0 + $0x5c0] sm:$0xff]
    %v665 = vld [vmem:[%s0 + $0x5c8] sm:$0xff]
    %v666 = vld [vmem:[%s0 + $0x5d0] sm:$0xff]
    %v667 = vld [vmem:[%s0 + $0x5d8] sm:$0xff]
    %v668 = vld [vmem:[%s0 + $0x5e0] sm:$0xff]
    %v669 = vld [vmem:[%s0 + $0x5e8] sm:$0xff]
    %v670 = vld [vmem:[%s0 + $0x5f0] sm:$0xff]
    %v671 = vld [vmem:[%s0 + $0x5f8] sm:$0xff]
    %v672 = vld [vmem:[%s0 + $0x600] sm:$0xff]
    %v673 = vld [vmem:[%s0 + $0x608] sm:$0xff]
    %v674 = vld [vmem:[%s0 + $0x610] sm:$0xff]
    %v675 = vld [vmem:[%s0 + $0x618] sm:$0xff]
    %v676 = vld [vmem:[%s0 + $0x620] sm:$0xff]
    %v677 = vld [vmem:[%s0 + $0x628] sm:$0xff]
    %v678 = vld [vmem:[%s0 + $0x630] sm:$0xff]
    %v679 = vld [vmem:[%s0 + $0x638] sm:$0xff]
    %v680 = vld [vmem:[%s0 + $0x640] sm:$0xff]
    %v681 = vld [vmem:[%s0 + $0x648] sm:$0xff]
    %v682 = vld [vmem:[%s0 + $0x650] sm:$0xff]
    %v683 = vld [vmem:[%s0 + $0x658] sm:$0xff]
    %v684 = vld [vmem:[%s0 + $0x660] sm:$0xff]
    %v685 = vld [vmem:[%s0 + $0x668] sm:$0xff]
    %v686 = vld [vmem:[%s0 + $0x670] sm:$0xff]
    %v687 = vld [vmem:[%s0 + $0x678] sm:$0xff]
    %v688 = vld [vmem:[%s0 + $0x680] sm:$0xff]
    %v689 = vld [vmem:[%s0 + $0x688] sm:$0xff]
    %v690 = vld [vmem:[%s0 + $0x690] sm:$0xff]
    %v691 = vld [vmem:[%s0 + $0x698] sm:$0xff]
    %v692 = vld [vmem:[%s0 + $0x6a0] sm:$0xff]
    %v693 = vld [vmem:[%s0 + $0x6a8] sm:$0xff]
    %v694 = vld [vmem:[%s0 + $0x6b0] sm:$0xff]
    %v695 = vld [vmem:[%s0 + $0x6b8] sm:$0xff]
    %v696 = vld [vmem:[%s0 + $0x6c0] sm:$0xff]
    %v697 = vld [vmem:[%s0 + $0x6c8] sm:$0xff]
    %v698 = vld [vmem:[%s0 + $0x6d0] sm:$0xff]
    %v699 = vld [vmem:[%s0 + $0x6d8] sm:$0xff]
    %v700 = vld [vmem:[%s0 + $0x6e0] sm:$0xff]
    %v701 = vld [vmem:[%s0 + $0x6e8] sm:$0xff]
    %v702 = vld [vmem:[%s0 + $0x6f0] sm:$0xff]
    %v703 = vld [vmem:[%s0 + $0x6f8] sm:$0xff]
    %v704 = vld [vmem:[%s0 + $0x700] sm:$0xff]
    %v705 = vld [vmem:[%s0 + $0x708] sm:$0xff]
    %v706 = vld [vmem:[%s0 + $0x710] sm:$0xff]
    %v707 = vld [vmem:[%s0 + $0x718] sm:$0xff]
    %v708 = vld [vmem:[%s0 + $0x720] sm:$0xff]
    %v709 = vld [vmem:[%s0 + $0x728] sm:$0xff]
    %v710 = vld [vmem:[%s0 + $0x730] sm:$0xff]
    %v711 = vld [vmem:[%s0 + $0x738] sm:$0xff]
    %v712 = vld [vmem:[%s0 + $0x740] sm:$0xff]
    %v713 = vld [vmem:[%s0 + $0x748] sm:$0xff]
    %v714 = vld [vmem:[%s0 + $0x750] sm:$0xff]
    %v715 = vld [vmem:[%s0 + $0x758] sm:$0xff]
    %v716 = vld [vmem:[%s0 + $0x760] sm:$0xff]
    %v717 = vld [vmem:[%s0 + $0x768] sm:$0xff]
    %v718 = vld [vmem:[%s0 + $0x770] sm:$0xff]
    %v719 = vld [vmem:[%s0 + $0x778] sm:$0xff]
    %v720 = vld [vmem:[%s0 + $0x780] sm:$0xff]
    %v721 = vld [vmem:[%s0 + $0x788] sm:$0xff]
    %v722 = vld [vmem:[%s0 + $0x790] sm:$0xff]
    %v723 = vld [vmem:[%s0 + $0x798] sm:$0xff]
    %v724 = vld [vmem:[%s0 + $0x7a0] sm:$0xff]
    %v725 = vld [vmem:[%s0 + $0x7a8] sm:$0xff]
    %v726 = vld [vmem:[%s0 + $0x7b0] sm:$0xff]
    %v727 = vld [vmem:[%s0 + $0x7b8] sm:$0xff]
    %v728 = vld [vmem:[%s0 + $0x7c0] sm:$0xff]
    %v729 = vld [vmem:[%s0 + $0x7c8] sm:$0xff]
    %v730 = vpack.c.bf16 %v482, %v480
    %v731 = vpack.c.bf16 %v483, %v481
    %v732 = vpack.c.bf16 %v486, %v484
    %v733 = vpack.c.bf16 %v487, %v485
    %v734 = vpack.c.bf16 %v490, %v488
    %v735 = vpack.c.bf16 %v491, %v489
    %v736 = vpack.c.bf16 %v494, %v492
    %v737 = vpack.c.bf16 %v495, %v493
    %v738 = vpack.c.bf16 %v498, %v496
    %v739 = vpack.c.bf16 %v499, %v497
    %v740 = vpack.c.bf16 %v502, %v500
    %v741 = vpack.c.bf16 %v503, %v501
    %v742 = vpack.c.bf16 %v506, %v504
    %v743 = vpack.c.bf16 %v507, %v505
    %v744 = vpack.c.bf16 %v510, %v508
    %v745 = vpack.c.bf16 %v511, %v509
    %v746 = vpack.c.bf16 %v514, %v512
    %v747 = vpack.c.bf16 %v515, %v513
    %v748 = vpack.c.bf16 %v518, %v516
    %v749 = vpack.c.bf16 %v519, %v517
    %v750 = vpack.c.bf16 %v522, %v520
    %v751 = vpack.c.bf16 %v523, %v521
    %v752 = vpack.c.bf16 %v526, %v524
    %v753 = vpack.c.bf16 %v527, %v525
    %v754 = vpack.c.bf16 %v530, %v528
    %v755 = vpack.c.bf16 %v531, %v529
    %v756 = vpack.c.bf16 %v534, %v532
    %v757 = vpack.c.bf16 %v535, %v533
    %v758 = vpack.c.bf16 %v538, %v536
    %v759 = vpack.c.bf16 %v539, %v537
    %v760 = vpack.c.bf16 %v542, %v540
    %v761 = vpack.c.bf16 %v543, %v541
    %v762 = vpack.c.bf16 %v546, %v544
    %v763 = vpack.c.bf16 %v547, %v545
    %v764 = vpack.c.bf16 %v550, %v548
    %v765 = vpack.c.bf16 %v551, %v549
    %v766 = vpack.c.bf16 %v554, %v552
    %v767 = vpack.c.bf16 %v555, %v553
    %v768 = vpack.c.bf16 %v558, %v556
    %v769 = vpack.c.bf16 %v559, %v557
    %v770 = vpack.c.bf16 %v562, %v560
    %v771 = vpack.c.bf16 %v563, %v561
    %v772 = vpack.c.bf16 %v566, %v564
    %v773 = vpack.c.bf16 %v567, %v565
    %v774 = vpack.c.bf16 %v570, %v568
    %v775 = vpack.c.bf16 %v571, %v569
    %v776 = vpack.c.bf16 %v574, %v572
    %v777 = vpack.c.bf16 %v575, %v573
    %v778 = vpack.c.bf16 %v578, %v576
    %v779 = vpack.c.bf16 %v579, %v577
    %v780 = vpack.c.bf16 %v582, %v580
    %v781 = vpack.c.bf16 %v583, %v581
    %v782 = vpack.c.bf16 %v586, %v584
    %v783 = vpack.c.bf16 %v587, %v585
    %v784 = vpack.c.bf16 %v590, %v588
    %v785 = vpack.c.bf16 %v591, %v589
    %v786 = vpack.c.bf16 %v594, %v592
    %v787 = vpack.c.bf16 %v595, %v593
    %v788 = vpack.c.bf16 %v598, %v596
    %v789 = vpack.c.bf16 %v599, %v597
    %v790 = vpack.c.bf16 %v602, %v600
    %v791 = vpack.c.bf16 %v603, %v601
    %v792 = vpack.c.bf16 %v606, %v604
    %v793 = vpack.c.bf16 %v607, %v605
    %v794 = vpack.c.bf16 %v610, %v608
    %v795 = vpack.c.bf16 %v611, %v609
    %v796 = vpack.c.bf16 %v614, %v612
    %v797 = vpack.c.bf16 %v615, %v613
    %v798 = vpack.c.bf16 %v618, %v616
    %v799 = vpack.c.bf16 %v619, %v617
    %v800 = vpack.c.bf16 %v622, %v620
    %v801 = vpack.c.bf16 %v623, %v621
    %v802 = vpack.c.bf16 %v626, %v624
    %v803 = vpack.c.bf16 %v627, %v625
    %v804 = vpack.c.bf16 %v630, %v628
    %v805 = vpack.c.bf16 %v631, %v629
    %v806 = vpack.c.bf16 %v634, %v632
    %v807 = vpack.c.bf16 %v635, %v633
    %v808 = vpack.c.bf16 %v638, %v636
    %v809 = vpack.c.bf16 %v639, %v637
    %v810 = vpack.c.bf16 %v642, %v640
    %v811 = vpack.c.bf16 %v643, %v641
    %v812 = vpack.c.bf16 %v646, %v644
    %v813 = vpack.c.bf16 %v647, %v645
    %v814 = vpack.c.bf16 %v650, %v648
    %v815 = vpack.c.bf16 %v651, %v649
    %v816 = vpack.c.bf16 %v654, %v652
    %v817 = vpack.c.bf16 %v655, %v653
    %v818 = vpack.c.bf16 %v658, %v656
    %v819 = vpack.c.bf16 %v659, %v657
    %v820 = vpack.c.bf16 %v662, %v660
    %v821 = vpack.c.bf16 %v663, %v661
    %v822 = vpack.c.bf16 %v666, %v664
    %v823 = vpack.c.bf16 %v667, %v665
    %v824 = vpack.c.bf16 %v670, %v668
    %v825 = vpack.c.bf16 %v671, %v669
    %v826 = vpack.c.bf16 %v674, %v672
    %v827 = vpack.c.bf16 %v675, %v673
    %v828 = vpack.c.bf16 %v678, %v676
    %v829 = vpack.c.bf16 %v679, %v677
    %v830 = vpack.c.bf16 %v682, %v680
    %v831 = vpack.c.bf16 %v683, %v681
    %v832 = vpack.c.bf16 %v686, %v684
    %v833 = vpack.c.bf16 %v687, %v685
    %v834 = vpack.c.bf16 %v690, %v688
    %v835 = vpack.c.bf16 %v691, %v689
    %v836 = vpack.c.bf16 %v694, %v692
    %v837 = vpack.c.bf16 %v695, %v693
    %v838 = vpack.c.bf16 %v698, %v696
    %v839 = vpack.c.bf16 %v699, %v697
    %v840 = vpack.c.bf16 %v702, %v700
    %v841 = vpack.c.bf16 %v703, %v701
    %v842 = vpack.c.bf16 %v706, %v704
    %v843 = vpack.c.bf16 %v707, %v705
    %v844 = vpack.c.bf16 %v710, %v708
    %v845 = vpack.c.bf16 %v711, %v709
    %v846 = vpack.c.bf16 %v714, %v712
    %v847 = vpack.c.bf16 %v715, %v713
    %v848 = vpack.c.bf16 %v718, %v716
    %v849 = vpack.c.bf16 %v719, %v717
    %v850 = vpack.c.bf16 %v722, %v720
    %v851 = vpack.c.bf16 %v723, %v721
    %v852 = vpack.c.bf16 %v726, %v724
    %v853 = vpack.c.bf16 %v727, %v725
    %v854 = vpack.c.bf16 %v728, %v728
    %v855 = vpack.c.bf16 %v729, %v729
    %v1272 = vunpack.c.l.b16 %v16
    %v1273 = vunpack.c.h.b16 %v16
    %v1274 = vunpack.c.l.b16 %v17
    %v1275 = vunpack.c.h.b16 %v17
    %v1276 = vunpack.c.l.b16 %v18
    %v1277 = vunpack.c.h.b16 %v18
    %v1278 = vunpack.c.l.b16 %v19
    %v1279 = vunpack.c.h.b16 %v19
    %v1280 = vunpack.c.l.b16 %v20
    %v1281 = vunpack.c.h.b16 %v20
    %v1282 = vunpack.c.l.b16 %v21
    %v1283 = vunpack.c.h.b16 %v21
    %v1284 = vunpack.c.l.b16 %v22
    %v1285 = vunpack.c.h.b16 %v22
    %v1286 = vunpack.c.l.b16 %v23
    %v1287 = vunpack.c.h.b16 %v23
    %v1288 = vunpack.c.l.b16 %v24
    %v1289 = vunpack.c.h.b16 %v24
    %v1290 = vunpack.c.l.b16 %v25
    %v1291 = vunpack.c.h.b16 %v25
    %v1292 = vunpack.c.l.b16 %v26
    %v1293 = vunpack.c.h.b16 %v26
    %v1294 = vunpack.c.l.b16 %v27
    %v1295 = vunpack.c.h.b16 %v27
    %v1296 = vunpack.c.l.b16 %v28
    %v1297 = vunpack.c.h.b16 %v28
    %v1298 = vunpack.c.l.b16 %v29
    %v1299 = vunpack.c.h.b16 %v29
    %v1300 = vunpack.c.l.b16 %v30
    %v1301 = vunpack.c.h.b16 %v30
    %v1302 = vunpack.c.l.b16 %v31
    %v1303 = vunpack.c.h.b16 %v31
    %v1304 = vunpack.c.l.b16 %v32
    %v1305 = vunpack.c.h.b16 %v32
    %v1306 = vunpack.c.l.b16 %v33
    %v1307 = vunpack.c.h.b16 %v33
    %v1308 = vunpack.c.l.b16 %v34
    %v1309 = vunpack.c.h.b16 %v34
    %v1310 = vunpack.c.l.b16 %v35
    %v1311 = vunpack.c.h.b16 %v35
    %v1312 = vunpack.c.l.b16 %v36
    %v1313 = vunpack.c.h.b16 %v36
    %v1314 = vunpack.c.l.b16 %v37
    %v1315 = vunpack.c.h.b16 %v37
    %v1316 = vunpack.c.l.b16 %v38
    %v1317 = vunpack.c.h.b16 %v38
    %v1318 = vunpack.c.l.b16 %v39
    %v1319 = vunpack.c.h.b16 %v39
    %v1320 = vunpack.c.l.b16 %v40
    %v1321 = vunpack.c.h.b16 %v40
    %v1322 = vunpack.c.l.b16 %v41
    %v1323 = vunpack.c.h.b16 %v41
    %v1324 = vunpack.c.l.b16 %v42
    %v1325 = vunpack.c.h.b16 %v42
    %v1326 = vunpack.c.l.b16 %v43
    %v1327 = vunpack.c.h.b16 %v43
    %v1328 = vunpack.c.l.b16 %v44
    %v1329 = vunpack.c.h.b16 %v44
    %v1330 = vunpack.c.l.b16 %v45
    %v1331 = vunpack.c.h.b16 %v45
    %v1332 = vunpack.c.l.b16 %v46
    %v1333 = vunpack.c.h.b16 %v46
    %v1334 = vunpack.c.l.b16 %v47
    %v1335 = vunpack.c.h.b16 %v47
    %v1336 = vunpack.c.l.b16 %v48
    %v1337 = vunpack.c.h.b16 %v48
    %v1338 = vunpack.c.l.b16 %v49
    %v1339 = vunpack.c.h.b16 %v49
    %v1340 = vunpack.c.l.b16 %v50
    %v1341 = vunpack.c.h.b16 %v50
    %v1342 = vunpack.c.l.b16 %v51
    %v1343 = vunpack.c.h.b16 %v51
    %v1344 = vunpack.c.l.b16 %v52
    %v1345 = vunpack.c.h.b16 %v52
    %v1346 = vunpack.c.l.b16 %v53
    %v1347 = vunpack.c.h.b16 %v53
    %v1348 = vunpack.c.l.b16 %v54
    %v1349 = vunpack.c.h.b16 %v54
    %v1350 = vunpack.c.l.b16 %v55
    %v1351 = vunpack.c.h.b16 %v55
    %v1352 = vunpack.c.l.b16 %v56
    %v1353 = vunpack.c.h.b16 %v56
    %v1354 = vunpack.c.l.b16 %v57
    %v1355 = vunpack.c.h.b16 %v57
    %v1356 = vunpack.c.l.b16 %v58
    %v1357 = vunpack.c.h.b16 %v58
    %v1358 = vunpack.c.l.b16 %v59
    %v1359 = vunpack.c.h.b16 %v59
    %v1360 = vunpack.c.l.b16 %v60
    %v1361 = vunpack.c.h.b16 %v60
    %v1362 = vunpack.c.l.b16 %v61
    %v1363 = vunpack.c.h.b16 %v61
    %v1364 = vunpack.c.l.b16 %v62
    %v1365 = vunpack.c.h.b16 %v62
    %v1366 = vunpack.c.l.b16 %v63
    %v1367 = vunpack.c.h.b16 %v63
    %v1368 = vunpack.c.l.b16 %v64
    %v1369 = vunpack.c.h.b16 %v64
    %v1370 = vunpack.c.l.b16 %v65
    %v1371 = vunpack.c.h.b16 %v65
    %v1372 = vunpack.c.l.b16 %v66
    %v1373 = vunpack.c.h.b16 %v66
    %v1374 = vunpack.c.l.b16 %v67
    %v1375 = vunpack.c.h.b16 %v67
    %v1376 = vunpack.c.l.b16 %v68
    %v1377 = vunpack.c.h.b16 %v68
    %v1378 = vunpack.c.l.b16 %v69
    %v1379 = vunpack.c.h.b16 %v69
    %v1380 = vunpack.c.l.b16 %v70
    %v1381 = vunpack.c.h.b16 %v70
    %v1382 = vunpack.c.l.b16 %v71
    %v1383 = vunpack.c.h.b16 %v71
    %v1384 = vunpack.c.l.b16 %v72
    %v1385 = vunpack.c.h.b16 %v72
    %v1386 = vunpack.c.l.b16 %v73
    %v1387 = vunpack.c.h.b16 %v73
    %v1388 = vunpack.c.l.b16 %v74
    %v1389 = vunpack.c.h.b16 %v74
    %v1390 = vunpack.c.l.b16 %v75
    %v1391 = vunpack.c.h.b16 %v75
    %v1392 = vunpack.c.l.b16 %v76
    %v1393 = vunpack.c.h.b16 %v76
    %v1394 = vunpack.c.l.b16 %v77
    %v1395 = vunpack.c.h.b16 %v77
    %v1396 = vunpack.c.l.b16 %v78
    %v1397 = vunpack.c.h.b16 %v78
    %v1398 = vunpack.c.l.b16 %v79
    %v1399 = vunpack.c.h.b16 %v79
    %v1400 = vunpack.c.l.b16 %v80
    %v1401 = vunpack.c.h.b16 %v80
    %v1402 = vunpack.c.l.b16 %v81
    %v1403 = vunpack.c.h.b16 %v81
    %v1404 = vunpack.c.l.b16 %v82
    %v1405 = vunpack.c.h.b16 %v82
    %v1406 = vunpack.c.l.b16 %v83
    %v1407 = vunpack.c.h.b16 %v83
    %v1408 = vunpack.c.l.b16 %v84
    %v1409 = vunpack.c.h.b16 %v84
    %v1410 = vunpack.c.l.b16 %v85
    %v1411 = vunpack.c.h.b16 %v85
    %v1412 = vunpack.c.l.b16 %v86
    %v1413 = vunpack.c.h.b16 %v86
    %v1414 = vunpack.c.l.b16 %v87
    %v1415 = vunpack.c.h.b16 %v87
    %v1416 = vunpack.c.l.b16 %v88
    %v1417 = vunpack.c.h.b16 %v88
    %v1418 = vunpack.c.l.b16 %v89
    %v1419 = vunpack.c.h.b16 %v89
    %v1420 = vunpack.c.l.b16 %v90
    %v1421 = vunpack.c.h.b16 %v90
    %v1422 = vunpack.c.l.b16 %v91
    %v1423 = vunpack.c.h.b16 %v91
    %v1424 = vunpack.c.l.b16 %v92
    %v1425 = vunpack.c.h.b16 %v92
    %v1426 = vunpack.c.l.b16 %v93
    %v1427 = vunpack.c.h.b16 %v93
    %v1428 = vunpack.c.l.b16 %v94
    %v1429 = vunpack.c.h.b16 %v94
    %v1430 = vunpack.c.l.b16 %v95
    %v1431 = vunpack.c.h.b16 %v95
    %v1432 = vunpack.c.l.b16 %v96
    %v1433 = vunpack.c.h.b16 %v96
    %v1434 = vunpack.c.l.b16 %v97
    %v1435 = vunpack.c.h.b16 %v97
    %v1436 = vunpack.c.l.b16 %v98
    %v1437 = vunpack.c.h.b16 %v98
    %v1438 = vunpack.c.l.b16 %v99
    %v1439 = vunpack.c.h.b16 %v99
    %v1440 = vunpack.c.l.b16 %v100
    %v1441 = vunpack.c.h.b16 %v100
    %v1442 = vunpack.c.l.b16 %v101
    %v1443 = vunpack.c.h.b16 %v101
    %v1444 = vunpack.c.l.b16 %v102
    %v1445 = vunpack.c.h.b16 %v102
    %v1446 = vunpack.c.l.b16 %v103
    %v1447 = vunpack.c.h.b16 %v103
    %v1448 = vunpack.c.l.b16 %v104
    %v1449 = vunpack.c.h.b16 %v104
    %v1450 = vunpack.c.l.b16 %v105
    %v1451 = vunpack.c.h.b16 %v105
    %v1452 = vunpack.c.l.b16 %v106
    %v1453 = vunpack.c.h.b16 %v106
    %v1454 = vunpack.c.l.b16 %v107
    %v1455 = vunpack.c.h.b16 %v107
    %v1456 = vunpack.c.l.b16 %v108
    %v1457 = vunpack.c.h.b16 %v108
    %v1458 = vunpack.c.l.b16 %v109
    %v1459 = vunpack.c.h.b16 %v109
    %v1460 = vunpack.c.l.b16 %v110
    %v1461 = vunpack.c.h.b16 %v110
    %v1462 = vunpack.c.l.b16 %v111
    %v1463 = vunpack.c.h.b16 %v111
    %v1464 = vunpack.c.l.b16 %v112
    %v1465 = vunpack.c.h.b16 %v112
    %v1466 = vunpack.c.l.b16 %v113
    %v1467 = vunpack.c.h.b16 %v113
    %v1468 = vunpack.c.l.b16 %v114
    %v1469 = vunpack.c.h.b16 %v114
    %v1470 = vunpack.c.l.b16 %v115
    %v1471 = vunpack.c.h.b16 %v115
    %v1472 = vunpack.c.l.b16 %v116
    %v1473 = vunpack.c.h.b16 %v116
    %v1474 = vunpack.c.l.b16 %v117
    %v1475 = vunpack.c.h.b16 %v117
    %v1476 = vunpack.c.l.b16 %v118
    %v1477 = vunpack.c.h.b16 %v118
    %v1478 = vunpack.c.l.b16 %v119
    %v1479 = vunpack.c.h.b16 %v119
    %v1480 = vunpack.c.l.b16 %v120
    %v1481 = vunpack.c.h.b16 %v120
    %v1482 = vunpack.c.l.b16 %v121
    %v1483 = vunpack.c.h.b16 %v121
    %v1484 = vunpack.c.l.b16 %v122
    %v1485 = vunpack.c.h.b16 %v122
    %v1486 = vunpack.c.l.b16 %v123
    %v1487 = vunpack.c.h.b16 %v123
    %v1488 = vunpack.c.l.b16 %v124
    %v1489 = vunpack.c.h.b16 %v124
    %v1490 = vunpack.c.l.b16 %v125
    %v1491 = vunpack.c.h.b16 %v125
    %v1492 = vunpack.c.l.b16 %v126
    %v1493 = vunpack.c.h.b16 %v126
    %v1494 = vunpack.c.l.b16 %v127
    %v1495 = vunpack.c.h.b16 %v127
    %v1496 = vunpack.c.l.b16 %v128
    %v1497 = vunpack.c.h.b16 %v128
    %v1498 = vunpack.c.l.b16 %v129
    %v1499 = vunpack.c.h.b16 %v129
    %v1500 = vunpack.c.l.b16 %v130
    %v1501 = vunpack.c.h.b16 %v130
    %v1502 = vunpack.c.l.b16 %v131
    %v1503 = vunpack.c.h.b16 %v131
    %v1504 = vunpack.c.l.b16 %v132
    %v1505 = vunpack.c.h.b16 %v132
    %v1506 = vunpack.c.l.b16 %v133
    %v1507 = vunpack.c.h.b16 %v133
    %v1508 = vunpack.c.l.b16 %v134
    %v1509 = vunpack.c.h.b16 %v134
    %v1510 = vunpack.c.l.b16 %v135
    %v1511 = vunpack.c.h.b16 %v135
    %v1512 = vunpack.c.l.b16 %v136
    %v1513 = vunpack.c.h.b16 %v136
    %v1514 = vunpack.c.l.b16 %v137
    %v1515 = vunpack.c.h.b16 %v137
    %v1516 = vunpack.c.l.b16 %v138
    %v1517 = vunpack.c.h.b16 %v138
    %v1518 = vunpack.c.l.b16 %v139
    %v1519 = vunpack.c.h.b16 %v139
    %v1520 = vunpack.c.l.b16 %v140
    %v1521 = vunpack.c.h.b16 %v140
    %v1522 = vunpack.c.l.b16 %v141
    %v1523 = vunpack.c.h.b16 %v141
    %v1524 = vunpack.c.l.b16 %v142
    %v1525 = vunpack.c.h.b16 %v142
    %v1526 = vunpack.c.l.b16 %v143
    %v1527 = vunpack.c.h.b16 %v143
    %v1528 = vunpack.c.l.b16 %v144
    %v1529 = vunpack.c.h.b16 %v144
    %v1530 = vunpack.c.l.b16 %v145
    %v1531 = vunpack.c.h.b16 %v145
    %v1532 = vunpack.c.l.b16 %v146
    %v1533 = vunpack.c.h.b16 %v146
    %v1534 = vunpack.c.l.b16 %v147
    %v1535 = vunpack.c.h.b16 %v147
    %v1536 = vunpack.c.l.b16 %v148
    %v1537 = vunpack.c.h.b16 %v148
    %v1538 = vunpack.c.l.b16 %v149
    %v1539 = vunpack.c.h.b16 %v149
    %v1540 = vunpack.c.l.b16 %v150
    %v1541 = vunpack.c.h.b16 %v150
    %v1542 = vunpack.c.l.b16 %v151
    %v1543 = vunpack.c.h.b16 %v151
    %v1544 = vunpack.c.l.b16 %v152
    %v1545 = vunpack.c.h.b16 %v152
    %v1546 = vunpack.c.l.b16 %v153
    %v1547 = vunpack.c.h.b16 %v153
    %v1548 = vunpack.c.l.b16 %v154
    %v1549 = vunpack.c.h.b16 %v154
    %v1550 = vunpack.c.l.b16 %v155
    %v1551 = vunpack.c.h.b16 %v155
    %v1552 = vunpack.c.l.b16 %v156
    %v1553 = vunpack.c.h.b16 %v156
    %v1554 = vunpack.c.l.b16 %v157
    %v1555 = vunpack.c.h.b16 %v157
    %v1556 = vunpack.c.l.b16 %v158
    %v1557 = vunpack.c.h.b16 %v158
    %v1558 = vunpack.c.l.b16 %v159
    %v1559 = vunpack.c.h.b16 %v159
    %v1560 = vunpack.c.l.b16 %v160
    %v1561 = vunpack.c.h.b16 %v160
    %v1562 = vunpack.c.l.b16 %v161
    %v1563 = vunpack.c.h.b16 %v161
    %v1564 = vunpack.c.l.b16 %v162
    %v1565 = vunpack.c.h.b16 %v162
    %v1566 = vunpack.c.l.b16 %v163
    %v1567 = vunpack.c.h.b16 %v163
    %v1568 = vunpack.c.l.b16 %v164
    %v1569 = vunpack.c.h.b16 %v164
    %v1570 = vunpack.c.l.b16 %v165
    %v1571 = vunpack.c.h.b16 %v165
    %v1572 = vunpack.c.l.b16 %v166
    %v1573 = vunpack.c.h.b16 %v166
    %v1574 = vunpack.c.l.b16 %v167
    %v1575 = vunpack.c.h.b16 %v167
    %v1576 = vunpack.c.l.b16 %v168
    %v1577 = vunpack.c.h.b16 %v168
    %v1578 = vunpack.c.l.b16 %v169
    %v1579 = vunpack.c.h.b16 %v169
    %v1580 = vunpack.c.l.b16 %v170
    %v1581 = vunpack.c.h.b16 %v170
    %v1582 = vunpack.c.l.b16 %v171
    %v1583 = vunpack.c.h.b16 %v171
    %v1584 = vunpack.c.l.b16 %v172
    %v1585 = vunpack.c.h.b16 %v172
    %v1586 = vunpack.c.l.b16 %v173
    %v1587 = vunpack.c.h.b16 %v173
    %v1588 = vunpack.c.l.b16 %v174
    %v1589 = vunpack.c.h.b16 %v174
    %v1590 = vunpack.c.l.b16 %v175
    %v1591 = vunpack.c.h.b16 %v175
    %v1592 = vunpack.c.l.b16 %v176
    %v1593 = vunpack.c.h.b16 %v176
    %v1594 = vunpack.c.l.b16 %v177
    %v1595 = vunpack.c.h.b16 %v177
    %v1596 = vunpack.c.l.b16 %v178
    %v1597 = vunpack.c.h.b16 %v178
    %v1598 = vunpack.c.l.b16 %v179
    %v1599 = vunpack.c.h.b16 %v179
    %v1600 = vunpack.c.l.b16 %v180
    %v1601 = vunpack.c.h.b16 %v180
    %v1602 = vunpack.c.l.b16 %v181
    %v1603 = vunpack.c.h.b16 %v181
    %v1604 = vunpack.c.l.b16 %v182
    %v1605 = vunpack.c.h.b16 %v182
    %v1606 = vunpack.c.l.b16 %v183
    %v1607 = vunpack.c.h.b16 %v183
    %v1608 = vunpack.c.l.b16 %v184
    %v1609 = vunpack.c.h.b16 %v184
    %v1610 = vunpack.c.l.b16 %v185
    %v1611 = vunpack.c.h.b16 %v185
    %v1612 = vunpack.c.l.b16 %v186
    %v1613 = vunpack.c.h.b16 %v186
    %v1614 = vunpack.c.l.b16 %v187
    %v1615 = vunpack.c.h.b16 %v187
    %v1616 = vunpack.c.l.b16 %v188
    %v1617 = vunpack.c.h.b16 %v188
    %v1618 = vunpack.c.l.b16 %v189
    %v1619 = vunpack.c.h.b16 %v189
    %v1620 = vunpack.c.l.b16 %v190
    %v1621 = vunpack.c.h.b16 %v190
    %v1622 = vunpack.c.l.b16 %v191
    %v1623 = vunpack.c.h.b16 %v191
    %v1624 = vunpack.c.l.b16 %v192
    %v1625 = vunpack.c.h.b16 %v192
    %v1626 = vunpack.c.l.b16 %v193
    %v1627 = vunpack.c.h.b16 %v193
    %v1628 = vunpack.c.l.b16 %v194
    %v1629 = vunpack.c.h.b16 %v194
    %v1630 = vunpack.c.l.b16 %v195
    %v1631 = vunpack.c.h.b16 %v195
    %v1632 = vunpack.c.l.b16 %v196
    %v1633 = vunpack.c.h.b16 %v196
    %v1634 = vunpack.c.l.b16 %v197
    %v1635 = vunpack.c.h.b16 %v197
    %v1636 = vunpack.c.l.b16 %v198
    %v1637 = vunpack.c.h.b16 %v198
    %v1638 = vunpack.c.l.b16 %v199
    %v1639 = vunpack.c.h.b16 %v199
    %v1640 = vunpack.c.l.b16 %v200
    %v1641 = vunpack.c.h.b16 %v200
    %v1642 = vunpack.c.l.b16 %v201
    %v1643 = vunpack.c.h.b16 %v201
    %v1644 = vunpack.c.l.b16 %v202
    %v1645 = vunpack.c.h.b16 %v202
    %v1646 = vunpack.c.l.b16 %v203
    %v1647 = vunpack.c.h.b16 %v203
    %v1648 = vunpack.c.l.b16 %v204
    %v1649 = vunpack.c.h.b16 %v204
    %v1650 = vunpack.c.l.b16 %v205
    %v1651 = vunpack.c.h.b16 %v205
    %v1652 = vunpack.c.l.b16 %v206
    %v1653 = vunpack.c.h.b16 %v206
    %v1654 = vunpack.c.l.b16 %v207
    %v1655 = vunpack.c.h.b16 %v207
    %v1656 = vunpack.c.l.b16 %v208
    %v1657 = vunpack.c.h.b16 %v208
    %v1658 = vunpack.c.l.b16 %v209
    %v1659 = vunpack.c.h.b16 %v209
    %v1660 = vunpack.c.l.b16 %v210
    %v1661 = vunpack.c.h.b16 %v210
    %v1662 = vunpack.c.l.b16 %v211
    %v1663 = vunpack.c.h.b16 %v211
    %v1664 = vunpack.c.l.b16 %v212
    %v1665 = vunpack.c.h.b16 %v212
    %v1666 = vunpack.c.l.b16 %v213
    %v1667 = vunpack.c.h.b16 %v213
    %v1668 = vunpack.c.l.b16 %v214
    %v1669 = vunpack.c.h.b16 %v214
    %v1670 = vunpack.c.l.b16 %v215
    %v1671 = vunpack.c.h.b16 %v215
    %v1672 = vunpack.c.l.b16 %v216
    %v1673 = vunpack.c.h.b16 %v216
    %v1674 = vunpack.c.l.b16 %v217
    %v1675 = vunpack.c.h.b16 %v217
    %v1676 = vunpack.c.l.b16 %v218
    %v1677 = vunpack.c.h.b16 %v218
    %v1678 = vunpack.c.l.b16 %v219
    %v1679 = vunpack.c.h.b16 %v219
    %v1680 = vunpack.c.l.b16 %v220
    %v1681 = vunpack.c.h.b16 %v220
    %v1682 = vunpack.c.l.b16 %v221
    %v1683 = vunpack.c.h.b16 %v221
    %v1684 = vunpack.c.l.b16 %v222
    %v1685 = vunpack.c.h.b16 %v222
    %v1686 = vunpack.c.l.b16 %v223
    %v1687 = vunpack.c.h.b16 %v223
    %v1688 = vunpack.c.l.b16 %v224
    %v1689 = vunpack.c.h.b16 %v224
    %v1690 = vunpack.c.l.b16 %v225
    %v1691 = vunpack.c.h.b16 %v225
    %v1692 = vunpack.c.l.b16 %v226
    %v1693 = vunpack.c.h.b16 %v226
    %v1694 = vunpack.c.l.b16 %v227
    %v1695 = vunpack.c.h.b16 %v227
    %v1696 = vunpack.c.l.b16 %v228
    %v1697 = vunpack.c.h.b16 %v228
    %v1698 = vunpack.c.l.b16 %v229
    %v1699 = vunpack.c.h.b16 %v229
    %v1700 = vunpack.c.l.b16 %v230
    %v1701 = vunpack.c.h.b16 %v230
    %v1702 = vunpack.c.l.b16 %v231
    %v1703 = vunpack.c.h.b16 %v231
    %v1704 = vunpack.c.l.b16 %v232
    %v1705 = vunpack.c.h.b16 %v232
    %v1706 = vunpack.c.l.b16 %v233
    %v1707 = vunpack.c.h.b16 %v233
    %v1708 = vunpack.c.l.b16 %v234
    %v1709 = vunpack.c.h.b16 %v234
    %v1710 = vunpack.c.l.b16 %v235
    %v1711 = vunpack.c.h.b16 %v235
    %v1712 = vunpack.c.l.b16 %v236
    %v1713 = vunpack.c.h.b16 %v236
    %v1714 = vunpack.c.l.b16 %v237
    %v1715 = vunpack.c.h.b16 %v237
    %v1716 = vunpack.c.l.b16 %v238
    %v1717 = vunpack.c.h.b16 %v238
    %v1718 = vunpack.c.l.b16 %v239
    %v1719 = vunpack.c.h.b16 %v239
    %v1720 = vunpack.c.l.b16 %v240
    %v1721 = vunpack.c.h.b16 %v240
    %v1722 = vunpack.c.l.b16 %v241
    %v1723 = vunpack.c.h.b16 %v241
    %v1724 = vunpack.c.l.b16 %v242
    %v1725 = vunpack.c.h.b16 %v242
    %v1726 = vunpack.c.l.b16 %v243
    %v1727 = vunpack.c.h.b16 %v243
    %v1728 = vunpack.c.l.b16 %v244
    %v1729 = vunpack.c.h.b16 %v244
    %v1730 = vunpack.c.l.b16 %v245
    %v1731 = vunpack.c.h.b16 %v245
    %v1732 = vunpack.c.l.b16 %v246
    %v1733 = vunpack.c.h.b16 %v246
    %v1734 = vunpack.c.l.b16 %v247
    %v1735 = vunpack.c.h.b16 %v247
    %v1736 = vunpack.c.l.b16 %v248
    %v1737 = vunpack.c.h.b16 %v248
    %v1738 = vunpack.c.l.b16 %v249
    %v1739 = vunpack.c.h.b16 %v249
    %v1740 = vunpack.c.l.b16 %v250
    %v1741 = vunpack.c.h.b16 %v250
    %v1742 = vunpack.c.l.b16 %v251
    %v1743 = vunpack.c.h.b16 %v251
    %v1744 = vunpack.c.l.b16 %v252
    %v1745 = vunpack.c.h.b16 %v252
    %v1746 = vunpack.c.l.b16 %v253
    %v1747 = vunpack.c.h.b16 %v253
    %v1748 = vunpack.c.l.b16 %v254
    %v1749 = vunpack.c.h.b16 %v254
    %v1750 = vunpack.c.l.b16 %v255
    %v1751 = vunpack.c.h.b16 %v255
    %v1752 = vunpack.c.l.b16 %v256
    %v1753 = vunpack.c.h.b16 %v256
    %v1754 = vunpack.c.l.b16 %v257
    %v1755 = vunpack.c.h.b16 %v257
    %v1756 = vunpack.c.l.b16 %v258
    %v1757 = vunpack.c.h.b16 %v258
    %v1758 = vunpack.c.l.b16 %v259
    %v1759 = vunpack.c.h.b16 %v259
    %v1760 = vunpack.c.l.b16 %v260
    %v1761 = vunpack.c.h.b16 %v260
    %v1762 = vunpack.c.l.b16 %v261
    %v1763 = vunpack.c.h.b16 %v261
    %v1764 = vunpack.c.l.b16 %v262
    %v1765 = vunpack.c.h.b16 %v262
    %v1766 = vunpack.c.l.b16 %v263
    %v1767 = vunpack.c.h.b16 %v263
    %v1768 = vunpack.c.l.b16 %v264
    %v1769 = vunpack.c.h.b16 %v264
    %v1770 = vunpack.c.l.b16 %v265
    %v1771 = vunpack.c.h.b16 %v265
    %v1772 = vunpack.c.l.b16 %v266
    %v1773 = vunpack.c.h.b16 %v266
    %v1774 = vunpack.c.l.b16 %v267
    %v1775 = vunpack.c.h.b16 %v267
    %v1776 = vunpack.c.l.b16 %v268
    %v1777 = vunpack.c.h.b16 %v268
    %v1778 = vunpack.c.l.b16 %v269
    %v1779 = vunpack.c.h.b16 %v269
    %v1780 = vunpack.c.l.b16 %v270
    %v1781 = vunpack.c.h.b16 %v270
    %v1782 = vunpack.c.l.b16 %v271
    %v1783 = vunpack.c.h.b16 %v271
    %v1784 = vunpack.c.l.b16 %v272
    %v1785 = vunpack.c.h.b16 %v272
    %v1786 = vunpack.c.l.b16 %v273
    %v1787 = vunpack.c.h.b16 %v273
    %v1788 = vunpack.c.l.b16 %v274
    %v1789 = vunpack.c.h.b16 %v274
    %v1790 = vunpack.c.l.b16 %v275
    %v1791 = vunpack.c.h.b16 %v275
    %v1792 = vunpack.c.l.b16 %v276
    %v1793 = vunpack.c.h.b16 %v276
    %v1794 = vunpack.c.l.b16 %v277
    %v1795 = vunpack.c.h.b16 %v277
    %v1796 = vunpack.c.l.b16 %v278
    %v1797 = vunpack.c.h.b16 %v278
    %v1798 = vunpack.c.l.b16 %v279
    %v1799 = vunpack.c.h.b16 %v279
    %v1800 = vunpack.c.l.b16 %v280
    %v1801 = vunpack.c.h.b16 %v280
    %v1802 = vunpack.c.l.b16 %v281
    %v1803 = vunpack.c.h.b16 %v281
    %v1804 = vunpack.c.l.b16 %v282
    %v1805 = vunpack.c.h.b16 %v282
    %v1806 = vunpack.c.l.b16 %v283
    %v1807 = vunpack.c.h.b16 %v283
    %v1808 = vunpack.c.l.b16 %v284
    %v1809 = vunpack.c.h.b16 %v284
    %v1810 = vunpack.c.l.b16 %v285
    %v1811 = vunpack.c.h.b16 %v285
    %v1812 = vunpack.c.l.b16 %v286
    %v1813 = vunpack.c.h.b16 %v286
    %v1814 = vunpack.c.l.b16 %v287
    %v1815 = vunpack.c.h.b16 %v287
    %v1816 = vunpack.c.l.b16 %v288
    %v1817 = vunpack.c.h.b16 %v288
    %v1818 = vunpack.c.l.b16 %v289
    %v1819 = vunpack.c.h.b16 %v289
    %v1820 = vunpack.c.l.b16 %v290
    %v1821 = vunpack.c.h.b16 %v290
    %v1822 = vunpack.c.l.b16 %v291
    %v1823 = vunpack.c.h.b16 %v291
    %v1824 = vunpack.c.l.b16 %v292
    %v1825 = vunpack.c.h.b16 %v292
    %v1826 = vunpack.c.l.b16 %v293
    %v1827 = vunpack.c.h.b16 %v293
    %v1828 = vunpack.c.l.b16 %v294
    %v1829 = vunpack.c.h.b16 %v294
    %v1830 = vunpack.c.l.b16 %v295
    %v1831 = vunpack.c.h.b16 %v295
    %v1832 = vunpack.c.l.b16 %v296
    %v1833 = vunpack.c.h.b16 %v296
    %v1834 = vunpack.c.l.b16 %v297
    %v1835 = vunpack.c.h.b16 %v297
    %v1836 = vunpack.c.l.b16 %v298
    %v1837 = vunpack.c.h.b16 %v298
    %v1838 = vunpack.c.l.b16 %v299
    %v1839 = vunpack.c.h.b16 %v299
    %v1840 = vunpack.c.l.b16 %v300
    %v1841 = vunpack.c.h.b16 %v300
    %v1842 = vunpack.c.l.b16 %v301
    %v1843 = vunpack.c.h.b16 %v301
    %v1844 = vunpack.c.l.b16 %v302
    %v1845 = vunpack.c.h.b16 %v302
    %v1846 = vunpack.c.l.b16 %v303
    %v1847 = vunpack.c.h.b16 %v303
    %v1848 = vunpack.c.l.b16 %v304
    %v1849 = vunpack.c.h.b16 %v304
    %v1850 = vunpack.c.l.b16 %v305
    %v1851 = vunpack.c.h.b16 %v305
    %v1852 = vunpack.c.l.b16 %v306
    %v1853 = vunpack.c.h.b16 %v306
    %v1854 = vunpack.c.l.b16 %v307
    %v1855 = vunpack.c.h.b16 %v307
    %v1856 = vunpack.c.l.b16 %v308
    %v1857 = vunpack.c.h.b16 %v308
    %v1858 = vunpack.c.l.b16 %v309
    %v1859 = vunpack.c.h.b16 %v309
    %v1860 = vunpack.c.l.b16 %v310
    %v1861 = vunpack.c.h.b16 %v310
    %v1862 = vunpack.c.l.b16 %v311
    %v1863 = vunpack.c.h.b16 %v311
    %v1864 = vunpack.c.l.b16 %v312
    %v1865 = vunpack.c.h.b16 %v312
    %v1866 = vunpack.c.l.b16 %v313
    %v1867 = vunpack.c.h.b16 %v313
    %v1868 = vunpack.c.l.b16 %v314
    %v1869 = vunpack.c.h.b16 %v314
    %v1870 = vunpack.c.l.b16 %v315
    %v1871 = vunpack.c.h.b16 %v315
    %v1872 = vunpack.c.l.b16 %v316
    %v1873 = vunpack.c.h.b16 %v316
    %v1874 = vunpack.c.l.b16 %v317
    %v1875 = vunpack.c.h.b16 %v317
    %v1876 = vunpack.c.l.b16 %v318
    %v1877 = vunpack.c.h.b16 %v318
    %v1878 = vunpack.c.l.b16 %v319
    %v1879 = vunpack.c.h.b16 %v319
    %v1880 = vunpack.c.l.b16 %v320
    %v1881 = vunpack.c.h.b16 %v320
    %v1882 = vunpack.c.l.b16 %v321
    %v1883 = vunpack.c.h.b16 %v321
    %v1884 = vunpack.c.l.b16 %v322
    %v1885 = vunpack.c.h.b16 %v322
    %v1886 = vunpack.c.l.b16 %v323
    %v1887 = vunpack.c.h.b16 %v323
    %v1888 = vunpack.c.l.b16 %v324
    %v1889 = vunpack.c.h.b16 %v324
    %v1890 = vunpack.c.l.b16 %v325
    %v1891 = vunpack.c.h.b16 %v325
    %v1892 = vunpack.c.l.b16 %v326
    %v1893 = vunpack.c.h.b16 %v326
    %v1894 = vunpack.c.l.b16 %v327
    %v1895 = vunpack.c.h.b16 %v327
    %v1896 = vunpack.c.l.b16 %v328
    %v1897 = vunpack.c.h.b16 %v328
    %v1898 = vunpack.c.l.b16 %v329
    %v1899 = vunpack.c.h.b16 %v329
    %v1900 = vunpack.c.l.b16 %v330
    %v1901 = vunpack.c.h.b16 %v330
    %v1902 = vunpack.c.l.b16 %v331
    %v1903 = vunpack.c.h.b16 %v331
    %v1904 = vunpack.c.l.b16 %v332
    %v1905 = vunpack.c.h.b16 %v332
    %v1906 = vunpack.c.l.b16 %v333
    %v1907 = vunpack.c.h.b16 %v333
    %v1908 = vunpack.c.l.b16 %v334
    %v1909 = vunpack.c.h.b16 %v334
    %v1910 = vunpack.c.l.b16 %v335
    %v1911 = vunpack.c.h.b16 %v335
    %v1912 = vunpack.c.l.b16 %v336
    %v1913 = vunpack.c.h.b16 %v336
    %v1914 = vunpack.c.l.b16 %v337
    %v1915 = vunpack.c.h.b16 %v337
    %v1916 = vunpack.c.l.b16 %v338
    %v1917 = vunpack.c.h.b16 %v338
    %v1918 = vunpack.c.l.b16 %v339
    %v1919 = vunpack.c.h.b16 %v339
    %v1920 = vunpack.c.l.b16 %v340
    %v1921 = vunpack.c.h.b16 %v340
    %v1922 = vunpack.c.l.b16 %v341
    %v1923 = vunpack.c.h.b16 %v341
    %v1924 = vunpack.c.l.b16 %v342
    %v1925 = vunpack.c.h.b16 %v342
    %v1926 = vunpack.c.l.b16 %v343
    %v1927 = vunpack.c.h.b16 %v343
    %v1928 = vunpack.c.l.b16 %v344
    %v1929 = vunpack.c.h.b16 %v344
    %v1930 = vunpack.c.l.b16 %v345
    %v1931 = vunpack.c.h.b16 %v345
    %v1932 = vunpack.c.l.b16 %v346
    %v1933 = vunpack.c.h.b16 %v346
    %v1934 = vunpack.c.l.b16 %v347
    %v1935 = vunpack.c.h.b16 %v347
    %v1936 = vunpack.c.l.b16 %v348
    %v1937 = vunpack.c.h.b16 %v348
    %v1938 = vunpack.c.l.b16 %v349
    %v1939 = vunpack.c.h.b16 %v349
    %v1940 = vunpack.c.l.b16 %v350
    %v1941 = vunpack.c.h.b16 %v350
    %v1942 = vunpack.c.l.b16 %v351
    %v1943 = vunpack.c.h.b16 %v351
    %v1944 = vunpack.c.l.b16 %v352
    %v1945 = vunpack.c.h.b16 %v352
    %v1946 = vunpack.c.l.b16 %v353
    %v1947 = vunpack.c.h.b16 %v353
    %v1948 = vunpack.c.l.b16 %v354
    %v1949 = vunpack.c.h.b16 %v354
    %v1950 = vunpack.c.l.b16 %v355
    %v1951 = vunpack.c.h.b16 %v355
    %v1952 = vunpack.c.l.b16 %v356
    %v1953 = vunpack.c.h.b16 %v356
    %v1954 = vunpack.c.l.b16 %v357
    %v1955 = vunpack.c.h.b16 %v357
    %v1956 = vunpack.c.l.b16 %v358
    %v1957 = vunpack.c.h.b16 %v358
    %v1958 = vunpack.c.l.b16 %v359
    %v1959 = vunpack.c.h.b16 %v359
    %v1960 = vunpack.c.l.b16 %v360
    %v1961 = vunpack.c.h.b16 %v360
    %v1962 = vunpack.c.l.b16 %v361
    %v1963 = vunpack.c.h.b16 %v361
    %v1964 = vunpack.c.l.b16 %v362
    %v1965 = vunpack.c.h.b16 %v362
    %v1966 = vunpack.c.l.b16 %v363
    %v1967 = vunpack.c.h.b16 %v363
    %v1968 = vunpack.c.l.b16 %v364
    %v1969 = vunpack.c.h.b16 %v364
    %v1970 = vunpack.c.l.b16 %v365
    %v1971 = vunpack.c.h.b16 %v365
    %v1972 = vunpack.c.l.b16 %v366
    %v1973 = vunpack.c.h.b16 %v366
    %v1974 = vunpack.c.l.b16 %v367
    %v1975 = vunpack.c.h.b16 %v367
    %v1976 = vunpack.c.l.b16 %v368
    %v1977 = vunpack.c.h.b16 %v368
    %v1978 = vunpack.c.l.b16 %v369
    %v1979 = vunpack.c.h.b16 %v369
    %v1980 = vunpack.c.l.b16 %v370
    %v1981 = vunpack.c.h.b16 %v370
    %v1982 = vunpack.c.l.b16 %v371
    %v1983 = vunpack.c.h.b16 %v371
    %v1984 = vunpack.c.l.b16 %v372
    %v1985 = vunpack.c.h.b16 %v372
    %v1986 = vunpack.c.l.b16 %v373
    %v1987 = vunpack.c.h.b16 %v373
    %v1988 = vunpack.c.l.b16 %v374
    %v1989 = vunpack.c.h.b16 %v374
    %v1990 = vunpack.c.l.b16 %v375
    %v1991 = vunpack.c.h.b16 %v375
    %v1992 = vunpack.c.l.b16 %v376
    %v1993 = vunpack.c.h.b16 %v376
    %v1994 = vunpack.c.l.b16 %v377
    %v1995 = vunpack.c.h.b16 %v377
    %v1996 = vunpack.c.l.b16 %v378
    %v1997 = vunpack.c.h.b16 %v378
    %v1998 = vunpack.c.l.b16 %v379
    %v1999 = vunpack.c.h.b16 %v379
    %v2000 = vunpack.c.l.b16 %v380
    %v2001 = vunpack.c.h.b16 %v380
    %v2002 = vunpack.c.l.b16 %v381
    %v2003 = vunpack.c.h.b16 %v381
    %v2004 = vunpack.c.l.b16 %v382
    %v2005 = vunpack.c.h.b16 %v382
    %v2006 = vunpack.c.l.b16 %v383
    %v2007 = vunpack.c.h.b16 %v383
    %v2008 = vunpack.c.l.b16 %v384
    %v2009 = vunpack.c.h.b16 %v384
    %v2010 = vunpack.c.l.b16 %v385
    %v2011 = vunpack.c.h.b16 %v385
    %v2012 = vunpack.c.l.b16 %v386
    %v2013 = vunpack.c.h.b16 %v386
    %v2014 = vunpack.c.l.b16 %v387
    %v2015 = vunpack.c.h.b16 %v387
    %v2016 = vunpack.c.l.b16 %v388
    %v2017 = vunpack.c.h.b16 %v388
    %v2018 = vunpack.c.l.b16 %v389
    %v2019 = vunpack.c.h.b16 %v389
    %v2020 = vunpack.c.l.b16 %v390
    %v2021 = vunpack.c.h.b16 %v390
    %v2022 = vunpack.c.l.b16 %v391
    %v2023 = vunpack.c.h.b16 %v391
    %v2024 = vunpack.c.l.b16 %v392
    %v2025 = vunpack.c.h.b16 %v392
    %v2026 = vunpack.c.l.b16 %v393
    %v2027 = vunpack.c.h.b16 %v393
    %v2028 = vunpack.c.l.b16 %v394
    %v2029 = vunpack.c.h.b16 %v394
    %v2030 = vunpack.c.l.b16 %v395
    %v2031 = vunpack.c.h.b16 %v395
    %v2032 = vunpack.c.l.b16 %v396
    %v2033 = vunpack.c.h.b16 %v396
    %v2034 = vunpack.c.l.b16 %v397
    %v2035 = vunpack.c.h.b16 %v397
    %v2036 = vunpack.c.l.b16 %v398
    %v2037 = vunpack.c.h.b16 %v398
    %v2038 = vunpack.c.l.b16 %v399
    %v2039 = vunpack.c.h.b16 %v399
    %v2040 = vunpack.c.l.b16 %v400
    %v2041 = vunpack.c.h.b16 %v400
    %v2042 = vunpack.c.l.b16 %v401
    %v2043 = vunpack.c.h.b16 %v401
    %v2044 = vunpack.c.l.b16 %v402
    %v2045 = vunpack.c.h.b16 %v402
    %v2046 = vunpack.c.l.b16 %v403
    %v2047 = vunpack.c.h.b16 %v403
    %v2048 = vunpack.c.l.b16 %v404
    %v2049 = vunpack.c.h.b16 %v404
    %v2050 = vunpack.c.l.b16 %v405
    %v2051 = vunpack.c.h.b16 %v405
    %v2052 = vunpack.c.l.b16 %v406
    %v2053 = vunpack.c.h.b16 %v406
    %v2054 = vunpack.c.l.b16 %v407
    %v2055 = vunpack.c.h.b16 %v407
    %v2056 = vunpack.c.l.b16 %v408
    %v2057 = vunpack.c.h.b16 %v408
    %v2058 = vunpack.c.l.b16 %v409
    %v2059 = vunpack.c.h.b16 %v409
    %v2060 = vunpack.c.l.b16 %v410
    %v2061 = vunpack.c.h.b16 %v410
    %v2062 = vunpack.c.l.b16 %v411
    %v2063 = vunpack.c.h.b16 %v411
    %v2064 = vunpack.c.l.b16 %v412
    %v2065 = vunpack.c.h.b16 %v412
    %v2066 = vunpack.c.l.b16 %v413
    %v2067 = vunpack.c.h.b16 %v413
    %v2068 = vunpack.c.l.b16 %v414
    %v2069 = vunpack.c.h.b16 %v414
    %v2070 = vunpack.c.l.b16 %v415
    %v2071 = vunpack.c.h.b16 %v415
    %v2072 = vunpack.c.l.b16 %v416
    %v2073 = vunpack.c.h.b16 %v416
    %v2074 = vunpack.c.l.b16 %v417
    %v2075 = vunpack.c.h.b16 %v417
    %v2076 = vunpack.c.l.b16 %v418
    %v2077 = vunpack.c.h.b16 %v418
    %v2078 = vunpack.c.l.b16 %v419
    %v2079 = vunpack.c.h.b16 %v419
    %v2080 = vunpack.c.l.b16 %v420
    %v2081 = vunpack.c.h.b16 %v420
    %v2082 = vunpack.c.l.b16 %v421
    %v2083 = vunpack.c.h.b16 %v421
    %v2084 = vunpack.c.l.b16 %v422
    %v2085 = vunpack.c.h.b16 %v422
    %v2086 = vunpack.c.l.b16 %v423
    %v2087 = vunpack.c.h.b16 %v423
    %v2088 = vunpack.c.l.b16 %v424
    %v2089 = vunpack.c.h.b16 %v424
    %v2090 = vunpack.c.l.b16 %v425
    %v2091 = vunpack.c.h.b16 %v425
    %v2092 = vunpack.c.l.b16 %v426
    %v2093 = vunpack.c.h.b16 %v426
    %v2094 = vunpack.c.l.b16 %v427
    %v2095 = vunpack.c.h.b16 %v427
    %v2096 = vunpack.c.l.b16 %v428
    %v2097 = vunpack.c.h.b16 %v428
    %v2098 = vunpack.c.l.b16 %v429
    %v2099 = vunpack.c.h.b16 %v429
    %v2100 = vunpack.c.l.b16 %v430
    %v2101 = vunpack.c.h.b16 %v430
    %v2102 = vunpack.c.l.b16 %v431
    %v2103 = vunpack.c.h.b16 %v431
    %v2104 = vpack.c.b16 %v1280, %v1272
    %v2105 = vpack.c.b16 %v1281, %v1273
    %v2106 = vpack.c.b16 %v1282, %v1274
    %v2107 = vpack.c.b16 %v1283, %v1275
    %v2108 = vpack.c.b16 %v1284, %v1276
    %v2109 = vpack.c.b16 %v1285, %v1277
    %v2110 = vpack.c.b16 %v1286, %v1278
    %v2111 = vpack.c.b16 %v1287, %v1279
    %v2112 = vpack.c.b16 %v1296, %v1288
    %v2113 = vpack.c.b16 %v1297, %v1289
    %v2114 = vpack.c.b16 %v1298, %v1290
    %v2115 = vpack.c.b16 %v1299, %v1291
    %v2116 = vpack.c.b16 %v1300, %v1292
    %v2117 = vpack.c.b16 %v1301, %v1293
    %v2118 = vpack.c.b16 %v1302, %v1294
    %v2119 = vpack.c.b16 %v1303, %v1295
    %v2120 = vpack.c.b16 %v1312, %v1304
    %v2121 = vpack.c.b16 %v1313, %v1305
    %v2122 = vpack.c.b16 %v1314, %v1306
    %v2123 = vpack.c.b16 %v1315, %v1307
    %v2124 = vpack.c.b16 %v1316, %v1308
    %v2125 = vpack.c.b16 %v1317, %v1309
    %v2126 = vpack.c.b16 %v1318, %v1310
    %v2127 = vpack.c.b16 %v1319, %v1311
    %v2128 = vpack.c.b16 %v1328, %v1320
    %v2129 = vpack.c.b16 %v1329, %v1321
    %v2130 = vpack.c.b16 %v1330, %v1322
    %v2131 = vpack.c.b16 %v1331, %v1323
    %v2132 = vpack.c.b16 %v1332, %v1324
    %v2133 = vpack.c.b16 %v1333, %v1325
    %v2134 = vpack.c.b16 %v1334, %v1326
    %v2135 = vpack.c.b16 %v1335, %v1327
    %v2136 = vpack.c.b16 %v1344, %v1336
    %v2137 = vpack.c.b16 %v1345, %v1337
    %v2138 = vpack.c.b16 %v1346, %v1338
    %v2139 = vpack.c.b16 %v1347, %v1339
    %v2140 = vpack.c.b16 %v1348, %v1340
    %v2141 = vpack.c.b16 %v1349, %v1341
    %v2142 = vpack.c.b16 %v1350, %v1342
    %v2143 = vpack.c.b16 %v1351, %v1343
    %v2144 = vpack.c.b16 %v1360, %v1352
    %v2145 = vpack.c.b16 %v1361, %v1353
    %v2146 = vpack.c.b16 %v1362, %v1354
    %v2147 = vpack.c.b16 %v1363, %v1355
    %v2148 = vpack.c.b16 %v1364, %v1356
    %v2149 = vpack.c.b16 %v1365, %v1357
    %v2150 = vpack.c.b16 %v1366, %v1358
    %v2151 = vpack.c.b16 %v1367, %v1359
    %v2152 = vpack.c.b16 %v1376, %v1368
    %v2153 = vpack.c.b16 %v1377, %v1369
    %v2154 = vpack.c.b16 %v1378, %v1370
    %v2155 = vpack.c.b16 %v1379, %v1371
    %v2156 = vpack.c.b16 %v1380, %v1372
    %v2157 = vpack.c.b16 %v1381, %v1373
    %v2158 = vpack.c.b16 %v1382, %v1374
    %v2159 = vpack.c.b16 %v1383, %v1375
    %v2160 = vpack.c.b16 %v1392, %v1384
    %v2161 = vpack.c.b16 %v1393, %v1385
    %v2162 = vpack.c.b16 %v1394, %v1386
    %v2163 = vpack.c.b16 %v1395, %v1387
    %v2164 = vpack.c.b16 %v1396, %v1388
    %v2165 = vpack.c.b16 %v1397, %v1389
    %v2166 = vpack.c.b16 %v1398, %v1390
    %v2167 = vpack.c.b16 %v1399, %v1391
    %v2168 = vpack.c.b16 %v1408, %v1400
    %v2169 = vpack.c.b16 %v1409, %v1401
    %v2170 = vpack.c.b16 %v1410, %v1402
    %v2171 = vpack.c.b16 %v1411, %v1403
    %v2172 = vpack.c.b16 %v1412, %v1404
    %v2173 = vpack.c.b16 %v1413, %v1405
    %v2174 = vpack.c.b16 %v1414, %v1406
    %v2175 = vpack.c.b16 %v1415, %v1407
    %v2176 = vpack.c.b16 %v1424, %v1416
    %v2177 = vpack.c.b16 %v1425, %v1417
    %v2178 = vpack.c.b16 %v1426, %v1418
    %v2179 = vpack.c.b16 %v1427, %v1419
    %v2180 = vpack.c.b16 %v1428, %v1420
    %v2181 = vpack.c.b16 %v1429, %v1421
    %v2182 = vpack.c.b16 %v1430, %v1422
    %v2183 = vpack.c.b16 %v1431, %v1423
    %v2184 = vpack.c.b16 %v1440, %v1432
    %v2185 = vpack.c.b16 %v1441, %v1433
    %v2186 = vpack.c.b16 %v1442, %v1434
    %v2187 = vpack.c.b16 %v1443, %v1435
    %v2188 = vpack.c.b16 %v1444, %v1436
    %v2189 = vpack.c.b16 %v1445, %v1437
    %v2190 = vpack.c.b16 %v1446, %v1438
    %v2191 = vpack.c.b16 %v1447, %v1439
    %v2192 = vpack.c.b16 %v1456, %v1448
    %v2193 = vpack.c.b16 %v1457, %v1449
    %v2194 = vpack.c.b16 %v1458, %v1450
    %v2195 = vpack.c.b16 %v1459, %v1451
    %v2196 = vpack.c.b16 %v1460, %v1452
    %v2197 = vpack.c.b16 %v1461, %v1453
    %v2198 = vpack.c.b16 %v1462, %v1454
    %v2199 = vpack.c.b16 %v1463, %v1455
    %v2200 = vpack.c.b16 %v1472, %v1464
    %v2201 = vpack.c.b16 %v1473, %v1465
    %v2202 = vpack.c.b16 %v1474, %v1466
    %v2203 = vpack.c.b16 %v1475, %v1467
    %v2204 = vpack.c.b16 %v1476, %v1468
    %v2205 = vpack.c.b16 %v1477, %v1469
    %v2206 = vpack.c.b16 %v1478, %v1470
    %v2207 = vpack.c.b16 %v1479, %v1471
    %v2208 = vpack.c.b16 %v1488, %v1480
    %v2209 = vpack.c.b16 %v1489, %v1481
    %v2210 = vpack.c.b16 %v1490, %v1482
    %v2211 = vpack.c.b16 %v1491, %v1483
    %v2212 = vpack.c.b16 %v1492, %v1484
    %v2213 = vpack.c.b16 %v1493, %v1485
    %v2214 = vpack.c.b16 %v1494, %v1486
    %v2215 = vpack.c.b16 %v1495, %v1487
    %v2216 = vpack.c.b16 %v1504, %v1496
    %v2217 = vpack.c.b16 %v1505, %v1497
    %v2218 = vpack.c.b16 %v1506, %v1498
    %v2219 = vpack.c.b16 %v1507, %v1499
    %v2220 = vpack.c.b16 %v1508, %v1500
    %v2221 = vpack.c.b16 %v1509, %v1501
    %v2222 = vpack.c.b16 %v1510, %v1502
    %v2223 = vpack.c.b16 %v1511, %v1503
    %v2224 = vpack.c.b16 %v1520, %v1512
    %v2225 = vpack.c.b16 %v1521, %v1513
    %v2226 = vpack.c.b16 %v1522, %v1514
    %v2227 = vpack.c.b16 %v1523, %v1515
    %v2228 = vpack.c.b16 %v1524, %v1516
    %v2229 = vpack.c.b16 %v1525, %v1517
    %v2230 = vpack.c.b16 %v1526, %v1518
    %v2231 = vpack.c.b16 %v1527, %v1519
    %v2232 = vpack.c.b16 %v1536, %v1528
    %v2233 = vpack.c.b16 %v1537, %v1529
    %v2234 = vpack.c.b16 %v1538, %v1530
    %v2235 = vpack.c.b16 %v1539, %v1531
    %v2236 = vpack.c.b16 %v1540, %v1532
    %v2237 = vpack.c.b16 %v1541, %v1533
    %v2238 = vpack.c.b16 %v1542, %v1534
    %v2239 = vpack.c.b16 %v1543, %v1535
    %v2240 = vpack.c.b16 %v1552, %v1544
    %v2241 = vpack.c.b16 %v1553, %v1545
    %v2242 = vpack.c.b16 %v1554, %v1546
    %v2243 = vpack.c.b16 %v1555, %v1547
    %v2244 = vpack.c.b16 %v1556, %v1548
    %v2245 = vpack.c.b16 %v1557, %v1549
    %v2246 = vpack.c.b16 %v1558, %v1550
    %v2247 = vpack.c.b16 %v1559, %v1551
    %v2248 = vpack.c.b16 %v1568, %v1560
    %v2249 = vpack.c.b16 %v1569, %v1561
    %v2250 = vpack.c.b16 %v1570, %v1562
    %v2251 = vpack.c.b16 %v1571, %v1563
    %v2252 = vpack.c.b16 %v1572, %v1564
    %v2253 = vpack.c.b16 %v1573, %v1565
    %v2254 = vpack.c.b16 %v1574, %v1566
    %v2255 = vpack.c.b16 %v1575, %v1567
    %v2256 = vpack.c.b16 %v1584, %v1576
    %v2257 = vpack.c.b16 %v1585, %v1577
    %v2258 = vpack.c.b16 %v1586, %v1578
    %v2259 = vpack.c.b16 %v1587, %v1579
    %v2260 = vpack.c.b16 %v1588, %v1580
    %v2261 = vpack.c.b16 %v1589, %v1581
    %v2262 = vpack.c.b16 %v1590, %v1582
    %v2263 = vpack.c.b16 %v1591, %v1583
    %v2264 = vpack.c.b16 %v1600, %v1592
    %v2265 = vpack.c.b16 %v1601, %v1593
    %v2266 = vpack.c.b16 %v1602, %v1594
    %v2267 = vpack.c.b16 %v1603, %v1595
    %v2268 = vpack.c.b16 %v1604, %v1596
    %v2269 = vpack.c.b16 %v1605, %v1597
    %v2270 = vpack.c.b16 %v1606, %v1598
    %v2271 = vpack.c.b16 %v1607, %v1599
    %v2272 = vpack.c.b16 %v1616, %v1608
    %v2273 = vpack.c.b16 %v1617, %v1609
    %v2274 = vpack.c.b16 %v1618, %v1610
    %v2275 = vpack.c.b16 %v1619, %v1611
    %v2276 = vpack.c.b16 %v1620, %v1612
    %v2277 = vpack.c.b16 %v1621, %v1613
    %v2278 = vpack.c.b16 %v1622, %v1614
    %v2279 = vpack.c.b16 %v1623, %v1615
    %v2280 = vpack.c.b16 %v1632, %v1624
    %v2281 = vpack.c.b16 %v1633, %v1625
    %v2282 = vpack.c.b16 %v1634, %v1626
    %v2283 = vpack.c.b16 %v1635, %v1627
    %v2284 = vpack.c.b16 %v1636, %v1628
    %v2285 = vpack.c.b16 %v1637, %v1629
    %v2286 = vpack.c.b16 %v1638, %v1630
    %v2287 = vpack.c.b16 %v1639, %v1631
    %v2288 = vpack.c.b16 %v1648, %v1640
    %v2289 = vpack.c.b16 %v1649, %v1641
    %v2290 = vpack.c.b16 %v1650, %v1642
    %v2291 = vpack.c.b16 %v1651, %v1643
    %v2292 = vpack.c.b16 %v1652, %v1644
    %v2293 = vpack.c.b16 %v1653, %v1645
    %v2294 = vpack.c.b16 %v1654, %v1646
    %v2295 = vpack.c.b16 %v1655, %v1647
    %v2296 = vpack.c.b16 %v1664, %v1656
    %v2297 = vpack.c.b16 %v1665, %v1657
    %v2298 = vpack.c.b16 %v1666, %v1658
    %v2299 = vpack.c.b16 %v1667, %v1659
    %v2300 = vpack.c.b16 %v1668, %v1660
    %v2301 = vpack.c.b16 %v1669, %v1661
    %v2302 = vpack.c.b16 %v1670, %v1662
    %v2303 = vpack.c.b16 %v1671, %v1663
    %v2304 = vpack.c.b16 %v1680, %v1672
    %v2305 = vpack.c.b16 %v1681, %v1673
    %v2306 = vpack.c.b16 %v1682, %v1674
    %v2307 = vpack.c.b16 %v1683, %v1675
    %v2308 = vpack.c.b16 %v1684, %v1676
    %v2309 = vpack.c.b16 %v1685, %v1677
    %v2310 = vpack.c.b16 %v1686, %v1678
    %v2311 = vpack.c.b16 %v1687, %v1679
    %v2312 = vpack.c.b16 %v1696, %v1688
    %v2313 = vpack.c.b16 %v1697, %v1689
    %v2314 = vpack.c.b16 %v1698, %v1690
    %v2315 = vpack.c.b16 %v1699, %v1691
    %v2316 = vpack.c.b16 %v1700, %v1692
    %v2317 = vpack.c.b16 %v1701, %v1693
    %v2318 = vpack.c.b16 %v1702, %v1694
    %v2319 = vpack.c.b16 %v1703, %v1695
    %v2320 = vpack.c.b16 %v1712, %v1704
    %v2321 = vpack.c.b16 %v1713, %v1705
    %v2322 = vpack.c.b16 %v1714, %v1706
    %v2323 = vpack.c.b16 %v1715, %v1707
    %v2324 = vpack.c.b16 %v1716, %v1708
    %v2325 = vpack.c.b16 %v1717, %v1709
    %v2326 = vpack.c.b16 %v1718, %v1710
    %v2327 = vpack.c.b16 %v1719, %v1711
    %v2328 = vpack.c.b16 %v1728, %v1720
    %v2329 = vpack.c.b16 %v1729, %v1721
    %v2330 = vpack.c.b16 %v1730, %v1722
    %v2331 = vpack.c.b16 %v1731, %v1723
    %v2332 = vpack.c.b16 %v1732, %v1724
    %v2333 = vpack.c.b16 %v1733, %v1725
    %v2334 = vpack.c.b16 %v1734, %v1726
    %v2335 = vpack.c.b16 %v1735, %v1727
    %v2336 = vpack.c.b16 %v1744, %v1736
    %v2337 = vpack.c.b16 %v1745, %v1737
    %v2338 = vpack.c.b16 %v1746, %v1738
    %v2339 = vpack.c.b16 %v1747, %v1739
    %v2340 = vpack.c.b16 %v1748, %v1740
    %v2341 = vpack.c.b16 %v1749, %v1741
    %v2342 = vpack.c.b16 %v1750, %v1742
    %v2343 = vpack.c.b16 %v1751, %v1743
    %v2344 = vpack.c.b16 %v1760, %v1752
    %v2345 = vpack.c.b16 %v1761, %v1753
    %v2346 = vpack.c.b16 %v1762, %v1754
    %v2347 = vpack.c.b16 %v1763, %v1755
    %v2348 = vpack.c.b16 %v1764, %v1756
    %v2349 = vpack.c.b16 %v1765, %v1757
    %v2350 = vpack.c.b16 %v1766, %v1758
    %v2351 = vpack.c.b16 %v1767, %v1759
    %v2352 = vpack.c.b16 %v1776, %v1768
    %v2353 = vpack.c.b16 %v1777, %v1769
    %v2354 = vpack.c.b16 %v1778, %v1770
    %v2355 = vpack.c.b16 %v1779, %v1771
    %v2356 = vpack.c.b16 %v1780, %v1772
    %v2357 = vpack.c.b16 %v1781, %v1773
    %v2358 = vpack.c.b16 %v1782, %v1774
    %v2359 = vpack.c.b16 %v1783, %v1775
    %v2360 = vpack.c.b16 %v1792, %v1784
    %v2361 = vpack.c.b16 %v1793, %v1785
    %v2362 = vpack.c.b16 %v1794, %v1786
    %v2363 = vpack.c.b16 %v1795, %v1787
    %v2364 = vpack.c.b16 %v1796, %v1788
    %v2365 = vpack.c.b16 %v1797, %v1789
    %v2366 = vpack.c.b16 %v1798, %v1790
    %v2367 = vpack.c.b16 %v1799, %v1791
    %v2368 = vpack.c.b16 %v1808, %v1800
    %v2369 = vpack.c.b16 %v1809, %v1801
    %v2370 = vpack.c.b16 %v1810, %v1802
    %v2371 = vpack.c.b16 %v1811, %v1803
    %v2372 = vpack.c.b16 %v1812, %v1804
    %v2373 = vpack.c.b16 %v1813, %v1805
    %v2374 = vpack.c.b16 %v1814, %v1806
    %v2375 = vpack.c.b16 %v1815, %v1807
    %v2376 = vpack.c.b16 %v1824, %v1816
    %v2377 = vpack.c.b16 %v1825, %v1817
    %v2378 = vpack.c.b16 %v1826, %v1818
    %v2379 = vpack.c.b16 %v1827, %v1819
    %v2380 = vpack.c.b16 %v1828, %v1820
    %v2381 = vpack.c.b16 %v1829, %v1821
    %v2382 = vpack.c.b16 %v1830, %v1822
    %v2383 = vpack.c.b16 %v1831, %v1823
    %v2384 = vpack.c.b16 %v1840, %v1832
    %v2385 = vpack.c.b16 %v1841, %v1833
    %v2386 = vpack.c.b16 %v1842, %v1834
    %v2387 = vpack.c.b16 %v1843, %v1835
    %v2388 = vpack.c.b16 %v1844, %v1836
    %v2389 = vpack.c.b16 %v1845, %v1837
    %v2390 = vpack.c.b16 %v1846, %v1838
    %v2391 = vpack.c.b16 %v1847, %v1839
    %v2392 = vpack.c.b16 %v1856, %v1848
    %v2393 = vpack.c.b16 %v1857, %v1849
    %v2394 = vpack.c.b16 %v1858, %v1850
    %v2395 = vpack.c.b16 %v1859, %v1851
    %v2396 = vpack.c.b16 %v1860, %v1852
    %v2397 = vpack.c.b16 %v1861, %v1853
    %v2398 = vpack.c.b16 %v1862, %v1854
    %v2399 = vpack.c.b16 %v1863, %v1855
    %v2400 = vpack.c.b16 %v1872, %v1864
    %v2401 = vpack.c.b16 %v1873, %v1865
    %v2402 = vpack.c.b16 %v1874, %v1866
    %v2403 = vpack.c.b16 %v1875, %v1867
    %v2404 = vpack.c.b16 %v1876, %v1868
    %v2405 = vpack.c.b16 %v1877, %v1869
    %v2406 = vpack.c.b16 %v1878, %v1870
    %v2407 = vpack.c.b16 %v1879, %v1871
    %v2408 = vpack.c.b16 %v1888, %v1880
    %v2409 = vpack.c.b16 %v1889, %v1881
    %v2410 = vpack.c.b16 %v1890, %v1882
    %v2411 = vpack.c.b16 %v1891, %v1883
    %v2412 = vpack.c.b16 %v1892, %v1884
    %v2413 = vpack.c.b16 %v1893, %v1885
    %v2414 = vpack.c.b16 %v1894, %v1886
    %v2415 = vpack.c.b16 %v1895, %v1887
    %v2416 = vpack.c.b16 %v1904, %v1896
    %v2417 = vpack.c.b16 %v1905, %v1897
    %v2418 = vpack.c.b16 %v1906, %v1898
    %v2419 = vpack.c.b16 %v1907, %v1899
    %v2420 = vpack.c.b16 %v1908, %v1900
    %v2421 = vpack.c.b16 %v1909, %v1901
    %v2422 = vpack.c.b16 %v1910, %v1902
    %v2423 = vpack.c.b16 %v1911, %v1903
    %v2424 = vpack.c.b16 %v1920, %v1912
    %v2425 = vpack.c.b16 %v1921, %v1913
    %v2426 = vpack.c.b16 %v1922, %v1914
    %v2427 = vpack.c.b16 %v1923, %v1915
    %v2428 = vpack.c.b16 %v1924, %v1916
    %v2429 = vpack.c.b16 %v1925, %v1917
    %v2430 = vpack.c.b16 %v1926, %v1918
    %v2431 = vpack.c.b16 %v1927, %v1919
    %v2432 = vpack.c.b16 %v1936, %v1928
    %v2433 = vpack.c.b16 %v1937, %v1929
    %v2434 = vpack.c.b16 %v1938, %v1930
    %v2435 = vpack.c.b16 %v1939, %v1931
    %v2436 = vpack.c.b16 %v1940, %v1932
    %v2437 = vpack.c.b16 %v1941, %v1933
    %v2438 = vpack.c.b16 %v1942, %v1934
    %v2439 = vpack.c.b16 %v1943, %v1935
    %v2440 = vpack.c.b16 %v1952, %v1944
    %v2441 = vpack.c.b16 %v1953, %v1945
    %v2442 = vpack.c.b16 %v1954, %v1946
    %v2443 = vpack.c.b16 %v1955, %v1947
    %v2444 = vpack.c.b16 %v1956, %v1948
    %v2445 = vpack.c.b16 %v1957, %v1949
    %v2446 = vpack.c.b16 %v1958, %v1950
    %v2447 = vpack.c.b16 %v1959, %v1951
    %v2448 = vpack.c.b16 %v1968, %v1960
    %v2449 = vpack.c.b16 %v1969, %v1961
    %v2450 = vpack.c.b16 %v1970, %v1962
    %v2451 = vpack.c.b16 %v1971, %v1963
    %v2452 = vpack.c.b16 %v1972, %v1964
    %v2453 = vpack.c.b16 %v1973, %v1965
    %v2454 = vpack.c.b16 %v1974, %v1966
    %v2455 = vpack.c.b16 %v1975, %v1967
    %v2456 = vpack.c.b16 %v1984, %v1976
    %v2457 = vpack.c.b16 %v1985, %v1977
    %v2458 = vpack.c.b16 %v1986, %v1978
    %v2459 = vpack.c.b16 %v1987, %v1979
    %v2460 = vpack.c.b16 %v1988, %v1980
    %v2461 = vpack.c.b16 %v1989, %v1981
    %v2462 = vpack.c.b16 %v1990, %v1982
    %v2463 = vpack.c.b16 %v1991, %v1983
    %v2464 = vpack.c.b16 %v2000, %v1992
    %v2465 = vpack.c.b16 %v2001, %v1993
    %v2466 = vpack.c.b16 %v2002, %v1994
    %v2467 = vpack.c.b16 %v2003, %v1995
    %v2468 = vpack.c.b16 %v2004, %v1996
    %v2469 = vpack.c.b16 %v2005, %v1997
    %v2470 = vpack.c.b16 %v2006, %v1998
    %v2471 = vpack.c.b16 %v2007, %v1999
    %v2472 = vpack.c.b16 %v2016, %v2008
    %v2473 = vpack.c.b16 %v2017, %v2009
    %v2474 = vpack.c.b16 %v2018, %v2010
    %v2475 = vpack.c.b16 %v2019, %v2011
    %v2476 = vpack.c.b16 %v2020, %v2012
    %v2477 = vpack.c.b16 %v2021, %v2013
    %v2478 = vpack.c.b16 %v2022, %v2014
    %v2479 = vpack.c.b16 %v2023, %v2015
    %v2480 = vpack.c.b16 %v2032, %v2024
    %v2481 = vpack.c.b16 %v2033, %v2025
    %v2482 = vpack.c.b16 %v2034, %v2026
    %v2483 = vpack.c.b16 %v2035, %v2027
    %v2484 = vpack.c.b16 %v2036, %v2028
    %v2485 = vpack.c.b16 %v2037, %v2029
    %v2486 = vpack.c.b16 %v2038, %v2030
    %v2487 = vpack.c.b16 %v2039, %v2031
    %v2488 = vpack.c.b16 %v2048, %v2040
    %v2489 = vpack.c.b16 %v2049, %v2041
    %v2490 = vpack.c.b16 %v2050, %v2042
    %v2491 = vpack.c.b16 %v2051, %v2043
    %v2492 = vpack.c.b16 %v2052, %v2044
    %v2493 = vpack.c.b16 %v2053, %v2045
    %v2494 = vpack.c.b16 %v2054, %v2046
    %v2495 = vpack.c.b16 %v2055, %v2047
    %v2496 = vpack.c.b16 %v2064, %v2056
    %v2497 = vpack.c.b16 %v2065, %v2057
    %v2498 = vpack.c.b16 %v2066, %v2058
    %v2499 = vpack.c.b16 %v2067, %v2059
    %v2500 = vpack.c.b16 %v2068, %v2060
    %v2501 = vpack.c.b16 %v2069, %v2061
    %v2502 = vpack.c.b16 %v2070, %v2062
    %v2503 = vpack.c.b16 %v2071, %v2063
    %v2504 = vpack.c.b16 %v2080, %v2072
    %v2505 = vpack.c.b16 %v2081, %v2073
    %v2506 = vpack.c.b16 %v2082, %v2074
    %v2507 = vpack.c.b16 %v2083, %v2075
    %v2508 = vpack.c.b16 %v2084, %v2076
    %v2509 = vpack.c.b16 %v2085, %v2077
    %v2510 = vpack.c.b16 %v2086, %v2078
    %v2511 = vpack.c.b16 %v2087, %v2079
    %v2512 = vpack.c.b16 %v2096, %v2088
    %v2513 = vpack.c.b16 %v2097, %v2089
    %v2514 = vpack.c.b16 %v2098, %v2090
    %v2515 = vpack.c.b16 %v2099, %v2091
    %v2516 = vpack.c.b16 %v2100, %v2092
    %v2517 = vpack.c.b16 %v2101, %v2093
    %v2518 = vpack.c.b16 %v2102, %v2094
    %v2519 = vpack.c.b16 %v2103, %v2095
    %vm2884 = vcmask 850944
    %v2886 = vsel %vm2884, %v2111, 0
    %v2889 = vsel %vm2884, %v2119, 0
    %v2892 = vsel %vm2884, %v2127, 0
    %v2895 = vsel %vm2884, %v2135, 0
    %v2898 = vsel %vm2884, %v2143, 0
    %v2901 = vsel %vm2884, %v2151, 0
    %v2904 = vsel %vm2884, %v2159, 0
    %v2907 = vsel %vm2884, %v2167, 0
    %v2910 = vsel %vm2884, %v2175, 0
    %v2913 = vsel %vm2884, %v2183, 0
    %v2916 = vsel %vm2884, %v2191, 0
    %v2919 = vsel %vm2884, %v2199, 0
    %v2922 = vsel %vm2884, %v2207, 0
    %v2925 = vsel %vm2884, %v2215, 0
    %v2928 = vsel %vm2884, %v2223, 0
    %v2931 = vsel %vm2884, %v2231, 0
    %v2934 = vsel %vm2884, %v2239, 0
    %v2937 = vsel %vm2884, %v2247, 0
    %v2940 = vsel %vm2884, %v2255, 0
    %v2943 = vsel %vm2884, %v2263, 0
    %v2946 = vsel %vm2884, %v2271, 0
    %v2949 = vsel %vm2884, %v2279, 0
    %v2952 = vsel %vm2884, %v2287, 0
    %v2955 = vsel %vm2884, %v2295, 0
    %v2958 = vsel %vm2884, %v2303, 0
    %v2961 = vsel %vm2884, %v2311, 0
    %v2964 = vsel %vm2884, %v2319, 0
    %v2967 = vsel %vm2884, %v2327, 0
    %v2970 = vsel %vm2884, %v2335, 0
    %v2973 = vsel %vm2884, %v2343, 0
    %v2976 = vsel %vm2884, %v2351, 0
    %v2979 = vsel %vm2884, %v2359, 0
    %v2982 = vsel %vm2884, %v2367, 0
    %v2985 = vsel %vm2884, %v2375, 0
    %v2988 = vsel %vm2884, %v2383, 0
    %v2991 = vsel %vm2884, %v2391, 0
    %v2994 = vsel %vm2884, %v2399, 0
    %v2997 = vsel %vm2884, %v2407, 0
    %v3000 = vsel %vm2884, %v2415, 0
    %v3003 = vsel %vm2884, %v2423, 0
    %v3006 = vsel %vm2884, %v2431, 0
    %v3009 = vsel %vm2884, %v2439, 0
    %v3012 = vsel %vm2884, %v2447, 0
    %v3015 = vsel %vm2884, %v2455, 0
    %v3018 = vsel %vm2884, %v2463, 0
    %v3021 = vsel %vm2884, %v2471, 0
    %v3024 = vsel %vm2884, %v2479, 0
    %v3027 = vsel %vm2884, %v2487, 0
    %v3030 = vsel %vm2884, %v2495, 0
    %v3033 = vsel %vm2884, %v2503, 0
    %v3036 = vsel %vm2884, %v2511, 0
    %v3039 = vsel %vm2884, %v2519, 0
    %vm3041 = vcmask 1043456
    %v3043 = vsel %vm3041, %v854, 0
    %v3046 = vsel %vm3041, %v855, 0
    %3048 = vmatpush.bf16.msra.mxu0 %v744
    %3049 = vmatpush.bf16.msra.mxu0 %v742
    %3050 = vmatpush.bf16.msra.mxu0 %v740
    %3051 = vmatpush.bf16.msra.mxu0 %v738
    %3052 = vmatpush.bf16.msra.mxu0 %v736
    %3053 = vmatpush.bf16.msra.mxu0 %v734
    %3054 = vmatpush.bf16.msra.mxu0 %v732
    %3055 = vmatpush.bf16.msra.mxu0 %v730
    %3056 = vmatmul.bf16.gmra.mxu0 %v2104
    %v3057 = vpop.f32.mrf.mxu0
    %v3058 = vadd.f32 0.0, %v3057
    %v3059 = vpop.f32.mrf.mxu0
    %v3060 = vadd.f32 0.0, %v3059
    %3061 = vmatmul.bf16.gmra.mxu0 %v2112
    %v3062 = vpop.f32.mrf.mxu0
    %v3063 = vadd.f32 0.0, %v3062
    %v3064 = vpop.f32.mrf.mxu0
    %v3065 = vadd.f32 0.0, %v3064
    %3066 = vmatmul.bf16.gmra.mxu0 %v2120
    %v3067 = vpop.f32.mrf.mxu0
    %v3068 = vadd.f32 0.0, %v3067
    %v3069 = vpop.f32.mrf.mxu0
    %v3070 = vadd.f32 0.0, %v3069
    %3071 = vmatmul.bf16.gmra.mxu0 %v2128
    %v3072 = vpop.f32.mrf.mxu0
    %v3073 = vadd.f32 0.0, %v3072
    %v3074 = vpop.f32.mrf.mxu0
    %v3075 = vadd.f32 0.0, %v3074
    %3076 = vmatmul.bf16.gmra.mxu0 %v2136
    %v3077 = vpop.f32.mrf.mxu0
    %v3078 = vadd.f32 0.0, %v3077
    %v3079 = vpop.f32.mrf.mxu0
    %v3080 = vadd.f32 0.0, %v3079
    %3081 = vmatmul.bf16.gmra.mxu0 %v2144
    %v3082 = vpop.f32.mrf.mxu0
    %v3083 = vadd.f32 0.0, %v3082
    %v3084 = vpop.f32.mrf.mxu0
    %v3085 = vadd.f32 0.0, %v3084
    %3086 = vmatmul.bf16.gmra.mxu0 %v2152
    %v3087 = vpop.f32.mrf.mxu0
    %v3088 = vadd.f32 0.0, %v3087
    %v3089 = vpop.f32.mrf.mxu0
    %v3090 = vadd.f32 0.0, %v3089
    %3091 = vmatmul.bf16.gmra.mxu0 %v2160
    %v3092 = vpop.f32.mrf.mxu0
    %v3093 = vadd.f32 0.0, %v3092
    %v3094 = vpop.f32.mrf.mxu0
    %v3095 = vadd.f32 0.0, %v3094
    %3096 = vmatmul.bf16.gmra.mxu0 %v2168
    %v3097 = vpop.f32.mrf.mxu0
    %v3098 = vadd.f32 0.0, %v3097
    %v3099 = vpop.f32.mrf.mxu0
    %v3100 = vadd.f32 0.0, %v3099
    %3101 = vmatmul.bf16.gmra.mxu0 %v2176
    %v3102 = vpop.f32.mrf.mxu0
    %v3103 = vadd.f32 0.0, %v3102
    %v3104 = vpop.f32.mrf.mxu0
    %v3105 = vadd.f32 0.0, %v3104
    %3106 = vmatmul.bf16.gmra.mxu0 %v2184
    %v3107 = vpop.f32.mrf.mxu0
    %v3108 = vadd.f32 0.0, %v3107
    %v3109 = vpop.f32.mrf.mxu0
    %v3110 = vadd.f32 0.0, %v3109
    %3111 = vmatmul.bf16.gmra.mxu0 %v2192
    %v3112 = vpop.f32.mrf.mxu0
    %v3113 = vadd.f32 0.0, %v3112
    %v3114 = vpop.f32.mrf.mxu0
    %v3115 = vadd.f32 0.0, %v3114
    %3116 = vmatmul.bf16.gmra.mxu0 %v2200
    %v3117 = vpop.f32.mrf.mxu0
    %v3118 = vadd.f32 0.0, %v3117
    %v3119 = vpop.f32.mrf.mxu0
    %v3120 = vadd.f32 0.0, %v3119
    %3121 = vmatmul.bf16.gmra.mxu0 %v2208
    %v3122 = vpop.f32.mrf.mxu0
    %v3123 = vadd.f32 0.0, %v3122
    %v3124 = vpop.f32.mrf.mxu0
    %v3125 = vadd.f32 0.0, %v3124
    %3126 = vmatmul.bf16.gmra.mxu0 %v2216
    %v3127 = vpop.f32.mrf.mxu0
    %v3128 = vadd.f32 0.0, %v3127
    %v3129 = vpop.f32.mrf.mxu0
    %v3130 = vadd.f32 0.0, %v3129
    %3131 = vmatmul.bf16.gmra.mxu0 %v2224
    %v3132 = vpop.f32.mrf.mxu0
    %v3133 = vadd.f32 0.0, %v3132
    %v3134 = vpop.f32.mrf.mxu0
    %v3135 = vadd.f32 0.0, %v3134
    %3136 = vmatmul.bf16.gmra.mxu0 %v2232
    %v3137 = vpop.f32.mrf.mxu0
    %v3138 = vadd.f32 0.0, %v3137
    %v3139 = vpop.f32.mrf.mxu0
    %v3140 = vadd.f32 0.0, %v3139
    %3141 = vmatmul.bf16.gmra.mxu0 %v2240
    %v3142 = vpop.f32.mrf.mxu0
    %v3143 = vadd.f32 0.0, %v3142
    %v3144 = vpop.f32.mrf.mxu0
    %v3145 = vadd.f32 0.0, %v3144
    %3146 = vmatmul.bf16.gmra.mxu0 %v2248
    %v3147 = vpop.f32.mrf.mxu0
    %v3148 = vadd.f32 0.0, %v3147
    %v3149 = vpop.f32.mrf.mxu0
    %v3150 = vadd.f32 0.0, %v3149
    %3151 = vmatmul.bf16.gmra.mxu0 %v2256
    %v3152 = vpop.f32.mrf.mxu0
    %v3153 = vadd.f32 0.0, %v3152
    %v3154 = vpop.f32.mrf.mxu0
    %v3155 = vadd.f32 0.0, %v3154
    %3156 = vmatmul.bf16.gmra.mxu0 %v2264
    %v3157 = vpop.f32.mrf.mxu0
    %v3158 = vadd.f32 0.0, %v3157
    %v3159 = vpop.f32.mrf.mxu0
    %v3160 = vadd.f32 0.0, %v3159
    %3161 = vmatmul.bf16.gmra.mxu0 %v2272
    %v3162 = vpop.f32.mrf.mxu0
    %v3163 = vadd.f32 0.0, %v3162
    %v3164 = vpop.f32.mrf.mxu0
    %v3165 = vadd.f32 0.0, %v3164
    %3166 = vmatmul.bf16.gmra.mxu0 %v2280
    %v3167 = vpop.f32.mrf.mxu0
    %v3168 = vadd.f32 0.0, %v3167
    %v3169 = vpop.f32.mrf.mxu0
    %v3170 = vadd.f32 0.0, %v3169
    %3171 = vmatmul.bf16.gmra.mxu0 %v2288
    %v3172 = vpop.f32.mrf.mxu0
    %v3173 = vadd.f32 0.0, %v3172
    %v3174 = vpop.f32.mrf.mxu0
    %v3175 = vadd.f32 0.0, %v3174
    %3176 = vmatmul.bf16.gmra.mxu0 %v2296
    %v3177 = vpop.f32.mrf.mxu0
    %v3178 = vadd.f32 0.0, %v3177
    %v3179 = vpop.f32.mrf.mxu0
    %v3180 = vadd.f32 0.0, %v3179
    %3181 = vmatmul.bf16.gmra.mxu0 %v2304
    %v3182 = vpop.f32.mrf.mxu0
    %v3183 = vadd.f32 0.0, %v3182
    %v3184 = vpop.f32.mrf.mxu0
    %v3185 = vadd.f32 0.0, %v3184
    %3186 = vmatmul.bf16.gmra.mxu0 %v2312
    %v3187 = vpop.f32.mrf.mxu0
    %v3188 = vadd.f32 0.0, %v3187
    %v3189 = vpop.f32.mrf.mxu0
    %v3190 = vadd.f32 0.0, %v3189
    %3191 = vmatmul.bf16.gmra.mxu0 %v2320
    %v3192 = vpop.f32.mrf.mxu0
    %v3193 = vadd.f32 0.0, %v3192
    %v3194 = vpop.f32.mrf.mxu0
    %v3195 = vadd.f32 0.0, %v3194
    %3196 = vmatmul.bf16.gmra.mxu0 %v2328
    %v3197 = vpop.f32.mrf.mxu0
    %v3198 = vadd.f32 0.0, %v3197
    %v3199 = vpop.f32.mrf.mxu0
    %v3200 = vadd.f32 0.0, %v3199
    %3201 = vmatmul.bf16.gmra.mxu0 %v2336
    %v3202 = vpop.f32.mrf.mxu0
    %v3203 = vadd.f32 0.0, %v3202
    %v3204 = vpop.f32.mrf.mxu0
    %v3205 = vadd.f32 0.0, %v3204
    %3206 = vmatmul.bf16.gmra.mxu0 %v2344
    %v3207 = vpop.f32.mrf.mxu0
    %v3208 = vadd.f32 0.0, %v3207
    %v3209 = vpop.f32.mrf.mxu0
    %v3210 = vadd.f32 0.0, %v3209
    %3211 = vmatmul.bf16.gmra.mxu0 %v2352
    %v3212 = vpop.f32.mrf.mxu0
    %v3213 = vadd.f32 0.0, %v3212
    %v3214 = vpop.f32.mrf.mxu0
    %v3215 = vadd.f32 0.0, %v3214
    %3216 = vmatmul.bf16.gmra.mxu0 %v2360
    %v3217 = vpop.f32.mrf.mxu0
    %v3218 = vadd.f32 0.0, %v3217
    %v3219 = vpop.f32.mrf.mxu0
    %v3220 = vadd.f32 0.0, %v3219
    %3221 = vmatmul.bf16.gmra.mxu0 %v2368
    %v3222 = vpop.f32.mrf.mxu0
    %v3223 = vadd.f32 0.0, %v3222
    %v3224 = vpop.f32.mrf.mxu0
    %v3225 = vadd.f32 0.0, %v3224
    %3226 = vmatmul.bf16.gmra.mxu0 %v2376
    %v3227 = vpop.f32.mrf.mxu0
    %v3228 = vadd.f32 0.0, %v3227
    %v3229 = vpop.f32.mrf.mxu0
    %v3230 = vadd.f32 0.0, %v3229
    %3231 = vmatmul.bf16.gmra.mxu0 %v2384
    %v3232 = vpop.f32.mrf.mxu0
    %v3233 = vadd.f32 0.0, %v3232
    %v3234 = vpop.f32.mrf.mxu0
    %v3235 = vadd.f32 0.0, %v3234
    %3236 = vmatmul.bf16.gmra.mxu0 %v2392
    %v3237 = vpop.f32.mrf.mxu0
    %v3238 = vadd.f32 0.0, %v3237
    %v3239 = vpop.f32.mrf.mxu0
    %v3240 = vadd.f32 0.0, %v3239
    %3241 = vmatmul.bf16.gmra.mxu0 %v2400
    %v3242 = vpop.f32.mrf.mxu0
    %v3243 = vadd.f32 0.0, %v3242
    %v3244 = vpop.f32.mrf.mxu0
    %v3245 = vadd.f32 0.0, %v3244
    %3246 = vmatmul.bf16.gmra.mxu0 %v2408
    %v3247 = vpop.f32.mrf.mxu0
    %v3248 = vadd.f32 0.0, %v3247
    %v3249 = vpop.f32.mrf.mxu0
    %v3250 = vadd.f32 0.0, %v3249
    %3251 = vmatmul.bf16.gmra.mxu0 %v2416
    %v3252 = vpop.f32.mrf.mxu0
    %v3253 = vadd.f32 0.0, %v3252
    %v3254 = vpop.f32.mrf.mxu0
    %v3255 = vadd.f32 0.0, %v3254
    %3256 = vmatmul.bf16.gmra.mxu0 %v2424
    %v3257 = vpop.f32.mrf.mxu0
    %v3258 = vadd.f32 0.0, %v3257
    %v3259 = vpop.f32.mrf.mxu0
    %v3260 = vadd.f32 0.0, %v3259
    %3261 = vmatmul.bf16.gmra.mxu0 %v2432
    %v3262 = vpop.f32.mrf.mxu0
    %v3263 = vadd.f32 0.0, %v3262
    %v3264 = vpop.f32.mrf.mxu0
    %v3265 = vadd.f32 0.0, %v3264
    %3266 = vmatmul.bf16.gmra.mxu0 %v2440
    %v3267 = vpop.f32.mrf.mxu0
    %v3268 = vadd.f32 0.0, %v3267
    %v3269 = vpop.f32.mrf.mxu0
    %v3270 = vadd.f32 0.0, %v3269
    %3271 = vmatmul.bf16.gmra.mxu0 %v2448
    %v3272 = vpop.f32.mrf.mxu0
    %v3273 = vadd.f32 0.0, %v3272
    %v3274 = vpop.f32.mrf.mxu0
    %v3275 = vadd.f32 0.0, %v3274
    %3276 = vmatmul.bf16.gmra.mxu0 %v2456
    %v3277 = vpop.f32.mrf.mxu0
    %v3278 = vadd.f32 0.0, %v3277
    %v3279 = vpop.f32.mrf.mxu0
    %v3280 = vadd.f32 0.0, %v3279
    %3281 = vmatmul.bf16.gmra.mxu0 %v2464
    %v3282 = vpop.f32.mrf.mxu0
    %v3283 = vadd.f32 0.0, %v3282
    %v3284 = vpop.f32.mrf.mxu0
    %v3285 = vadd.f32 0.0, %v3284
    %3286 = vmatmul.bf16.gmra.mxu0 %v2472
    %v3287 = vpop.f32.mrf.mxu0
    %v3288 = vadd.f32 0.0, %v3287
    %v3289 = vpop.f32.mrf.mxu0
    %v3290 = vadd.f32 0.0, %v3289
    %3291 = vmatmul.bf16.gmra.mxu0 %v2480
    %v3292 = vpop.f32.mrf.mxu0
    %v3293 = vadd.f32 0.0, %v3292
    %v3294 = vpop.f32.mrf.mxu0
    %v3295 = vadd.f32 0.0, %v3294
    %3296 = vmatmul.bf16.gmra.mxu0 %v2488
    %v3297 = vpop.f32.mrf.mxu0
    %v3298 = vadd.f32 0.0, %v3297
    %v3299 = vpop.f32.mrf.mxu0
    %v3300 = vadd.f32 0.0, %v3299
    %3301 = vmatmul.bf16.gmra.mxu0 %v2496
    %v3302 = vpop.f32.mrf.mxu0
    %v3303 = vadd.f32 0.0, %v3302
    %v3304 = vpop.f32.mrf.mxu0
    %v3305 = vadd.f32 0.0, %v3304
    %3306 = vmatmul.bf16.gmra.mxu0 %v2504
    %v3307 = vpop.f32.mrf.mxu0
    %v3308 = vadd.f32 0.0, %v3307
    %v3309 = vpop.f32.mrf.mxu0
    %v3310 = vadd.f32 0.0, %v3309
    %3311 = vmatmul.bf16.gmra.mxu0 %v2512
    %v3312 = vpop.f32.mrf.mxu0
    %v3313 = vadd.f32 0.0, %v3312
    %v3314 = vpop.f32.mrf.mxu0
    %v3315 = vadd.f32 0.0, %v3314
    %3316 = vdwg.mxu0
    %3317 = vmatpush.bf16.msra.mxu0 %v760
    %3318 = vmatpush.bf16.msra.mxu0 %v758
    %3319 = vmatpush.bf16.msra.mxu0 %v756
    %3320 = vmatpush.bf16.msra.mxu0 %v754
    %3321 = vmatpush.bf16.msra.mxu0 %v752
    %3322 = vmatpush.bf16.msra.mxu0 %v750
    %3323 = vmatpush.bf16.msra.mxu0 %v748
    %3324 = vmatpush.bf16.msra.mxu0 %v746
    %3325 = vmatmul.bf16.gmra.mxu0 %v2105
    %v3326 = vpop.f32.mrf.mxu0
    %v3327 = vadd.f32 %v3058, %v3326
    %v3328 = vpop.f32.mrf.mxu0
    %v3329 = vadd.f32 %v3060, %v3328
    %3330 = vmatmul.bf16.gmra.mxu0 %v2113
    %v3331 = vpop.f32.mrf.mxu0
    %v3332 = vadd.f32 %v3063, %v3331
    %v3333 = vpop.f32.mrf.mxu0
    %v3334 = vadd.f32 %v3065, %v3333
    %3335 = vmatmul.bf16.gmra.mxu0 %v2121
    %v3336 = vpop.f32.mrf.mxu0
    %v3337 = vadd.f32 %v3068, %v3336
    %v3338 = vpop.f32.mrf.mxu0
    %v3339 = vadd.f32 %v3070, %v3338
    %3340 = vmatmul.bf16.gmra.mxu0 %v2129
    %v3341 = vpop.f32.mrf.mxu0
    %v3342 = vadd.f32 %v3073, %v3341
    %v3343 = vpop.f32.mrf.mxu0
    %v3344 = vadd.f32 %v3075, %v3343
    %3345 = vmatmul.bf16.gmra.mxu0 %v2137
    %v3346 = vpop.f32.mrf.mxu0
    %v3347 = vadd.f32 %v3078, %v3346
    %v3348 = vpop.f32.mrf.mxu0
    %v3349 = vadd.f32 %v3080, %v3348
    %3350 = vmatmul.bf16.gmra.mxu0 %v2145
    %v3351 = vpop.f32.mrf.mxu0
    %v3352 = vadd.f32 %v3083, %v3351
    %v3353 = vpop.f32.mrf.mxu0
    %v3354 = vadd.f32 %v3085, %v3353
    %3355 = vmatmul.bf16.gmra.mxu0 %v2153
    %v3356 = vpop.f32.mrf.mxu0
    %v3357 = vadd.f32 %v3088, %v3356
    %v3358 = vpop.f32.mrf.mxu0
    %v3359 = vadd.f32 %v3090, %v3358
    %3360 = vmatmul.bf16.gmra.mxu0 %v2161
    %v3361 = vpop.f32.mrf.mxu0
    %v3362 = vadd.f32 %v3093, %v3361
    %v3363 = vpop.f32.mrf.mxu0
    %v3364 = vadd.f32 %v3095, %v3363
    %3365 = vmatmul.bf16.gmra.mxu0 %v2169
    %v3366 = vpop.f32.mrf.mxu0
    %v3367 = vadd.f32 %v3098, %v3366
    %v3368 = vpop.f32.mrf.mxu0
    %v3369 = vadd.f32 %v3100, %v3368
    %3370 = vmatmul.bf16.gmra.mxu0 %v2177
    %v3371 = vpop.f32.mrf.mxu0
    %v3372 = vadd.f32 %v3103, %v3371
    %v3373 = vpop.f32.mrf.mxu0
    %v3374 = vadd.f32 %v3105, %v3373
    %3375 = vmatmul.bf16.gmra.mxu0 %v2185
    %v3376 = vpop.f32.mrf.mxu0
    %v3377 = vadd.f32 %v3108, %v3376
    %v3378 = vpop.f32.mrf.mxu0
    %v3379 = vadd.f32 %v3110, %v3378
    %3380 = vmatmul.bf16.gmra.mxu0 %v2193
    %v3381 = vpop.f32.mrf.mxu0
    %v3382 = vadd.f32 %v3113, %v3381
    %v3383 = vpop.f32.mrf.mxu0
    %v3384 = vadd.f32 %v3115, %v3383
    %3385 = vmatmul.bf16.gmra.mxu0 %v2201
    %v3386 = vpop.f32.mrf.mxu0
    %v3387 = vadd.f32 %v3118, %v3386
    %v3388 = vpop.f32.mrf.mxu0
    %v3389 = vadd.f32 %v3120, %v3388
    %3390 = vmatmul.bf16.gmra.mxu0 %v2209
    %v3391 = vpop.f32.mrf.mxu0
    %v3392 = vadd.f32 %v3123, %v3391
    %v3393 = vpop.f32.mrf.mxu0
    %v3394 = vadd.f32 %v3125, %v3393
    %3395 = vmatmul.bf16.gmra.mxu0 %v2217
    %v3396 = vpop.f32.mrf.mxu0
    %v3397 = vadd.f32 %v3128, %v3396
    %v3398 = vpop.f32.mrf.mxu0
    %v3399 = vadd.f32 %v3130, %v3398
    %3400 = vmatmul.bf16.gmra.mxu0 %v2225
    %v3401 = vpop.f32.mrf.mxu0
    %v3402 = vadd.f32 %v3133, %v3401
    %v3403 = vpop.f32.mrf.mxu0
    %v3404 = vadd.f32 %v3135, %v3403
    %3405 = vmatmul.bf16.gmra.mxu0 %v2233
    %v3406 = vpop.f32.mrf.mxu0
    %v3407 = vadd.f32 %v3138, %v3406
    %v3408 = vpop.f32.mrf.mxu0
    %v3409 = vadd.f32 %v3140, %v3408
    %3410 = vmatmul.bf16.gmra.mxu0 %v2241
    %v3411 = vpop.f32.mrf.mxu0
    %v3412 = vadd.f32 %v3143, %v3411
    %v3413 = vpop.f32.mrf.mxu0
    %v3414 = vadd.f32 %v3145, %v3413
    %3415 = vmatmul.bf16.gmra.mxu0 %v2249
    %v3416 = vpop.f32.mrf.mxu0
    %v3417 = vadd.f32 %v3148, %v3416
    %v3418 = vpop.f32.mrf.mxu0
    %v3419 = vadd.f32 %v3150, %v3418
    %3420 = vmatmul.bf16.gmra.mxu0 %v2257
    %v3421 = vpop.f32.mrf.mxu0
    %v3422 = vadd.f32 %v3153, %v3421
    %v3423 = vpop.f32.mrf.mxu0
    %v3424 = vadd.f32 %v3155, %v3423
    %3425 = vmatmul.bf16.gmra.mxu0 %v2265
    %v3426 = vpop.f32.mrf.mxu0
    %v3427 = vadd.f32 %v3158, %v3426
    %v3428 = vpop.f32.mrf.mxu0
    %v3429 = vadd.f32 %v3160, %v3428
    %3430 = vmatmul.bf16.gmra.mxu0 %v2273
    %v3431 = vpop.f32.mrf.mxu0
    %v3432 = vadd.f32 %v3163, %v3431
    %v3433 = vpop.f32.mrf.mxu0
    %v3434 = vadd.f32 %v3165, %v3433
    %3435 = vmatmul.bf16.gmra.mxu0 %v2281
    %v3436 = vpop.f32.mrf.mxu0
    %v3437 = vadd.f32 %v3168, %v3436
    %v3438 = vpop.f32.mrf.mxu0
    %v3439 = vadd.f32 %v3170, %v3438
    %3440 = vmatmul.bf16.gmra.mxu0 %v2289
    %v3441 = vpop.f32.mrf.mxu0
    %v3442 = vadd.f32 %v3173, %v3441
    %v3443 = vpop.f32.mrf.mxu0
    %v3444 = vadd.f32 %v3175, %v3443
    %3445 = vmatmul.bf16.gmra.mxu0 %v2297
    %v3446 = vpop.f32.mrf.mxu0
    %v3447 = vadd.f32 %v3178, %v3446
    %v3448 = vpop.f32.mrf.mxu0
    %v3449 = vadd.f32 %v3180, %v3448
    %3450 = vmatmul.bf16.gmra.mxu0 %v2305
    %v3451 = vpop.f32.mrf.mxu0
    %v3452 = vadd.f32 %v3183, %v3451
    %v3453 = vpop.f32.mrf.mxu0
    %v3454 = vadd.f32 %v3185, %v3453
    %3455 = vmatmul.bf16.gmra.mxu0 %v2313
    %v3456 = vpop.f32.mrf.mxu0
    %v3457 = vadd.f32 %v3188, %v3456
    %v3458 = vpop.f32.mrf.mxu0
    %v3459 = vadd.f32 %v3190, %v3458
    %3460 = vmatmul.bf16.gmra.mxu0 %v2321
    %v3461 = vpop.f32.mrf.mxu0
    %v3462 = vadd.f32 %v3193, %v3461
    %v3463 = vpop.f32.mrf.mxu0
    %v3464 = vadd.f32 %v3195, %v3463
    %3465 = vmatmul.bf16.gmra.mxu0 %v2329
    %v3466 = vpop.f32.mrf.mxu0
    %v3467 = vadd.f32 %v3198, %v3466
    %v3468 = vpop.f32.mrf.mxu0
    %v3469 = vadd.f32 %v3200, %v3468
    %3470 = vmatmul.bf16.gmra.mxu0 %v2337
    %v3471 = vpop.f32.mrf.mxu0
    %v3472 = vadd.f32 %v3203, %v3471
    %v3473 = vpop.f32.mrf.mxu0
    %v3474 = vadd.f32 %v3205, %v3473
    %3475 = vmatmul.bf16.gmra.mxu0 %v2345
    %v3476 = vpop.f32.mrf.mxu0
    %v3477 = vadd.f32 %v3208, %v3476
    %v3478 = vpop.f32.mrf.mxu0
    %v3479 = vadd.f32 %v3210, %v3478
    %3480 = vmatmul.bf16.gmra.mxu0 %v2353
    %v3481 = vpop.f32.mrf.mxu0
    %v3482 = vadd.f32 %v3213, %v3481
    %v3483 = vpop.f32.mrf.mxu0
    %v3484 = vadd.f32 %v3215, %v3483
    %3485 = vmatmul.bf16.gmra.mxu0 %v2361
    %v3486 = vpop.f32.mrf.mxu0
    %v3487 = vadd.f32 %v3218, %v3486
    %v3488 = vpop.f32.mrf.mxu0
    %v3489 = vadd.f32 %v3220, %v3488
    %3490 = vmatmul.bf16.gmra.mxu0 %v2369
    %v3491 = vpop.f32.mrf.mxu0
    %v3492 = vadd.f32 %v3223, %v3491
    %v3493 = vpop.f32.mrf.mxu0
    %v3494 = vadd.f32 %v3225, %v3493
    %3495 = vmatmul.bf16.gmra.mxu0 %v2377
    %v3496 = vpop.f32.mrf.mxu0
    %v3497 = vadd.f32 %v3228, %v3496
    %v3498 = vpop.f32.mrf.mxu0
    %v3499 = vadd.f32 %v3230, %v3498
    %3500 = vmatmul.bf16.gmra.mxu0 %v2385
    %v3501 = vpop.f32.mrf.mxu0
    %v3502 = vadd.f32 %v3233, %v3501
    %v3503 = vpop.f32.mrf.mxu0
    %v3504 = vadd.f32 %v3235, %v3503
    %3505 = vmatmul.bf16.gmra.mxu0 %v2393
    %v3506 = vpop.f32.mrf.mxu0
    %v3507 = vadd.f32 %v3238, %v3506
    %v3508 = vpop.f32.mrf.mxu0
    %v3509 = vadd.f32 %v3240, %v3508
    %3510 = vmatmul.bf16.gmra.mxu0 %v2401
    %v3511 = vpop.f32.mrf.mxu0
    %v3512 = vadd.f32 %v3243, %v3511
    %v3513 = vpop.f32.mrf.mxu0
    %v3514 = vadd.f32 %v3245, %v3513
    %3515 = vmatmul.bf16.gmra.mxu0 %v2409
    %v3516 = vpop.f32.mrf.mxu0
    %v3517 = vadd.f32 %v3248, %v3516
    %v3518 = vpop.f32.mrf.mxu0
    %v3519 = vadd.f32 %v3250, %v3518
    %3520 = vmatmul.bf16.gmra.mxu0 %v2417
    %v3521 = vpop.f32.mrf.mxu0
    %v3522 = vadd.f32 %v3253, %v3521
    %v3523 = vpop.f32.mrf.mxu0
    %v3524 = vadd.f32 %v3255, %v3523
    %3525 = vmatmul.bf16.gmra.mxu0 %v2425
    %v3526 = vpop.f32.mrf.mxu0
    %v3527 = vadd.f32 %v3258, %v3526
    %v3528 = vpop.f32.mrf.mxu0
    %v3529 = vadd.f32 %v3260, %v3528
    %3530 = vmatmul.bf16.gmra.mxu0 %v2433
    %v3531 = vpop.f32.mrf.mxu0
    %v3532 = vadd.f32 %v3263, %v3531
    %v3533 = vpop.f32.mrf.mxu0
    %v3534 = vadd.f32 %v3265, %v3533
    %3535 = vmatmul.bf16.gmra.mxu0 %v2441
    %v3536 = vpop.f32.mrf.mxu0
    %v3537 = vadd.f32 %v3268, %v3536
    %v3538 = vpop.f32.mrf.mxu0
    %v3539 = vadd.f32 %v3270, %v3538
    %3540 = vmatmul.bf16.gmra.mxu0 %v2449
    %v3541 = vpop.f32.mrf.mxu0
    %v3542 = vadd.f32 %v3273, %v3541
    %v3543 = vpop.f32.mrf.mxu0
    %v3544 = vadd.f32 %v3275, %v3543
    %3545 = vmatmul.bf16.gmra.mxu0 %v2457
    %v3546 = vpop.f32.mrf.mxu0
    %v3547 = vadd.f32 %v3278, %v3546
    %v3548 = vpop.f32.mrf.mxu0
    %v3549 = vadd.f32 %v3280, %v3548
    %3550 = vmatmul.bf16.gmra.mxu0 %v2465
    %v3551 = vpop.f32.mrf.mxu0
    %v3552 = vadd.f32 %v3283, %v3551
    %v3553 = vpop.f32.mrf.mxu0
    %v3554 = vadd.f32 %v3285, %v3553
    %3555 = vmatmul.bf16.gmra.mxu0 %v2473
    %v3556 = vpop.f32.mrf.mxu0
    %v3557 = vadd.f32 %v3288, %v3556
    %v3558 = vpop.f32.mrf.mxu0
    %v3559 = vadd.f32 %v3290, %v3558
    %3560 = vmatmul.bf16.gmra.mxu0 %v2481
    %v3561 = vpop.f32.mrf.mxu0
    %v3562 = vadd.f32 %v3293, %v3561
    %v3563 = vpop.f32.mrf.mxu0
    %v3564 = vadd.f32 %v3295, %v3563
    %3565 = vmatmul.bf16.gmra.mxu0 %v2489
    %v3566 = vpop.f32.mrf.mxu0
    %v3567 = vadd.f32 %v3298, %v3566
    %v3568 = vpop.f32.mrf.mxu0
    %v3569 = vadd.f32 %v3300, %v3568
    %3570 = vmatmul.bf16.gmra.mxu0 %v2497
    %v3571 = vpop.f32.mrf.mxu0
    %v3572 = vadd.f32 %v3303, %v3571
    %v3573 = vpop.f32.mrf.mxu0
    %v3574 = vadd.f32 %v3305, %v3573
    %3575 = vmatmul.bf16.gmra.mxu0 %v2505
    %v3576 = vpop.f32.mrf.mxu0
    %v3577 = vadd.f32 %v3308, %v3576
    %v3578 = vpop.f32.mrf.mxu0
    %v3579 = vadd.f32 %v3310, %v3578
    %3580 = vmatmul.bf16.gmra.mxu0 %v2513
    %v3581 = vpop.f32.mrf.mxu0
    %v3582 = vadd.f32 %v3313, %v3581
    %v3583 = vpop.f32.mrf.mxu0
    %v3584 = vadd.f32 %v3315, %v3583
    %3585 = vdwg.mxu0
    %3586 = vmatpush.bf16.msra.mxu0 %v776
    %3587 = vmatpush.bf16.msra.mxu0 %v774
    %3588 = vmatpush.bf16.msra.mxu0 %v772
    %3589 = vmatpush.bf16.msra.mxu0 %v770
    %3590 = vmatpush.bf16.msra.mxu0 %v768
    %3591 = vmatpush.bf16.msra.mxu0 %v766
    %3592 = vmatpush.bf16.msra.mxu0 %v764
    %3593 = vmatpush.bf16.msra.mxu0 %v762
    %3594 = vmatmul.bf16.gmra.mxu0 %v2106
    %v3595 = vpop.f32.mrf.mxu0
    %v3596 = vadd.f32 %v3327, %v3595
    %v3597 = vpop.f32.mrf.mxu0
    %v3598 = vadd.f32 %v3329, %v3597
    %3599 = vmatmul.bf16.gmra.mxu0 %v2114
    %v3600 = vpop.f32.mrf.mxu0
    %v3601 = vadd.f32 %v3332, %v3600
    %v3602 = vpop.f32.mrf.mxu0
    %v3603 = vadd.f32 %v3334, %v3602
    %3604 = vmatmul.bf16.gmra.mxu0 %v2122
    %v3605 = vpop.f32.mrf.mxu0
    %v3606 = vadd.f32 %v3337, %v3605
    %v3607 = vpop.f32.mrf.mxu0
    %v3608 = vadd.f32 %v3339, %v3607
    %3609 = vmatmul.bf16.gmra.mxu0 %v2130
    %v3610 = vpop.f32.mrf.mxu0
    %v3611 = vadd.f32 %v3342, %v3610
    %v3612 = vpop.f32.mrf.mxu0
    %v3613 = vadd.f32 %v3344, %v3612
    %3614 = vmatmul.bf16.gmra.mxu0 %v2138
    %v3615 = vpop.f32.mrf.mxu0
    %v3616 = vadd.f32 %v3347, %v3615
    %v3617 = vpop.f32.mrf.mxu0
    %v3618 = vadd.f32 %v3349, %v3617
    %3619 = vmatmul.bf16.gmra.mxu0 %v2146
    %v3620 = vpop.f32.mrf.mxu0
    %v3621 = vadd.f32 %v3352, %v3620
    %v3622 = vpop.f32.mrf.mxu0
    %v3623 = vadd.f32 %v3354, %v3622
    %3624 = vmatmul.bf16.gmra.mxu0 %v2154
    %v3625 = vpop.f32.mrf.mxu0
    %v3626 = vadd.f32 %v3357, %v3625
    %v3627 = vpop.f32.mrf.mxu0
    %v3628 = vadd.f32 %v3359, %v3627
    %3629 = vmatmul.bf16.gmra.mxu0 %v2162
    %v3630 = vpop.f32.mrf.mxu0
    %v3631 = vadd.f32 %v3362, %v3630
    %v3632 = vpop.f32.mrf.mxu0
    %v3633 = vadd.f32 %v3364, %v3632
    %3634 = vmatmul.bf16.gmra.mxu0 %v2170
    %v3635 = vpop.f32.mrf.mxu0
    %v3636 = vadd.f32 %v3367, %v3635
    %v3637 = vpop.f32.mrf.mxu0
    %v3638 = vadd.f32 %v3369, %v3637
    %3639 = vmatmul.bf16.gmra.mxu0 %v2178
    %v3640 = vpop.f32.mrf.mxu0
    %v3641 = vadd.f32 %v3372, %v3640
    %v3642 = vpop.f32.mrf.mxu0
    %v3643 = vadd.f32 %v3374, %v3642
    %3644 = vmatmul.bf16.gmra.mxu0 %v2186
    %v3645 = vpop.f32.mrf.mxu0
    %v3646 = vadd.f32 %v3377, %v3645
    %v3647 = vpop.f32.mrf.mxu0
    %v3648 = vadd.f32 %v3379, %v3647
    %3649 = vmatmul.bf16.gmra.mxu0 %v2194
    %v3650 = vpop.f32.mrf.mxu0
    %v3651 = vadd.f32 %v3382, %v3650
    %v3652 = vpop.f32.mrf.mxu0
    %v3653 = vadd.f32 %v3384, %v3652
    %3654 = vmatmul.bf16.gmra.mxu0 %v2202
    %v3655 = vpop.f32.mrf.mxu0
    %v3656 = vadd.f32 %v3387, %v3655
    %v3657 = vpop.f32.mrf.mxu0
    %v3658 = vadd.f32 %v3389, %v3657
    %3659 = vmatmul.bf16.gmra.mxu0 %v2210
    %v3660 = vpop.f32.mrf.mxu0
    %v3661 = vadd.f32 %v3392, %v3660
    %v3662 = vpop.f32.mrf.mxu0
    %v3663 = vadd.f32 %v3394, %v3662
    %3664 = vmatmul.bf16.gmra.mxu0 %v2218
    %v3665 = vpop.f32.mrf.mxu0
    %v3666 = vadd.f32 %v3397, %v3665
    %v3667 = vpop.f32.mrf.mxu0
    %v3668 = vadd.f32 %v3399, %v3667
    %3669 = vmatmul.bf16.gmra.mxu0 %v2226
    %v3670 = vpop.f32.mrf.mxu0
    %v3671 = vadd.f32 %v3402, %v3670
    %v3672 = vpop.f32.mrf.mxu0
    %v3673 = vadd.f32 %v3404, %v3672
    %3674 = vmatmul.bf16.gmra.mxu0 %v2234
    %v3675 = vpop.f32.mrf.mxu0
    %v3676 = vadd.f32 %v3407, %v3675
    %v3677 = vpop.f32.mrf.mxu0
    %v3678 = vadd.f32 %v3409, %v3677
    %3679 = vmatmul.bf16.gmra.mxu0 %v2242
    %v3680 = vpop.f32.mrf.mxu0
    %v3681 = vadd.f32 %v3412, %v3680
    %v3682 = vpop.f32.mrf.mxu0
    %v3683 = vadd.f32 %v3414, %v3682
    %3684 = vmatmul.bf16.gmra.mxu0 %v2250
    %v3685 = vpop.f32.mrf.mxu0
    %v3686 = vadd.f32 %v3417, %v3685
    %v3687 = vpop.f32.mrf.mxu0
    %v3688 = vadd.f32 %v3419, %v3687
    %3689 = vmatmul.bf16.gmra.mxu0 %v2258
    %v3690 = vpop.f32.mrf.mxu0
    %v3691 = vadd.f32 %v3422, %v3690
    %v3692 = vpop.f32.mrf.mxu0
    %v3693 = vadd.f32 %v3424, %v3692
    %3694 = vmatmul.bf16.gmra.mxu0 %v2266
    %v3695 = vpop.f32.mrf.mxu0
    %v3696 = vadd.f32 %v3427, %v3695
    %v3697 = vpop.f32.mrf.mxu0
    %v3698 = vadd.f32 %v3429, %v3697
    %3699 = vmatmul.bf16.gmra.mxu0 %v2274
    %v3700 = vpop.f32.mrf.mxu0
    %v3701 = vadd.f32 %v3432, %v3700
    %v3702 = vpop.f32.mrf.mxu0
    %v3703 = vadd.f32 %v3434, %v3702
    %3704 = vmatmul.bf16.gmra.mxu0 %v2282
    %v3705 = vpop.f32.mrf.mxu0
    %v3706 = vadd.f32 %v3437, %v3705
    %v3707 = vpop.f32.mrf.mxu0
    %v3708 = vadd.f32 %v3439, %v3707
    %3709 = vmatmul.bf16.gmra.mxu0 %v2290
    %v3710 = vpop.f32.mrf.mxu0
    %v3711 = vadd.f32 %v3442, %v3710
    %v3712 = vpop.f32.mrf.mxu0
    %v3713 = vadd.f32 %v3444, %v3712
    %3714 = vmatmul.bf16.gmra.mxu0 %v2298
    %v3715 = vpop.f32.mrf.mxu0
    %v3716 = vadd.f32 %v3447, %v3715
    %v3717 = vpop.f32.mrf.mxu0
    %v3718 = vadd.f32 %v3449, %v3717
    %3719 = vmatmul.bf16.gmra.mxu0 %v2306
    %v3720 = vpop.f32.mrf.mxu0
    %v3721 = vadd.f32 %v3452, %v3720
    %v3722 = vpop.f32.mrf.mxu0
    %v3723 = vadd.f32 %v3454, %v3722
    %3724 = vmatmul.bf16.gmra.mxu0 %v2314
    %v3725 = vpop.f32.mrf.mxu0
    %v3726 = vadd.f32 %v3457, %v3725
    %v3727 = vpop.f32.mrf.mxu0
    %v3728 = vadd.f32 %v3459, %v3727
    %3729 = vmatmul.bf16.gmra.mxu0 %v2322
    %v3730 = vpop.f32.mrf.mxu0
    %v3731 = vadd.f32 %v3462, %v3730
    %v3732 = vpop.f32.mrf.mxu0
    %v3733 = vadd.f32 %v3464, %v3732
    %3734 = vmatmul.bf16.gmra.mxu0 %v2330
    %v3735 = vpop.f32.mrf.mxu0
    %v3736 = vadd.f32 %v3467, %v3735
    %v3737 = vpop.f32.mrf.mxu0
    %v3738 = vadd.f32 %v3469, %v3737
    %3739 = vmatmul.bf16.gmra.mxu0 %v2338
    %v3740 = vpop.f32.mrf.mxu0
    %v3741 = vadd.f32 %v3472, %v3740
    %v3742 = vpop.f32.mrf.mxu0
    %v3743 = vadd.f32 %v3474, %v3742
    %3744 = vmatmul.bf16.gmra.mxu0 %v2346
    %v3745 = vpop.f32.mrf.mxu0
    %v3746 = vadd.f32 %v3477, %v3745
    %v3747 = vpop.f32.mrf.mxu0
    %v3748 = vadd.f32 %v3479, %v3747
    %3749 = vmatmul.bf16.gmra.mxu0 %v2354
    %v3750 = vpop.f32.mrf.mxu0
    %v3751 = vadd.f32 %v3482, %v3750
    %v3752 = vpop.f32.mrf.mxu0
    %v3753 = vadd.f32 %v3484, %v3752
    %3754 = vmatmul.bf16.gmra.mxu0 %v2362
    %v3755 = vpop.f32.mrf.mxu0
    %v3756 = vadd.f32 %v3487, %v3755
    %v3757 = vpop.f32.mrf.mxu0
    %v3758 = vadd.f32 %v3489, %v3757
    %3759 = vmatmul.bf16.gmra.mxu0 %v2370
    %v3760 = vpop.f32.mrf.mxu0
    %v3761 = vadd.f32 %v3492, %v3760
    %v3762 = vpop.f32.mrf.mxu0
    %v3763 = vadd.f32 %v3494, %v3762
    %3764 = vmatmul.bf16.gmra.mxu0 %v2378
    %v3765 = vpop.f32.mrf.mxu0
    %v3766 = vadd.f32 %v3497, %v3765
    %v3767 = vpop.f32.mrf.mxu0
    %v3768 = vadd.f32 %v3499, %v3767
    %3769 = vmatmul.bf16.gmra.mxu0 %v2386
    %v3770 = vpop.f32.mrf.mxu0
    %v3771 = vadd.f32 %v3502, %v3770
    %v3772 = vpop.f32.mrf.mxu0
    %v3773 = vadd.f32 %v3504, %v3772
    %3774 = vmatmul.bf16.gmra.mxu0 %v2394
    %v3775 = vpop.f32.mrf.mxu0
    %v3776 = vadd.f32 %v3507, %v3775
    %v3777 = vpop.f32.mrf.mxu0
    %v3778 = vadd.f32 %v3509, %v3777
    %3779 = vmatmul.bf16.gmra.mxu0 %v2402
    %v3780 = vpop.f32.mrf.mxu0
    %v3781 = vadd.f32 %v3512, %v3780
    %v3782 = vpop.f32.mrf.mxu0
    %v3783 = vadd.f32 %v3514, %v3782
    %3784 = vmatmul.bf16.gmra.mxu0 %v2410
    %v3785 = vpop.f32.mrf.mxu0
    %v3786 = vadd.f32 %v3517, %v3785
    %v3787 = vpop.f32.mrf.mxu0
    %v3788 = vadd.f32 %v3519, %v3787
    %3789 = vmatmul.bf16.gmra.mxu0 %v2418
    %v3790 = vpop.f32.mrf.mxu0
    %v3791 = vadd.f32 %v3522, %v3790
    %v3792 = vpop.f32.mrf.mxu0
    %v3793 = vadd.f32 %v3524, %v3792
    %3794 = vmatmul.bf16.gmra.mxu0 %v2426
    %v3795 = vpop.f32.mrf.mxu0
    %v3796 = vadd.f32 %v3527, %v3795
    %v3797 = vpop.f32.mrf.mxu0
    %v3798 = vadd.f32 %v3529, %v3797
    %3799 = vmatmul.bf16.gmra.mxu0 %v2434
    %v3800 = vpop.f32.mrf.mxu0
    %v3801 = vadd.f32 %v3532, %v3800
    %v3802 = vpop.f32.mrf.mxu0
    %v3803 = vadd.f32 %v3534, %v3802
    %3804 = vmatmul.bf16.gmra.mxu0 %v2442
    %v3805 = vpop.f32.mrf.mxu0
    %v3806 = vadd.f32 %v3537, %v3805
    %v3807 = vpop.f32.mrf.mxu0
    %v3808 = vadd.f32 %v3539, %v3807
    %3809 = vmatmul.bf16.gmra.mxu0 %v2450
    %v3810 = vpop.f32.mrf.mxu0
    %v3811 = vadd.f32 %v3542, %v3810
    %v3812 = vpop.f32.mrf.mxu0
    %v3813 = vadd.f32 %v3544, %v3812
    %3814 = vmatmul.bf16.gmra.mxu0 %v2458
    %v3815 = vpop.f32.mrf.mxu0
    %v3816 = vadd.f32 %v3547, %v3815
    %v3817 = vpop.f32.mrf.mxu0
    %v3818 = vadd.f32 %v3549, %v3817
    %3819 = vmatmul.bf16.gmra.mxu0 %v2466
    %v3820 = vpop.f32.mrf.mxu0
    %v3821 = vadd.f32 %v3552, %v3820
    %v3822 = vpop.f32.mrf.mxu0
    %v3823 = vadd.f32 %v3554, %v3822
    %3824 = vmatmul.bf16.gmra.mxu0 %v2474
    %v3825 = vpop.f32.mrf.mxu0
    %v3826 = vadd.f32 %v3557, %v3825
    %v3827 = vpop.f32.mrf.mxu0
    %v3828 = vadd.f32 %v3559, %v3827
    %3829 = vmatmul.bf16.gmra.mxu0 %v2482
    %v3830 = vpop.f32.mrf.mxu0
    %v3831 = vadd.f32 %v3562, %v3830
    %v3832 = vpop.f32.mrf.mxu0
    %v3833 = vadd.f32 %v3564, %v3832
    %3834 = vmatmul.bf16.gmra.mxu0 %v2490
    %v3835 = vpop.f32.mrf.mxu0
    %v3836 = vadd.f32 %v3567, %v3835
    %v3837 = vpop.f32.mrf.mxu0
    %v3838 = vadd.f32 %v3569, %v3837
    %3839 = vmatmul.bf16.gmra.mxu0 %v2498
    %v3840 = vpop.f32.mrf.mxu0
    %v3841 = vadd.f32 %v3572, %v3840
    %v3842 = vpop.f32.mrf.mxu0
    %v3843 = vadd.f32 %v3574, %v3842
    %3844 = vmatmul.bf16.gmra.mxu0 %v2506
    %v3845 = vpop.f32.mrf.mxu0
    %v3846 = vadd.f32 %v3577, %v3845
    %v3847 = vpop.f32.mrf.mxu0
    %v3848 = vadd.f32 %v3579, %v3847
    %3849 = vmatmul.bf16.gmra.mxu0 %v2514
    %v3850 = vpop.f32.mrf.mxu0
    %v3851 = vadd.f32 %v3582, %v3850
    %v3852 = vpop.f32.mrf.mxu0
    %v3853 = vadd.f32 %v3584, %v3852
    %3854 = vdwg.mxu0
    %3855 = vmatpush.bf16.msra.mxu0 %v792
    %3856 = vmatpush.bf16.msra.mxu0 %v790
    %3857 = vmatpush.bf16.msra.mxu0 %v788
    %3858 = vmatpush.bf16.msra.mxu0 %v786
    %3859 = vmatpush.bf16.msra.mxu0 %v784
    %3860 = vmatpush.bf16.msra.mxu0 %v782
    %3861 = vmatpush.bf16.msra.mxu0 %v780
    %3862 = vmatpush.bf16.msra.mxu0 %v778
    %3863 = vmatmul.bf16.gmra.mxu0 %v2107
    %v3864 = vpop.f32.mrf.mxu0
    %v3865 = vadd.f32 %v3596, %v3864
    %v3866 = vpop.f32.mrf.mxu0
    %v3867 = vadd.f32 %v3598, %v3866
    %3868 = vmatmul.bf16.gmra.mxu0 %v2115
    %v3869 = vpop.f32.mrf.mxu0
    %v3870 = vadd.f32 %v3601, %v3869
    %v3871 = vpop.f32.mrf.mxu0
    %v3872 = vadd.f32 %v3603, %v3871
    %3873 = vmatmul.bf16.gmra.mxu0 %v2123
    %v3874 = vpop.f32.mrf.mxu0
    %v3875 = vadd.f32 %v3606, %v3874
    %v3876 = vpop.f32.mrf.mxu0
    %v3877 = vadd.f32 %v3608, %v3876
    %3878 = vmatmul.bf16.gmra.mxu0 %v2131
    %v3879 = vpop.f32.mrf.mxu0
    %v3880 = vadd.f32 %v3611, %v3879
    %v3881 = vpop.f32.mrf.mxu0
    %v3882 = vadd.f32 %v3613, %v3881
    %3883 = vmatmul.bf16.gmra.mxu0 %v2139
    %v3884 = vpop.f32.mrf.mxu0
    %v3885 = vadd.f32 %v3616, %v3884
    %v3886 = vpop.f32.mrf.mxu0
    %v3887 = vadd.f32 %v3618, %v3886
    %3888 = vmatmul.bf16.gmra.mxu0 %v2147
    %v3889 = vpop.f32.mrf.mxu0
    %v3890 = vadd.f32 %v3621, %v3889
    %v3891 = vpop.f32.mrf.mxu0
    %v3892 = vadd.f32 %v3623, %v3891
    %3893 = vmatmul.bf16.gmra.mxu0 %v2155
    %v3894 = vpop.f32.mrf.mxu0
    %v3895 = vadd.f32 %v3626, %v3894
    %v3896 = vpop.f32.mrf.mxu0
    %v3897 = vadd.f32 %v3628, %v3896
    %3898 = vmatmul.bf16.gmra.mxu0 %v2163
    %v3899 = vpop.f32.mrf.mxu0
    %v3900 = vadd.f32 %v3631, %v3899
    %v3901 = vpop.f32.mrf.mxu0
    %v3902 = vadd.f32 %v3633, %v3901
    %3903 = vmatmul.bf16.gmra.mxu0 %v2171
    %v3904 = vpop.f32.mrf.mxu0
    %v3905 = vadd.f32 %v3636, %v3904
    %v3906 = vpop.f32.mrf.mxu0
    %v3907 = vadd.f32 %v3638, %v3906
    %3908 = vmatmul.bf16.gmra.mxu0 %v2179
    %v3909 = vpop.f32.mrf.mxu0
    %v3910 = vadd.f32 %v3641, %v3909
    %v3911 = vpop.f32.mrf.mxu0
    %v3912 = vadd.f32 %v3643, %v3911
    %3913 = vmatmul.bf16.gmra.mxu0 %v2187
    %v3914 = vpop.f32.mrf.mxu0
    %v3915 = vadd.f32 %v3646, %v3914
    %v3916 = vpop.f32.mrf.mxu0
    %v3917 = vadd.f32 %v3648, %v3916
    %3918 = vmatmul.bf16.gmra.mxu0 %v2195
    %v3919 = vpop.f32.mrf.mxu0
    %v3920 = vadd.f32 %v3651, %v3919
    %v3921 = vpop.f32.mrf.mxu0
    %v3922 = vadd.f32 %v3653, %v3921
    %3923 = vmatmul.bf16.gmra.mxu0 %v2203
    %v3924 = vpop.f32.mrf.mxu0
    %v3925 = vadd.f32 %v3656, %v3924
    %v3926 = vpop.f32.mrf.mxu0
    %v3927 = vadd.f32 %v3658, %v3926
    %3928 = vmatmul.bf16.gmra.mxu0 %v2211
    %v3929 = vpop.f32.mrf.mxu0
    %v3930 = vadd.f32 %v3661, %v3929
    %v3931 = vpop.f32.mrf.mxu0
    %v3932 = vadd.f32 %v3663, %v3931
    %3933 = vmatmul.bf16.gmra.mxu0 %v2219
    %v3934 = vpop.f32.mrf.mxu0
    %v3935 = vadd.f32 %v3666, %v3934
    %v3936 = vpop.f32.mrf.mxu0
    %v3937 = vadd.f32 %v3668, %v3936
    %3938 = vmatmul.bf16.gmra.mxu0 %v2227
    %v3939 = vpop.f32.mrf.mxu0
    %v3940 = vadd.f32 %v3671, %v3939
    %v3941 = vpop.f32.mrf.mxu0
    %v3942 = vadd.f32 %v3673, %v3941
    %3943 = vmatmul.bf16.gmra.mxu0 %v2235
    %v3944 = vpop.f32.mrf.mxu0
    %v3945 = vadd.f32 %v3676, %v3944
    %v3946 = vpop.f32.mrf.mxu0
    %v3947 = vadd.f32 %v3678, %v3946
    %3948 = vmatmul.bf16.gmra.mxu0 %v2243
    %v3949 = vpop.f32.mrf.mxu0
    %v3950 = vadd.f32 %v3681, %v3949
    %v3951 = vpop.f32.mrf.mxu0
    %v3952 = vadd.f32 %v3683, %v3951
    %3953 = vmatmul.bf16.gmra.mxu0 %v2251
    %v3954 = vpop.f32.mrf.mxu0
    %v3955 = vadd.f32 %v3686, %v3954
    %v3956 = vpop.f32.mrf.mxu0
    %v3957 = vadd.f32 %v3688, %v3956
    %3958 = vmatmul.bf16.gmra.mxu0 %v2259
    %v3959 = vpop.f32.mrf.mxu0
    %v3960 = vadd.f32 %v3691, %v3959
    %v3961 = vpop.f32.mrf.mxu0
    %v3962 = vadd.f32 %v3693, %v3961
    %3963 = vmatmul.bf16.gmra.mxu0 %v2267
    %v3964 = vpop.f32.mrf.mxu0
    %v3965 = vadd.f32 %v3696, %v3964
    %v3966 = vpop.f32.mrf.mxu0
    %v3967 = vadd.f32 %v3698, %v3966
    %3968 = vmatmul.bf16.gmra.mxu0 %v2275
    %v3969 = vpop.f32.mrf.mxu0
    %v3970 = vadd.f32 %v3701, %v3969
    %v3971 = vpop.f32.mrf.mxu0
    %v3972 = vadd.f32 %v3703, %v3971
    %3973 = vmatmul.bf16.gmra.mxu0 %v2283
    %v3974 = vpop.f32.mrf.mxu0
    %v3975 = vadd.f32 %v3706, %v3974
    %v3976 = vpop.f32.mrf.mxu0
    %v3977 = vadd.f32 %v3708, %v3976
    %3978 = vmatmul.bf16.gmra.mxu0 %v2291
    %v3979 = vpop.f32.mrf.mxu0
    %v3980 = vadd.f32 %v3711, %v3979
    %v3981 = vpop.f32.mrf.mxu0
    %v3982 = vadd.f32 %v3713, %v3981
    %3983 = vmatmul.bf16.gmra.mxu0 %v2299
    %v3984 = vpop.f32.mrf.mxu0
    %v3985 = vadd.f32 %v3716, %v3984
    %v3986 = vpop.f32.mrf.mxu0
    %v3987 = vadd.f32 %v3718, %v3986
    %3988 = vmatmul.bf16.gmra.mxu0 %v2307
    %v3989 = vpop.f32.mrf.mxu0
    %v3990 = vadd.f32 %v3721, %v3989
    %v3991 = vpop.f32.mrf.mxu0
    %v3992 = vadd.f32 %v3723, %v3991
    %3993 = vmatmul.bf16.gmra.mxu0 %v2315
    %v3994 = vpop.f32.mrf.mxu0
    %v3995 = vadd.f32 %v3726, %v3994
    %v3996 = vpop.f32.mrf.mxu0
    %v3997 = vadd.f32 %v3728, %v3996
    %3998 = vmatmul.bf16.gmra.mxu0 %v2323
    %v3999 = vpop.f32.mrf.mxu0
    %v4000 = vadd.f32 %v3731, %v3999
    %v4001 = vpop.f32.mrf.mxu0
    %v4002 = vadd.f32 %v3733, %v4001
    %4003 = vmatmul.bf16.gmra.mxu0 %v2331
    %v4004 = vpop.f32.mrf.mxu0
    %v4005 = vadd.f32 %v3736, %v4004
    %v4006 = vpop.f32.mrf.mxu0
    %v4007 = vadd.f32 %v3738, %v4006
    %4008 = vmatmul.bf16.gmra.mxu0 %v2339
    %v4009 = vpop.f32.mrf.mxu0
    %v4010 = vadd.f32 %v3741, %v4009
    %v4011 = vpop.f32.mrf.mxu0
    %v4012 = vadd.f32 %v3743, %v4011
    %4013 = vmatmul.bf16.gmra.mxu0 %v2347
    %v4014 = vpop.f32.mrf.mxu0
    %v4015 = vadd.f32 %v3746, %v4014
    %v4016 = vpop.f32.mrf.mxu0
    %v4017 = vadd.f32 %v3748, %v4016
    %4018 = vmatmul.bf16.gmra.mxu0 %v2355
    %v4019 = vpop.f32.mrf.mxu0
    %v4020 = vadd.f32 %v3751, %v4019
    %v4021 = vpop.f32.mrf.mxu0
    %v4022 = vadd.f32 %v3753, %v4021
    %4023 = vmatmul.bf16.gmra.mxu0 %v2363
    %v4024 = vpop.f32.mrf.mxu0
    %v4025 = vadd.f32 %v3756, %v4024
    %v4026 = vpop.f32.mrf.mxu0
    %v4027 = vadd.f32 %v3758, %v4026
    %4028 = vmatmul.bf16.gmra.mxu0 %v2371
    %v4029 = vpop.f32.mrf.mxu0
    %v4030 = vadd.f32 %v3761, %v4029
    %v4031 = vpop.f32.mrf.mxu0
    %v4032 = vadd.f32 %v3763, %v4031
    %4033 = vmatmul.bf16.gmra.mxu0 %v2379
    %v4034 = vpop.f32.mrf.mxu0
    %v4035 = vadd.f32 %v3766, %v4034
    %v4036 = vpop.f32.mrf.mxu0
    %v4037 = vadd.f32 %v3768, %v4036
    %4038 = vmatmul.bf16.gmra.mxu0 %v2387
    %v4039 = vpop.f32.mrf.mxu0
    %v4040 = vadd.f32 %v3771, %v4039
    %v4041 = vpop.f32.mrf.mxu0
    %v4042 = vadd.f32 %v3773, %v4041
    %4043 = vmatmul.bf16.gmra.mxu0 %v2395
    %v4044 = vpop.f32.mrf.mxu0
    %v4045 = vadd.f32 %v3776, %v4044
    %v4046 = vpop.f32.mrf.mxu0
    %v4047 = vadd.f32 %v3778, %v4046
    %4048 = vmatmul.bf16.gmra.mxu0 %v2403
    %v4049 = vpop.f32.mrf.mxu0
    %v4050 = vadd.f32 %v3781, %v4049
    %v4051 = vpop.f32.mrf.mxu0
    %v4052 = vadd.f32 %v3783, %v4051
    %4053 = vmatmul.bf16.gmra.mxu0 %v2411
    %v4054 = vpop.f32.mrf.mxu0
    %v4055 = vadd.f32 %v3786, %v4054
    %v4056 = vpop.f32.mrf.mxu0
    %v4057 = vadd.f32 %v3788, %v4056
    %4058 = vmatmul.bf16.gmra.mxu0 %v2419
    %v4059 = vpop.f32.mrf.mxu0
    %v4060 = vadd.f32 %v3791, %v4059
    %v4061 = vpop.f32.mrf.mxu0
    %v4062 = vadd.f32 %v3793, %v4061
    %4063 = vmatmul.bf16.gmra.mxu0 %v2427
    %v4064 = vpop.f32.mrf.mxu0
    %v4065 = vadd.f32 %v3796, %v4064
    %v4066 = vpop.f32.mrf.mxu0
    %v4067 = vadd.f32 %v3798, %v4066
    %4068 = vmatmul.bf16.gmra.mxu0 %v2435
    %v4069 = vpop.f32.mrf.mxu0
    %v4070 = vadd.f32 %v3801, %v4069
    %v4071 = vpop.f32.mrf.mxu0
    %v4072 = vadd.f32 %v3803, %v4071
    %4073 = vmatmul.bf16.gmra.mxu0 %v2443
    %v4074 = vpop.f32.mrf.mxu0
    %v4075 = vadd.f32 %v3806, %v4074
    %v4076 = vpop.f32.mrf.mxu0
    %v4077 = vadd.f32 %v3808, %v4076
    %4078 = vmatmul.bf16.gmra.mxu0 %v2451
    %v4079 = vpop.f32.mrf.mxu0
    %v4080 = vadd.f32 %v3811, %v4079
    %v4081 = vpop.f32.mrf.mxu0
    %v4082 = vadd.f32 %v3813, %v4081
    %4083 = vmatmul.bf16.gmra.mxu0 %v2459
    %v4084 = vpop.f32.mrf.mxu0
    %v4085 = vadd.f32 %v3816, %v4084
    %v4086 = vpop.f32.mrf.mxu0
    %v4087 = vadd.f32 %v3818, %v4086
    %4088 = vmatmul.bf16.gmra.mxu0 %v2467
    %v4089 = vpop.f32.mrf.mxu0
    %v4090 = vadd.f32 %v3821, %v4089
    %v4091 = vpop.f32.mrf.mxu0
    %v4092 = vadd.f32 %v3823, %v4091
    %4093 = vmatmul.bf16.gmra.mxu0 %v2475
    %v4094 = vpop.f32.mrf.mxu0
    %v4095 = vadd.f32 %v3826, %v4094
    %v4096 = vpop.f32.mrf.mxu0
    %v4097 = vadd.f32 %v3828, %v4096
    %4098 = vmatmul.bf16.gmra.mxu0 %v2483
    %v4099 = vpop.f32.mrf.mxu0
    %v4100 = vadd.f32 %v3831, %v4099
    %v4101 = vpop.f32.mrf.mxu0
    %v4102 = vadd.f32 %v3833, %v4101
    %4103 = vmatmul.bf16.gmra.mxu0 %v2491
    %v4104 = vpop.f32.mrf.mxu0
    %v4105 = vadd.f32 %v3836, %v4104
    %v4106 = vpop.f32.mrf.mxu0
    %v4107 = vadd.f32 %v3838, %v4106
    %4108 = vmatmul.bf16.gmra.mxu0 %v2499
    %v4109 = vpop.f32.mrf.mxu0
    %v4110 = vadd.f32 %v3841, %v4109
    %v4111 = vpop.f32.mrf.mxu0
    %v4112 = vadd.f32 %v3843, %v4111
    %4113 = vmatmul.bf16.gmra.mxu0 %v2507
    %v4114 = vpop.f32.mrf.mxu0
    %v4115 = vadd.f32 %v3846, %v4114
    %v4116 = vpop.f32.mrf.mxu0
    %v4117 = vadd.f32 %v3848, %v4116
    %4118 = vmatmul.bf16.gmra.mxu0 %v2515
    %v4119 = vpop.f32.mrf.mxu0
    %v4120 = vadd.f32 %v3851, %v4119
    %v4121 = vpop.f32.mrf.mxu0
    %v4122 = vadd.f32 %v3853, %v4121
    %4123 = vdwg.mxu0
    %4124 = vmatpush.bf16.msra.mxu0 %v808
    %4125 = vmatpush.bf16.msra.mxu0 %v806
    %4126 = vmatpush.bf16.msra.mxu0 %v804
    %4127 = vmatpush.bf16.msra.mxu0 %v802
    %4128 = vmatpush.bf16.msra.mxu0 %v800
    %4129 = vmatpush.bf16.msra.mxu0 %v798
    %4130 = vmatpush.bf16.msra.mxu0 %v796
    %4131 = vmatpush.bf16.msra.mxu0 %v794
    %4132 = vmatmul.bf16.gmra.mxu0 %v2108
    %v4133 = vpop.f32.mrf.mxu0
    %v4134 = vadd.f32 %v3865, %v4133
    %v4135 = vpop.f32.mrf.mxu0
    %v4136 = vadd.f32 %v3867, %v4135
    %4137 = vmatmul.bf16.gmra.mxu0 %v2116
    %v4138 = vpop.f32.mrf.mxu0
    %v4139 = vadd.f32 %v3870, %v4138
    %v4140 = vpop.f32.mrf.mxu0
    %v4141 = vadd.f32 %v3872, %v4140
    %4142 = vmatmul.bf16.gmra.mxu0 %v2124
    %v4143 = vpop.f32.mrf.mxu0
    %v4144 = vadd.f32 %v3875, %v4143
    %v4145 = vpop.f32.mrf.mxu0
    %v4146 = vadd.f32 %v3877, %v4145
    %4147 = vmatmul.bf16.gmra.mxu0 %v2132
    %v4148 = vpop.f32.mrf.mxu0
    %v4149 = vadd.f32 %v3880, %v4148
    %v4150 = vpop.f32.mrf.mxu0
    %v4151 = vadd.f32 %v3882, %v4150
    %4152 = vmatmul.bf16.gmra.mxu0 %v2140
    %v4153 = vpop.f32.mrf.mxu0
    %v4154 = vadd.f32 %v3885, %v4153
    %v4155 = vpop.f32.mrf.mxu0
    %v4156 = vadd.f32 %v3887, %v4155
    %4157 = vmatmul.bf16.gmra.mxu0 %v2148
    %v4158 = vpop.f32.mrf.mxu0
    %v4159 = vadd.f32 %v3890, %v4158
    %v4160 = vpop.f32.mrf.mxu0
    %v4161 = vadd.f32 %v3892, %v4160
    %4162 = vmatmul.bf16.gmra.mxu0 %v2156
    %v4163 = vpop.f32.mrf.mxu0
    %v4164 = vadd.f32 %v3895, %v4163
    %v4165 = vpop.f32.mrf.mxu0
    %v4166 = vadd.f32 %v3897, %v4165
    %4167 = vmatmul.bf16.gmra.mxu0 %v2164
    %v4168 = vpop.f32.mrf.mxu0
    %v4169 = vadd.f32 %v3900, %v4168
    %v4170 = vpop.f32.mrf.mxu0
    %v4171 = vadd.f32 %v3902, %v4170
    %4172 = vmatmul.bf16.gmra.mxu0 %v2172
    %v4173 = vpop.f32.mrf.mxu0
    %v4174 = vadd.f32 %v3905, %v4173
    %v4175 = vpop.f32.mrf.mxu0
    %v4176 = vadd.f32 %v3907, %v4175
    %4177 = vmatmul.bf16.gmra.mxu0 %v2180
    %v4178 = vpop.f32.mrf.mxu0
    %v4179 = vadd.f32 %v3910, %v4178
    %v4180 = vpop.f32.mrf.mxu0
    %v4181 = vadd.f32 %v3912, %v4180
    %4182 = vmatmul.bf16.gmra.mxu0 %v2188
    %v4183 = vpop.f32.mrf.mxu0
    %v4184 = vadd.f32 %v3915, %v4183
    %v4185 = vpop.f32.mrf.mxu0
    %v4186 = vadd.f32 %v3917, %v4185
    %4187 = vmatmul.bf16.gmra.mxu0 %v2196
    %v4188 = vpop.f32.mrf.mxu0
    %v4189 = vadd.f32 %v3920, %v4188
    %v4190 = vpop.f32.mrf.mxu0
    %v4191 = vadd.f32 %v3922, %v4190
    %4192 = vmatmul.bf16.gmra.mxu0 %v2204
    %v4193 = vpop.f32.mrf.mxu0
    %v4194 = vadd.f32 %v3925, %v4193
    %v4195 = vpop.f32.mrf.mxu0
    %v4196 = vadd.f32 %v3927, %v4195
    %4197 = vmatmul.bf16.gmra.mxu0 %v2212
    %v4198 = vpop.f32.mrf.mxu0
    %v4199 = vadd.f32 %v3930, %v4198
    %v4200 = vpop.f32.mrf.mxu0
    %v4201 = vadd.f32 %v3932, %v4200
    %4202 = vmatmul.bf16.gmra.mxu0 %v2220
    %v4203 = vpop.f32.mrf.mxu0
    %v4204 = vadd.f32 %v3935, %v4203
    %v4205 = vpop.f32.mrf.mxu0
    %v4206 = vadd.f32 %v3937, %v4205
    %4207 = vmatmul.bf16.gmra.mxu0 %v2228
    %v4208 = vpop.f32.mrf.mxu0
    %v4209 = vadd.f32 %v3940, %v4208
    %v4210 = vpop.f32.mrf.mxu0
    %v4211 = vadd.f32 %v3942, %v4210
    %4212 = vmatmul.bf16.gmra.mxu0 %v2236
    %v4213 = vpop.f32.mrf.mxu0
    %v4214 = vadd.f32 %v3945, %v4213
    %v4215 = vpop.f32.mrf.mxu0
    %v4216 = vadd.f32 %v3947, %v4215
    %4217 = vmatmul.bf16.gmra.mxu0 %v2244
    %v4218 = vpop.f32.mrf.mxu0
    %v4219 = vadd.f32 %v3950, %v4218
    %v4220 = vpop.f32.mrf.mxu0
    %v4221 = vadd.f32 %v3952, %v4220
    %4222 = vmatmul.bf16.gmra.mxu0 %v2252
    %v4223 = vpop.f32.mrf.mxu0
    %v4224 = vadd.f32 %v3955, %v4223
    %v4225 = vpop.f32.mrf.mxu0
    %v4226 = vadd.f32 %v3957, %v4225
    %4227 = vmatmul.bf16.gmra.mxu0 %v2260
    %v4228 = vpop.f32.mrf.mxu0
    %v4229 = vadd.f32 %v3960, %v4228
    %v4230 = vpop.f32.mrf.mxu0
    %v4231 = vadd.f32 %v3962, %v4230
    %4232 = vmatmul.bf16.gmra.mxu0 %v2268
    %v4233 = vpop.f32.mrf.mxu0
    %v4234 = vadd.f32 %v3965, %v4233
    %v4235 = vpop.f32.mrf.mxu0
    %v4236 = vadd.f32 %v3967, %v4235
    %4237 = vmatmul.bf16.gmra.mxu0 %v2276
    %v4238 = vpop.f32.mrf.mxu0
    %v4239 = vadd.f32 %v3970, %v4238
    %v4240 = vpop.f32.mrf.mxu0
    %v4241 = vadd.f32 %v3972, %v4240
    %4242 = vmatmul.bf16.gmra.mxu0 %v2284
    %v4243 = vpop.f32.mrf.mxu0
    %v4244 = vadd.f32 %v3975, %v4243
    %v4245 = vpop.f32.mrf.mxu0
    %v4246 = vadd.f32 %v3977, %v4245
    %4247 = vmatmul.bf16.gmra.mxu0 %v2292
    %v4248 = vpop.f32.mrf.mxu0
    %v4249 = vadd.f32 %v3980, %v4248
    %v4250 = vpop.f32.mrf.mxu0
    %v4251 = vadd.f32 %v3982, %v4250
    %4252 = vmatmul.bf16.gmra.mxu0 %v2300
    %v4253 = vpop.f32.mrf.mxu0
    %v4254 = vadd.f32 %v3985, %v4253
    %v4255 = vpop.f32.mrf.mxu0
    %v4256 = vadd.f32 %v3987, %v4255
    %4257 = vmatmul.bf16.gmra.mxu0 %v2308
    %v4258 = vpop.f32.mrf.mxu0
    %v4259 = vadd.f32 %v3990, %v4258
    %v4260 = vpop.f32.mrf.mxu0
    %v4261 = vadd.f32 %v3992, %v4260
    %4262 = vmatmul.bf16.gmra.mxu0 %v2316
    %v4263 = vpop.f32.mrf.mxu0
    %v4264 = vadd.f32 %v3995, %v4263
    %v4265 = vpop.f32.mrf.mxu0
    %v4266 = vadd.f32 %v3997, %v4265
    %4267 = vmatmul.bf16.gmra.mxu0 %v2324
    %v4268 = vpop.f32.mrf.mxu0
    %v4269 = vadd.f32 %v4000, %v4268
    %v4270 = vpop.f32.mrf.mxu0
    %v4271 = vadd.f32 %v4002, %v4270
    %4272 = vmatmul.bf16.gmra.mxu0 %v2332
    %v4273 = vpop.f32.mrf.mxu0
    %v4274 = vadd.f32 %v4005, %v4273
    %v4275 = vpop.f32.mrf.mxu0
    %v4276 = vadd.f32 %v4007, %v4275
    %4277 = vmatmul.bf16.gmra.mxu0 %v2340
    %v4278 = vpop.f32.mrf.mxu0
    %v4279 = vadd.f32 %v4010, %v4278
    %v4280 = vpop.f32.mrf.mxu0
    %v4281 = vadd.f32 %v4012, %v4280
    %4282 = vmatmul.bf16.gmra.mxu0 %v2348
    %v4283 = vpop.f32.mrf.mxu0
    %v4284 = vadd.f32 %v4015, %v4283
    %v4285 = vpop.f32.mrf.mxu0
    %v4286 = vadd.f32 %v4017, %v4285
    %4287 = vmatmul.bf16.gmra.mxu0 %v2356
    %v4288 = vpop.f32.mrf.mxu0
    %v4289 = vadd.f32 %v4020, %v4288
    %v4290 = vpop.f32.mrf.mxu0
    %v4291 = vadd.f32 %v4022, %v4290
    %4292 = vmatmul.bf16.gmra.mxu0 %v2364
    %v4293 = vpop.f32.mrf.mxu0
    %v4294 = vadd.f32 %v4025, %v4293
    %v4295 = vpop.f32.mrf.mxu0
    %v4296 = vadd.f32 %v4027, %v4295
    %4297 = vmatmul.bf16.gmra.mxu0 %v2372
    %v4298 = vpop.f32.mrf.mxu0
    %v4299 = vadd.f32 %v4030, %v4298
    %v4300 = vpop.f32.mrf.mxu0
    %v4301 = vadd.f32 %v4032, %v4300
    %4302 = vmatmul.bf16.gmra.mxu0 %v2380
    %v4303 = vpop.f32.mrf.mxu0
    %v4304 = vadd.f32 %v4035, %v4303
    %v4305 = vpop.f32.mrf.mxu0
    %v4306 = vadd.f32 %v4037, %v4305
    %4307 = vmatmul.bf16.gmra.mxu0 %v2388
    %v4308 = vpop.f32.mrf.mxu0
    %v4309 = vadd.f32 %v4040, %v4308
    %v4310 = vpop.f32.mrf.mxu0
    %v4311 = vadd.f32 %v4042, %v4310
    %4312 = vmatmul.bf16.gmra.mxu0 %v2396
    %v4313 = vpop.f32.mrf.mxu0
    %v4314 = vadd.f32 %v4045, %v4313
    %v4315 = vpop.f32.mrf.mxu0
    %v4316 = vadd.f32 %v4047, %v4315
    %4317 = vmatmul.bf16.gmra.mxu0 %v2404
    %v4318 = vpop.f32.mrf.mxu0
    %v4319 = vadd.f32 %v4050, %v4318
    %v4320 = vpop.f32.mrf.mxu0
    %v4321 = vadd.f32 %v4052, %v4320
    %4322 = vmatmul.bf16.gmra.mxu0 %v2412
    %v4323 = vpop.f32.mrf.mxu0
    %v4324 = vadd.f32 %v4055, %v4323
    %v4325 = vpop.f32.mrf.mxu0
    %v4326 = vadd.f32 %v4057, %v4325
    %4327 = vmatmul.bf16.gmra.mxu0 %v2420
    %v4328 = vpop.f32.mrf.mxu0
    %v4329 = vadd.f32 %v4060, %v4328
    %v4330 = vpop.f32.mrf.mxu0
    %v4331 = vadd.f32 %v4062, %v4330
    %4332 = vmatmul.bf16.gmra.mxu0 %v2428
    %v4333 = vpop.f32.mrf.mxu0
    %v4334 = vadd.f32 %v4065, %v4333
    %v4335 = vpop.f32.mrf.mxu0
    %v4336 = vadd.f32 %v4067, %v4335
    %4337 = vmatmul.bf16.gmra.mxu0 %v2436
    %v4338 = vpop.f32.mrf.mxu0
    %v4339 = vadd.f32 %v4070, %v4338
    %v4340 = vpop.f32.mrf.mxu0
    %v4341 = vadd.f32 %v4072, %v4340
    %4342 = vmatmul.bf16.gmra.mxu0 %v2444
    %v4343 = vpop.f32.mrf.mxu0
    %v4344 = vadd.f32 %v4075, %v4343
    %v4345 = vpop.f32.mrf.mxu0
    %v4346 = vadd.f32 %v4077, %v4345
    %4347 = vmatmul.bf16.gmra.mxu0 %v2452
    %v4348 = vpop.f32.mrf.mxu0
    %v4349 = vadd.f32 %v4080, %v4348
    %v4350 = vpop.f32.mrf.mxu0
    %v4351 = vadd.f32 %v4082, %v4350
    %4352 = vmatmul.bf16.gmra.mxu0 %v2460
    %v4353 = vpop.f32.mrf.mxu0
    %v4354 = vadd.f32 %v4085, %v4353
    %v4355 = vpop.f32.mrf.mxu0
    %v4356 = vadd.f32 %v4087, %v4355
    %4357 = vmatmul.bf16.gmra.mxu0 %v2468
    %v4358 = vpop.f32.mrf.mxu0
    %v4359 = vadd.f32 %v4090, %v4358
    %v4360 = vpop.f32.mrf.mxu0
    %v4361 = vadd.f32 %v4092, %v4360
    %4362 = vmatmul.bf16.gmra.mxu0 %v2476
    %v4363 = vpop.f32.mrf.mxu0
    %v4364 = vadd.f32 %v4095, %v4363
    %v4365 = vpop.f32.mrf.mxu0
    %v4366 = vadd.f32 %v4097, %v4365
    %4367 = vmatmul.bf16.gmra.mxu0 %v2484
    %v4368 = vpop.f32.mrf.mxu0
    %v4369 = vadd.f32 %v4100, %v4368
    %v4370 = vpop.f32.mrf.mxu0
    %v4371 = vadd.f32 %v4102, %v4370
    %4372 = vmatmul.bf16.gmra.mxu0 %v2492
    %v4373 = vpop.f32.mrf.mxu0
    %v4374 = vadd.f32 %v4105, %v4373
    %v4375 = vpop.f32.mrf.mxu0
    %v4376 = vadd.f32 %v4107, %v4375
    %4377 = vmatmul.bf16.gmra.mxu0 %v2500
    %v4378 = vpop.f32.mrf.mxu0
    %v4379 = vadd.f32 %v4110, %v4378
    %v4380 = vpop.f32.mrf.mxu0
    %v4381 = vadd.f32 %v4112, %v4380
    %4382 = vmatmul.bf16.gmra.mxu0 %v2508
    %v4383 = vpop.f32.mrf.mxu0
    %v4384 = vadd.f32 %v4115, %v4383
    %v4385 = vpop.f32.mrf.mxu0
    %v4386 = vadd.f32 %v4117, %v4385
    %4387 = vmatmul.bf16.gmra.mxu0 %v2516
    %v4388 = vpop.f32.mrf.mxu0
    %v4389 = vadd.f32 %v4120, %v4388
    %v4390 = vpop.f32.mrf.mxu0
    %v4391 = vadd.f32 %v4122, %v4390
    %4392 = vdwg.mxu0
    %4393 = vmatpush.bf16.msra.mxu0 %v824
    %4394 = vmatpush.bf16.msra.mxu0 %v822
    %4395 = vmatpush.bf16.msra.mxu0 %v820
    %4396 = vmatpush.bf16.msra.mxu0 %v818
    %4397 = vmatpush.bf16.msra.mxu0 %v816
    %4398 = vmatpush.bf16.msra.mxu0 %v814
    %4399 = vmatpush.bf16.msra.mxu0 %v812
    %4400 = vmatpush.bf16.msra.mxu0 %v810
    %4401 = vmatmul.bf16.gmra.mxu0 %v2109
    %v4402 = vpop.f32.mrf.mxu0
    %v4403 = vadd.f32 %v4134, %v4402
    %v4404 = vpop.f32.mrf.mxu0
    %v4405 = vadd.f32 %v4136, %v4404
    %4406 = vmatmul.bf16.gmra.mxu0 %v2117
    %v4407 = vpop.f32.mrf.mxu0
    %v4408 = vadd.f32 %v4139, %v4407
    %v4409 = vpop.f32.mrf.mxu0
    %v4410 = vadd.f32 %v4141, %v4409
    %4411 = vmatmul.bf16.gmra.mxu0 %v2125
    %v4412 = vpop.f32.mrf.mxu0
    %v4413 = vadd.f32 %v4144, %v4412
    %v4414 = vpop.f32.mrf.mxu0
    %v4415 = vadd.f32 %v4146, %v4414
    %4416 = vmatmul.bf16.gmra.mxu0 %v2133
    %v4417 = vpop.f32.mrf.mxu0
    %v4418 = vadd.f32 %v4149, %v4417
    %v4419 = vpop.f32.mrf.mxu0
    %v4420 = vadd.f32 %v4151, %v4419
    %4421 = vmatmul.bf16.gmra.mxu0 %v2141
    %v4422 = vpop.f32.mrf.mxu0
    %v4423 = vadd.f32 %v4154, %v4422
    %v4424 = vpop.f32.mrf.mxu0
    %v4425 = vadd.f32 %v4156, %v4424
    %4426 = vmatmul.bf16.gmra.mxu0 %v2149
    %v4427 = vpop.f32.mrf.mxu0
    %v4428 = vadd.f32 %v4159, %v4427
    %v4429 = vpop.f32.mrf.mxu0
    %v4430 = vadd.f32 %v4161, %v4429
    %4431 = vmatmul.bf16.gmra.mxu0 %v2157
    %v4432 = vpop.f32.mrf.mxu0
    %v4433 = vadd.f32 %v4164, %v4432
    %v4434 = vpop.f32.mrf.mxu0
    %v4435 = vadd.f32 %v4166, %v4434
    %4436 = vmatmul.bf16.gmra.mxu0 %v2165
    %v4437 = vpop.f32.mrf.mxu0
    %v4438 = vadd.f32 %v4169, %v4437
    %v4439 = vpop.f32.mrf.mxu0
    %v4440 = vadd.f32 %v4171, %v4439
    %4441 = vmatmul.bf16.gmra.mxu0 %v2173
    %v4442 = vpop.f32.mrf.mxu0
    %v4443 = vadd.f32 %v4174, %v4442
    %v4444 = vpop.f32.mrf.mxu0
    %v4445 = vadd.f32 %v4176, %v4444
    %4446 = vmatmul.bf16.gmra.mxu0 %v2181
    %v4447 = vpop.f32.mrf.mxu0
    %v4448 = vadd.f32 %v4179, %v4447
    %v4449 = vpop.f32.mrf.mxu0
    %v4450 = vadd.f32 %v4181, %v4449
    %4451 = vmatmul.bf16.gmra.mxu0 %v2189
    %v4452 = vpop.f32.mrf.mxu0
    %v4453 = vadd.f32 %v4184, %v4452
    %v4454 = vpop.f32.mrf.mxu0
    %v4455 = vadd.f32 %v4186, %v4454
    %4456 = vmatmul.bf16.gmra.mxu0 %v2197
    %v4457 = vpop.f32.mrf.mxu0
    %v4458 = vadd.f32 %v4189, %v4457
    %v4459 = vpop.f32.mrf.mxu0
    %v4460 = vadd.f32 %v4191, %v4459
    %4461 = vmatmul.bf16.gmra.mxu0 %v2205
    %v4462 = vpop.f32.mrf.mxu0
    %v4463 = vadd.f32 %v4194, %v4462
    %v4464 = vpop.f32.mrf.mxu0
    %v4465 = vadd.f32 %v4196, %v4464
    %4466 = vmatmul.bf16.gmra.mxu0 %v2213
    %v4467 = vpop.f32.mrf.mxu0
    %v4468 = vadd.f32 %v4199, %v4467
    %v4469 = vpop.f32.mrf.mxu0
    %v4470 = vadd.f32 %v4201, %v4469
    %4471 = vmatmul.bf16.gmra.mxu0 %v2221
    %v4472 = vpop.f32.mrf.mxu0
    %v4473 = vadd.f32 %v4204, %v4472
    %v4474 = vpop.f32.mrf.mxu0
    %v4475 = vadd.f32 %v4206, %v4474
    %4476 = vmatmul.bf16.gmra.mxu0 %v2229
    %v4477 = vpop.f32.mrf.mxu0
    %v4478 = vadd.f32 %v4209, %v4477
    %v4479 = vpop.f32.mrf.mxu0
    %v4480 = vadd.f32 %v4211, %v4479
    %4481 = vmatmul.bf16.gmra.mxu0 %v2237
    %v4482 = vpop.f32.mrf.mxu0
    %v4483 = vadd.f32 %v4214, %v4482
    %v4484 = vpop.f32.mrf.mxu0
    %v4485 = vadd.f32 %v4216, %v4484
    %4486 = vmatmul.bf16.gmra.mxu0 %v2245
    %v4487 = vpop.f32.mrf.mxu0
    %v4488 = vadd.f32 %v4219, %v4487
    %v4489 = vpop.f32.mrf.mxu0
    %v4490 = vadd.f32 %v4221, %v4489
    %4491 = vmatmul.bf16.gmra.mxu0 %v2253
    %v4492 = vpop.f32.mrf.mxu0
    %v4493 = vadd.f32 %v4224, %v4492
    %v4494 = vpop.f32.mrf.mxu0
    %v4495 = vadd.f32 %v4226, %v4494
    %4496 = vmatmul.bf16.gmra.mxu0 %v2261
    %v4497 = vpop.f32.mrf.mxu0
    %v4498 = vadd.f32 %v4229, %v4497
    %v4499 = vpop.f32.mrf.mxu0
    %v4500 = vadd.f32 %v4231, %v4499
    %4501 = vmatmul.bf16.gmra.mxu0 %v2269
    %v4502 = vpop.f32.mrf.mxu0
    %v4503 = vadd.f32 %v4234, %v4502
    %v4504 = vpop.f32.mrf.mxu0
    %v4505 = vadd.f32 %v4236, %v4504
    %4506 = vmatmul.bf16.gmra.mxu0 %v2277
    %v4507 = vpop.f32.mrf.mxu0
    %v4508 = vadd.f32 %v4239, %v4507
    %v4509 = vpop.f32.mrf.mxu0
    %v4510 = vadd.f32 %v4241, %v4509
    %4511 = vmatmul.bf16.gmra.mxu0 %v2285
    %v4512 = vpop.f32.mrf.mxu0
    %v4513 = vadd.f32 %v4244, %v4512
    %v4514 = vpop.f32.mrf.mxu0
    %v4515 = vadd.f32 %v4246, %v4514
    %4516 = vmatmul.bf16.gmra.mxu0 %v2293
    %v4517 = vpop.f32.mrf.mxu0
    %v4518 = vadd.f32 %v4249, %v4517
    %v4519 = vpop.f32.mrf.mxu0
    %v4520 = vadd.f32 %v4251, %v4519
    %4521 = vmatmul.bf16.gmra.mxu0 %v2301
    %v4522 = vpop.f32.mrf.mxu0
    %v4523 = vadd.f32 %v4254, %v4522
    %v4524 = vpop.f32.mrf.mxu0
    %v4525 = vadd.f32 %v4256, %v4524
    %4526 = vmatmul.bf16.gmra.mxu0 %v2309
    %v4527 = vpop.f32.mrf.mxu0
    %v4528 = vadd.f32 %v4259, %v4527
    %v4529 = vpop.f32.mrf.mxu0
    %v4530 = vadd.f32 %v4261, %v4529
    %4531 = vmatmul.bf16.gmra.mxu0 %v2317
    %v4532 = vpop.f32.mrf.mxu0
    %v4533 = vadd.f32 %v4264, %v4532
    %v4534 = vpop.f32.mrf.mxu0
    %v4535 = vadd.f32 %v4266, %v4534
    %4536 = vmatmul.bf16.gmra.mxu0 %v2325
    %v4537 = vpop.f32.mrf.mxu0
    %v4538 = vadd.f32 %v4269, %v4537
    %v4539 = vpop.f32.mrf.mxu0
    %v4540 = vadd.f32 %v4271, %v4539
    %4541 = vmatmul.bf16.gmra.mxu0 %v2333
    %v4542 = vpop.f32.mrf.mxu0
    %v4543 = vadd.f32 %v4274, %v4542
    %v4544 = vpop.f32.mrf.mxu0
    %v4545 = vadd.f32 %v4276, %v4544
    %4546 = vmatmul.bf16.gmra.mxu0 %v2341
    %v4547 = vpop.f32.mrf.mxu0
    %v4548 = vadd.f32 %v4279, %v4547
    %v4549 = vpop.f32.mrf.mxu0
    %v4550 = vadd.f32 %v4281, %v4549
    %4551 = vmatmul.bf16.gmra.mxu0 %v2349
    %v4552 = vpop.f32.mrf.mxu0
    %v4553 = vadd.f32 %v4284, %v4552
    %v4554 = vpop.f32.mrf.mxu0
    %v4555 = vadd.f32 %v4286, %v4554
    %4556 = vmatmul.bf16.gmra.mxu0 %v2357
    %v4557 = vpop.f32.mrf.mxu0
    %v4558 = vadd.f32 %v4289, %v4557
    %v4559 = vpop.f32.mrf.mxu0
    %v4560 = vadd.f32 %v4291, %v4559
    %4561 = vmatmul.bf16.gmra.mxu0 %v2365
    %v4562 = vpop.f32.mrf.mxu0
    %v4563 = vadd.f32 %v4294, %v4562
    %v4564 = vpop.f32.mrf.mxu0
    %v4565 = vadd.f32 %v4296, %v4564
    %4566 = vmatmul.bf16.gmra.mxu0 %v2373
    %v4567 = vpop.f32.mrf.mxu0
    %v4568 = vadd.f32 %v4299, %v4567
    %v4569 = vpop.f32.mrf.mxu0
    %v4570 = vadd.f32 %v4301, %v4569
    %4571 = vmatmul.bf16.gmra.mxu0 %v2381
    %v4572 = vpop.f32.mrf.mxu0
    %v4573 = vadd.f32 %v4304, %v4572
    %v4574 = vpop.f32.mrf.mxu0
    %v4575 = vadd.f32 %v4306, %v4574
    %4576 = vmatmul.bf16.gmra.mxu0 %v2389
    %v4577 = vpop.f32.mrf.mxu0
    %v4578 = vadd.f32 %v4309, %v4577
    %v4579 = vpop.f32.mrf.mxu0
    %v4580 = vadd.f32 %v4311, %v4579
    %4581 = vmatmul.bf16.gmra.mxu0 %v2397
    %v4582 = vpop.f32.mrf.mxu0
    %v4583 = vadd.f32 %v4314, %v4582
    %v4584 = vpop.f32.mrf.mxu0
    %v4585 = vadd.f32 %v4316, %v4584
    %4586 = vmatmul.bf16.gmra.mxu0 %v2405
    %v4587 = vpop.f32.mrf.mxu0
    %v4588 = vadd.f32 %v4319, %v4587
    %v4589 = vpop.f32.mrf.mxu0
    %v4590 = vadd.f32 %v4321, %v4589
    %4591 = vmatmul.bf16.gmra.mxu0 %v2413
    %v4592 = vpop.f32.mrf.mxu0
    %v4593 = vadd.f32 %v4324, %v4592
    %v4594 = vpop.f32.mrf.mxu0
    %v4595 = vadd.f32 %v4326, %v4594
    %4596 = vmatmul.bf16.gmra.mxu0 %v2421
    %v4597 = vpop.f32.mrf.mxu0
    %v4598 = vadd.f32 %v4329, %v4597
    %v4599 = vpop.f32.mrf.mxu0
    %v4600 = vadd.f32 %v4331, %v4599
    %4601 = vmatmul.bf16.gmra.mxu0 %v2429
    %v4602 = vpop.f32.mrf.mxu0
    %v4603 = vadd.f32 %v4334, %v4602
    %v4604 = vpop.f32.mrf.mxu0
    %v4605 = vadd.f32 %v4336, %v4604
    %4606 = vmatmul.bf16.gmra.mxu0 %v2437
    %v4607 = vpop.f32.mrf.mxu0
    %v4608 = vadd.f32 %v4339, %v4607
    %v4609 = vpop.f32.mrf.mxu0
    %v4610 = vadd.f32 %v4341, %v4609
    %4611 = vmatmul.bf16.gmra.mxu0 %v2445
    %v4612 = vpop.f32.mrf.mxu0
    %v4613 = vadd.f32 %v4344, %v4612
    %v4614 = vpop.f32.mrf.mxu0
    %v4615 = vadd.f32 %v4346, %v4614
    %4616 = vmatmul.bf16.gmra.mxu0 %v2453
    %v4617 = vpop.f32.mrf.mxu0
    %v4618 = vadd.f32 %v4349, %v4617
    %v4619 = vpop.f32.mrf.mxu0
    %v4620 = vadd.f32 %v4351, %v4619
    %4621 = vmatmul.bf16.gmra.mxu0 %v2461
    %v4622 = vpop.f32.mrf.mxu0
    %v4623 = vadd.f32 %v4354, %v4622
    %v4624 = vpop.f32.mrf.mxu0
    %v4625 = vadd.f32 %v4356, %v4624
    %4626 = vmatmul.bf16.gmra.mxu0 %v2469
    %v4627 = vpop.f32.mrf.mxu0
    %v4628 = vadd.f32 %v4359, %v4627
    %v4629 = vpop.f32.mrf.mxu0
    %v4630 = vadd.f32 %v4361, %v4629
    %4631 = vmatmul.bf16.gmra.mxu0 %v2477
    %v4632 = vpop.f32.mrf.mxu0
    %v4633 = vadd.f32 %v4364, %v4632
    %v4634 = vpop.f32.mrf.mxu0
    %v4635 = vadd.f32 %v4366, %v4634
    %4636 = vmatmul.bf16.gmra.mxu0 %v2485
    %v4637 = vpop.f32.mrf.mxu0
    %v4638 = vadd.f32 %v4369, %v4637
    %v4639 = vpop.f32.mrf.mxu0
    %v4640 = vadd.f32 %v4371, %v4639
    %4641 = vmatmul.bf16.gmra.mxu0 %v2493
    %v4642 = vpop.f32.mrf.mxu0
    %v4643 = vadd.f32 %v4374, %v4642
    %v4644 = vpop.f32.mrf.mxu0
    %v4645 = vadd.f32 %v4376, %v4644
    %4646 = vmatmul.bf16.gmra.mxu0 %v2501
    %v4647 = vpop.f32.mrf.mxu0
    %v4648 = vadd.f32 %v4379, %v4647
    %v4649 = vpop.f32.mrf.mxu0
    %v4650 = vadd.f32 %v4381, %v4649
    %4651 = vmatmul.bf16.gmra.mxu0 %v2509
    %v4652 = vpop.f32.mrf.mxu0
    %v4653 = vadd.f32 %v4384, %v4652
    %v4654 = vpop.f32.mrf.mxu0
    %v4655 = vadd.f32 %v4386, %v4654
    %4656 = vmatmul.bf16.gmra.mxu0 %v2517
    %v4657 = vpop.f32.mrf.mxu0
    %v4658 = vadd.f32 %v4389, %v4657
    %v4659 = vpop.f32.mrf.mxu0
    %v4660 = vadd.f32 %v4391, %v4659
    %4661 = vdwg.mxu0
    %4662 = vmatpush.bf16.msra.mxu0 %v840
    %4663 = vmatpush.bf16.msra.mxu0 %v838
    %4664 = vmatpush.bf16.msra.mxu0 %v836
    %4665 = vmatpush.bf16.msra.mxu0 %v834
    %4666 = vmatpush.bf16.msra.mxu0 %v832
    %4667 = vmatpush.bf16.msra.mxu0 %v830
    %4668 = vmatpush.bf16.msra.mxu0 %v828
    %4669 = vmatpush.bf16.msra.mxu0 %v826
    %4670 = vmatmul.bf16.gmra.mxu0 %v2110
    %v4671 = vpop.f32.mrf.mxu0
    %v4672 = vadd.f32 %v4403, %v4671
    %v4673 = vpop.f32.mrf.mxu0
    %v4674 = vadd.f32 %v4405, %v4673
    %4675 = vmatmul.bf16.gmra.mxu0 %v2118
    %v4676 = vpop.f32.mrf.mxu0
    %v4677 = vadd.f32 %v4408, %v4676
    %v4678 = vpop.f32.mrf.mxu0
    %v4679 = vadd.f32 %v4410, %v4678
    %4680 = vmatmul.bf16.gmra.mxu0 %v2126
    %v4681 = vpop.f32.mrf.mxu0
    %v4682 = vadd.f32 %v4413, %v4681
    %v4683 = vpop.f32.mrf.mxu0
    %v4684 = vadd.f32 %v4415, %v4683
    %4685 = vmatmul.bf16.gmra.mxu0 %v2134
    %v4686 = vpop.f32.mrf.mxu0
    %v4687 = vadd.f32 %v4418, %v4686
    %v4688 = vpop.f32.mrf.mxu0
    %v4689 = vadd.f32 %v4420, %v4688
    %4690 = vmatmul.bf16.gmra.mxu0 %v2142
    %v4691 = vpop.f32.mrf.mxu0
    %v4692 = vadd.f32 %v4423, %v4691
    %v4693 = vpop.f32.mrf.mxu0
    %v4694 = vadd.f32 %v4425, %v4693
    %4695 = vmatmul.bf16.gmra.mxu0 %v2150
    %v4696 = vpop.f32.mrf.mxu0
    %v4697 = vadd.f32 %v4428, %v4696
    %v4698 = vpop.f32.mrf.mxu0
    %v4699 = vadd.f32 %v4430, %v4698
    %4700 = vmatmul.bf16.gmra.mxu0 %v2158
    %v4701 = vpop.f32.mrf.mxu0
    %v4702 = vadd.f32 %v4433, %v4701
    %v4703 = vpop.f32.mrf.mxu0
    %v4704 = vadd.f32 %v4435, %v4703
    %4705 = vmatmul.bf16.gmra.mxu0 %v2166
    %v4706 = vpop.f32.mrf.mxu0
    %v4707 = vadd.f32 %v4438, %v4706
    %v4708 = vpop.f32.mrf.mxu0
    %v4709 = vadd.f32 %v4440, %v4708
    %4710 = vmatmul.bf16.gmra.mxu0 %v2174
    %v4711 = vpop.f32.mrf.mxu0
    %v4712 = vadd.f32 %v4443, %v4711
    %v4713 = vpop.f32.mrf.mxu0
    %v4714 = vadd.f32 %v4445, %v4713
    %4715 = vmatmul.bf16.gmra.mxu0 %v2182
    %v4716 = vpop.f32.mrf.mxu0
    %v4717 = vadd.f32 %v4448, %v4716
    %v4718 = vpop.f32.mrf.mxu0
    %v4719 = vadd.f32 %v4450, %v4718
    %4720 = vmatmul.bf16.gmra.mxu0 %v2190
    %v4721 = vpop.f32.mrf.mxu0
    %v4722 = vadd.f32 %v4453, %v4721
    %v4723 = vpop.f32.mrf.mxu0
    %v4724 = vadd.f32 %v4455, %v4723
    %4725 = vmatmul.bf16.gmra.mxu0 %v2198
    %v4726 = vpop.f32.mrf.mxu0
    %v4727 = vadd.f32 %v4458, %v4726
    %v4728 = vpop.f32.mrf.mxu0
    %v4729 = vadd.f32 %v4460, %v4728
    %4730 = vmatmul.bf16.gmra.mxu0 %v2206
    %v4731 = vpop.f32.mrf.mxu0
    %v4732 = vadd.f32 %v4463, %v4731
    %v4733 = vpop.f32.mrf.mxu0
    %v4734 = vadd.f32 %v4465, %v4733
    %4735 = vmatmul.bf16.gmra.mxu0 %v2214
    %v4736 = vpop.f32.mrf.mxu0
    %v4737 = vadd.f32 %v4468, %v4736
    %v4738 = vpop.f32.mrf.mxu0
    %v4739 = vadd.f32 %v4470, %v4738
    %4740 = vmatmul.bf16.gmra.mxu0 %v2222
    %v4741 = vpop.f32.mrf.mxu0
    %v4742 = vadd.f32 %v4473, %v4741
    %v4743 = vpop.f32.mrf.mxu0
    %v4744 = vadd.f32 %v4475, %v4743
    %4745 = vmatmul.bf16.gmra.mxu0 %v2230
    %v4746 = vpop.f32.mrf.mxu0
    %v4747 = vadd.f32 %v4478, %v4746
    %v4748 = vpop.f32.mrf.mxu0
    %v4749 = vadd.f32 %v4480, %v4748
    %4750 = vmatmul.bf16.gmra.mxu0 %v2238
    %v4751 = vpop.f32.mrf.mxu0
    %v4752 = vadd.f32 %v4483, %v4751
    %v4753 = vpop.f32.mrf.mxu0
    %v4754 = vadd.f32 %v4485, %v4753
    %4755 = vmatmul.bf16.gmra.mxu0 %v2246
    %v4756 = vpop.f32.mrf.mxu0
    %v4757 = vadd.f32 %v4488, %v4756
    %v4758 = vpop.f32.mrf.mxu0
    %v4759 = vadd.f32 %v4490, %v4758
    %4760 = vmatmul.bf16.gmra.mxu0 %v2254
    %v4761 = vpop.f32.mrf.mxu0
    %v4762 = vadd.f32 %v4493, %v4761
    %v4763 = vpop.f32.mrf.mxu0
    %v4764 = vadd.f32 %v4495, %v4763
    %4765 = vmatmul.bf16.gmra.mxu0 %v2262
    %v4766 = vpop.f32.mrf.mxu0
    %v4767 = vadd.f32 %v4498, %v4766
    %v4768 = vpop.f32.mrf.mxu0
    %v4769 = vadd.f32 %v4500, %v4768
    %4770 = vmatmul.bf16.gmra.mxu0 %v2270
    %v4771 = vpop.f32.mrf.mxu0
    %v4772 = vadd.f32 %v4503, %v4771
    %v4773 = vpop.f32.mrf.mxu0
    %v4774 = vadd.f32 %v4505, %v4773
    %4775 = vmatmul.bf16.gmra.mxu0 %v2278
    %v4776 = vpop.f32.mrf.mxu0
    %v4777 = vadd.f32 %v4508, %v4776
    %v4778 = vpop.f32.mrf.mxu0
    %v4779 = vadd.f32 %v4510, %v4778
    %4780 = vmatmul.bf16.gmra.mxu0 %v2286
    %v4781 = vpop.f32.mrf.mxu0
    %v4782 = vadd.f32 %v4513, %v4781
    %v4783 = vpop.f32.mrf.mxu0
    %v4784 = vadd.f32 %v4515, %v4783
    %4785 = vmatmul.bf16.gmra.mxu0 %v2294
    %v4786 = vpop.f32.mrf.mxu0
    %v4787 = vadd.f32 %v4518, %v4786
    %v4788 = vpop.f32.mrf.mxu0
    %v4789 = vadd.f32 %v4520, %v4788
    %4790 = vmatmul.bf16.gmra.mxu0 %v2302
    %v4791 = vpop.f32.mrf.mxu0
    %v4792 = vadd.f32 %v4523, %v4791
    %v4793 = vpop.f32.mrf.mxu0
    %v4794 = vadd.f32 %v4525, %v4793
    %4795 = vmatmul.bf16.gmra.mxu0 %v2310
    %v4796 = vpop.f32.mrf.mxu0
    %v4797 = vadd.f32 %v4528, %v4796
    %v4798 = vpop.f32.mrf.mxu0
    %v4799 = vadd.f32 %v4530, %v4798
    %4800 = vmatmul.bf16.gmra.mxu0 %v2318
    %v4801 = vpop.f32.mrf.mxu0
    %v4802 = vadd.f32 %v4533, %v4801
    %v4803 = vpop.f32.mrf.mxu0
    %v4804 = vadd.f32 %v4535, %v4803
    %4805 = vmatmul.bf16.gmra.mxu0 %v2326
    %v4806 = vpop.f32.mrf.mxu0
    %v4807 = vadd.f32 %v4538, %v4806
    %v4808 = vpop.f32.mrf.mxu0
    %v4809 = vadd.f32 %v4540, %v4808
    %4810 = vmatmul.bf16.gmra.mxu0 %v2334
    %v4811 = vpop.f32.mrf.mxu0
    %v4812 = vadd.f32 %v4543, %v4811
    %v4813 = vpop.f32.mrf.mxu0
    %v4814 = vadd.f32 %v4545, %v4813
    %4815 = vmatmul.bf16.gmra.mxu0 %v2342
    %v4816 = vpop.f32.mrf.mxu0
    %v4817 = vadd.f32 %v4548, %v4816
    %v4818 = vpop.f32.mrf.mxu0
    %v4819 = vadd.f32 %v4550, %v4818
    %4820 = vmatmul.bf16.gmra.mxu0 %v2350
    %v4821 = vpop.f32.mrf.mxu0
    %v4822 = vadd.f32 %v4553, %v4821
    %v4823 = vpop.f32.mrf.mxu0
    %v4824 = vadd.f32 %v4555, %v4823
    %4825 = vmatmul.bf16.gmra.mxu0 %v2358
    %v4826 = vpop.f32.mrf.mxu0
    %v4827 = vadd.f32 %v4558, %v4826
    %v4828 = vpop.f32.mrf.mxu0
    %v4829 = vadd.f32 %v4560, %v4828
    %4830 = vmatmul.bf16.gmra.mxu0 %v2366
    %v4831 = vpop.f32.mrf.mxu0
    %v4832 = vadd.f32 %v4563, %v4831
    %v4833 = vpop.f32.mrf.mxu0
    %v4834 = vadd.f32 %v4565, %v4833
    %4835 = vmatmul.bf16.gmra.mxu0 %v2374
    %v4836 = vpop.f32.mrf.mxu0
    %v4837 = vadd.f32 %v4568, %v4836
    %v4838 = vpop.f32.mrf.mxu0
    %v4839 = vadd.f32 %v4570, %v4838
    %4840 = vmatmul.bf16.gmra.mxu0 %v2382
    %v4841 = vpop.f32.mrf.mxu0
    %v4842 = vadd.f32 %v4573, %v4841
    %v4843 = vpop.f32.mrf.mxu0
    %v4844 = vadd.f32 %v4575, %v4843
    %4845 = vmatmul.bf16.gmra.mxu0 %v2390
    %v4846 = vpop.f32.mrf.mxu0
    %v4847 = vadd.f32 %v4578, %v4846
    %v4848 = vpop.f32.mrf.mxu0
    %v4849 = vadd.f32 %v4580, %v4848
    %4850 = vmatmul.bf16.gmra.mxu0 %v2398
    %v4851 = vpop.f32.mrf.mxu0
    %v4852 = vadd.f32 %v4583, %v4851
    %v4853 = vpop.f32.mrf.mxu0
    %v4854 = vadd.f32 %v4585, %v4853
    %4855 = vmatmul.bf16.gmra.mxu0 %v2406
    %v4856 = vpop.f32.mrf.mxu0
    %v4857 = vadd.f32 %v4588, %v4856
    %v4858 = vpop.f32.mrf.mxu0
    %v4859 = vadd.f32 %v4590, %v4858
    %4860 = vmatmul.bf16.gmra.mxu0 %v2414
    %v4861 = vpop.f32.mrf.mxu0
    %v4862 = vadd.f32 %v4593, %v4861
    %v4863 = vpop.f32.mrf.mxu0
    %v4864 = vadd.f32 %v4595, %v4863
    %4865 = vmatmul.bf16.gmra.mxu0 %v2422
    %v4866 = vpop.f32.mrf.mxu0
    %v4867 = vadd.f32 %v4598, %v4866
    %v4868 = vpop.f32.mrf.mxu0
    %v4869 = vadd.f32 %v4600, %v4868
    %4870 = vmatmul.bf16.gmra.mxu0 %v2430
    %v4871 = vpop.f32.mrf.mxu0
    %v4872 = vadd.f32 %v4603, %v4871
    %v4873 = vpop.f32.mrf.mxu0
    %v4874 = vadd.f32 %v4605, %v4873
    %4875 = vmatmul.bf16.gmra.mxu0 %v2438
    %v4876 = vpop.f32.mrf.mxu0
    %v4877 = vadd.f32 %v4608, %v4876
    %v4878 = vpop.f32.mrf.mxu0
    %v4879 = vadd.f32 %v4610, %v4878
    %4880 = vmatmul.bf16.gmra.mxu0 %v2446
    %v4881 = vpop.f32.mrf.mxu0
    %v4882 = vadd.f32 %v4613, %v4881
    %v4883 = vpop.f32.mrf.mxu0
    %v4884 = vadd.f32 %v4615, %v4883
    %4885 = vmatmul.bf16.gmra.mxu0 %v2454
    %v4886 = vpop.f32.mrf.mxu0
    %v4887 = vadd.f32 %v4618, %v4886
    %v4888 = vpop.f32.mrf.mxu0
    %v4889 = vadd.f32 %v4620, %v4888
    %4890 = vmatmul.bf16.gmra.mxu0 %v2462
    %v4891 = vpop.f32.mrf.mxu0
    %v4892 = vadd.f32 %v4623, %v4891
    %v4893 = vpop.f32.mrf.mxu0
    %v4894 = vadd.f32 %v4625, %v4893
    %4895 = vmatmul.bf16.gmra.mxu0 %v2470
    %v4896 = vpop.f32.mrf.mxu0
    %v4897 = vadd.f32 %v4628, %v4896
    %v4898 = vpop.f32.mrf.mxu0
    %v4899 = vadd.f32 %v4630, %v4898
    %4900 = vmatmul.bf16.gmra.mxu0 %v2478
    %v4901 = vpop.f32.mrf.mxu0
    %v4902 = vadd.f32 %v4633, %v4901
    %v4903 = vpop.f32.mrf.mxu0
    %v4904 = vadd.f32 %v4635, %v4903
    %4905 = vmatmul.bf16.gmra.mxu0 %v2486
    %v4906 = vpop.f32.mrf.mxu0
    %v4907 = vadd.f32 %v4638, %v4906
    %v4908 = vpop.f32.mrf.mxu0
    %v4909 = vadd.f32 %v4640, %v4908
    %4910 = vmatmul.bf16.gmra.mxu0 %v2494
    %v4911 = vpop.f32.mrf.mxu0
    %v4912 = vadd.f32 %v4643, %v4911
    %v4913 = vpop.f32.mrf.mxu0
    %v4914 = vadd.f32 %v4645, %v4913
    %4915 = vmatmul.bf16.gmra.mxu0 %v2502
    %v4916 = vpop.f32.mrf.mxu0
    %v4917 = vadd.f32 %v4648, %v4916
    %v4918 = vpop.f32.mrf.mxu0
    %v4919 = vadd.f32 %v4650, %v4918
    %4920 = vmatmul.bf16.gmra.mxu0 %v2510
    %v4921 = vpop.f32.mrf.mxu0
    %v4922 = vadd.f32 %v4653, %v4921
    %v4923 = vpop.f32.mrf.mxu0
    %v4924 = vadd.f32 %v4655, %v4923
    %4925 = vmatmul.bf16.gmra.mxu0 %v2518
    %v4926 = vpop.f32.mrf.mxu0
    %v4927 = vadd.f32 %v4658, %v4926
    %v4928 = vpop.f32.mrf.mxu0
    %v4929 = vadd.f32 %v4660, %v4928
    %4930 = vdwg.mxu0
    %4931 = vmatpush.bf16.msra.mxu0 0
    %4932 = vmatpush.bf16.msra.mxu0 %v3043
    %4933 = vmatpush.bf16.msra.mxu0 %v852
    %4934 = vmatpush.bf16.msra.mxu0 %v850
    %4935 = vmatpush.bf16.msra.mxu0 %v848
    %4936 = vmatpush.bf16.msra.mxu0 %v846
    %4937 = vmatpush.bf16.msra.mxu0 %v844
    %4938 = vmatpush.bf16.msra.mxu0 %v842
    %4939 = vmatmul.bf16.gmra.mxu0 %v2886
    %v4940 = vpop.f32.mrf.mxu0
    %v4941 = vadd.f32 %v4672, %v4940
    %v4942 = vpop.f32.mrf.mxu0
    %v4943 = vadd.f32 %v4674, %v4942
    %4944 = vmatmul.bf16.gmra.mxu0 %v2889
    %v4945 = vpop.f32.mrf.mxu0
    %v4946 = vadd.f32 %v4677, %v4945
    %v4947 = vpop.f32.mrf.mxu0
    %v4948 = vadd.f32 %v4679, %v4947
    %4949 = vmatmul.bf16.gmra.mxu0 %v2892
    %v4950 = vpop.f32.mrf.mxu0
    %v4951 = vadd.f32 %v4682, %v4950
    %v4952 = vpop.f32.mrf.mxu0
    %v4953 = vadd.f32 %v4684, %v4952
    %4954 = vmatmul.bf16.gmra.mxu0 %v2895
    %v4955 = vpop.f32.mrf.mxu0
    %v4956 = vadd.f32 %v4687, %v4955
    %v4957 = vpop.f32.mrf.mxu0
    %v4958 = vadd.f32 %v4689, %v4957
    %4959 = vmatmul.bf16.gmra.mxu0 %v2898
    %v4960 = vpop.f32.mrf.mxu0
    %v4961 = vadd.f32 %v4692, %v4960
    %v4962 = vpop.f32.mrf.mxu0
    %v4963 = vadd.f32 %v4694, %v4962
    %4964 = vmatmul.bf16.gmra.mxu0 %v2901
    %v4965 = vpop.f32.mrf.mxu0
    %v4966 = vadd.f32 %v4697, %v4965
    %v4967 = vpop.f32.mrf.mxu0
    %v4968 = vadd.f32 %v4699, %v4967
    %4969 = vmatmul.bf16.gmra.mxu0 %v2904
    %v4970 = vpop.f32.mrf.mxu0
    %v4971 = vadd.f32 %v4702, %v4970
    %v4972 = vpop.f32.mrf.mxu0
    %v4973 = vadd.f32 %v4704, %v4972
    %4974 = vmatmul.bf16.gmra.mxu0 %v2907
    %v4975 = vpop.f32.mrf.mxu0
    %v4976 = vadd.f32 %v4707, %v4975
    %v4977 = vpop.f32.mrf.mxu0
    %v4978 = vadd.f32 %v4709, %v4977
    %4979 = vmatmul.bf16.gmra.mxu0 %v2910
    %v4980 = vpop.f32.mrf.mxu0
    %v4981 = vadd.f32 %v4712, %v4980
    %v4982 = vpop.f32.mrf.mxu0
    %v4983 = vadd.f32 %v4714, %v4982
    %4984 = vmatmul.bf16.gmra.mxu0 %v2913
    %v4985 = vpop.f32.mrf.mxu0
    %v4986 = vadd.f32 %v4717, %v4985
    %v4987 = vpop.f32.mrf.mxu0
    %v4988 = vadd.f32 %v4719, %v4987
    %4989 = vmatmul.bf16.gmra.mxu0 %v2916
    %v4990 = vpop.f32.mrf.mxu0
    %v4991 = vadd.f32 %v4722, %v4990
    %v4992 = vpop.f32.mrf.mxu0
    %v4993 = vadd.f32 %v4724, %v4992
    %4994 = vmatmul.bf16.gmra.mxu0 %v2919
    %v4995 = vpop.f32.mrf.mxu0
    %v4996 = vadd.f32 %v4727, %v4995
    %v4997 = vpop.f32.mrf.mxu0
    %v4998 = vadd.f32 %v4729, %v4997
    %4999 = vmatmul.bf16.gmra.mxu0 %v2922
    %v5000 = vpop.f32.mrf.mxu0
    %v5001 = vadd.f32 %v4732, %v5000
    %v5002 = vpop.f32.mrf.mxu0
    %v5003 = vadd.f32 %v4734, %v5002
    %5004 = vmatmul.bf16.gmra.mxu0 %v2925
    %v5005 = vpop.f32.mrf.mxu0
    %v5006 = vadd.f32 %v4737, %v5005
    %v5007 = vpop.f32.mrf.mxu0
    %v5008 = vadd.f32 %v4739, %v5007
    %5009 = vmatmul.bf16.gmra.mxu0 %v2928
    %v5010 = vpop.f32.mrf.mxu0
    %v5011 = vadd.f32 %v4742, %v5010
    %v5012 = vpop.f32.mrf.mxu0
    %v5013 = vadd.f32 %v4744, %v5012
    %5014 = vmatmul.bf16.gmra.mxu0 %v2931
    %v5015 = vpop.f32.mrf.mxu0
    %v5016 = vadd.f32 %v4747, %v5015
    %v5017 = vpop.f32.mrf.mxu0
    %v5018 = vadd.f32 %v4749, %v5017
    %5019 = vmatmul.bf16.gmra.mxu0 %v2934
    %v5020 = vpop.f32.mrf.mxu0
    %v5021 = vadd.f32 %v4752, %v5020
    %v5022 = vpop.f32.mrf.mxu0
    %v5023 = vadd.f32 %v4754, %v5022
    %5024 = vmatmul.bf16.gmra.mxu0 %v2937
    %v5025 = vpop.f32.mrf.mxu0
    %v5026 = vadd.f32 %v4757, %v5025
    %v5027 = vpop.f32.mrf.mxu0
    %v5028 = vadd.f32 %v4759, %v5027
    %5029 = vmatmul.bf16.gmra.mxu0 %v2940
    %v5030 = vpop.f32.mrf.mxu0
    %v5031 = vadd.f32 %v4762, %v5030
    %v5032 = vpop.f32.mrf.mxu0
    %v5033 = vadd.f32 %v4764, %v5032
    %5034 = vmatmul.bf16.gmra.mxu0 %v2943
    %v5035 = vpop.f32.mrf.mxu0
    %v5036 = vadd.f32 %v4767, %v5035
    %v5037 = vpop.f32.mrf.mxu0
    %v5038 = vadd.f32 %v4769, %v5037
    %5039 = vmatmul.bf16.gmra.mxu0 %v2946
    %v5040 = vpop.f32.mrf.mxu0
    %v5041 = vadd.f32 %v4772, %v5040
    %v5042 = vpop.f32.mrf.mxu0
    %v5043 = vadd.f32 %v4774, %v5042
    %5044 = vmatmul.bf16.gmra.mxu0 %v2949
    %v5045 = vpop.f32.mrf.mxu0
    %v5046 = vadd.f32 %v4777, %v5045
    %v5047 = vpop.f32.mrf.mxu0
    %v5048 = vadd.f32 %v4779, %v5047
    %5049 = vmatmul.bf16.gmra.mxu0 %v2952
    %v5050 = vpop.f32.mrf.mxu0
    %v5051 = vadd.f32 %v4782, %v5050
    %v5052 = vpop.f32.mrf.mxu0
    %v5053 = vadd.f32 %v4784, %v5052
    %5054 = vmatmul.bf16.gmra.mxu0 %v2955
    %v5055 = vpop.f32.mrf.mxu0
    %v5056 = vadd.f32 %v4787, %v5055
    %v5057 = vpop.f32.mrf.mxu0
    %v5058 = vadd.f32 %v4789, %v5057
    %5059 = vmatmul.bf16.gmra.mxu0 %v2958
    %v5060 = vpop.f32.mrf.mxu0
    %v5061 = vadd.f32 %v4792, %v5060
    %v5062 = vpop.f32.mrf.mxu0
    %v5063 = vadd.f32 %v4794, %v5062
    %5064 = vmatmul.bf16.gmra.mxu0 %v2961
    %v5065 = vpop.f32.mrf.mxu0
    %v5066 = vadd.f32 %v4797, %v5065
    %v5067 = vpop.f32.mrf.mxu0
    %v5068 = vadd.f32 %v4799, %v5067
    %5069 = vmatmul.bf16.gmra.mxu0 %v2964
    %v5070 = vpop.f32.mrf.mxu0
    %v5071 = vadd.f32 %v4802, %v5070
    %v5072 = vpop.f32.mrf.mxu0
    %v5073 = vadd.f32 %v4804, %v5072
    %5074 = vmatmul.bf16.gmra.mxu0 %v2967
    %v5075 = vpop.f32.mrf.mxu0
    %v5076 = vadd.f32 %v4807, %v5075
    %v5077 = vpop.f32.mrf.mxu0
    %v5078 = vadd.f32 %v4809, %v5077
    %5079 = vmatmul.bf16.gmra.mxu0 %v2970
    %v5080 = vpop.f32.mrf.mxu0
    %v5081 = vadd.f32 %v4812, %v5080
    %v5082 = vpop.f32.mrf.mxu0
    %v5083 = vadd.f32 %v4814, %v5082
    %5084 = vmatmul.bf16.gmra.mxu0 %v2973
    %v5085 = vpop.f32.mrf.mxu0
    %v5086 = vadd.f32 %v4817, %v5085
    %v5087 = vpop.f32.mrf.mxu0
    %v5088 = vadd.f32 %v4819, %v5087
    %5089 = vmatmul.bf16.gmra.mxu0 %v2976
    %v5090 = vpop.f32.mrf.mxu0
    %v5091 = vadd.f32 %v4822, %v5090
    %v5092 = vpop.f32.mrf.mxu0
    %v5093 = vadd.f32 %v4824, %v5092
    %5094 = vmatmul.bf16.gmra.mxu0 %v2979
    %v5095 = vpop.f32.mrf.mxu0
    %v5096 = vadd.f32 %v4827, %v5095
    %v5097 = vpop.f32.mrf.mxu0
    %v5098 = vadd.f32 %v4829, %v5097
    %5099 = vmatmul.bf16.gmra.mxu0 %v2982
    %v5100 = vpop.f32.mrf.mxu0
    %v5101 = vadd.f32 %v4832, %v5100
    %v5102 = vpop.f32.mrf.mxu0
    %v5103 = vadd.f32 %v4834, %v5102
    %5104 = vmatmul.bf16.gmra.mxu0 %v2985
    %v5105 = vpop.f32.mrf.mxu0
    %v5106 = vadd.f32 %v4837, %v5105
    %v5107 = vpop.f32.mrf.mxu0
    %v5108 = vadd.f32 %v4839, %v5107
    %5109 = vmatmul.bf16.gmra.mxu0 %v2988
    %v5110 = vpop.f32.mrf.mxu0
    %v5111 = vadd.f32 %v4842, %v5110
    %v5112 = vpop.f32.mrf.mxu0
    %v5113 = vadd.f32 %v4844, %v5112
    %5114 = vmatmul.bf16.gmra.mxu0 %v2991
    %v5115 = vpop.f32.mrf.mxu0
    %v5116 = vadd.f32 %v4847, %v5115
    %v5117 = vpop.f32.mrf.mxu0
    %v5118 = vadd.f32 %v4849, %v5117
    %5119 = vmatmul.bf16.gmra.mxu0 %v2994
    %v5120 = vpop.f32.mrf.mxu0
    %v5121 = vadd.f32 %v4852, %v5120
    %v5122 = vpop.f32.mrf.mxu0
    %v5123 = vadd.f32 %v4854, %v5122
    %5124 = vmatmul.bf16.gmra.mxu0 %v2997
    %v5125 = vpop.f32.mrf.mxu0
    %v5126 = vadd.f32 %v4857, %v5125
    %v5127 = vpop.f32.mrf.mxu0
    %v5128 = vadd.f32 %v4859, %v5127
    %5129 = vmatmul.bf16.gmra.mxu0 %v3000
    %v5130 = vpop.f32.mrf.mxu0
    %v5131 = vadd.f32 %v4862, %v5130
    %v5132 = vpop.f32.mrf.mxu0
    %v5133 = vadd.f32 %v4864, %v5132
    %5134 = vmatmul.bf16.gmra.mxu0 %v3003
    %v5135 = vpop.f32.mrf.mxu0
    %v5136 = vadd.f32 %v4867, %v5135
    %v5137 = vpop.f32.mrf.mxu0
    %v5138 = vadd.f32 %v4869, %v5137
    %5139 = vmatmul.bf16.gmra.mxu0 %v3006
    %v5140 = vpop.f32.mrf.mxu0
    %v5141 = vadd.f32 %v4872, %v5140
    %v5142 = vpop.f32.mrf.mxu0
    %v5143 = vadd.f32 %v4874, %v5142
    %5144 = vmatmul.bf16.gmra.mxu0 %v3009
    %v5145 = vpop.f32.mrf.mxu0
    %v5146 = vadd.f32 %v4877, %v5145
    %v5147 = vpop.f32.mrf.mxu0
    %v5148 = vadd.f32 %v4879, %v5147
    %5149 = vmatmul.bf16.gmra.mxu0 %v3012
    %v5150 = vpop.f32.mrf.mxu0
    %v5151 = vadd.f32 %v4882, %v5150
    %v5152 = vpop.f32.mrf.mxu0
    %v5153 = vadd.f32 %v4884, %v5152
    %5154 = vmatmul.bf16.gmra.mxu0 %v3015
    %v5155 = vpop.f32.mrf.mxu0
    %v5156 = vadd.f32 %v4887, %v5155
    %v5157 = vpop.f32.mrf.mxu0
    %v5158 = vadd.f32 %v4889, %v5157
    %5159 = vmatmul.bf16.gmra.mxu0 %v3018
    %v5160 = vpop.f32.mrf.mxu0
    %v5161 = vadd.f32 %v4892, %v5160
    %v5162 = vpop.f32.mrf.mxu0
    %v5163 = vadd.f32 %v4894, %v5162
    %5164 = vmatmul.bf16.gmra.mxu0 %v3021
    %v5165 = vpop.f32.mrf.mxu0
    %v5166 = vadd.f32 %v4897, %v5165
    %v5167 = vpop.f32.mrf.mxu0
    %v5168 = vadd.f32 %v4899, %v5167
    %5169 = vmatmul.bf16.gmra.mxu0 %v3024
    %v5170 = vpop.f32.mrf.mxu0
    %v5171 = vadd.f32 %v4902, %v5170
    %v5172 = vpop.f32.mrf.mxu0
    %v5173 = vadd.f32 %v4904, %v5172
    %5174 = vmatmul.bf16.gmra.mxu0 %v3027
    %v5175 = vpop.f32.mrf.mxu0
    %v5176 = vadd.f32 %v4907, %v5175
    %v5177 = vpop.f32.mrf.mxu0
    %v5178 = vadd.f32 %v4909, %v5177
    %5179 = vmatmul.bf16.gmra.mxu0 %v3030
    %v5180 = vpop.f32.mrf.mxu0
    %v5181 = vadd.f32 %v4912, %v5180
    %v5182 = vpop.f32.mrf.mxu0
    %v5183 = vadd.f32 %v4914, %v5182
    %5184 = vmatmul.bf16.gmra.mxu0 %v3033
    %v5185 = vpop.f32.mrf.mxu0
    %v5186 = vadd.f32 %v4917, %v5185
    %v5187 = vpop.f32.mrf.mxu0
    %v5188 = vadd.f32 %v4919, %v5187
    %5189 = vmatmul.bf16.gmra.mxu0 %v3036
    %v5190 = vpop.f32.mrf.mxu0
    %v5191 = vadd.f32 %v4922, %v5190
    %v5192 = vpop.f32.mrf.mxu0
    %v5193 = vadd.f32 %v4924, %v5192
    %5194 = vmatmul.bf16.gmra.mxu0 %v3039
    %v5195 = vpop.f32.mrf.mxu0
    %v5196 = vadd.f32 %v4927, %v5195
    %v5197 = vpop.f32.mrf.mxu0
    %v5198 = vadd.f32 %v4929, %v5197
    %5199 = vdwg.mxu0
    %5200 = vmatpush.bf16.msra.mxu0 %v745
    %5201 = vmatpush.bf16.msra.mxu0 %v743
    %5202 = vmatpush.bf16.msra.mxu0 %v741
    %5203 = vmatpush.bf16.msra.mxu0 %v739
    %5204 = vmatpush.bf16.msra.mxu0 %v737
    %5205 = vmatpush.bf16.msra.mxu0 %v735
    %5206 = vmatpush.bf16.msra.mxu0 %v733
    %5207 = vmatpush.bf16.msra.mxu0 %v731
    %5208 = vmatmul.bf16.gmra.mxu0 %v2104
    %v5209 = vpop.f32.mrf.mxu0
    %v5210 = vpop.f32.mrf.mxu0
    %5211 = vmatmul.bf16.gmra.mxu0 %v2112
    %v5212 = vpop.f32.mrf.mxu0
    %v5213 = vpop.f32.mrf.mxu0
    %5214 = vmatmul.bf16.gmra.mxu0 %v2120
    %v5215 = vpop.f32.mrf.mxu0
    %v5216 = vpop.f32.mrf.mxu0
    %5217 = vmatmul.bf16.gmra.mxu0 %v2128
    %v5218 = vpop.f32.mrf.mxu0
    %v5219 = vpop.f32.mrf.mxu0
    %5220 = vmatmul.bf16.gmra.mxu0 %v2136
    %v5221 = vpop.f32.mrf.mxu0
    %v5222 = vadd.f32 0.0, %v5221
    %v5223 = vpop.f32.mrf.mxu0
    %v5224 = vadd.f32 0.0, %v5223
    %5225 = vmatmul.bf16.gmra.mxu0 %v2144
    %v5226 = vpop.f32.mrf.mxu0
    %v5227 = vadd.f32 0.0, %v5226
    %v5228 = vpop.f32.mrf.mxu0
    %v5229 = vadd.f32 0.0, %v5228
    %5230 = vmatmul.bf16.gmra.mxu0 %v2152
    %v5231 = vpop.f32.mrf.mxu0
    %v5232 = vadd.f32 0.0, %v5231
    %v5233 = vpop.f32.mrf.mxu0
    %v5234 = vadd.f32 0.0, %v5233
    %5235 = vmatmul.bf16.gmra.mxu0 %v2160
    %v5236 = vpop.f32.mrf.mxu0
    %v5237 = vadd.f32 0.0, %v5236
    %v5238 = vpop.f32.mrf.mxu0
    %v5239 = vadd.f32 0.0, %v5238
    %5240 = vmatmul.bf16.gmra.mxu0 %v2168
    %v5241 = vpop.f32.mrf.mxu0
    %v5242 = vadd.f32 0.0, %v5241
    %v5243 = vpop.f32.mrf.mxu0
    %v5244 = vadd.f32 0.0, %v5243
    %5245 = vmatmul.bf16.gmra.mxu0 %v2176
    %v5246 = vpop.f32.mrf.mxu0
    %v5247 = vadd.f32 0.0, %v5246
    %v5248 = vpop.f32.mrf.mxu0
    %v5249 = vadd.f32 0.0, %v5248
    %5250 = vmatmul.bf16.gmra.mxu0 %v2184
    %v5251 = vpop.f32.mrf.mxu0
    %v5252 = vadd.f32 0.0, %v5251
    %v5253 = vpop.f32.mrf.mxu0
    %v5254 = vadd.f32 0.0, %v5253
    %5255 = vmatmul.bf16.gmra.mxu0 %v2192
    %v5256 = vpop.f32.mrf.mxu0
    %v5257 = vadd.f32 0.0, %v5256
    %v5258 = vpop.f32.mrf.mxu0
    %v5259 = vadd.f32 0.0, %v5258
    %5260 = vmatmul.bf16.gmra.mxu0 %v2200
    %v5261 = vpop.f32.mrf.mxu0
    %v5262 = vadd.f32 0.0, %v5261
    %v5263 = vpop.f32.mrf.mxu0
    %v5264 = vadd.f32 0.0, %v5263
    %5265 = vmatmul.bf16.gmra.mxu0 %v2208
    %v5266 = vpop.f32.mrf.mxu0
    %v5267 = vadd.f32 0.0, %v5266
    %v5268 = vpop.f32.mrf.mxu0
    %v5269 = vadd.f32 0.0, %v5268
    %5270 = vmatmul.bf16.gmra.mxu0 %v2216
    %v5271 = vpop.f32.mrf.mxu0
    %v5272 = vadd.f32 0.0, %v5271
    %v5273 = vpop.f32.mrf.mxu0
    %v5274 = vadd.f32 0.0, %v5273
    %5275 = vmatmul.bf16.gmra.mxu0 %v2224
    %v5276 = vpop.f32.mrf.mxu0
    %v5277 = vadd.f32 0.0, %v5276
    %v5278 = vpop.f32.mrf.mxu0
    %v5279 = vadd.f32 0.0, %v5278
    %5280 = vmatmul.bf16.gmra.mxu0 %v2232
    %v5281 = vpop.f32.mrf.mxu0
    %v5282 = vadd.f32 0.0, %v5281
    %v5283 = vpop.f32.mrf.mxu0
    %v5284 = vadd.f32 0.0, %v5283
    %5285 = vmatmul.bf16.gmra.mxu0 %v2240
    %v5286 = vpop.f32.mrf.mxu0
    %v5287 = vadd.f32 0.0, %v5286
    %v5288 = vpop.f32.mrf.mxu0
    %v5289 = vadd.f32 0.0, %v5288
    %5290 = vmatmul.bf16.gmra.mxu0 %v2248
    %v5291 = vpop.f32.mrf.mxu0
    %v5292 = vadd.f32 0.0, %v5291
    %v5293 = vpop.f32.mrf.mxu0
    %v5294 = vadd.f32 0.0, %v5293
    %5295 = vmatmul.bf16.gmra.mxu0 %v2256
    %v5296 = vpop.f32.mrf.mxu0
    %v5297 = vadd.f32 0.0, %v5296
    %v5298 = vpop.f32.mrf.mxu0
    %v5299 = vadd.f32 0.0, %v5298
    %5300 = vmatmul.bf16.gmra.mxu0 %v2264
    %v5301 = vpop.f32.mrf.mxu0
    %v5302 = vadd.f32 0.0, %v5301
    %v5303 = vpop.f32.mrf.mxu0
    %v5304 = vadd.f32 0.0, %v5303
    %5305 = vmatmul.bf16.gmra.mxu0 %v2272
    %v5306 = vpop.f32.mrf.mxu0
    %v5307 = vadd.f32 0.0, %v5306
    %v5308 = vpop.f32.mrf.mxu0
    %v5309 = vadd.f32 0.0, %v5308
    %5310 = vmatmul.bf16.gmra.mxu0 %v2280
    %v5311 = vpop.f32.mrf.mxu0
    %v5312 = vadd.f32 0.0, %v5311
    %v5313 = vpop.f32.mrf.mxu0
    %v5314 = vadd.f32 0.0, %v5313
    %5315 = vmatmul.bf16.gmra.mxu0 %v2288
    %v5316 = vpop.f32.mrf.mxu0
    %v5317 = vadd.f32 0.0, %v5316
    %v5318 = vpop.f32.mrf.mxu0
    %v5319 = vadd.f32 0.0, %v5318
    %5320 = vmatmul.bf16.gmra.mxu0 %v2296
    %v5321 = vpop.f32.mrf.mxu0
    %v5322 = vadd.f32 0.0, %v5321
    %v5323 = vpop.f32.mrf.mxu0
    %v5324 = vadd.f32 0.0, %v5323
    %5325 = vmatmul.bf16.gmra.mxu0 %v2304
    %v5326 = vpop.f32.mrf.mxu0
    %v5327 = vadd.f32 0.0, %v5326
    %v5328 = vpop.f32.mrf.mxu0
    %v5329 = vadd.f32 0.0, %v5328
    %5330 = vmatmul.bf16.gmra.mxu0 %v2312
    %v5331 = vpop.f32.mrf.mxu0
    %v5332 = vadd.f32 0.0, %v5331
    %v5333 = vpop.f32.mrf.mxu0
    %v5334 = vadd.f32 0.0, %v5333
    %5335 = vmatmul.bf16.gmra.mxu0 %v2320
    %v5336 = vpop.f32.mrf.mxu0
    %v5337 = vadd.f32 0.0, %v5336
    %v5338 = vpop.f32.mrf.mxu0
    %v5339 = vadd.f32 0.0, %v5338
    %5340 = vmatmul.bf16.gmra.mxu0 %v2328
    %v5341 = vpop.f32.mrf.mxu0
    %v5342 = vadd.f32 0.0, %v5341
    %v5343 = vpop.f32.mrf.mxu0
    %v5344 = vadd.f32 0.0, %v5343
    %5345 = vmatmul.bf16.gmra.mxu0 %v2336
    %v5346 = vpop.f32.mrf.mxu0
    %v5347 = vadd.f32 0.0, %v5346
    %v5348 = vpop.f32.mrf.mxu0
    %v5349 = vadd.f32 0.0, %v5348
    %5350 = vmatmul.bf16.gmra.mxu0 %v2344
    %v5351 = vpop.f32.mrf.mxu0
    %v5352 = vadd.f32 0.0, %v5351
    %v5353 = vpop.f32.mrf.mxu0
    %v5354 = vadd.f32 0.0, %v5353
    %5355 = vmatmul.bf16.gmra.mxu0 %v2352
    %v5356 = vpop.f32.mrf.mxu0
    %v5357 = vadd.f32 0.0, %v5356
    %v5358 = vpop.f32.mrf.mxu0
    %v5359 = vadd.f32 0.0, %v5358
    %5360 = vmatmul.bf16.gmra.mxu0 %v2360
    %v5361 = vpop.f32.mrf.mxu0
    %v5362 = vadd.f32 0.0, %v5361
    %v5363 = vpop.f32.mrf.mxu0
    %v5364 = vadd.f32 0.0, %v5363
    %5365 = vmatmul.bf16.gmra.mxu0 %v2368
    %v5366 = vpop.f32.mrf.mxu0
    %v5367 = vadd.f32 0.0, %v5366
    %v5368 = vpop.f32.mrf.mxu0
    %v5369 = vadd.f32 0.0, %v5368
    %5370 = vmatmul.bf16.gmra.mxu0 %v2376
    %v5371 = vpop.f32.mrf.mxu0
    %v5372 = vadd.f32 0.0, %v5371
    %v5373 = vpop.f32.mrf.mxu0
    %v5374 = vadd.f32 0.0, %v5373
    %5375 = vmatmul.bf16.gmra.mxu0 %v2384
    %v5376 = vpop.f32.mrf.mxu0
    %v5377 = vadd.f32 0.0, %v5376
    %v5378 = vpop.f32.mrf.mxu0
    %v5379 = vadd.f32 0.0, %v5378
    %5380 = vmatmul.bf16.gmra.mxu0 %v2392
    %v5381 = vpop.f32.mrf.mxu0
    %v5382 = vadd.f32 0.0, %v5381
    %v5383 = vpop.f32.mrf.mxu0
    %v5384 = vadd.f32 0.0, %v5383
    %5385 = vmatmul.bf16.gmra.mxu0 %v2400
    %v5386 = vpop.f32.mrf.mxu0
    %v5387 = vadd.f32 0.0, %v5386
    %v5388 = vpop.f32.mrf.mxu0
    %v5389 = vadd.f32 0.0, %v5388
    %5390 = vmatmul.bf16.gmra.mxu0 %v2408
    %v5391 = vpop.f32.mrf.mxu0
    %v5392 = vadd.f32 0.0, %v5391
    %v5393 = vpop.f32.mrf.mxu0
    %v5394 = vadd.f32 0.0, %v5393
    %5395 = vmatmul.bf16.gmra.mxu0 %v2416
    %v5396 = vpop.f32.mrf.mxu0
    %v5397 = vadd.f32 0.0, %v5396
    %v5398 = vpop.f32.mrf.mxu0
    %v5399 = vadd.f32 0.0, %v5398
    %5400 = vmatmul.bf16.gmra.mxu0 %v2424
    %v5401 = vpop.f32.mrf.mxu0
    %v5402 = vadd.f32 0.0, %v5401
    %v5403 = vpop.f32.mrf.mxu0
    %v5404 = vadd.f32 0.0, %v5403
    %5405 = vmatmul.bf16.gmra.mxu0 %v2432
    %v5406 = vpop.f32.mrf.mxu0
    %v5407 = vadd.f32 0.0, %v5406
    %v5408 = vpop.f32.mrf.mxu0
    %v5409 = vadd.f32 0.0, %v5408
    %5410 = vmatmul.bf16.gmra.mxu0 %v2440
    %v5411 = vpop.f32.mrf.mxu0
    %v5412 = vadd.f32 0.0, %v5411
    %v5413 = vpop.f32.mrf.mxu0
    %v5414 = vadd.f32 0.0, %v5413
    %5415 = vmatmul.bf16.gmra.mxu0 %v2448
    %v5416 = vpop.f32.mrf.mxu0
    %v5417 = vadd.f32 0.0, %v5416
    %v5418 = vpop.f32.mrf.mxu0
    %v5419 = vadd.f32 0.0, %v5418
    %5420 = vmatmul.bf16.gmra.mxu0 %v2456
    %v5421 = vpop.f32.mrf.mxu0
    %v5422 = vadd.f32 0.0, %v5421
    %v5423 = vpop.f32.mrf.mxu0
    %v5424 = vadd.f32 0.0, %v5423
    %5425 = vmatmul.bf16.gmra.mxu0 %v2464
    %v5426 = vpop.f32.mrf.mxu0
    %v5427 = vadd.f32 0.0, %v5426
    %v5428 = vpop.f32.mrf.mxu0
    %v5429 = vadd.f32 0.0, %v5428
    %5430 = vmatmul.bf16.gmra.mxu0 %v2472
    %v5431 = vpop.f32.mrf.mxu0
    %v5432 = vadd.f32 0.0, %v5431
    %v5433 = vpop.f32.mrf.mxu0
    %v5434 = vadd.f32 0.0, %v5433
    %5435 = vmatmul.bf16.gmra.mxu0 %v2480
    %v5436 = vpop.f32.mrf.mxu0
    %v5437 = vadd.f32 0.0, %v5436
    %v5438 = vpop.f32.mrf.mxu0
    %v5439 = vadd.f32 0.0, %v5438
    %5440 = vmatmul.bf16.gmra.mxu0 %v2488
    %v5441 = vpop.f32.mrf.mxu0
    %v5442 = vadd.f32 0.0, %v5441
    %v5443 = vpop.f32.mrf.mxu0
    %v5444 = vadd.f32 0.0, %v5443
    %5445 = vmatmul.bf16.gmra.mxu0 %v2496
    %v5446 = vpop.f32.mrf.mxu0
    %v5447 = vadd.f32 0.0, %v5446
    %v5448 = vpop.f32.mrf.mxu0
    %v5449 = vadd.f32 0.0, %v5448
    %5450 = vmatmul.bf16.gmra.mxu0 %v2504
    %v5451 = vpop.f32.mrf.mxu0
    %v5452 = vadd.f32 0.0, %v5451
    %v5453 = vpop.f32.mrf.mxu0
    %v5454 = vadd.f32 0.0, %v5453
    %5455 = vmatmul.bf16.gmra.mxu0 %v2512
    %v5456 = vpop.f32.mrf.mxu0
    %v5457 = vadd.f32 0.0, %v5456
    %v5458 = vpop.f32.mrf.mxu0
    %v5459 = vadd.f32 0.0, %v5458
    %5460 = vdwg.mxu0
    %5461 = vmatpush.bf16.msra.mxu0 %v761
    %5462 = vmatpush.bf16.msra.mxu0 %v759
    %5463 = vmatpush.bf16.msra.mxu0 %v757
    %5464 = vmatpush.bf16.msra.mxu0 %v755
    %5465 = vmatpush.bf16.msra.mxu0 %v753
    %5466 = vmatpush.bf16.msra.mxu0 %v751
    %5467 = vmatpush.bf16.msra.mxu0 %v749
    %5468 = vmatpush.bf16.msra.mxu0 %v747
    %5469 = vmatmul.bf16.gmra.mxu0 %v2105
    %v5470 = vpop.f32.mrf.mxu0
    %v5471 = vpop.f32.mrf.mxu0
    %5472 = vmatmul.bf16.gmra.mxu0 %v2113
    %v5473 = vpop.f32.mrf.mxu0
    %v5474 = vpop.f32.mrf.mxu0
    %5475 = vmatmul.bf16.gmra.mxu0 %v2121
    %v5476 = vpop.f32.mrf.mxu0
    %v5477 = vpop.f32.mrf.mxu0
    %5478 = vmatmul.bf16.gmra.mxu0 %v2129
    %v5479 = vpop.f32.mrf.mxu0
    %v5480 = vpop.f32.mrf.mxu0
    %5481 = vmatmul.bf16.gmra.mxu0 %v2137
    %v5482 = vpop.f32.mrf.mxu0
    %v5483 = vadd.f32 %v5222, %v5482
    %v5484 = vpop.f32.mrf.mxu0
    %v5485 = vadd.f32 %v5224, %v5484
    %5486 = vmatmul.bf16.gmra.mxu0 %v2145
    %v5487 = vpop.f32.mrf.mxu0
    %v5488 = vadd.f32 %v5227, %v5487
    %v5489 = vpop.f32.mrf.mxu0
    %v5490 = vadd.f32 %v5229, %v5489
    %5491 = vmatmul.bf16.gmra.mxu0 %v2153
    %v5492 = vpop.f32.mrf.mxu0
    %v5493 = vadd.f32 %v5232, %v5492
    %v5494 = vpop.f32.mrf.mxu0
    %v5495 = vadd.f32 %v5234, %v5494
    %5496 = vmatmul.bf16.gmra.mxu0 %v2161
    %v5497 = vpop.f32.mrf.mxu0
    %v5498 = vadd.f32 %v5237, %v5497
    %v5499 = vpop.f32.mrf.mxu0
    %v5500 = vadd.f32 %v5239, %v5499
    %5501 = vmatmul.bf16.gmra.mxu0 %v2169
    %v5502 = vpop.f32.mrf.mxu0
    %v5503 = vadd.f32 %v5242, %v5502
    %v5504 = vpop.f32.mrf.mxu0
    %v5505 = vadd.f32 %v5244, %v5504
    %5506 = vmatmul.bf16.gmra.mxu0 %v2177
    %v5507 = vpop.f32.mrf.mxu0
    %v5508 = vadd.f32 %v5247, %v5507
    %v5509 = vpop.f32.mrf.mxu0
    %v5510 = vadd.f32 %v5249, %v5509
    %5511 = vmatmul.bf16.gmra.mxu0 %v2185
    %v5512 = vpop.f32.mrf.mxu0
    %v5513 = vadd.f32 %v5252, %v5512
    %v5514 = vpop.f32.mrf.mxu0
    %v5515 = vadd.f32 %v5254, %v5514
    %5516 = vmatmul.bf16.gmra.mxu0 %v2193
    %v5517 = vpop.f32.mrf.mxu0
    %v5518 = vadd.f32 %v5257, %v5517
    %v5519 = vpop.f32.mrf.mxu0
    %v5520 = vadd.f32 %v5259, %v5519
    %5521 = vmatmul.bf16.gmra.mxu0 %v2201
    %v5522 = vpop.f32.mrf.mxu0
    %v5523 = vadd.f32 %v5262, %v5522
    %v5524 = vpop.f32.mrf.mxu0
    %v5525 = vadd.f32 %v5264, %v5524
    %5526 = vmatmul.bf16.gmra.mxu0 %v2209
    %v5527 = vpop.f32.mrf.mxu0
    %v5528 = vadd.f32 %v5267, %v5527
    %v5529 = vpop.f32.mrf.mxu0
    %v5530 = vadd.f32 %v5269, %v5529
    %5531 = vmatmul.bf16.gmra.mxu0 %v2217
    %v5532 = vpop.f32.mrf.mxu0
    %v5533 = vadd.f32 %v5272, %v5532
    %v5534 = vpop.f32.mrf.mxu0
    %v5535 = vadd.f32 %v5274, %v5534
    %5536 = vmatmul.bf16.gmra.mxu0 %v2225
    %v5537 = vpop.f32.mrf.mxu0
    %v5538 = vadd.f32 %v5277, %v5537
    %v5539 = vpop.f32.mrf.mxu0
    %v5540 = vadd.f32 %v5279, %v5539
    %5541 = vmatmul.bf16.gmra.mxu0 %v2233
    %v5542 = vpop.f32.mrf.mxu0
    %v5543 = vadd.f32 %v5282, %v5542
    %v5544 = vpop.f32.mrf.mxu0
    %v5545 = vadd.f32 %v5284, %v5544
    %5546 = vmatmul.bf16.gmra.mxu0 %v2241
    %v5547 = vpop.f32.mrf.mxu0
    %v5548 = vadd.f32 %v5287, %v5547
    %v5549 = vpop.f32.mrf.mxu0
    %v5550 = vadd.f32 %v5289, %v5549
    %5551 = vmatmul.bf16.gmra.mxu0 %v2249
    %v5552 = vpop.f32.mrf.mxu0
    %v5553 = vadd.f32 %v5292, %v5552
    %v5554 = vpop.f32.mrf.mxu0
    %v5555 = vadd.f32 %v5294, %v5554
    %5556 = vmatmul.bf16.gmra.mxu0 %v2257
    %v5557 = vpop.f32.mrf.mxu0
    %v5558 = vadd.f32 %v5297, %v5557
    %v5559 = vpop.f32.mrf.mxu0
    %v5560 = vadd.f32 %v5299, %v5559
    %5561 = vmatmul.bf16.gmra.mxu0 %v2265
    %v5562 = vpop.f32.mrf.mxu0
    %v5563 = vadd.f32 %v5302, %v5562
    %v5564 = vpop.f32.mrf.mxu0
    %v5565 = vadd.f32 %v5304, %v5564
    %5566 = vmatmul.bf16.gmra.mxu0 %v2273
    %v5567 = vpop.f32.mrf.mxu0
    %v5568 = vadd.f32 %v5307, %v5567
    %v5569 = vpop.f32.mrf.mxu0
    %v5570 = vadd.f32 %v5309, %v5569
    %5571 = vmatmul.bf16.gmra.mxu0 %v2281
    %v5572 = vpop.f32.mrf.mxu0
    %v5573 = vadd.f32 %v5312, %v5572
    %v5574 = vpop.f32.mrf.mxu0
    %v5575 = vadd.f32 %v5314, %v5574
    %5576 = vmatmul.bf16.gmra.mxu0 %v2289
    %v5577 = vpop.f32.mrf.mxu0
    %v5578 = vadd.f32 %v5317, %v5577
    %v5579 = vpop.f32.mrf.mxu0
    %v5580 = vadd.f32 %v5319, %v5579
    %5581 = vmatmul.bf16.gmra.mxu0 %v2297
    %v5582 = vpop.f32.mrf.mxu0
    %v5583 = vadd.f32 %v5322, %v5582
    %v5584 = vpop.f32.mrf.mxu0
    %v5585 = vadd.f32 %v5324, %v5584
    %5586 = vmatmul.bf16.gmra.mxu0 %v2305
    %v5587 = vpop.f32.mrf.mxu0
    %v5588 = vadd.f32 %v5327, %v5587
    %v5589 = vpop.f32.mrf.mxu0
    %v5590 = vadd.f32 %v5329, %v5589
    %5591 = vmatmul.bf16.gmra.mxu0 %v2313
    %v5592 = vpop.f32.mrf.mxu0
    %v5593 = vadd.f32 %v5332, %v5592
    %v5594 = vpop.f32.mrf.mxu0
    %v5595 = vadd.f32 %v5334, %v5594
    %5596 = vmatmul.bf16.gmra.mxu0 %v2321
    %v5597 = vpop.f32.mrf.mxu0
    %v5598 = vadd.f32 %v5337, %v5597
    %v5599 = vpop.f32.mrf.mxu0
    %v5600 = vadd.f32 %v5339, %v5599
    %5601 = vmatmul.bf16.gmra.mxu0 %v2329
    %v5602 = vpop.f32.mrf.mxu0
    %v5603 = vadd.f32 %v5342, %v5602
    %v5604 = vpop.f32.mrf.mxu0
    %v5605 = vadd.f32 %v5344, %v5604
    %5606 = vmatmul.bf16.gmra.mxu0 %v2337
    %v5607 = vpop.f32.mrf.mxu0
    %v5608 = vadd.f32 %v5347, %v5607
    %v5609 = vpop.f32.mrf.mxu0
    %v5610 = vadd.f32 %v5349, %v5609
    %5611 = vmatmul.bf16.gmra.mxu0 %v2345
    %v5612 = vpop.f32.mrf.mxu0
    %v5613 = vadd.f32 %v5352, %v5612
    %v5614 = vpop.f32.mrf.mxu0
    %v5615 = vadd.f32 %v5354, %v5614
    %5616 = vmatmul.bf16.gmra.mxu0 %v2353
    %v5617 = vpop.f32.mrf.mxu0
    %v5618 = vadd.f32 %v5357, %v5617
    %v5619 = vpop.f32.mrf.mxu0
    %v5620 = vadd.f32 %v5359, %v5619
    %5621 = vmatmul.bf16.gmra.mxu0 %v2361
    %v5622 = vpop.f32.mrf.mxu0
    %v5623 = vadd.f32 %v5362, %v5622
    %v5624 = vpop.f32.mrf.mxu0
    %v5625 = vadd.f32 %v5364, %v5624
    %5626 = vmatmul.bf16.gmra.mxu0 %v2369
    %v5627 = vpop.f32.mrf.mxu0
    %v5628 = vadd.f32 %v5367, %v5627
    %v5629 = vpop.f32.mrf.mxu0
    %v5630 = vadd.f32 %v5369, %v5629
    %5631 = vmatmul.bf16.gmra.mxu0 %v2377
    %v5632 = vpop.f32.mrf.mxu0
    %v5633 = vadd.f32 %v5372, %v5632
    %v5634 = vpop.f32.mrf.mxu0
    %v5635 = vadd.f32 %v5374, %v5634
    %5636 = vmatmul.bf16.gmra.mxu0 %v2385
    %v5637 = vpop.f32.mrf.mxu0
    %v5638 = vadd.f32 %v5377, %v5637
    %v5639 = vpop.f32.mrf.mxu0
    %v5640 = vadd.f32 %v5379, %v5639
    %5641 = vmatmul.bf16.gmra.mxu0 %v2393
    %v5642 = vpop.f32.mrf.mxu0
    %v5643 = vadd.f32 %v5382, %v5642
    %v5644 = vpop.f32.mrf.mxu0
    %v5645 = vadd.f32 %v5384, %v5644
    %5646 = vmatmul.bf16.gmra.mxu0 %v2401
    %v5647 = vpop.f32.mrf.mxu0
    %v5648 = vadd.f32 %v5387, %v5647
    %v5649 = vpop.f32.mrf.mxu0
    %v5650 = vadd.f32 %v5389, %v5649
    %5651 = vmatmul.bf16.gmra.mxu0 %v2409
    %v5652 = vpop.f32.mrf.mxu0
    %v5653 = vadd.f32 %v5392, %v5652
    %v5654 = vpop.f32.mrf.mxu0
    %v5655 = vadd.f32 %v5394, %v5654
    %5656 = vmatmul.bf16.gmra.mxu0 %v2417
    %v5657 = vpop.f32.mrf.mxu0
    %v5658 = vadd.f32 %v5397, %v5657
    %v5659 = vpop.f32.mrf.mxu0
    %v5660 = vadd.f32 %v5399, %v5659
    %5661 = vmatmul.bf16.gmra.mxu0 %v2425
    %v5662 = vpop.f32.mrf.mxu0
    %v5663 = vadd.f32 %v5402, %v5662
    %v5664 = vpop.f32.mrf.mxu0
    %v5665 = vadd.f32 %v5404, %v5664
    %5666 = vmatmul.bf16.gmra.mxu0 %v2433
    %v5667 = vpop.f32.mrf.mxu0
    %v5668 = vadd.f32 %v5407, %v5667
    %v5669 = vpop.f32.mrf.mxu0
    %v5670 = vadd.f32 %v5409, %v5669
    %5671 = vmatmul.bf16.gmra.mxu0 %v2441
    %v5672 = vpop.f32.mrf.mxu0
    %v5673 = vadd.f32 %v5412, %v5672
    %v5674 = vpop.f32.mrf.mxu0
    %v5675 = vadd.f32 %v5414, %v5674
    %5676 = vmatmul.bf16.gmra.mxu0 %v2449
    %v5677 = vpop.f32.mrf.mxu0
    %v5678 = vadd.f32 %v5417, %v5677
    %v5679 = vpop.f32.mrf.mxu0
    %v5680 = vadd.f32 %v5419, %v5679
    %5681 = vmatmul.bf16.gmra.mxu0 %v2457
    %v5682 = vpop.f32.mrf.mxu0
    %v5683 = vadd.f32 %v5422, %v5682
    %v5684 = vpop.f32.mrf.mxu0
    %v5685 = vadd.f32 %v5424, %v5684
    %5686 = vmatmul.bf16.gmra.mxu0 %v2465
    %v5687 = vpop.f32.mrf.mxu0
    %v5688 = vadd.f32 %v5427, %v5687
    %v5689 = vpop.f32.mrf.mxu0
    %v5690 = vadd.f32 %v5429, %v5689
    %5691 = vmatmul.bf16.gmra.mxu0 %v2473
    %v5692 = vpop.f32.mrf.mxu0
    %v5693 = vadd.f32 %v5432, %v5692
    %v5694 = vpop.f32.mrf.mxu0
    %v5695 = vadd.f32 %v5434, %v5694
    %5696 = vmatmul.bf16.gmra.mxu0 %v2481
    %v5697 = vpop.f32.mrf.mxu0
    %v5698 = vadd.f32 %v5437, %v5697
    %v5699 = vpop.f32.mrf.mxu0
    %v5700 = vadd.f32 %v5439, %v5699
    %5701 = vmatmul.bf16.gmra.mxu0 %v2489
    %v5702 = vpop.f32.mrf.mxu0
    %v5703 = vadd.f32 %v5442, %v5702
    %v5704 = vpop.f32.mrf.mxu0
    %v5705 = vadd.f32 %v5444, %v5704
    %5706 = vmatmul.bf16.gmra.mxu0 %v2497
    %v5707 = vpop.f32.mrf.mxu0
    %v5708 = vadd.f32 %v5447, %v5707
    %v5709 = vpop.f32.mrf.mxu0
    %v5710 = vadd.f32 %v5449, %v5709
    %5711 = vmatmul.bf16.gmra.mxu0 %v2505
    %v5712 = vpop.f32.mrf.mxu0
    %v5713 = vadd.f32 %v5452, %v5712
    %v5714 = vpop.f32.mrf.mxu0
    %v5715 = vadd.f32 %v5454, %v5714
    %5716 = vmatmul.bf16.gmra.mxu0 %v2513
    %v5717 = vpop.f32.mrf.mxu0
    %v5718 = vadd.f32 %v5457, %v5717
    %v5719 = vpop.f32.mrf.mxu0
    %v5720 = vadd.f32 %v5459, %v5719
    %5721 = vdwg.mxu0
    %5722 = vmatpush.bf16.msra.mxu0 %v777
    %5723 = vmatpush.bf16.msra.mxu0 %v775
    %5724 = vmatpush.bf16.msra.mxu0 %v773
    %5725 = vmatpush.bf16.msra.mxu0 %v771
    %5726 = vmatpush.bf16.msra.mxu0 %v769
    %5727 = vmatpush.bf16.msra.mxu0 %v767
    %5728 = vmatpush.bf16.msra.mxu0 %v765
    %5729 = vmatpush.bf16.msra.mxu0 %v763
    %5730 = vmatmul.bf16.gmra.mxu0 %v2106
    %v5731 = vpop.f32.mrf.mxu0
    %v5732 = vpop.f32.mrf.mxu0
    %5733 = vmatmul.bf16.gmra.mxu0 %v2114
    %v5734 = vpop.f32.mrf.mxu0
    %v5735 = vpop.f32.mrf.mxu0
    %5736 = vmatmul.bf16.gmra.mxu0 %v2122
    %v5737 = vpop.f32.mrf.mxu0
    %v5738 = vpop.f32.mrf.mxu0
    %5739 = vmatmul.bf16.gmra.mxu0 %v2130
    %v5740 = vpop.f32.mrf.mxu0
    %v5741 = vpop.f32.mrf.mxu0
    %5742 = vmatmul.bf16.gmra.mxu0 %v2138
    %v5743 = vpop.f32.mrf.mxu0
    %v5744 = vadd.f32 %v5483, %v5743
    %v5745 = vpop.f32.mrf.mxu0
    %v5746 = vadd.f32 %v5485, %v5745
    %5747 = vmatmul.bf16.gmra.mxu0 %v2146
    %v5748 = vpop.f32.mrf.mxu0
    %v5749 = vadd.f32 %v5488, %v5748
    %v5750 = vpop.f32.mrf.mxu0
    %v5751 = vadd.f32 %v5490, %v5750
    %5752 = vmatmul.bf16.gmra.mxu0 %v2154
    %v5753 = vpop.f32.mrf.mxu0
    %v5754 = vadd.f32 %v5493, %v5753
    %v5755 = vpop.f32.mrf.mxu0
    %v5756 = vadd.f32 %v5495, %v5755
    %5757 = vmatmul.bf16.gmra.mxu0 %v2162
    %v5758 = vpop.f32.mrf.mxu0
    %v5759 = vadd.f32 %v5498, %v5758
    %v5760 = vpop.f32.mrf.mxu0
    %v5761 = vadd.f32 %v5500, %v5760
    %5762 = vmatmul.bf16.gmra.mxu0 %v2170
    %v5763 = vpop.f32.mrf.mxu0
    %v5764 = vadd.f32 %v5503, %v5763
    %v5765 = vpop.f32.mrf.mxu0
    %v5766 = vadd.f32 %v5505, %v5765
    %5767 = vmatmul.bf16.gmra.mxu0 %v2178
    %v5768 = vpop.f32.mrf.mxu0
    %v5769 = vadd.f32 %v5508, %v5768
    %v5770 = vpop.f32.mrf.mxu0
    %v5771 = vadd.f32 %v5510, %v5770
    %5772 = vmatmul.bf16.gmra.mxu0 %v2186
    %v5773 = vpop.f32.mrf.mxu0
    %v5774 = vadd.f32 %v5513, %v5773
    %v5775 = vpop.f32.mrf.mxu0
    %v5776 = vadd.f32 %v5515, %v5775
    %5777 = vmatmul.bf16.gmra.mxu0 %v2194
    %v5778 = vpop.f32.mrf.mxu0
    %v5779 = vadd.f32 %v5518, %v5778
    %v5780 = vpop.f32.mrf.mxu0
    %v5781 = vadd.f32 %v5520, %v5780
    %5782 = vmatmul.bf16.gmra.mxu0 %v2202
    %v5783 = vpop.f32.mrf.mxu0
    %v5784 = vadd.f32 %v5523, %v5783
    %v5785 = vpop.f32.mrf.mxu0
    %v5786 = vadd.f32 %v5525, %v5785
    %5787 = vmatmul.bf16.gmra.mxu0 %v2210
    %v5788 = vpop.f32.mrf.mxu0
    %v5789 = vadd.f32 %v5528, %v5788
    %v5790 = vpop.f32.mrf.mxu0
    %v5791 = vadd.f32 %v5530, %v5790
    %5792 = vmatmul.bf16.gmra.mxu0 %v2218
    %v5793 = vpop.f32.mrf.mxu0
    %v5794 = vadd.f32 %v5533, %v5793
    %v5795 = vpop.f32.mrf.mxu0
    %v5796 = vadd.f32 %v5535, %v5795
    %5797 = vmatmul.bf16.gmra.mxu0 %v2226
    %v5798 = vpop.f32.mrf.mxu0
    %v5799 = vadd.f32 %v5538, %v5798
    %v5800 = vpop.f32.mrf.mxu0
    %v5801 = vadd.f32 %v5540, %v5800
    %5802 = vmatmul.bf16.gmra.mxu0 %v2234
    %v5803 = vpop.f32.mrf.mxu0
    %v5804 = vadd.f32 %v5543, %v5803
    %v5805 = vpop.f32.mrf.mxu0
    %v5806 = vadd.f32 %v5545, %v5805
    %5807 = vmatmul.bf16.gmra.mxu0 %v2242
    %v5808 = vpop.f32.mrf.mxu0
    %v5809 = vadd.f32 %v5548, %v5808
    %v5810 = vpop.f32.mrf.mxu0
    %v5811 = vadd.f32 %v5550, %v5810
    %5812 = vmatmul.bf16.gmra.mxu0 %v2250
    %v5813 = vpop.f32.mrf.mxu0
    %v5814 = vadd.f32 %v5553, %v5813
    %v5815 = vpop.f32.mrf.mxu0
    %v5816 = vadd.f32 %v5555, %v5815
    %5817 = vmatmul.bf16.gmra.mxu0 %v2258
    %v5818 = vpop.f32.mrf.mxu0
    %v5819 = vadd.f32 %v5558, %v5818
    %v5820 = vpop.f32.mrf.mxu0
    %v5821 = vadd.f32 %v5560, %v5820
    %5822 = vmatmul.bf16.gmra.mxu0 %v2266
    %v5823 = vpop.f32.mrf.mxu0
    %v5824 = vadd.f32 %v5563, %v5823
    %v5825 = vpop.f32.mrf.mxu0
    %v5826 = vadd.f32 %v5565, %v5825
    %5827 = vmatmul.bf16.gmra.mxu0 %v2274
    %v5828 = vpop.f32.mrf.mxu0
    %v5829 = vadd.f32 %v5568, %v5828
    %v5830 = vpop.f32.mrf.mxu0
    %v5831 = vadd.f32 %v5570, %v5830
    %5832 = vmatmul.bf16.gmra.mxu0 %v2282
    %v5833 = vpop.f32.mrf.mxu0
    %v5834 = vadd.f32 %v5573, %v5833
    %v5835 = vpop.f32.mrf.mxu0
    %v5836 = vadd.f32 %v5575, %v5835
    %5837 = vmatmul.bf16.gmra.mxu0 %v2290
    %v5838 = vpop.f32.mrf.mxu0
    %v5839 = vadd.f32 %v5578, %v5838
    %v5840 = vpop.f32.mrf.mxu0
    %v5841 = vadd.f32 %v5580, %v5840
    %5842 = vmatmul.bf16.gmra.mxu0 %v2298
    %v5843 = vpop.f32.mrf.mxu0
    %v5844 = vadd.f32 %v5583, %v5843
    %v5845 = vpop.f32.mrf.mxu0
    %v5846 = vadd.f32 %v5585, %v5845
    %5847 = vmatmul.bf16.gmra.mxu0 %v2306
    %v5848 = vpop.f32.mrf.mxu0
    %v5849 = vadd.f32 %v5588, %v5848
    %v5850 = vpop.f32.mrf.mxu0
    %v5851 = vadd.f32 %v5590, %v5850
    %5852 = vmatmul.bf16.gmra.mxu0 %v2314
    %v5853 = vpop.f32.mrf.mxu0
    %v5854 = vadd.f32 %v5593, %v5853
    %v5855 = vpop.f32.mrf.mxu0
    %v5856 = vadd.f32 %v5595, %v5855
    %5857 = vmatmul.bf16.gmra.mxu0 %v2322
    %v5858 = vpop.f32.mrf.mxu0
    %v5859 = vadd.f32 %v5598, %v5858
    %v5860 = vpop.f32.mrf.mxu0
    %v5861 = vadd.f32 %v5600, %v5860
    %5862 = vmatmul.bf16.gmra.mxu0 %v2330
    %v5863 = vpop.f32.mrf.mxu0
    %v5864 = vadd.f32 %v5603, %v5863
    %v5865 = vpop.f32.mrf.mxu0
    %v5866 = vadd.f32 %v5605, %v5865
    %5867 = vmatmul.bf16.gmra.mxu0 %v2338
    %v5868 = vpop.f32.mrf.mxu0
    %v5869 = vadd.f32 %v5608, %v5868
    %v5870 = vpop.f32.mrf.mxu0
    %v5871 = vadd.f32 %v5610, %v5870
    %5872 = vmatmul.bf16.gmra.mxu0 %v2346
    %v5873 = vpop.f32.mrf.mxu0
    %v5874 = vadd.f32 %v5613, %v5873
    %v5875 = vpop.f32.mrf.mxu0
    %v5876 = vadd.f32 %v5615, %v5875
    %5877 = vmatmul.bf16.gmra.mxu0 %v2354
    %v5878 = vpop.f32.mrf.mxu0
    %v5879 = vadd.f32 %v5618, %v5878
    %v5880 = vpop.f32.mrf.mxu0
    %v5881 = vadd.f32 %v5620, %v5880
    %5882 = vmatmul.bf16.gmra.mxu0 %v2362
    %v5883 = vpop.f32.mrf.mxu0
    %v5884 = vadd.f32 %v5623, %v5883
    %v5885 = vpop.f32.mrf.mxu0
    %v5886 = vadd.f32 %v5625, %v5885
    %5887 = vmatmul.bf16.gmra.mxu0 %v2370
    %v5888 = vpop.f32.mrf.mxu0
    %v5889 = vadd.f32 %v5628, %v5888
    %v5890 = vpop.f32.mrf.mxu0
    %v5891 = vadd.f32 %v5630, %v5890
    %5892 = vmatmul.bf16.gmra.mxu0 %v2378
    %v5893 = vpop.f32.mrf.mxu0
    %v5894 = vadd.f32 %v5633, %v5893
    %v5895 = vpop.f32.mrf.mxu0
    %v5896 = vadd.f32 %v5635, %v5895
    %5897 = vmatmul.bf16.gmra.mxu0 %v2386
    %v5898 = vpop.f32.mrf.mxu0
    %v5899 = vadd.f32 %v5638, %v5898
    %v5900 = vpop.f32.mrf.mxu0
    %v5901 = vadd.f32 %v5640, %v5900
    %5902 = vmatmul.bf16.gmra.mxu0 %v2394
    %v5903 = vpop.f32.mrf.mxu0
    %v5904 = vadd.f32 %v5643, %v5903
    %v5905 = vpop.f32.mrf.mxu0
    %v5906 = vadd.f32 %v5645, %v5905
    %5907 = vmatmul.bf16.gmra.mxu0 %v2402
    %v5908 = vpop.f32.mrf.mxu0
    %v5909 = vadd.f32 %v5648, %v5908
    %v5910 = vpop.f32.mrf.mxu0
    %v5911 = vadd.f32 %v5650, %v5910
    %5912 = vmatmul.bf16.gmra.mxu0 %v2410
    %v5913 = vpop.f32.mrf.mxu0
    %v5914 = vadd.f32 %v5653, %v5913
    %v5915 = vpop.f32.mrf.mxu0
    %v5916 = vadd.f32 %v5655, %v5915
    %5917 = vmatmul.bf16.gmra.mxu0 %v2418
    %v5918 = vpop.f32.mrf.mxu0
    %v5919 = vadd.f32 %v5658, %v5918
    %v5920 = vpop.f32.mrf.mxu0
    %v5921 = vadd.f32 %v5660, %v5920
    %5922 = vmatmul.bf16.gmra.mxu0 %v2426
    %v5923 = vpop.f32.mrf.mxu0
    %v5924 = vadd.f32 %v5663, %v5923
    %v5925 = vpop.f32.mrf.mxu0
    %v5926 = vadd.f32 %v5665, %v5925
    %5927 = vmatmul.bf16.gmra.mxu0 %v2434
    %v5928 = vpop.f32.mrf.mxu0
    %v5929 = vadd.f32 %v5668, %v5928
    %v5930 = vpop.f32.mrf.mxu0
    %v5931 = vadd.f32 %v5670, %v5930
    %5932 = vmatmul.bf16.gmra.mxu0 %v2442
    %v5933 = vpop.f32.mrf.mxu0
    %v5934 = vadd.f32 %v5673, %v5933
    %v5935 = vpop.f32.mrf.mxu0
    %v5936 = vadd.f32 %v5675, %v5935
    %5937 = vmatmul.bf16.gmra.mxu0 %v2450
    %v5938 = vpop.f32.mrf.mxu0
    %v5939 = vadd.f32 %v5678, %v5938
    %v5940 = vpop.f32.mrf.mxu0
    %v5941 = vadd.f32 %v5680, %v5940
    %5942 = vmatmul.bf16.gmra.mxu0 %v2458
    %v5943 = vpop.f32.mrf.mxu0
    %v5944 = vadd.f32 %v5683, %v5943
    %v5945 = vpop.f32.mrf.mxu0
    %v5946 = vadd.f32 %v5685, %v5945
    %5947 = vmatmul.bf16.gmra.mxu0 %v2466
    %v5948 = vpop.f32.mrf.mxu0
    %v5949 = vadd.f32 %v5688, %v5948
    %v5950 = vpop.f32.mrf.mxu0
    %v5951 = vadd.f32 %v5690, %v5950
    %5952 = vmatmul.bf16.gmra.mxu0 %v2474
    %v5953 = vpop.f32.mrf.mxu0
    %v5954 = vadd.f32 %v5693, %v5953
    %v5955 = vpop.f32.mrf.mxu0
    %v5956 = vadd.f32 %v5695, %v5955
    %5957 = vmatmul.bf16.gmra.mxu0 %v2482
    %v5958 = vpop.f32.mrf.mxu0
    %v5959 = vadd.f32 %v5698, %v5958
    %v5960 = vpop.f32.mrf.mxu0
    %v5961 = vadd.f32 %v5700, %v5960
    %5962 = vmatmul.bf16.gmra.mxu0 %v2490
    %v5963 = vpop.f32.mrf.mxu0
    %v5964 = vadd.f32 %v5703, %v5963
    %v5965 = vpop.f32.mrf.mxu0
    %v5966 = vadd.f32 %v5705, %v5965
    %5967 = vmatmul.bf16.gmra.mxu0 %v2498
    %v5968 = vpop.f32.mrf.mxu0
    %v5969 = vadd.f32 %v5708, %v5968
    %v5970 = vpop.f32.mrf.mxu0
    %v5971 = vadd.f32 %v5710, %v5970
    %5972 = vmatmul.bf16.gmra.mxu0 %v2506
    %v5973 = vpop.f32.mrf.mxu0
    %v5974 = vadd.f32 %v5713, %v5973
    %v5975 = vpop.f32.mrf.mxu0
    %v5976 = vadd.f32 %v5715, %v5975
    %5977 = vmatmul.bf16.gmra.mxu0 %v2514
    %v5978 = vpop.f32.mrf.mxu0
    %v5979 = vadd.f32 %v5718, %v5978
    %v5980 = vpop.f32.mrf.mxu0
    %v5981 = vadd.f32 %v5720, %v5980
    %5982 = vdwg.mxu0
    %5983 = vmatpush.bf16.msra.mxu0 %v793
    %5984 = vmatpush.bf16.msra.mxu0 %v791
    %5985 = vmatpush.bf16.msra.mxu0 %v789
    %5986 = vmatpush.bf16.msra.mxu0 %v787
    %5987 = vmatpush.bf16.msra.mxu0 %v785
    %5988 = vmatpush.bf16.msra.mxu0 %v783
    %5989 = vmatpush.bf16.msra.mxu0 %v781
    %5990 = vmatpush.bf16.msra.mxu0 %v779
    %5991 = vmatmul.bf16.gmra.mxu0 %v2107
    %v5992 = vpop.f32.mrf.mxu0
    %v5993 = vpop.f32.mrf.mxu0
    %5994 = vmatmul.bf16.gmra.mxu0 %v2115
    %v5995 = vpop.f32.mrf.mxu0
    %v5996 = vpop.f32.mrf.mxu0
    %5997 = vmatmul.bf16.gmra.mxu0 %v2123
    %v5998 = vpop.f32.mrf.mxu0
    %v5999 = vpop.f32.mrf.mxu0
    %6000 = vmatmul.bf16.gmra.mxu0 %v2131
    %v6001 = vpop.f32.mrf.mxu0
    %v6002 = vpop.f32.mrf.mxu0
    %6003 = vmatmul.bf16.gmra.mxu0 %v2139
    %v6004 = vpop.f32.mrf.mxu0
    %v6005 = vadd.f32 %v5744, %v6004
    %v6006 = vpop.f32.mrf.mxu0
    %v6007 = vadd.f32 %v5746, %v6006
    %6008 = vmatmul.bf16.gmra.mxu0 %v2147
    %v6009 = vpop.f32.mrf.mxu0
    %v6010 = vadd.f32 %v5749, %v6009
    %v6011 = vpop.f32.mrf.mxu0
    %v6012 = vadd.f32 %v5751, %v6011
    %6013 = vmatmul.bf16.gmra.mxu0 %v2155
    %v6014 = vpop.f32.mrf.mxu0
    %v6015 = vadd.f32 %v5754, %v6014
    %v6016 = vpop.f32.mrf.mxu0
    %v6017 = vadd.f32 %v5756, %v6016
    %6018 = vmatmul.bf16.gmra.mxu0 %v2163
    %v6019 = vpop.f32.mrf.mxu0
    %v6020 = vadd.f32 %v5759, %v6019
    %v6021 = vpop.f32.mrf.mxu0
    %v6022 = vadd.f32 %v5761, %v6021
    %6023 = vmatmul.bf16.gmra.mxu0 %v2171
    %v6024 = vpop.f32.mrf.mxu0
    %v6025 = vadd.f32 %v5764, %v6024
    %v6026 = vpop.f32.mrf.mxu0
    %v6027 = vadd.f32 %v5766, %v6026
    %6028 = vmatmul.bf16.gmra.mxu0 %v2179
    %v6029 = vpop.f32.mrf.mxu0
    %v6030 = vadd.f32 %v5769, %v6029
    %v6031 = vpop.f32.mrf.mxu0
    %v6032 = vadd.f32 %v5771, %v6031
    %6033 = vmatmul.bf16.gmra.mxu0 %v2187
    %v6034 = vpop.f32.mrf.mxu0
    %v6035 = vadd.f32 %v5774, %v6034
    %v6036 = vpop.f32.mrf.mxu0
    %v6037 = vadd.f32 %v5776, %v6036
    %6038 = vmatmul.bf16.gmra.mxu0 %v2195
    %v6039 = vpop.f32.mrf.mxu0
    %v6040 = vadd.f32 %v5779, %v6039
    %v6041 = vpop.f32.mrf.mxu0
    %v6042 = vadd.f32 %v5781, %v6041
    %6043 = vmatmul.bf16.gmra.mxu0 %v2203
    %v6044 = vpop.f32.mrf.mxu0
    %v6045 = vadd.f32 %v5784, %v6044
    %v6046 = vpop.f32.mrf.mxu0
    %v6047 = vadd.f32 %v5786, %v6046
    %6048 = vmatmul.bf16.gmra.mxu0 %v2211
    %v6049 = vpop.f32.mrf.mxu0
    %v6050 = vadd.f32 %v5789, %v6049
    %v6051 = vpop.f32.mrf.mxu0
    %v6052 = vadd.f32 %v5791, %v6051
    %6053 = vmatmul.bf16.gmra.mxu0 %v2219
    %v6054 = vpop.f32.mrf.mxu0
    %v6055 = vadd.f32 %v5794, %v6054
    %v6056 = vpop.f32.mrf.mxu0
    %v6057 = vadd.f32 %v5796, %v6056
    %6058 = vmatmul.bf16.gmra.mxu0 %v2227
    %v6059 = vpop.f32.mrf.mxu0
    %v6060 = vadd.f32 %v5799, %v6059
    %v6061 = vpop.f32.mrf.mxu0
    %v6062 = vadd.f32 %v5801, %v6061
    %6063 = vmatmul.bf16.gmra.mxu0 %v2235
    %v6064 = vpop.f32.mrf.mxu0
    %v6065 = vadd.f32 %v5804, %v6064
    %v6066 = vpop.f32.mrf.mxu0
    %v6067 = vadd.f32 %v5806, %v6066
    %6068 = vmatmul.bf16.gmra.mxu0 %v2243
    %v6069 = vpop.f32.mrf.mxu0
    %v6070 = vadd.f32 %v5809, %v6069
    %v6071 = vpop.f32.mrf.mxu0
    %v6072 = vadd.f32 %v5811, %v6071
    %6073 = vmatmul.bf16.gmra.mxu0 %v2251
    %v6074 = vpop.f32.mrf.mxu0
    %v6075 = vadd.f32 %v5814, %v6074
    %v6076 = vpop.f32.mrf.mxu0
    %v6077 = vadd.f32 %v5816, %v6076
    %6078 = vmatmul.bf16.gmra.mxu0 %v2259
    %v6079 = vpop.f32.mrf.mxu0
    %v6080 = vadd.f32 %v5819, %v6079
    %v6081 = vpop.f32.mrf.mxu0
    %v6082 = vadd.f32 %v5821, %v6081
    %6083 = vmatmul.bf16.gmra.mxu0 %v2267
    %v6084 = vpop.f32.mrf.mxu0
    %v6085 = vadd.f32 %v5824, %v6084
    %v6086 = vpop.f32.mrf.mxu0
    %v6087 = vadd.f32 %v5826, %v6086
    %6088 = vmatmul.bf16.gmra.mxu0 %v2275
    %v6089 = vpop.f32.mrf.mxu0
    %v6090 = vadd.f32 %v5829, %v6089
    %v6091 = vpop.f32.mrf.mxu0
    %v6092 = vadd.f32 %v5831, %v6091
    %6093 = vmatmul.bf16.gmra.mxu0 %v2283
    %v6094 = vpop.f32.mrf.mxu0
    %v6095 = vadd.f32 %v5834, %v6094
    %v6096 = vpop.f32.mrf.mxu0
    %v6097 = vadd.f32 %v5836, %v6096
    %6098 = vmatmul.bf16.gmra.mxu0 %v2291
    %v6099 = vpop.f32.mrf.mxu0
    %v6100 = vadd.f32 %v5839, %v6099
    %v6101 = vpop.f32.mrf.mxu0
    %v6102 = vadd.f32 %v5841, %v6101
    %6103 = vmatmul.bf16.gmra.mxu0 %v2299
    %v6104 = vpop.f32.mrf.mxu0
    %v6105 = vadd.f32 %v5844, %v6104
    %v6106 = vpop.f32.mrf.mxu0
    %v6107 = vadd.f32 %v5846, %v6106
    %6108 = vmatmul.bf16.gmra.mxu0 %v2307
    %v6109 = vpop.f32.mrf.mxu0
    %v6110 = vadd.f32 %v5849, %v6109
    %v6111 = vpop.f32.mrf.mxu0
    %v6112 = vadd.f32 %v5851, %v6111
    %6113 = vmatmul.bf16.gmra.mxu0 %v2315
    %v6114 = vpop.f32.mrf.mxu0
    %v6115 = vadd.f32 %v5854, %v6114
    %v6116 = vpop.f32.mrf.mxu0
    %v6117 = vadd.f32 %v5856, %v6116
    %6118 = vmatmul.bf16.gmra.mxu0 %v2323
    %v6119 = vpop.f32.mrf.mxu0
    %v6120 = vadd.f32 %v5859, %v6119
    %v6121 = vpop.f32.mrf.mxu0
    %v6122 = vadd.f32 %v5861, %v6121
    %6123 = vmatmul.bf16.gmra.mxu0 %v2331
    %v6124 = vpop.f32.mrf.mxu0
    %v6125 = vadd.f32 %v5864, %v6124
    %v6126 = vpop.f32.mrf.mxu0
    %v6127 = vadd.f32 %v5866, %v6126
    %6128 = vmatmul.bf16.gmra.mxu0 %v2339
    %v6129 = vpop.f32.mrf.mxu0
    %v6130 = vadd.f32 %v5869, %v6129
    %v6131 = vpop.f32.mrf.mxu0
    %v6132 = vadd.f32 %v5871, %v6131
    %6133 = vmatmul.bf16.gmra.mxu0 %v2347
    %v6134 = vpop.f32.mrf.mxu0
    %v6135 = vadd.f32 %v5874, %v6134
    %v6136 = vpop.f32.mrf.mxu0
    %v6137 = vadd.f32 %v5876, %v6136
    %6138 = vmatmul.bf16.gmra.mxu0 %v2355
    %v6139 = vpop.f32.mrf.mxu0
    %v6140 = vadd.f32 %v5879, %v6139
    %v6141 = vpop.f32.mrf.mxu0
    %v6142 = vadd.f32 %v5881, %v6141
    %6143 = vmatmul.bf16.gmra.mxu0 %v2363
    %v6144 = vpop.f32.mrf.mxu0
    %v6145 = vadd.f32 %v5884, %v6144
    %v6146 = vpop.f32.mrf.mxu0
    %v6147 = vadd.f32 %v5886, %v6146
    %6148 = vmatmul.bf16.gmra.mxu0 %v2371
    %v6149 = vpop.f32.mrf.mxu0
    %v6150 = vadd.f32 %v5889, %v6149
    %v6151 = vpop.f32.mrf.mxu0
    %v6152 = vadd.f32 %v5891, %v6151
    %6153 = vmatmul.bf16.gmra.mxu0 %v2379
    %v6154 = vpop.f32.mrf.mxu0
    %v6155 = vadd.f32 %v5894, %v6154
    %v6156 = vpop.f32.mrf.mxu0
    %v6157 = vadd.f32 %v5896, %v6156
    %6158 = vmatmul.bf16.gmra.mxu0 %v2387
    %v6159 = vpop.f32.mrf.mxu0
    %v6160 = vadd.f32 %v5899, %v6159
    %v6161 = vpop.f32.mrf.mxu0
    %v6162 = vadd.f32 %v5901, %v6161
    %6163 = vmatmul.bf16.gmra.mxu0 %v2395
    %v6164 = vpop.f32.mrf.mxu0
    %v6165 = vadd.f32 %v5904, %v6164
    %v6166 = vpop.f32.mrf.mxu0
    %v6167 = vadd.f32 %v5906, %v6166
    %6168 = vmatmul.bf16.gmra.mxu0 %v2403
    %v6169 = vpop.f32.mrf.mxu0
    %v6170 = vadd.f32 %v5909, %v6169
    %v6171 = vpop.f32.mrf.mxu0
    %v6172 = vadd.f32 %v5911, %v6171
    %6173 = vmatmul.bf16.gmra.mxu0 %v2411
    %v6174 = vpop.f32.mrf.mxu0
    %v6175 = vadd.f32 %v5914, %v6174
    %v6176 = vpop.f32.mrf.mxu0
    %v6177 = vadd.f32 %v5916, %v6176
    %6178 = vmatmul.bf16.gmra.mxu0 %v2419
    %v6179 = vpop.f32.mrf.mxu0
    %v6180 = vadd.f32 %v5919, %v6179
    %v6181 = vpop.f32.mrf.mxu0
    %v6182 = vadd.f32 %v5921, %v6181
    %6183 = vmatmul.bf16.gmra.mxu0 %v2427
    %v6184 = vpop.f32.mrf.mxu0
    %v6185 = vadd.f32 %v5924, %v6184
    %v6186 = vpop.f32.mrf.mxu0
    %v6187 = vadd.f32 %v5926, %v6186
    %6188 = vmatmul.bf16.gmra.mxu0 %v2435
    %v6189 = vpop.f32.mrf.mxu0
    %v6190 = vadd.f32 %v5929, %v6189
    %v6191 = vpop.f32.mrf.mxu0
    %v6192 = vadd.f32 %v5931, %v6191
    %6193 = vmatmul.bf16.gmra.mxu0 %v2443
    %v6194 = vpop.f32.mrf.mxu0
    %v6195 = vadd.f32 %v5934, %v6194
    %v6196 = vpop.f32.mrf.mxu0
    %v6197 = vadd.f32 %v5936, %v6196
    %6198 = vmatmul.bf16.gmra.mxu0 %v2451
    %v6199 = vpop.f32.mrf.mxu0
    %v6200 = vadd.f32 %v5939, %v6199
    %v6201 = vpop.f32.mrf.mxu0
    %v6202 = vadd.f32 %v5941, %v6201
    %6203 = vmatmul.bf16.gmra.mxu0 %v2459
    %v6204 = vpop.f32.mrf.mxu0
    %v6205 = vadd.f32 %v5944, %v6204
    %v6206 = vpop.f32.mrf.mxu0
    %v6207 = vadd.f32 %v5946, %v6206
    %6208 = vmatmul.bf16.gmra.mxu0 %v2467
    %v6209 = vpop.f32.mrf.mxu0
    %v6210 = vadd.f32 %v5949, %v6209
    %v6211 = vpop.f32.mrf.mxu0
    %v6212 = vadd.f32 %v5951, %v6211
    %6213 = vmatmul.bf16.gmra.mxu0 %v2475
    %v6214 = vpop.f32.mrf.mxu0
    %v6215 = vadd.f32 %v5954, %v6214
    %v6216 = vpop.f32.mrf.mxu0
    %v6217 = vadd.f32 %v5956, %v6216
    %6218 = vmatmul.bf16.gmra.mxu0 %v2483
    %v6219 = vpop.f32.mrf.mxu0
    %v6220 = vadd.f32 %v5959, %v6219
    %v6221 = vpop.f32.mrf.mxu0
    %v6222 = vadd.f32 %v5961, %v6221
    %6223 = vmatmul.bf16.gmra.mxu0 %v2491
    %v6224 = vpop.f32.mrf.mxu0
    %v6225 = vadd.f32 %v5964, %v6224
    %v6226 = vpop.f32.mrf.mxu0
    %v6227 = vadd.f32 %v5966, %v6226
    %6228 = vmatmul.bf16.gmra.mxu0 %v2499
    %v6229 = vpop.f32.mrf.mxu0
    %v6230 = vadd.f32 %v5969, %v6229
    %v6231 = vpop.f32.mrf.mxu0
    %v6232 = vadd.f32 %v5971, %v6231
    %6233 = vmatmul.bf16.gmra.mxu0 %v2507
    %v6234 = vpop.f32.mrf.mxu0
    %v6235 = vadd.f32 %v5974, %v6234
    %v6236 = vpop.f32.mrf.mxu0
    %v6237 = vadd.f32 %v5976, %v6236
    %6238 = vmatmul.bf16.gmra.mxu0 %v2515
    %v6239 = vpop.f32.mrf.mxu0
    %v6240 = vadd.f32 %v5979, %v6239
    %v6241 = vpop.f32.mrf.mxu0
    %v6242 = vadd.f32 %v5981, %v6241
    %6243 = vdwg.mxu0
    %6244 = vmatpush.bf16.msra.mxu0 %v809
    %6245 = vmatpush.bf16.msra.mxu0 %v807
    %6246 = vmatpush.bf16.msra.mxu0 %v805
    %6247 = vmatpush.bf16.msra.mxu0 %v803
    %6248 = vmatpush.bf16.msra.mxu0 %v801
    %6249 = vmatpush.bf16.msra.mxu0 %v799
    %6250 = vmatpush.bf16.msra.mxu0 %v797
    %6251 = vmatpush.bf16.msra.mxu0 %v795
    %6252 = vmatmul.bf16.gmra.mxu0 %v2108
    %v6253 = vpop.f32.mrf.mxu0
    %v6254 = vpop.f32.mrf.mxu0
    %6255 = vmatmul.bf16.gmra.mxu0 %v2116
    %v6256 = vpop.f32.mrf.mxu0
    %v6257 = vpop.f32.mrf.mxu0
    %6258 = vmatmul.bf16.gmra.mxu0 %v2124
    %v6259 = vpop.f32.mrf.mxu0
    %v6260 = vpop.f32.mrf.mxu0
    %6261 = vmatmul.bf16.gmra.mxu0 %v2132
    %v6262 = vpop.f32.mrf.mxu0
    %v6263 = vpop.f32.mrf.mxu0
    %6264 = vmatmul.bf16.gmra.mxu0 %v2140
    %v6265 = vpop.f32.mrf.mxu0
    %v6266 = vadd.f32 %v6005, %v6265
    %v6267 = vpop.f32.mrf.mxu0
    %v6268 = vadd.f32 %v6007, %v6267
    %6269 = vmatmul.bf16.gmra.mxu0 %v2148
    %v6270 = vpop.f32.mrf.mxu0
    %v6271 = vadd.f32 %v6010, %v6270
    %v6272 = vpop.f32.mrf.mxu0
    %v6273 = vadd.f32 %v6012, %v6272
    %6274 = vmatmul.bf16.gmra.mxu0 %v2156
    %v6275 = vpop.f32.mrf.mxu0
    %v6276 = vadd.f32 %v6015, %v6275
    %v6277 = vpop.f32.mrf.mxu0
    %v6278 = vadd.f32 %v6017, %v6277
    %6279 = vmatmul.bf16.gmra.mxu0 %v2164
    %v6280 = vpop.f32.mrf.mxu0
    %v6281 = vadd.f32 %v6020, %v6280
    %v6282 = vpop.f32.mrf.mxu0
    %v6283 = vadd.f32 %v6022, %v6282
    %6284 = vmatmul.bf16.gmra.mxu0 %v2172
    %v6285 = vpop.f32.mrf.mxu0
    %v6286 = vadd.f32 %v6025, %v6285
    %v6287 = vpop.f32.mrf.mxu0
    %v6288 = vadd.f32 %v6027, %v6287
    %6289 = vmatmul.bf16.gmra.mxu0 %v2180
    %v6290 = vpop.f32.mrf.mxu0
    %v6291 = vadd.f32 %v6030, %v6290
    %v6292 = vpop.f32.mrf.mxu0
    %v6293 = vadd.f32 %v6032, %v6292
    %6294 = vmatmul.bf16.gmra.mxu0 %v2188
    %v6295 = vpop.f32.mrf.mxu0
    %v6296 = vadd.f32 %v6035, %v6295
    %v6297 = vpop.f32.mrf.mxu0
    %v6298 = vadd.f32 %v6037, %v6297
    %6299 = vmatmul.bf16.gmra.mxu0 %v2196
    %v6300 = vpop.f32.mrf.mxu0
    %v6301 = vadd.f32 %v6040, %v6300
    %v6302 = vpop.f32.mrf.mxu0
    %v6303 = vadd.f32 %v6042, %v6302
    %6304 = vmatmul.bf16.gmra.mxu0 %v2204
    %v6305 = vpop.f32.mrf.mxu0
    %v6306 = vadd.f32 %v6045, %v6305
    %v6307 = vpop.f32.mrf.mxu0
    %v6308 = vadd.f32 %v6047, %v6307
    %6309 = vmatmul.bf16.gmra.mxu0 %v2212
    %v6310 = vpop.f32.mrf.mxu0
    %v6311 = vadd.f32 %v6050, %v6310
    %v6312 = vpop.f32.mrf.mxu0
    %v6313 = vadd.f32 %v6052, %v6312
    %6314 = vmatmul.bf16.gmra.mxu0 %v2220
    %v6315 = vpop.f32.mrf.mxu0
    %v6316 = vadd.f32 %v6055, %v6315
    %v6317 = vpop.f32.mrf.mxu0
    %v6318 = vadd.f32 %v6057, %v6317
    %6319 = vmatmul.bf16.gmra.mxu0 %v2228
    %v6320 = vpop.f32.mrf.mxu0
    %v6321 = vadd.f32 %v6060, %v6320
    %v6322 = vpop.f32.mrf.mxu0
    %v6323 = vadd.f32 %v6062, %v6322
    %6324 = vmatmul.bf16.gmra.mxu0 %v2236
    %v6325 = vpop.f32.mrf.mxu0
    %v6326 = vadd.f32 %v6065, %v6325
    %v6327 = vpop.f32.mrf.mxu0
    %v6328 = vadd.f32 %v6067, %v6327
    %6329 = vmatmul.bf16.gmra.mxu0 %v2244
    %v6330 = vpop.f32.mrf.mxu0
    %v6331 = vadd.f32 %v6070, %v6330
    %v6332 = vpop.f32.mrf.mxu0
    %v6333 = vadd.f32 %v6072, %v6332
    %6334 = vmatmul.bf16.gmra.mxu0 %v2252
    %v6335 = vpop.f32.mrf.mxu0
    %v6336 = vadd.f32 %v6075, %v6335
    %v6337 = vpop.f32.mrf.mxu0
    %v6338 = vadd.f32 %v6077, %v6337
    %6339 = vmatmul.bf16.gmra.mxu0 %v2260
    %v6340 = vpop.f32.mrf.mxu0
    %v6341 = vadd.f32 %v6080, %v6340
    %v6342 = vpop.f32.mrf.mxu0
    %v6343 = vadd.f32 %v6082, %v6342
    %6344 = vmatmul.bf16.gmra.mxu0 %v2268
    %v6345 = vpop.f32.mrf.mxu0
    %v6346 = vadd.f32 %v6085, %v6345
    %v6347 = vpop.f32.mrf.mxu0
    %v6348 = vadd.f32 %v6087, %v6347
    %6349 = vmatmul.bf16.gmra.mxu0 %v2276
    %v6350 = vpop.f32.mrf.mxu0
    %v6351 = vadd.f32 %v6090, %v6350
    %v6352 = vpop.f32.mrf.mxu0
    %v6353 = vadd.f32 %v6092, %v6352
    %6354 = vmatmul.bf16.gmra.mxu0 %v2284
    %v6355 = vpop.f32.mrf.mxu0
    %v6356 = vadd.f32 %v6095, %v6355
    %v6357 = vpop.f32.mrf.mxu0
    %v6358 = vadd.f32 %v6097, %v6357
    %6359 = vmatmul.bf16.gmra.mxu0 %v2292
    %v6360 = vpop.f32.mrf.mxu0
    %v6361 = vadd.f32 %v6100, %v6360
    %v6362 = vpop.f32.mrf.mxu0
    %v6363 = vadd.f32 %v6102, %v6362
    %6364 = vmatmul.bf16.gmra.mxu0 %v2300
    %v6365 = vpop.f32.mrf.mxu0
    %v6366 = vadd.f32 %v6105, %v6365
    %v6367 = vpop.f32.mrf.mxu0
    %v6368 = vadd.f32 %v6107, %v6367
    %6369 = vmatmul.bf16.gmra.mxu0 %v2308
    %v6370 = vpop.f32.mrf.mxu0
    %v6371 = vadd.f32 %v6110, %v6370
    %v6372 = vpop.f32.mrf.mxu0
    %v6373 = vadd.f32 %v6112, %v6372
    %6374 = vmatmul.bf16.gmra.mxu0 %v2316
    %v6375 = vpop.f32.mrf.mxu0
    %v6376 = vadd.f32 %v6115, %v6375
    %v6377 = vpop.f32.mrf.mxu0
    %v6378 = vadd.f32 %v6117, %v6377
    %6379 = vmatmul.bf16.gmra.mxu0 %v2324
    %v6380 = vpop.f32.mrf.mxu0
    %v6381 = vadd.f32 %v6120, %v6380
    %v6382 = vpop.f32.mrf.mxu0
    %v6383 = vadd.f32 %v6122, %v6382
    %6384 = vmatmul.bf16.gmra.mxu0 %v2332
    %v6385 = vpop.f32.mrf.mxu0
    %v6386 = vadd.f32 %v6125, %v6385
    %v6387 = vpop.f32.mrf.mxu0
    %v6388 = vadd.f32 %v6127, %v6387
    %6389 = vmatmul.bf16.gmra.mxu0 %v2340
    %v6390 = vpop.f32.mrf.mxu0
    %v6391 = vadd.f32 %v6130, %v6390
    %v6392 = vpop.f32.mrf.mxu0
    %v6393 = vadd.f32 %v6132, %v6392
    %6394 = vmatmul.bf16.gmra.mxu0 %v2348
    %v6395 = vpop.f32.mrf.mxu0
    %v6396 = vadd.f32 %v6135, %v6395
    %v6397 = vpop.f32.mrf.mxu0
    %v6398 = vadd.f32 %v6137, %v6397
    %6399 = vmatmul.bf16.gmra.mxu0 %v2356
    %v6400 = vpop.f32.mrf.mxu0
    %v6401 = vadd.f32 %v6140, %v6400
    %v6402 = vpop.f32.mrf.mxu0
    %v6403 = vadd.f32 %v6142, %v6402
    %6404 = vmatmul.bf16.gmra.mxu0 %v2364
    %v6405 = vpop.f32.mrf.mxu0
    %v6406 = vadd.f32 %v6145, %v6405
    %v6407 = vpop.f32.mrf.mxu0
    %v6408 = vadd.f32 %v6147, %v6407
    %6409 = vmatmul.bf16.gmra.mxu0 %v2372
    %v6410 = vpop.f32.mrf.mxu0
    %v6411 = vadd.f32 %v6150, %v6410
    %v6412 = vpop.f32.mrf.mxu0
    %v6413 = vadd.f32 %v6152, %v6412
    %6414 = vmatmul.bf16.gmra.mxu0 %v2380
    %v6415 = vpop.f32.mrf.mxu0
    %v6416 = vadd.f32 %v6155, %v6415
    %v6417 = vpop.f32.mrf.mxu0
    %v6418 = vadd.f32 %v6157, %v6417
    %6419 = vmatmul.bf16.gmra.mxu0 %v2388
    %v6420 = vpop.f32.mrf.mxu0
    %v6421 = vadd.f32 %v6160, %v6420
    %v6422 = vpop.f32.mrf.mxu0
    %v6423 = vadd.f32 %v6162, %v6422
    %6424 = vmatmul.bf16.gmra.mxu0 %v2396
    %v6425 = vpop.f32.mrf.mxu0
    %v6426 = vadd.f32 %v6165, %v6425
    %v6427 = vpop.f32.mrf.mxu0
    %v6428 = vadd.f32 %v6167, %v6427
    %6429 = vmatmul.bf16.gmra.mxu0 %v2404
    %v6430 = vpop.f32.mrf.mxu0
    %v6431 = vadd.f32 %v6170, %v6430
    %v6432 = vpop.f32.mrf.mxu0
    %v6433 = vadd.f32 %v6172, %v6432
    %6434 = vmatmul.bf16.gmra.mxu0 %v2412
    %v6435 = vpop.f32.mrf.mxu0
    %v6436 = vadd.f32 %v6175, %v6435
    %v6437 = vpop.f32.mrf.mxu0
    %v6438 = vadd.f32 %v6177, %v6437
    %6439 = vmatmul.bf16.gmra.mxu0 %v2420
    %v6440 = vpop.f32.mrf.mxu0
    %v6441 = vadd.f32 %v6180, %v6440
    %v6442 = vpop.f32.mrf.mxu0
    %v6443 = vadd.f32 %v6182, %v6442
    %6444 = vmatmul.bf16.gmra.mxu0 %v2428
    %v6445 = vpop.f32.mrf.mxu0
    %v6446 = vadd.f32 %v6185, %v6445
    %v6447 = vpop.f32.mrf.mxu0
    %v6448 = vadd.f32 %v6187, %v6447
    %6449 = vmatmul.bf16.gmra.mxu0 %v2436
    %v6450 = vpop.f32.mrf.mxu0
    %v6451 = vadd.f32 %v6190, %v6450
    %v6452 = vpop.f32.mrf.mxu0
    %v6453 = vadd.f32 %v6192, %v6452
    %6454 = vmatmul.bf16.gmra.mxu0 %v2444
    %v6455 = vpop.f32.mrf.mxu0
    %v6456 = vadd.f32 %v6195, %v6455
    %v6457 = vpop.f32.mrf.mxu0
    %v6458 = vadd.f32 %v6197, %v6457
    %6459 = vmatmul.bf16.gmra.mxu0 %v2452
    %v6460 = vpop.f32.mrf.mxu0
    %v6461 = vadd.f32 %v6200, %v6460
    %v6462 = vpop.f32.mrf.mxu0
    %v6463 = vadd.f32 %v6202, %v6462
    %6464 = vmatmul.bf16.gmra.mxu0 %v2460
    %v6465 = vpop.f32.mrf.mxu0
    %v6466 = vadd.f32 %v6205, %v6465
    %v6467 = vpop.f32.mrf.mxu0
    %v6468 = vadd.f32 %v6207, %v6467
    %6469 = vmatmul.bf16.gmra.mxu0 %v2468
    %v6470 = vpop.f32.mrf.mxu0
    %v6471 = vadd.f32 %v6210, %v6470
    %v6472 = vpop.f32.mrf.mxu0
    %v6473 = vadd.f32 %v6212, %v6472
    %6474 = vmatmul.bf16.gmra.mxu0 %v2476
    %v6475 = vpop.f32.mrf.mxu0
    %v6476 = vadd.f32 %v6215, %v6475
    %v6477 = vpop.f32.mrf.mxu0
    %v6478 = vadd.f32 %v6217, %v6477
    %6479 = vmatmul.bf16.gmra.mxu0 %v2484
    %v6480 = vpop.f32.mrf.mxu0
    %v6481 = vadd.f32 %v6220, %v6480
    %v6482 = vpop.f32.mrf.mxu0
    %v6483 = vadd.f32 %v6222, %v6482
    %6484 = vmatmul.bf16.gmra.mxu0 %v2492
    %v6485 = vpop.f32.mrf.mxu0
    %v6486 = vadd.f32 %v6225, %v6485
    %v6487 = vpop.f32.mrf.mxu0
    %v6488 = vadd.f32 %v6227, %v6487
    %6489 = vmatmul.bf16.gmra.mxu0 %v2500
    %v6490 = vpop.f32.mrf.mxu0
    %v6491 = vadd.f32 %v6230, %v6490
    %v6492 = vpop.f32.mrf.mxu0
    %v6493 = vadd.f32 %v6232, %v6492
    %6494 = vmatmul.bf16.gmra.mxu0 %v2508
    %v6495 = vpop.f32.mrf.mxu0
    %v6496 = vadd.f32 %v6235, %v6495
    %v6497 = vpop.f32.mrf.mxu0
    %v6498 = vadd.f32 %v6237, %v6497
    %6499 = vmatmul.bf16.gmra.mxu0 %v2516
    %v6500 = vpop.f32.mrf.mxu0
    %v6501 = vadd.f32 %v6240, %v6500
    %v6502 = vpop.f32.mrf.mxu0
    %v6503 = vadd.f32 %v6242, %v6502
    %6504 = vdwg.mxu0
    %6505 = vmatpush.bf16.msra.mxu0 %v825
    %6506 = vmatpush.bf16.msra.mxu0 %v823
    %6507 = vmatpush.bf16.msra.mxu0 %v821
    %6508 = vmatpush.bf16.msra.mxu0 %v819
    %6509 = vmatpush.bf16.msra.mxu0 %v817
    %6510 = vmatpush.bf16.msra.mxu0 %v815
    %6511 = vmatpush.bf16.msra.mxu0 %v813
    %6512 = vmatpush.bf16.msra.mxu0 %v811
    %6513 = vmatmul.bf16.gmra.mxu0 %v2109
    %v6514 = vpop.f32.mrf.mxu0
    %v6515 = vpop.f32.mrf.mxu0
    %6516 = vmatmul.bf16.gmra.mxu0 %v2117
    %v6517 = vpop.f32.mrf.mxu0
    %v6518 = vpop.f32.mrf.mxu0
    %6519 = vmatmul.bf16.gmra.mxu0 %v2125
    %v6520 = vpop.f32.mrf.mxu0
    %v6521 = vpop.f32.mrf.mxu0
    %6522 = vmatmul.bf16.gmra.mxu0 %v2133
    %v6523 = vpop.f32.mrf.mxu0
    %v6524 = vpop.f32.mrf.mxu0
    %6525 = vmatmul.bf16.gmra.mxu0 %v2141
    %v6526 = vpop.f32.mrf.mxu0
    %v6527 = vadd.f32 %v6266, %v6526
    %v6528 = vpop.f32.mrf.mxu0
    %v6529 = vadd.f32 %v6268, %v6528
    %6530 = vmatmul.bf16.gmra.mxu0 %v2149
    %v6531 = vpop.f32.mrf.mxu0
    %v6532 = vadd.f32 %v6271, %v6531
    %v6533 = vpop.f32.mrf.mxu0
    %v6534 = vadd.f32 %v6273, %v6533
    %6535 = vmatmul.bf16.gmra.mxu0 %v2157
    %v6536 = vpop.f32.mrf.mxu0
    %v6537 = vadd.f32 %v6276, %v6536
    %v6538 = vpop.f32.mrf.mxu0
    %v6539 = vadd.f32 %v6278, %v6538
    %6540 = vmatmul.bf16.gmra.mxu0 %v2165
    %v6541 = vpop.f32.mrf.mxu0
    %v6542 = vadd.f32 %v6281, %v6541
    %v6543 = vpop.f32.mrf.mxu0
    %v6544 = vadd.f32 %v6283, %v6543
    %6545 = vmatmul.bf16.gmra.mxu0 %v2173
    %v6546 = vpop.f32.mrf.mxu0
    %v6547 = vadd.f32 %v6286, %v6546
    %v6548 = vpop.f32.mrf.mxu0
    %v6549 = vadd.f32 %v6288, %v6548
    %6550 = vmatmul.bf16.gmra.mxu0 %v2181
    %v6551 = vpop.f32.mrf.mxu0
    %v6552 = vadd.f32 %v6291, %v6551
    %v6553 = vpop.f32.mrf.mxu0
    %v6554 = vadd.f32 %v6293, %v6553
    %6555 = vmatmul.bf16.gmra.mxu0 %v2189
    %v6556 = vpop.f32.mrf.mxu0
    %v6557 = vadd.f32 %v6296, %v6556
    %v6558 = vpop.f32.mrf.mxu0
    %v6559 = vadd.f32 %v6298, %v6558
    %6560 = vmatmul.bf16.gmra.mxu0 %v2197
    %v6561 = vpop.f32.mrf.mxu0
    %v6562 = vadd.f32 %v6301, %v6561
    %v6563 = vpop.f32.mrf.mxu0
    %v6564 = vadd.f32 %v6303, %v6563
    %6565 = vmatmul.bf16.gmra.mxu0 %v2205
    %v6566 = vpop.f32.mrf.mxu0
    %v6567 = vadd.f32 %v6306, %v6566
    %v6568 = vpop.f32.mrf.mxu0
    %v6569 = vadd.f32 %v6308, %v6568
    %6570 = vmatmul.bf16.gmra.mxu0 %v2213
    %v6571 = vpop.f32.mrf.mxu0
    %v6572 = vadd.f32 %v6311, %v6571
    %v6573 = vpop.f32.mrf.mxu0
    %v6574 = vadd.f32 %v6313, %v6573
    %6575 = vmatmul.bf16.gmra.mxu0 %v2221
    %v6576 = vpop.f32.mrf.mxu0
    %v6577 = vadd.f32 %v6316, %v6576
    %v6578 = vpop.f32.mrf.mxu0
    %v6579 = vadd.f32 %v6318, %v6578
    %6580 = vmatmul.bf16.gmra.mxu0 %v2229
    %v6581 = vpop.f32.mrf.mxu0
    %v6582 = vadd.f32 %v6321, %v6581
    %v6583 = vpop.f32.mrf.mxu0
    %v6584 = vadd.f32 %v6323, %v6583
    %6585 = vmatmul.bf16.gmra.mxu0 %v2237
    %v6586 = vpop.f32.mrf.mxu0
    %v6587 = vadd.f32 %v6326, %v6586
    %v6588 = vpop.f32.mrf.mxu0
    %v6589 = vadd.f32 %v6328, %v6588
    %6590 = vmatmul.bf16.gmra.mxu0 %v2245
    %v6591 = vpop.f32.mrf.mxu0
    %v6592 = vadd.f32 %v6331, %v6591
    %v6593 = vpop.f32.mrf.mxu0
    %v6594 = vadd.f32 %v6333, %v6593
    %6595 = vmatmul.bf16.gmra.mxu0 %v2253
    %v6596 = vpop.f32.mrf.mxu0
    %v6597 = vadd.f32 %v6336, %v6596
    %v6598 = vpop.f32.mrf.mxu0
    %v6599 = vadd.f32 %v6338, %v6598
    %6600 = vmatmul.bf16.gmra.mxu0 %v2261
    %v6601 = vpop.f32.mrf.mxu0
    %v6602 = vadd.f32 %v6341, %v6601
    %v6603 = vpop.f32.mrf.mxu0
    %v6604 = vadd.f32 %v6343, %v6603
    %6605 = vmatmul.bf16.gmra.mxu0 %v2269
    %v6606 = vpop.f32.mrf.mxu0
    %v6607 = vadd.f32 %v6346, %v6606
    %v6608 = vpop.f32.mrf.mxu0
    %v6609 = vadd.f32 %v6348, %v6608
    %6610 = vmatmul.bf16.gmra.mxu0 %v2277
    %v6611 = vpop.f32.mrf.mxu0
    %v6612 = vadd.f32 %v6351, %v6611
    %v6613 = vpop.f32.mrf.mxu0
    %v6614 = vadd.f32 %v6353, %v6613
    %6615 = vmatmul.bf16.gmra.mxu0 %v2285
    %v6616 = vpop.f32.mrf.mxu0
    %v6617 = vadd.f32 %v6356, %v6616
    %v6618 = vpop.f32.mrf.mxu0
    %v6619 = vadd.f32 %v6358, %v6618
    %6620 = vmatmul.bf16.gmra.mxu0 %v2293
    %v6621 = vpop.f32.mrf.mxu0
    %v6622 = vadd.f32 %v6361, %v6621
    %v6623 = vpop.f32.mrf.mxu0
    %v6624 = vadd.f32 %v6363, %v6623
    %6625 = vmatmul.bf16.gmra.mxu0 %v2301
    %v6626 = vpop.f32.mrf.mxu0
    %v6627 = vadd.f32 %v6366, %v6626
    %v6628 = vpop.f32.mrf.mxu0
    %v6629 = vadd.f32 %v6368, %v6628
    %6630 = vmatmul.bf16.gmra.mxu0 %v2309
    %v6631 = vpop.f32.mrf.mxu0
    %v6632 = vadd.f32 %v6371, %v6631
    %v6633 = vpop.f32.mrf.mxu0
    %v6634 = vadd.f32 %v6373, %v6633
    %6635 = vmatmul.bf16.gmra.mxu0 %v2317
    %v6636 = vpop.f32.mrf.mxu0
    %v6637 = vadd.f32 %v6376, %v6636
    %v6638 = vpop.f32.mrf.mxu0
    %v6639 = vadd.f32 %v6378, %v6638
    %6640 = vmatmul.bf16.gmra.mxu0 %v2325
    %v6641 = vpop.f32.mrf.mxu0
    %v6642 = vadd.f32 %v6381, %v6641
    %v6643 = vpop.f32.mrf.mxu0
    %v6644 = vadd.f32 %v6383, %v6643
    %6645 = vmatmul.bf16.gmra.mxu0 %v2333
    %v6646 = vpop.f32.mrf.mxu0
    %v6647 = vadd.f32 %v6386, %v6646
    %v6648 = vpop.f32.mrf.mxu0
    %v6649 = vadd.f32 %v6388, %v6648
    %6650 = vmatmul.bf16.gmra.mxu0 %v2341
    %v6651 = vpop.f32.mrf.mxu0
    %v6652 = vadd.f32 %v6391, %v6651
    %v6653 = vpop.f32.mrf.mxu0
    %v6654 = vadd.f32 %v6393, %v6653
    %6655 = vmatmul.bf16.gmra.mxu0 %v2349
    %v6656 = vpop.f32.mrf.mxu0
    %v6657 = vadd.f32 %v6396, %v6656
    %v6658 = vpop.f32.mrf.mxu0
    %v6659 = vadd.f32 %v6398, %v6658
    %6660 = vmatmul.bf16.gmra.mxu0 %v2357
    %v6661 = vpop.f32.mrf.mxu0
    %v6662 = vadd.f32 %v6401, %v6661
    %v6663 = vpop.f32.mrf.mxu0
    %v6664 = vadd.f32 %v6403, %v6663
    %6665 = vmatmul.bf16.gmra.mxu0 %v2365
    %v6666 = vpop.f32.mrf.mxu0
    %v6667 = vadd.f32 %v6406, %v6666
    %v6668 = vpop.f32.mrf.mxu0
    %v6669 = vadd.f32 %v6408, %v6668
    %6670 = vmatmul.bf16.gmra.mxu0 %v2373
    %v6671 = vpop.f32.mrf.mxu0
    %v6672 = vadd.f32 %v6411, %v6671
    %v6673 = vpop.f32.mrf.mxu0
    %v6674 = vadd.f32 %v6413, %v6673
    %6675 = vmatmul.bf16.gmra.mxu0 %v2381
    %v6676 = vpop.f32.mrf.mxu0
    %v6677 = vadd.f32 %v6416, %v6676
    %v6678 = vpop.f32.mrf.mxu0
    %v6679 = vadd.f32 %v6418, %v6678
    %6680 = vmatmul.bf16.gmra.mxu0 %v2389
    %v6681 = vpop.f32.mrf.mxu0
    %v6682 = vadd.f32 %v6421, %v6681
    %v6683 = vpop.f32.mrf.mxu0
    %v6684 = vadd.f32 %v6423, %v6683
    %6685 = vmatmul.bf16.gmra.mxu0 %v2397
    %v6686 = vpop.f32.mrf.mxu0
    %v6687 = vadd.f32 %v6426, %v6686
    %v6688 = vpop.f32.mrf.mxu0
    %v6689 = vadd.f32 %v6428, %v6688
    %6690 = vmatmul.bf16.gmra.mxu0 %v2405
    %v6691 = vpop.f32.mrf.mxu0
    %v6692 = vadd.f32 %v6431, %v6691
    %v6693 = vpop.f32.mrf.mxu0
    %v6694 = vadd.f32 %v6433, %v6693
    %6695 = vmatmul.bf16.gmra.mxu0 %v2413
    %v6696 = vpop.f32.mrf.mxu0
    %v6697 = vadd.f32 %v6436, %v6696
    %v6698 = vpop.f32.mrf.mxu0
    %v6699 = vadd.f32 %v6438, %v6698
    %6700 = vmatmul.bf16.gmra.mxu0 %v2421
    %v6701 = vpop.f32.mrf.mxu0
    %v6702 = vadd.f32 %v6441, %v6701
    %v6703 = vpop.f32.mrf.mxu0
    %v6704 = vadd.f32 %v6443, %v6703
    %6705 = vmatmul.bf16.gmra.mxu0 %v2429
    %v6706 = vpop.f32.mrf.mxu0
    %v6707 = vadd.f32 %v6446, %v6706
    %v6708 = vpop.f32.mrf.mxu0
    %v6709 = vadd.f32 %v6448, %v6708
    %6710 = vmatmul.bf16.gmra.mxu0 %v2437
    %v6711 = vpop.f32.mrf.mxu0
    %v6712 = vadd.f32 %v6451, %v6711
    %v6713 = vpop.f32.mrf.mxu0
    %v6714 = vadd.f32 %v6453, %v6713
    %6715 = vmatmul.bf16.gmra.mxu0 %v2445
    %v6716 = vpop.f32.mrf.mxu0
    %v6717 = vadd.f32 %v6456, %v6716
    %v6718 = vpop.f32.mrf.mxu0
    %v6719 = vadd.f32 %v6458, %v6718
    %6720 = vmatmul.bf16.gmra.mxu0 %v2453
    %v6721 = vpop.f32.mrf.mxu0
    %v6722 = vadd.f32 %v6461, %v6721
    %v6723 = vpop.f32.mrf.mxu0
    %v6724 = vadd.f32 %v6463, %v6723
    %6725 = vmatmul.bf16.gmra.mxu0 %v2461
    %v6726 = vpop.f32.mrf.mxu0
    %v6727 = vadd.f32 %v6466, %v6726
    %v6728 = vpop.f32.mrf.mxu0
    %v6729 = vadd.f32 %v6468, %v6728
    %6730 = vmatmul.bf16.gmra.mxu0 %v2469
    %v6731 = vpop.f32.mrf.mxu0
    %v6732 = vadd.f32 %v6471, %v6731
    %v6733 = vpop.f32.mrf.mxu0
    %v6734 = vadd.f32 %v6473, %v6733
    %6735 = vmatmul.bf16.gmra.mxu0 %v2477
    %v6736 = vpop.f32.mrf.mxu0
    %v6737 = vadd.f32 %v6476, %v6736
    %v6738 = vpop.f32.mrf.mxu0
    %v6739 = vadd.f32 %v6478, %v6738
    %6740 = vmatmul.bf16.gmra.mxu0 %v2485
    %v6741 = vpop.f32.mrf.mxu0
    %v6742 = vadd.f32 %v6481, %v6741
    %v6743 = vpop.f32.mrf.mxu0
    %v6744 = vadd.f32 %v6483, %v6743
    %6745 = vmatmul.bf16.gmra.mxu0 %v2493
    %v6746 = vpop.f32.mrf.mxu0
    %v6747 = vadd.f32 %v6486, %v6746
    %v6748 = vpop.f32.mrf.mxu0
    %v6749 = vadd.f32 %v6488, %v6748
    %6750 = vmatmul.bf16.gmra.mxu0 %v2501
    %v6751 = vpop.f32.mrf.mxu0
    %v6752 = vadd.f32 %v6491, %v6751
    %v6753 = vpop.f32.mrf.mxu0
    %v6754 = vadd.f32 %v6493, %v6753
    %6755 = vmatmul.bf16.gmra.mxu0 %v2509
    %v6756 = vpop.f32.mrf.mxu0
    %v6757 = vadd.f32 %v6496, %v6756
    %v6758 = vpop.f32.mrf.mxu0
    %v6759 = vadd.f32 %v6498, %v6758
    %6760 = vmatmul.bf16.gmra.mxu0 %v2517
    %v6761 = vpop.f32.mrf.mxu0
    %v6762 = vadd.f32 %v6501, %v6761
    %v6763 = vpop.f32.mrf.mxu0
    %v6764 = vadd.f32 %v6503, %v6763
    %6765 = vdwg.mxu0
    %6766 = vmatpush.bf16.msra.mxu0 %v841
    %6767 = vmatpush.bf16.msra.mxu0 %v839
    %6768 = vmatpush.bf16.msra.mxu0 %v837
    %6769 = vmatpush.bf16.msra.mxu0 %v835
    %6770 = vmatpush.bf16.msra.mxu0 %v833
    %6771 = vmatpush.bf16.msra.mxu0 %v831
    %6772 = vmatpush.bf16.msra.mxu0 %v829
    %6773 = vmatpush.bf16.msra.mxu0 %v827
    %6774 = vmatmul.bf16.gmra.mxu0 %v2110
    %v6775 = vpop.f32.mrf.mxu0
    %v6776 = vpop.f32.mrf.mxu0
    %6777 = vmatmul.bf16.gmra.mxu0 %v2118
    %v6778 = vpop.f32.mrf.mxu0
    %v6779 = vpop.f32.mrf.mxu0
    %6780 = vmatmul.bf16.gmra.mxu0 %v2126
    %v6781 = vpop.f32.mrf.mxu0
    %v6782 = vpop.f32.mrf.mxu0
    %6783 = vmatmul.bf16.gmra.mxu0 %v2134
    %v6784 = vpop.f32.mrf.mxu0
    %v6785 = vpop.f32.mrf.mxu0
    %6786 = vmatmul.bf16.gmra.mxu0 %v2142
    %v6787 = vpop.f32.mrf.mxu0
    %v6788 = vadd.f32 %v6527, %v6787
    %v6789 = vpop.f32.mrf.mxu0
    %v6790 = vadd.f32 %v6529, %v6789
    %6791 = vmatmul.bf16.gmra.mxu0 %v2150
    %v6792 = vpop.f32.mrf.mxu0
    %v6793 = vadd.f32 %v6532, %v6792
    %v6794 = vpop.f32.mrf.mxu0
    %v6795 = vadd.f32 %v6534, %v6794
    %6796 = vmatmul.bf16.gmra.mxu0 %v2158
    %v6797 = vpop.f32.mrf.mxu0
    %v6798 = vadd.f32 %v6537, %v6797
    %v6799 = vpop.f32.mrf.mxu0
    %v6800 = vadd.f32 %v6539, %v6799
    %6801 = vmatmul.bf16.gmra.mxu0 %v2166
    %v6802 = vpop.f32.mrf.mxu0
    %v6803 = vadd.f32 %v6542, %v6802
    %v6804 = vpop.f32.mrf.mxu0
    %v6805 = vadd.f32 %v6544, %v6804
    %6806 = vmatmul.bf16.gmra.mxu0 %v2174
    %v6807 = vpop.f32.mrf.mxu0
    %v6808 = vadd.f32 %v6547, %v6807
    %v6809 = vpop.f32.mrf.mxu0
    %v6810 = vadd.f32 %v6549, %v6809
    %6811 = vmatmul.bf16.gmra.mxu0 %v2182
    %v6812 = vpop.f32.mrf.mxu0
    %v6813 = vadd.f32 %v6552, %v6812
    %v6814 = vpop.f32.mrf.mxu0
    %v6815 = vadd.f32 %v6554, %v6814
    %6816 = vmatmul.bf16.gmra.mxu0 %v2190
    %v6817 = vpop.f32.mrf.mxu0
    %v6818 = vadd.f32 %v6557, %v6817
    %v6819 = vpop.f32.mrf.mxu0
    %v6820 = vadd.f32 %v6559, %v6819
    %6821 = vmatmul.bf16.gmra.mxu0 %v2198
    %v6822 = vpop.f32.mrf.mxu0
    %v6823 = vadd.f32 %v6562, %v6822
    %v6824 = vpop.f32.mrf.mxu0
    %v6825 = vadd.f32 %v6564, %v6824
    %6826 = vmatmul.bf16.gmra.mxu0 %v2206
    %v6827 = vpop.f32.mrf.mxu0
    %v6828 = vadd.f32 %v6567, %v6827
    %v6829 = vpop.f32.mrf.mxu0
    %v6830 = vadd.f32 %v6569, %v6829
    %6831 = vmatmul.bf16.gmra.mxu0 %v2214
    %v6832 = vpop.f32.mrf.mxu0
    %v6833 = vadd.f32 %v6572, %v6832
    %v6834 = vpop.f32.mrf.mxu0
    %v6835 = vadd.f32 %v6574, %v6834
    %6836 = vmatmul.bf16.gmra.mxu0 %v2222
    %v6837 = vpop.f32.mrf.mxu0
    %v6838 = vadd.f32 %v6577, %v6837
    %v6839 = vpop.f32.mrf.mxu0
    %v6840 = vadd.f32 %v6579, %v6839
    %6841 = vmatmul.bf16.gmra.mxu0 %v2230
    %v6842 = vpop.f32.mrf.mxu0
    %v6843 = vadd.f32 %v6582, %v6842
    %v6844 = vpop.f32.mrf.mxu0
    %v6845 = vadd.f32 %v6584, %v6844
    %6846 = vmatmul.bf16.gmra.mxu0 %v2238
    %v6847 = vpop.f32.mrf.mxu0
    %v6848 = vadd.f32 %v6587, %v6847
    %v6849 = vpop.f32.mrf.mxu0
    %v6850 = vadd.f32 %v6589, %v6849
    %6851 = vmatmul.bf16.gmra.mxu0 %v2246
    %v6852 = vpop.f32.mrf.mxu0
    %v6853 = vadd.f32 %v6592, %v6852
    %v6854 = vpop.f32.mrf.mxu0
    %v6855 = vadd.f32 %v6594, %v6854
    %6856 = vmatmul.bf16.gmra.mxu0 %v2254
    %v6857 = vpop.f32.mrf.mxu0
    %v6858 = vadd.f32 %v6597, %v6857
    %v6859 = vpop.f32.mrf.mxu0
    %v6860 = vadd.f32 %v6599, %v6859
    %6861 = vmatmul.bf16.gmra.mxu0 %v2262
    %v6862 = vpop.f32.mrf.mxu0
    %v6863 = vadd.f32 %v6602, %v6862
    %v6864 = vpop.f32.mrf.mxu0
    %v6865 = vadd.f32 %v6604, %v6864
    %6866 = vmatmul.bf16.gmra.mxu0 %v2270
    %v6867 = vpop.f32.mrf.mxu0
    %v6868 = vadd.f32 %v6607, %v6867
    %v6869 = vpop.f32.mrf.mxu0
    %v6870 = vadd.f32 %v6609, %v6869
    %6871 = vmatmul.bf16.gmra.mxu0 %v2278
    %v6872 = vpop.f32.mrf.mxu0
    %v6873 = vadd.f32 %v6612, %v6872
    %v6874 = vpop.f32.mrf.mxu0
    %v6875 = vadd.f32 %v6614, %v6874
    %6876 = vmatmul.bf16.gmra.mxu0 %v2286
    %v6877 = vpop.f32.mrf.mxu0
    %v6878 = vadd.f32 %v6617, %v6877
    %v6879 = vpop.f32.mrf.mxu0
    %v6880 = vadd.f32 %v6619, %v6879
    %6881 = vmatmul.bf16.gmra.mxu0 %v2294
    %v6882 = vpop.f32.mrf.mxu0
    %v6883 = vadd.f32 %v6622, %v6882
    %v6884 = vpop.f32.mrf.mxu0
    %v6885 = vadd.f32 %v6624, %v6884
    %6886 = vmatmul.bf16.gmra.mxu0 %v2302
    %v6887 = vpop.f32.mrf.mxu0
    %v6888 = vadd.f32 %v6627, %v6887
    %v6889 = vpop.f32.mrf.mxu0
    %v6890 = vadd.f32 %v6629, %v6889
    %6891 = vmatmul.bf16.gmra.mxu0 %v2310
    %v6892 = vpop.f32.mrf.mxu0
    %v6893 = vadd.f32 %v6632, %v6892
    %v6894 = vpop.f32.mrf.mxu0
    %v6895 = vadd.f32 %v6634, %v6894
    %6896 = vmatmul.bf16.gmra.mxu0 %v2318
    %v6897 = vpop.f32.mrf.mxu0
    %v6898 = vadd.f32 %v6637, %v6897
    %v6899 = vpop.f32.mrf.mxu0
    %v6900 = vadd.f32 %v6639, %v6899
    %6901 = vmatmul.bf16.gmra.mxu0 %v2326
    %v6902 = vpop.f32.mrf.mxu0
    %v6903 = vadd.f32 %v6642, %v6902
    %v6904 = vpop.f32.mrf.mxu0
    %v6905 = vadd.f32 %v6644, %v6904
    %6906 = vmatmul.bf16.gmra.mxu0 %v2334
    %v6907 = vpop.f32.mrf.mxu0
    %v6908 = vadd.f32 %v6647, %v6907
    %v6909 = vpop.f32.mrf.mxu0
    %v6910 = vadd.f32 %v6649, %v6909
    %6911 = vmatmul.bf16.gmra.mxu0 %v2342
    %v6912 = vpop.f32.mrf.mxu0
    %v6913 = vadd.f32 %v6652, %v6912
    %v6914 = vpop.f32.mrf.mxu0
    %v6915 = vadd.f32 %v6654, %v6914
    %6916 = vmatmul.bf16.gmra.mxu0 %v2350
    %v6917 = vpop.f32.mrf.mxu0
    %v6918 = vadd.f32 %v6657, %v6917
    %v6919 = vpop.f32.mrf.mxu0
    %v6920 = vadd.f32 %v6659, %v6919
    %6921 = vmatmul.bf16.gmra.mxu0 %v2358
    %v6922 = vpop.f32.mrf.mxu0
    %v6923 = vadd.f32 %v6662, %v6922
    %v6924 = vpop.f32.mrf.mxu0
    %v6925 = vadd.f32 %v6664, %v6924
    %6926 = vmatmul.bf16.gmra.mxu0 %v2366
    %v6927 = vpop.f32.mrf.mxu0
    %v6928 = vadd.f32 %v6667, %v6927
    %v6929 = vpop.f32.mrf.mxu0
    %v6930 = vadd.f32 %v6669, %v6929
    %6931 = vmatmul.bf16.gmra.mxu0 %v2374
    %v6932 = vpop.f32.mrf.mxu0
    %v6933 = vadd.f32 %v6672, %v6932
    %v6934 = vpop.f32.mrf.mxu0
    %v6935 = vadd.f32 %v6674, %v6934
    %6936 = vmatmul.bf16.gmra.mxu0 %v2382
    %v6937 = vpop.f32.mrf.mxu0
    %v6938 = vadd.f32 %v6677, %v6937
    %v6939 = vpop.f32.mrf.mxu0
    %v6940 = vadd.f32 %v6679, %v6939
    %6941 = vmatmul.bf16.gmra.mxu0 %v2390
    %v6942 = vpop.f32.mrf.mxu0
    %v6943 = vadd.f32 %v6682, %v6942
    %v6944 = vpop.f32.mrf.mxu0
    %v6945 = vadd.f32 %v6684, %v6944
    %6946 = vmatmul.bf16.gmra.mxu0 %v2398
    %v6947 = vpop.f32.mrf.mxu0
    %v6948 = vadd.f32 %v6687, %v6947
    %v6949 = vpop.f32.mrf.mxu0
    %v6950 = vadd.f32 %v6689, %v6949
    %6951 = vmatmul.bf16.gmra.mxu0 %v2406
    %v6952 = vpop.f32.mrf.mxu0
    %v6953 = vadd.f32 %v6692, %v6952
    %v6954 = vpop.f32.mrf.mxu0
    %v6955 = vadd.f32 %v6694, %v6954
    %6956 = vmatmul.bf16.gmra.mxu0 %v2414
    %v6957 = vpop.f32.mrf.mxu0
    %v6958 = vadd.f32 %v6697, %v6957
    %v6959 = vpop.f32.mrf.mxu0
    %v6960 = vadd.f32 %v6699, %v6959
    %6961 = vmatmul.bf16.gmra.mxu0 %v2422
    %v6962 = vpop.f32.mrf.mxu0
    %v6963 = vadd.f32 %v6702, %v6962
    %v6964 = vpop.f32.mrf.mxu0
    %v6965 = vadd.f32 %v6704, %v6964
    %6966 = vmatmul.bf16.gmra.mxu0 %v2430
    %v6967 = vpop.f32.mrf.mxu0
    %v6968 = vadd.f32 %v6707, %v6967
    %v6969 = vpop.f32.mrf.mxu0
    %v6970 = vadd.f32 %v6709, %v6969
    %6971 = vmatmul.bf16.gmra.mxu0 %v2438
    %v6972 = vpop.f32.mrf.mxu0
    %v6973 = vadd.f32 %v6712, %v6972
    %v6974 = vpop.f32.mrf.mxu0
    %v6975 = vadd.f32 %v6714, %v6974
    %6976 = vmatmul.bf16.gmra.mxu0 %v2446
    %v6977 = vpop.f32.mrf.mxu0
    %v6978 = vadd.f32 %v6717, %v6977
    %v6979 = vpop.f32.mrf.mxu0
    %v6980 = vadd.f32 %v6719, %v6979
    %6981 = vmatmul.bf16.gmra.mxu0 %v2454
    %v6982 = vpop.f32.mrf.mxu0
    %v6983 = vadd.f32 %v6722, %v6982
    %v6984 = vpop.f32.mrf.mxu0
    %v6985 = vadd.f32 %v6724, %v6984
    %6986 = vmatmul.bf16.gmra.mxu0 %v2462
    %v6987 = vpop.f32.mrf.mxu0
    %v6988 = vadd.f32 %v6727, %v6987
    %v6989 = vpop.f32.mrf.mxu0
    %v6990 = vadd.f32 %v6729, %v6989
    %6991 = vmatmul.bf16.gmra.mxu0 %v2470
    %v6992 = vpop.f32.mrf.mxu0
    %v6993 = vadd.f32 %v6732, %v6992
    %v6994 = vpop.f32.mrf.mxu0
    %v6995 = vadd.f32 %v6734, %v6994
    %6996 = vmatmul.bf16.gmra.mxu0 %v2478
    %v6997 = vpop.f32.mrf.mxu0
    %v6998 = vadd.f32 %v6737, %v6997
    %v6999 = vpop.f32.mrf.mxu0
    %v7000 = vadd.f32 %v6739, %v6999
    %7001 = vmatmul.bf16.gmra.mxu0 %v2486
    %v7002 = vpop.f32.mrf.mxu0
    %v7003 = vadd.f32 %v6742, %v7002
    %v7004 = vpop.f32.mrf.mxu0
    %v7005 = vadd.f32 %v6744, %v7004
    %7006 = vmatmul.bf16.gmra.mxu0 %v2494
    %v7007 = vpop.f32.mrf.mxu0
    %v7008 = vadd.f32 %v6747, %v7007
    %v7009 = vpop.f32.mrf.mxu0
    %v7010 = vadd.f32 %v6749, %v7009
    %7011 = vmatmul.bf16.gmra.mxu0 %v2502
    %v7012 = vpop.f32.mrf.mxu0
    %v7013 = vadd.f32 %v6752, %v7012
    %v7014 = vpop.f32.mrf.mxu0
    %v7015 = vadd.f32 %v6754, %v7014
    %7016 = vmatmul.bf16.gmra.mxu0 %v2510
    %v7017 = vpop.f32.mrf.mxu0
    %v7018 = vadd.f32 %v6757, %v7017
    %v7019 = vpop.f32.mrf.mxu0
    %v7020 = vadd.f32 %v6759, %v7019
    %7021 = vmatmul.bf16.gmra.mxu0 %v2518
    %v7022 = vpop.f32.mrf.mxu0
    %v7023 = vadd.f32 %v6762, %v7022
    %v7024 = vpop.f32.mrf.mxu0
    %v7025 = vadd.f32 %v6764, %v7024
    %7026 = vdwg.mxu0
    %7027 = vmatpush.bf16.msra.mxu0 0
    %7028 = vmatpush.bf16.msra.mxu0 %v3046
    %7029 = vmatpush.bf16.msra.mxu0 %v853
    %7030 = vmatpush.bf16.msra.mxu0 %v851
    %7031 = vmatpush.bf16.msra.mxu0 %v849
    %7032 = vmatpush.bf16.msra.mxu0 %v847
    %7033 = vmatpush.bf16.msra.mxu0 %v845
    %7034 = vmatpush.bf16.msra.mxu0 %v843
    %7035 = vmatmul.bf16.gmra.mxu0 %v2886
    %v7036 = vpop.f32.mrf.mxu0
    %v7037 = vpop.f32.mrf.mxu0
    %7038 = vmatmul.bf16.gmra.mxu0 %v2889
    %v7039 = vpop.f32.mrf.mxu0
    %v7040 = vpop.f32.mrf.mxu0
    %7041 = vmatmul.bf16.gmra.mxu0 %v2892
    %v7042 = vpop.f32.mrf.mxu0
    %v7043 = vpop.f32.mrf.mxu0
    %7044 = vmatmul.bf16.gmra.mxu0 %v2895
    %v7045 = vpop.f32.mrf.mxu0
    %v7046 = vpop.f32.mrf.mxu0
    %7047 = vmatmul.bf16.gmra.mxu0 %v2898
    %v7048 = vpop.f32.mrf.mxu0
    %v7049 = vadd.f32 %v6788, %v7048
    %v7050 = vpop.f32.mrf.mxu0
    %v7051 = vadd.f32 %v6790, %v7050
    %7052 = vmatmul.bf16.gmra.mxu0 %v2901
    %v7053 = vpop.f32.mrf.mxu0
    %v7054 = vadd.f32 %v6793, %v7053
    %v7055 = vpop.f32.mrf.mxu0
    %v7056 = vadd.f32 %v6795, %v7055
    %7057 = vmatmul.bf16.gmra.mxu0 %v2904
    %v7058 = vpop.f32.mrf.mxu0
    %v7059 = vadd.f32 %v6798, %v7058
    %v7060 = vpop.f32.mrf.mxu0
    %v7061 = vadd.f32 %v6800, %v7060
    %7062 = vmatmul.bf16.gmra.mxu0 %v2907
    %v7063 = vpop.f32.mrf.mxu0
    %v7064 = vadd.f32 %v6803, %v7063
    %v7065 = vpop.f32.mrf.mxu0
    %v7066 = vadd.f32 %v6805, %v7065
    %7067 = vmatmul.bf16.gmra.mxu0 %v2910
    %v7068 = vpop.f32.mrf.mxu0
    %v7069 = vadd.f32 %v6808, %v7068
    %v7070 = vpop.f32.mrf.mxu0
    %v7071 = vadd.f32 %v6810, %v7070
    %7072 = vmatmul.bf16.gmra.mxu0 %v2913
    %v7073 = vpop.f32.mrf.mxu0
    %v7074 = vadd.f32 %v6813, %v7073
    %v7075 = vpop.f32.mrf.mxu0
    %v7076 = vadd.f32 %v6815, %v7075
    %7077 = vmatmul.bf16.gmra.mxu0 %v2916
    %v7078 = vpop.f32.mrf.mxu0
    %v7079 = vadd.f32 %v6818, %v7078
    %v7080 = vpop.f32.mrf.mxu0
    %v7081 = vadd.f32 %v6820, %v7080
    %7082 = vmatmul.bf16.gmra.mxu0 %v2919
    %v7083 = vpop.f32.mrf.mxu0
    %v7084 = vadd.f32 %v6823, %v7083
    %v7085 = vpop.f32.mrf.mxu0
    %v7086 = vadd.f32 %v6825, %v7085
    %7087 = vmatmul.bf16.gmra.mxu0 %v2922
    %v7088 = vpop.f32.mrf.mxu0
    %v7089 = vadd.f32 %v6828, %v7088
    %v7090 = vpop.f32.mrf.mxu0
    %v7091 = vadd.f32 %v6830, %v7090
    %7092 = vmatmul.bf16.gmra.mxu0 %v2925
    %v7093 = vpop.f32.mrf.mxu0
    %v7094 = vadd.f32 %v6833, %v7093
    %v7095 = vpop.f32.mrf.mxu0
    %v7096 = vadd.f32 %v6835, %v7095
    %7097 = vmatmul.bf16.gmra.mxu0 %v2928
    %v7098 = vpop.f32.mrf.mxu0
    %v7099 = vadd.f32 %v6838, %v7098
    %v7100 = vpop.f32.mrf.mxu0
    %v7101 = vadd.f32 %v6840, %v7100
    %7102 = vmatmul.bf16.gmra.mxu0 %v2931
    %v7103 = vpop.f32.mrf.mxu0
    %v7104 = vadd.f32 %v6843, %v7103
    %v7105 = vpop.f32.mrf.mxu0
    %v7106 = vadd.f32 %v6845, %v7105
    %7107 = vmatmul.bf16.gmra.mxu0 %v2934
    %v7108 = vpop.f32.mrf.mxu0
    %v7109 = vadd.f32 %v6848, %v7108
    %v7110 = vpop.f32.mrf.mxu0
    %v7111 = vadd.f32 %v6850, %v7110
    %7112 = vmatmul.bf16.gmra.mxu0 %v2937
    %v7113 = vpop.f32.mrf.mxu0
    %v7114 = vadd.f32 %v6853, %v7113
    %v7115 = vpop.f32.mrf.mxu0
    %v7116 = vadd.f32 %v6855, %v7115
    %7117 = vmatmul.bf16.gmra.mxu0 %v2940
    %v7118 = vpop.f32.mrf.mxu0
    %v7119 = vadd.f32 %v6858, %v7118
    %v7120 = vpop.f32.mrf.mxu0
    %v7121 = vadd.f32 %v6860, %v7120
    %7122 = vmatmul.bf16.gmra.mxu0 %v2943
    %v7123 = vpop.f32.mrf.mxu0
    %v7124 = vadd.f32 %v6863, %v7123
    %v7125 = vpop.f32.mrf.mxu0
    %v7126 = vadd.f32 %v6865, %v7125
    %7127 = vmatmul.bf16.gmra.mxu0 %v2946
    %v7128 = vpop.f32.mrf.mxu0
    %v7129 = vadd.f32 %v6868, %v7128
    %v7130 = vpop.f32.mrf.mxu0
    %v7131 = vadd.f32 %v6870, %v7130
    %7132 = vmatmul.bf16.gmra.mxu0 %v2949
    %v7133 = vpop.f32.mrf.mxu0
    %v7134 = vadd.f32 %v6873, %v7133
    %v7135 = vpop.f32.mrf.mxu0
    %v7136 = vadd.f32 %v6875, %v7135
    %7137 = vmatmul.bf16.gmra.mxu0 %v2952
    %v7138 = vpop.f32.mrf.mxu0
    %v7139 = vadd.f32 %v6878, %v7138
    %v7140 = vpop.f32.mrf.mxu0
    %v7141 = vadd.f32 %v6880, %v7140
    %7142 = vmatmul.bf16.gmra.mxu0 %v2955
    %v7143 = vpop.f32.mrf.mxu0
    %v7144 = vadd.f32 %v6883, %v7143
    %v7145 = vpop.f32.mrf.mxu0
    %v7146 = vadd.f32 %v6885, %v7145
    %7147 = vmatmul.bf16.gmra.mxu0 %v2958
    %v7148 = vpop.f32.mrf.mxu0
    %v7149 = vadd.f32 %v6888, %v7148
    %v7150 = vpop.f32.mrf.mxu0
    %v7151 = vadd.f32 %v6890, %v7150
    %7152 = vmatmul.bf16.gmra.mxu0 %v2961
    %v7153 = vpop.f32.mrf.mxu0
    %v7154 = vadd.f32 %v6893, %v7153
    %v7155 = vpop.f32.mrf.mxu0
    %v7156 = vadd.f32 %v6895, %v7155
    %7157 = vmatmul.bf16.gmra.mxu0 %v2964
    %v7158 = vpop.f32.mrf.mxu0
    %v7159 = vadd.f32 %v6898, %v7158
    %v7160 = vpop.f32.mrf.mxu0
    %v7161 = vadd.f32 %v6900, %v7160
    %7162 = vmatmul.bf16.gmra.mxu0 %v2967
    %v7163 = vpop.f32.mrf.mxu0
    %v7164 = vadd.f32 %v6903, %v7163
    %v7165 = vpop.f32.mrf.mxu0
    %v7166 = vadd.f32 %v6905, %v7165
    %7167 = vmatmul.bf16.gmra.mxu0 %v2970
    %v7168 = vpop.f32.mrf.mxu0
    %v7169 = vadd.f32 %v6908, %v7168
    %v7170 = vpop.f32.mrf.mxu0
    %v7171 = vadd.f32 %v6910, %v7170
    %7172 = vmatmul.bf16.gmra.mxu0 %v2973
    %v7173 = vpop.f32.mrf.mxu0
    %v7174 = vadd.f32 %v6913, %v7173
    %v7175 = vpop.f32.mrf.mxu0
    %v7176 = vadd.f32 %v6915, %v7175
    %7177 = vmatmul.bf16.gmra.mxu0 %v2976
    %v7178 = vpop.f32.mrf.mxu0
    %v7179 = vadd.f32 %v6918, %v7178
    %v7180 = vpop.f32.mrf.mxu0
    %v7181 = vadd.f32 %v6920, %v7180
    %7182 = vmatmul.bf16.gmra.mxu0 %v2979
    %v7183 = vpop.f32.mrf.mxu0
    %v7184 = vadd.f32 %v6923, %v7183
    %v7185 = vpop.f32.mrf.mxu0
    %v7186 = vadd.f32 %v6925, %v7185
    %7187 = vmatmul.bf16.gmra.mxu0 %v2982
    %v7188 = vpop.f32.mrf.mxu0
    %v7189 = vadd.f32 %v6928, %v7188
    %v7190 = vpop.f32.mrf.mxu0
    %v7191 = vadd.f32 %v6930, %v7190
    %7192 = vmatmul.bf16.gmra.mxu0 %v2985
    %v7193 = vpop.f32.mrf.mxu0
    %v7194 = vadd.f32 %v6933, %v7193
    %v7195 = vpop.f32.mrf.mxu0
    %v7196 = vadd.f32 %v6935, %v7195
    %7197 = vmatmul.bf16.gmra.mxu0 %v2988
    %v7198 = vpop.f32.mrf.mxu0
    %v7199 = vadd.f32 %v6938, %v7198
    %v7200 = vpop.f32.mrf.mxu0
    %v7201 = vadd.f32 %v6940, %v7200
    %7202 = vmatmul.bf16.gmra.mxu0 %v2991
    %v7203 = vpop.f32.mrf.mxu0
    %v7204 = vadd.f32 %v6943, %v7203
    %v7205 = vpop.f32.mrf.mxu0
    %v7206 = vadd.f32 %v6945, %v7205
    %7207 = vmatmul.bf16.gmra.mxu0 %v2994
    %v7208 = vpop.f32.mrf.mxu0
    %v7209 = vadd.f32 %v6948, %v7208
    %v7210 = vpop.f32.mrf.mxu0
    %v7211 = vadd.f32 %v6950, %v7210
    %7212 = vmatmul.bf16.gmra.mxu0 %v2997
    %v7213 = vpop.f32.mrf.mxu0
    %v7214 = vadd.f32 %v6953, %v7213
    %v7215 = vpop.f32.mrf.mxu0
    %v7216 = vadd.f32 %v6955, %v7215
    %7217 = vmatmul.bf16.gmra.mxu0 %v3000
    %v7218 = vpop.f32.mrf.mxu0
    %v7219 = vadd.f32 %v6958, %v7218
    %v7220 = vpop.f32.mrf.mxu0
    %v7221 = vadd.f32 %v6960, %v7220
    %7222 = vmatmul.bf16.gmra.mxu0 %v3003
    %v7223 = vpop.f32.mrf.mxu0
    %v7224 = vadd.f32 %v6963, %v7223
    %v7225 = vpop.f32.mrf.mxu0
    %v7226 = vadd.f32 %v6965, %v7225
    %7227 = vmatmul.bf16.gmra.mxu0 %v3006
    %v7228 = vpop.f32.mrf.mxu0
    %v7229 = vadd.f32 %v6968, %v7228
    %v7230 = vpop.f32.mrf.mxu0
    %v7231 = vadd.f32 %v6970, %v7230
    %7232 = vmatmul.bf16.gmra.mxu0 %v3009
    %v7233 = vpop.f32.mrf.mxu0
    %v7234 = vadd.f32 %v6973, %v7233
    %v7235 = vpop.f32.mrf.mxu0
    %v7236 = vadd.f32 %v6975, %v7235
    %7237 = vmatmul.bf16.gmra.mxu0 %v3012
    %v7238 = vpop.f32.mrf.mxu0
    %v7239 = vadd.f32 %v6978, %v7238
    %v7240 = vpop.f32.mrf.mxu0
    %v7241 = vadd.f32 %v6980, %v7240
    %7242 = vmatmul.bf16.gmra.mxu0 %v3015
    %v7243 = vpop.f32.mrf.mxu0
    %v7244 = vadd.f32 %v6983, %v7243
    %v7245 = vpop.f32.mrf.mxu0
    %v7246 = vadd.f32 %v6985, %v7245
    %7247 = vmatmul.bf16.gmra.mxu0 %v3018
    %v7248 = vpop.f32.mrf.mxu0
    %v7249 = vadd.f32 %v6988, %v7248
    %v7250 = vpop.f32.mrf.mxu0
    %v7251 = vadd.f32 %v6990, %v7250
    %7252 = vmatmul.bf16.gmra.mxu0 %v3021
    %v7253 = vpop.f32.mrf.mxu0
    %v7254 = vadd.f32 %v6993, %v7253
    %v7255 = vpop.f32.mrf.mxu0
    %v7256 = vadd.f32 %v6995, %v7255
    %7257 = vmatmul.bf16.gmra.mxu0 %v3024
    %v7258 = vpop.f32.mrf.mxu0
    %v7259 = vadd.f32 %v6998, %v7258
    %v7260 = vpop.f32.mrf.mxu0
    %v7261 = vadd.f32 %v7000, %v7260
    %7262 = vmatmul.bf16.gmra.mxu0 %v3027
    %v7263 = vpop.f32.mrf.mxu0
    %v7264 = vadd.f32 %v7003, %v7263
    %v7265 = vpop.f32.mrf.mxu0
    %v7266 = vadd.f32 %v7005, %v7265
    %7267 = vmatmul.bf16.gmra.mxu0 %v3030
    %v7268 = vpop.f32.mrf.mxu0
    %v7269 = vadd.f32 %v7008, %v7268
    %v7270 = vpop.f32.mrf.mxu0
    %v7271 = vadd.f32 %v7010, %v7270
    %7272 = vmatmul.bf16.gmra.mxu0 %v3033
    %v7273 = vpop.f32.mrf.mxu0
    %v7274 = vadd.f32 %v7013, %v7273
    %v7275 = vpop.f32.mrf.mxu0
    %v7276 = vadd.f32 %v7015, %v7275
    %7277 = vmatmul.bf16.gmra.mxu0 %v3036
    %v7278 = vpop.f32.mrf.mxu0
    %v7279 = vadd.f32 %v7018, %v7278
    %v7280 = vpop.f32.mrf.mxu0
    %v7281 = vadd.f32 %v7020, %v7280
    %7282 = vmatmul.bf16.gmra.mxu0 %v3039
    %v7283 = vpop.f32.mrf.mxu0
    %v7284 = vadd.f32 %v7023, %v7283
    %v7285 = vpop.f32.mrf.mxu0
    %v7286 = vadd.f32 %v7025, %v7285
    %7287 = vdwg.mxu0
    %v7288 = vadd.f32 %v443, %v4941
    %v7289 = vadd.f32 %v448, %v4943
    %v7290 = vadd.f32 %v453, %v4946
    %v7291 = vadd.f32 %v458, %v4948
    %v7292 = vadd.f32 %v463, %v4951
    %v7293 = vadd.f32 %v468, %v4953
    %v7294 = vadd.f32 %v473, %v4956
    %v7295 = vadd.f32 %v478, %v4958
    %7312 = vrot.lane.b32.xlu0 %v4961, 127
    %v7313 = vpop.permute.xlu0 %7312
    %7314 = vrot.lane.b32.xlu0 %v7049, 127
    %v7315 = vpop.permute.xlu0 %7314
    %7316 = vrot.lane.b32.xlu0 %v4963, 127
    %v7317 = vpop.permute.xlu0 %7316
    %7318 = vrot.lane.b32.xlu0 %v7051, 127
    %v7319 = vpop.permute.xlu0 %7318
    %7320 = vrot.lane.b32.xlu0 %v4966, 127
    %v7321 = vpop.permute.xlu0 %7320
    %7322 = vrot.lane.b32.xlu0 %v7054, 127
    %v7323 = vpop.permute.xlu0 %7322
    %7324 = vrot.lane.b32.xlu0 %v4968, 127
    %v7325 = vpop.permute.xlu0 %7324
    %7326 = vrot.lane.b32.xlu0 %v7056, 127
    %v7327 = vpop.permute.xlu0 %7326
    %7328 = vrot.lane.b32.xlu0 %v4971, 127
    %v7329 = vpop.permute.xlu0 %7328
    %7330 = vrot.lane.b32.xlu0 %v7059, 127
    %v7331 = vpop.permute.xlu0 %7330
    %7332 = vrot.lane.b32.xlu0 %v4973, 127
    %v7333 = vpop.permute.xlu0 %7332
    %7334 = vrot.lane.b32.xlu0 %v7061, 127
    %v7335 = vpop.permute.xlu0 %7334
    %7336 = vrot.lane.b32.xlu0 %v4976, 127
    %v7337 = vpop.permute.xlu0 %7336
    %7338 = vrot.lane.b32.xlu0 %v7064, 127
    %v7339 = vpop.permute.xlu0 %7338
    %7340 = vrot.lane.b32.xlu0 %v4978, 127
    %v7341 = vpop.permute.xlu0 %7340
    %7342 = vrot.lane.b32.xlu0 %v7066, 127
    %v7343 = vpop.permute.xlu0 %7342
    %vm7344 = vcmask 1039360
    %v7345 = vsel %vm7344, %v7313, %v7315
    %v7346 = vsel %vm7344, %v7317, %v7319
    %v7347 = vsel %vm7344, %v7321, %v7323
    %v7348 = vsel %vm7344, %v7325, %v7327
    %v7349 = vsel %vm7344, %v7329, %v7331
    %v7350 = vsel %vm7344, %v7333, %v7335
    %v7351 = vsel %vm7344, %v7337, %v7339
    %v7352 = vsel %vm7344, %v7341, %v7343
    %v7361 = vadd.f32 %v7288, %v7345
    %v7362 = vadd.f32 %v7289, %v7346
    %v7363 = vadd.f32 %v7290, %v7347
    %v7364 = vadd.f32 %v7291, %v7348
    %v7365 = vadd.f32 %v7292, %v7349
    %v7366 = vadd.f32 %v7293, %v7350
    %v7367 = vadd.f32 %v7294, %v7351
    %v7368 = vadd.f32 %v7295, %v7352
    %7385 = vrot.lane.b32.xlu0 %v4981, 126
    %v7386 = vpop.permute.xlu0 %7385
    %7387 = vrot.lane.b32.xlu0 %v7069, 126
    %v7388 = vpop.permute.xlu0 %7387
    %7389 = vrot.lane.b32.xlu0 %v4983, 126
    %v7390 = vpop.permute.xlu0 %7389
    %7391 = vrot.lane.b32.xlu0 %v7071, 126
    %v7392 = vpop.permute.xlu0 %7391
    %7393 = vrot.lane.b32.xlu0 %v4986, 126
    %v7394 = vpop.permute.xlu0 %7393
    %7395 = vrot.lane.b32.xlu0 %v7074, 126
    %v7396 = vpop.permute.xlu0 %7395
    %7397 = vrot.lane.b32.xlu0 %v4988, 126
    %v7398 = vpop.permute.xlu0 %7397
    %7399 = vrot.lane.b32.xlu0 %v7076, 126
    %v7400 = vpop.permute.xlu0 %7399
    %7401 = vrot.lane.b32.xlu0 %v4991, 126
    %v7402 = vpop.permute.xlu0 %7401
    %7403 = vrot.lane.b32.xlu0 %v7079, 126
    %v7404 = vpop.permute.xlu0 %7403
    %7405 = vrot.lane.b32.xlu0 %v4993, 126
    %v7406 = vpop.permute.xlu0 %7405
    %7407 = vrot.lane.b32.xlu0 %v7081, 126
    %v7408 = vpop.permute.xlu0 %7407
    %7409 = vrot.lane.b32.xlu0 %v4996, 126
    %v7410 = vpop.permute.xlu0 %7409
    %7411 = vrot.lane.b32.xlu0 %v7084, 126
    %v7412 = vpop.permute.xlu0 %7411
    %7413 = vrot.lane.b32.xlu0 %v4998, 126
    %v7414 = vpop.permute.xlu0 %7413
    %7415 = vrot.lane.b32.xlu0 %v7086, 126
    %v7416 = vpop.permute.xlu0 %7415
    %vm7417 = vcmask 1031168
    %v7418 = vsel %vm7417, %v7386, %v7388
    %v7419 = vsel %vm7417, %v7390, %v7392
    %v7420 = vsel %vm7417, %v7394, %v7396
    %v7421 = vsel %vm7417, %v7398, %v7400
    %v7422 = vsel %vm7417, %v7402, %v7404
    %v7423 = vsel %vm7417, %v7406, %v7408
    %v7424 = vsel %vm7417, %v7410, %v7412
    %v7425 = vsel %vm7417, %v7414, %v7416
    %v7434 = vadd.f32 %v7361, %v7418
    %v7435 = vadd.f32 %v7362, %v7419
    %v7436 = vadd.f32 %v7363, %v7420
    %v7437 = vadd.f32 %v7364, %v7421
    %v7438 = vadd.f32 %v7365, %v7422
    %v7439 = vadd.f32 %v7366, %v7423
    %v7440 = vadd.f32 %v7367, %v7424
    %v7441 = vadd.f32 %v7368, %v7425
    %7458 = vrot.lane.b32.xlu0 %v5001, 125
    %v7459 = vpop.permute.xlu0 %7458
    %7460 = vrot.lane.b32.xlu0 %v7089, 125
    %v7461 = vpop.permute.xlu0 %7460
    %7462 = vrot.lane.b32.xlu0 %v5003, 125
    %v7463 = vpop.permute.xlu0 %7462
    %7464 = vrot.lane.b32.xlu0 %v7091, 125
    %v7465 = vpop.permute.xlu0 %7464
    %7466 = vrot.lane.b32.xlu0 %v5006, 125
    %v7467 = vpop.permute.xlu0 %7466
    %7468 = vrot.lane.b32.xlu0 %v7094, 125
    %v7469 = vpop.permute.xlu0 %7468
    %7470 = vrot.lane.b32.xlu0 %v5008, 125
    %v7471 = vpop.permute.xlu0 %7470
    %7472 = vrot.lane.b32.xlu0 %v7096, 125
    %v7473 = vpop.permute.xlu0 %7472
    %7474 = vrot.lane.b32.xlu0 %v5011, 125
    %v7475 = vpop.permute.xlu0 %7474
    %7476 = vrot.lane.b32.xlu0 %v7099, 125
    %v7477 = vpop.permute.xlu0 %7476
    %7478 = vrot.lane.b32.xlu0 %v5013, 125
    %v7479 = vpop.permute.xlu0 %7478
    %7480 = vrot.lane.b32.xlu0 %v7101, 125
    %v7481 = vpop.permute.xlu0 %7480
    %7482 = vrot.lane.b32.xlu0 %v5016, 125
    %v7483 = vpop.permute.xlu0 %7482
    %7484 = vrot.lane.b32.xlu0 %v7104, 125
    %v7485 = vpop.permute.xlu0 %7484
    %7486 = vrot.lane.b32.xlu0 %v5018, 125
    %v7487 = vpop.permute.xlu0 %7486
    %7488 = vrot.lane.b32.xlu0 %v7106, 125
    %v7489 = vpop.permute.xlu0 %7488
    %vm7490 = vcmask 1022976
    %v7491 = vsel %vm7490, %v7459, %v7461
    %v7492 = vsel %vm7490, %v7463, %v7465
    %v7493 = vsel %vm7490, %v7467, %v7469
    %v7494 = vsel %vm7490, %v7471, %v7473
    %v7495 = vsel %vm7490, %v7475, %v7477
    %v7496 = vsel %vm7490, %v7479, %v7481
    %v7497 = vsel %vm7490, %v7483, %v7485
    %v7498 = vsel %vm7490, %v7487, %v7489
    %v7507 = vadd.f32 %v7434, %v7491
    %v7508 = vadd.f32 %v7435, %v7492
    %v7509 = vadd.f32 %v7436, %v7493
    %v7510 = vadd.f32 %v7437, %v7494
    %v7511 = vadd.f32 %v7438, %v7495
    %v7512 = vadd.f32 %v7439, %v7496
    %v7513 = vadd.f32 %v7440, %v7497
    %v7514 = vadd.f32 %v7441, %v7498
    %7531 = vrot.lane.b32.xlu0 %v5021, 124
    %v7532 = vpop.permute.xlu0 %7531
    %7533 = vrot.lane.b32.xlu0 %v7109, 124
    %v7534 = vpop.permute.xlu0 %7533
    %7535 = vrot.lane.b32.xlu0 %v5023, 124
    %v7536 = vpop.permute.xlu0 %7535
    %7537 = vrot.lane.b32.xlu0 %v7111, 124
    %v7538 = vpop.permute.xlu0 %7537
    %7539 = vrot.lane.b32.xlu0 %v5026, 124
    %v7540 = vpop.permute.xlu0 %7539
    %7541 = vrot.lane.b32.xlu0 %v7114, 124
    %v7542 = vpop.permute.xlu0 %7541
    %7543 = vrot.lane.b32.xlu0 %v5028, 124
    %v7544 = vpop.permute.xlu0 %7543
    %7545 = vrot.lane.b32.xlu0 %v7116, 124
    %v7546 = vpop.permute.xlu0 %7545
    %7547 = vrot.lane.b32.xlu0 %v5031, 124
    %v7548 = vpop.permute.xlu0 %7547
    %7549 = vrot.lane.b32.xlu0 %v7119, 124
    %v7550 = vpop.permute.xlu0 %7549
    %7551 = vrot.lane.b32.xlu0 %v5033, 124
    %v7552 = vpop.permute.xlu0 %7551
    %7553 = vrot.lane.b32.xlu0 %v7121, 124
    %v7554 = vpop.permute.xlu0 %7553
    %7555 = vrot.lane.b32.xlu0 %v5036, 124
    %v7556 = vpop.permute.xlu0 %7555
    %7557 = vrot.lane.b32.xlu0 %v7124, 124
    %v7558 = vpop.permute.xlu0 %7557
    %7559 = vrot.lane.b32.xlu0 %v5038, 124
    %v7560 = vpop.permute.xlu0 %7559
    %7561 = vrot.lane.b32.xlu0 %v7126, 124
    %v7562 = vpop.permute.xlu0 %7561
    %vm7563 = vcmask 1014784
    %v7564 = vsel %vm7563, %v7532, %v7534
    %v7565 = vsel %vm7563, %v7536, %v7538
    %v7566 = vsel %vm7563, %v7540, %v7542
    %v7567 = vsel %vm7563, %v7544, %v7546
    %v7568 = vsel %vm7563, %v7548, %v7550
    %v7569 = vsel %vm7563, %v7552, %v7554
    %v7570 = vsel %vm7563, %v7556, %v7558
    %v7571 = vsel %vm7563, %v7560, %v7562
    %v7580 = vadd.f32 %v7507, %v7564
    %v7581 = vadd.f32 %v7508, %v7565
    %v7582 = vadd.f32 %v7509, %v7566
    %v7583 = vadd.f32 %v7510, %v7567
    %v7584 = vadd.f32 %v7511, %v7568
    %v7585 = vadd.f32 %v7512, %v7569
    %v7586 = vadd.f32 %v7513, %v7570
    %v7587 = vadd.f32 %v7514, %v7571
    %7604 = vrot.lane.b32.xlu0 %v5041, 123
    %v7605 = vpop.permute.xlu0 %7604
    %7606 = vrot.lane.b32.xlu0 %v7129, 123
    %v7607 = vpop.permute.xlu0 %7606
    %7608 = vrot.lane.b32.xlu0 %v5043, 123
    %v7609 = vpop.permute.xlu0 %7608
    %7610 = vrot.lane.b32.xlu0 %v7131, 123
    %v7611 = vpop.permute.xlu0 %7610
    %7612 = vrot.lane.b32.xlu0 %v5046, 123
    %v7613 = vpop.permute.xlu0 %7612
    %7614 = vrot.lane.b32.xlu0 %v7134, 123
    %v7615 = vpop.permute.xlu0 %7614
    %7616 = vrot.lane.b32.xlu0 %v5048, 123
    %v7617 = vpop.permute.xlu0 %7616
    %7618 = vrot.lane.b32.xlu0 %v7136, 123
    %v7619 = vpop.permute.xlu0 %7618
    %7620 = vrot.lane.b32.xlu0 %v5051, 123
    %v7621 = vpop.permute.xlu0 %7620
    %7622 = vrot.lane.b32.xlu0 %v7139, 123
    %v7623 = vpop.permute.xlu0 %7622
    %7624 = vrot.lane.b32.xlu0 %v5053, 123
    %v7625 = vpop.permute.xlu0 %7624
    %7626 = vrot.lane.b32.xlu0 %v7141, 123
    %v7627 = vpop.permute.xlu0 %7626
    %7628 = vrot.lane.b32.xlu0 %v5056, 123
    %v7629 = vpop.permute.xlu0 %7628
    %7630 = vrot.lane.b32.xlu0 %v7144, 123
    %v7631 = vpop.permute.xlu0 %7630
    %7632 = vrot.lane.b32.xlu0 %v5058, 123
    %v7633 = vpop.permute.xlu0 %7632
    %7634 = vrot.lane.b32.xlu0 %v7146, 123
    %v7635 = vpop.permute.xlu0 %7634
    %vm7636 = vcmask 1006592
    %v7637 = vsel %vm7636, %v7605, %v7607
    %v7638 = vsel %vm7636, %v7609, %v7611
    %v7639 = vsel %vm7636, %v7613, %v7615
    %v7640 = vsel %vm7636, %v7617, %v7619
    %v7641 = vsel %vm7636, %v7621, %v7623
    %v7642 = vsel %vm7636, %v7625, %v7627
    %v7643 = vsel %vm7636, %v7629, %v7631
    %v7644 = vsel %vm7636, %v7633, %v7635
    %v7653 = vadd.f32 %v7580, %v7637
    %v7654 = vadd.f32 %v7581, %v7638
    %v7655 = vadd.f32 %v7582, %v7639
    %v7656 = vadd.f32 %v7583, %v7640
    %v7657 = vadd.f32 %v7584, %v7641
    %v7658 = vadd.f32 %v7585, %v7642
    %v7659 = vadd.f32 %v7586, %v7643
    %v7660 = vadd.f32 %v7587, %v7644
    %7677 = vrot.lane.b32.xlu0 %v5061, 122
    %v7678 = vpop.permute.xlu0 %7677
    %7679 = vrot.lane.b32.xlu0 %v7149, 122
    %v7680 = vpop.permute.xlu0 %7679
    %7681 = vrot.lane.b32.xlu0 %v5063, 122
    %v7682 = vpop.permute.xlu0 %7681
    %7683 = vrot.lane.b32.xlu0 %v7151, 122
    %v7684 = vpop.permute.xlu0 %7683
    %7685 = vrot.lane.b32.xlu0 %v5066, 122
    %v7686 = vpop.permute.xlu0 %7685
    %7687 = vrot.lane.b32.xlu0 %v7154, 122
    %v7688 = vpop.permute.xlu0 %7687
    %7689 = vrot.lane.b32.xlu0 %v5068, 122
    %v7690 = vpop.permute.xlu0 %7689
    %7691 = vrot.lane.b32.xlu0 %v7156, 122
    %v7692 = vpop.permute.xlu0 %7691
    %7693 = vrot.lane.b32.xlu0 %v5071, 122
    %v7694 = vpop.permute.xlu0 %7693
    %7695 = vrot.lane.b32.xlu0 %v7159, 122
    %v7696 = vpop.permute.xlu0 %7695
    %7697 = vrot.lane.b32.xlu0 %v5073, 122
    %v7698 = vpop.permute.xlu0 %7697
    %7699 = vrot.lane.b32.xlu0 %v7161, 122
    %v7700 = vpop.permute.xlu0 %7699
    %7701 = vrot.lane.b32.xlu0 %v5076, 122
    %v7702 = vpop.permute.xlu0 %7701
    %7703 = vrot.lane.b32.xlu0 %v7164, 122
    %v7704 = vpop.permute.xlu0 %7703
    %7705 = vrot.lane.b32.xlu0 %v5078, 122
    %v7706 = vpop.permute.xlu0 %7705
    %7707 = vrot.lane.b32.xlu0 %v7166, 122
    %v7708 = vpop.permute.xlu0 %7707
    %vm7709 = vcmask 998400
    %v7710 = vsel %vm7709, %v7678, %v7680
    %v7711 = vsel %vm7709, %v7682, %v7684
    %v7712 = vsel %vm7709, %v7686, %v7688
    %v7713 = vsel %vm7709, %v7690, %v7692
    %v7714 = vsel %vm7709, %v7694, %v7696
    %v7715 = vsel %vm7709, %v7698, %v7700
    %v7716 = vsel %vm7709, %v7702, %v7704
    %v7717 = vsel %vm7709, %v7706, %v7708
    %v7726 = vadd.f32 %v7653, %v7710
    %v7727 = vadd.f32 %v7654, %v7711
    %v7728 = vadd.f32 %v7655, %v7712
    %v7729 = vadd.f32 %v7656, %v7713
    %v7730 = vadd.f32 %v7657, %v7714
    %v7731 = vadd.f32 %v7658, %v7715
    %v7732 = vadd.f32 %v7659, %v7716
    %v7733 = vadd.f32 %v7660, %v7717
    %7750 = vrot.lane.b32.xlu0 %v5081, 121
    %v7751 = vpop.permute.xlu0 %7750
    %7752 = vrot.lane.b32.xlu0 %v7169, 121
    %v7753 = vpop.permute.xlu0 %7752
    %7754 = vrot.lane.b32.xlu0 %v5083, 121
    %v7755 = vpop.permute.xlu0 %7754
    %7756 = vrot.lane.b32.xlu0 %v7171, 121
    %v7757 = vpop.permute.xlu0 %7756
    %7758 = vrot.lane.b32.xlu0 %v5086, 121
    %v7759 = vpop.permute.xlu0 %7758
    %7760 = vrot.lane.b32.xlu0 %v7174, 121
    %v7761 = vpop.permute.xlu0 %7760
    %7762 = vrot.lane.b32.xlu0 %v5088, 121
    %v7763 = vpop.permute.xlu0 %7762
    %7764 = vrot.lane.b32.xlu0 %v7176, 121
    %v7765 = vpop.permute.xlu0 %7764
    %7766 = vrot.lane.b32.xlu0 %v5091, 121
    %v7767 = vpop.permute.xlu0 %7766
    %7768 = vrot.lane.b32.xlu0 %v7179, 121
    %v7769 = vpop.permute.xlu0 %7768
    %7770 = vrot.lane.b32.xlu0 %v5093, 121
    %v7771 = vpop.permute.xlu0 %7770
    %7772 = vrot.lane.b32.xlu0 %v7181, 121
    %v7773 = vpop.permute.xlu0 %7772
    %7774 = vrot.lane.b32.xlu0 %v5096, 121
    %v7775 = vpop.permute.xlu0 %7774
    %7776 = vrot.lane.b32.xlu0 %v7184, 121
    %v7777 = vpop.permute.xlu0 %7776
    %7778 = vrot.lane.b32.xlu0 %v5098, 121
    %v7779 = vpop.permute.xlu0 %7778
    %7780 = vrot.lane.b32.xlu0 %v7186, 121
    %v7781 = vpop.permute.xlu0 %7780
    %vm7782 = vcmask 990208
    %v7783 = vsel %vm7782, %v7751, %v7753
    %v7784 = vsel %vm7782, %v7755, %v7757
    %v7785 = vsel %vm7782, %v7759, %v7761
    %v7786 = vsel %vm7782, %v7763, %v7765
    %v7787 = vsel %vm7782, %v7767, %v7769
    %v7788 = vsel %vm7782, %v7771, %v7773
    %v7789 = vsel %vm7782, %v7775, %v7777
    %v7790 = vsel %vm7782, %v7779, %v7781
    %v7799 = vadd.f32 %v7726, %v7783
    %v7800 = vadd.f32 %v7727, %v7784
    %v7801 = vadd.f32 %v7728, %v7785
    %v7802 = vadd.f32 %v7729, %v7786
    %v7803 = vadd.f32 %v7730, %v7787
    %v7804 = vadd.f32 %v7731, %v7788
    %v7805 = vadd.f32 %v7732, %v7789
    %v7806 = vadd.f32 %v7733, %v7790
    %7823 = vrot.lane.b32.xlu0 %v5101, 120
    %v7824 = vpop.permute.xlu0 %7823
    %7825 = vrot.lane.b32.xlu0 %v7189, 120
    %v7826 = vpop.permute.xlu0 %7825
    %7827 = vrot.lane.b32.xlu0 %v5103, 120
    %v7828 = vpop.permute.xlu0 %7827
    %7829 = vrot.lane.b32.xlu0 %v7191, 120
    %v7830 = vpop.permute.xlu0 %7829
    %7831 = vrot.lane.b32.xlu0 %v5106, 120
    %v7832 = vpop.permute.xlu0 %7831
    %7833 = vrot.lane.b32.xlu0 %v7194, 120
    %v7834 = vpop.permute.xlu0 %7833
    %7835 = vrot.lane.b32.xlu0 %v5108, 120
    %v7836 = vpop.permute.xlu0 %7835
    %7837 = vrot.lane.b32.xlu0 %v7196, 120
    %v7838 = vpop.permute.xlu0 %7837
    %7839 = vrot.lane.b32.xlu0 %v5111, 120
    %v7840 = vpop.permute.xlu0 %7839
    %7841 = vrot.lane.b32.xlu0 %v7199, 120
    %v7842 = vpop.permute.xlu0 %7841
    %7843 = vrot.lane.b32.xlu0 %v5113, 120
    %v7844 = vpop.permute.xlu0 %7843
    %7845 = vrot.lane.b32.xlu0 %v7201, 120
    %v7846 = vpop.permute.xlu0 %7845
    %7847 = vrot.lane.b32.xlu0 %v5116, 120
    %v7848 = vpop.permute.xlu0 %7847
    %7849 = vrot.lane.b32.xlu0 %v7204, 120
    %v7850 = vpop.permute.xlu0 %7849
    %7851 = vrot.lane.b32.xlu0 %v5118, 120
    %v7852 = vpop.permute.xlu0 %7851
    %7853 = vrot.lane.b32.xlu0 %v7206, 120
    %v7854 = vpop.permute.xlu0 %7853
    %vm7855 = vcmask 982016
    %v7856 = vsel %vm7855, %v7824, %v7826
    %v7857 = vsel %vm7855, %v7828, %v7830
    %v7858 = vsel %vm7855, %v7832, %v7834
    %v7859 = vsel %vm7855, %v7836, %v7838
    %v7860 = vsel %vm7855, %v7840, %v7842
    %v7861 = vsel %vm7855, %v7844, %v7846
    %v7862 = vsel %vm7855, %v7848, %v7850
    %v7863 = vsel %vm7855, %v7852, %v7854
    %v7872 = vadd.f32 %v7799, %v7856
    %v7873 = vadd.f32 %v7800, %v7857
    %v7874 = vadd.f32 %v7801, %v7858
    %v7875 = vadd.f32 %v7802, %v7859
    %v7876 = vadd.f32 %v7803, %v7860
    %v7877 = vadd.f32 %v7804, %v7861
    %v7878 = vadd.f32 %v7805, %v7862
    %v7879 = vadd.f32 %v7806, %v7863
    %7896 = vrot.lane.b32.xlu0 %v5121, 119
    %v7897 = vpop.permute.xlu0 %7896
    %7898 = vrot.lane.b32.xlu0 %v7209, 119
    %v7899 = vpop.permute.xlu0 %7898
    %7900 = vrot.lane.b32.xlu0 %v5123, 119
    %v7901 = vpop.permute.xlu0 %7900
    %7902 = vrot.lane.b32.xlu0 %v7211, 119
    %v7903 = vpop.permute.xlu0 %7902
    %7904 = vrot.lane.b32.xlu0 %v5126, 119
    %v7905 = vpop.permute.xlu0 %7904
    %7906 = vrot.lane.b32.xlu0 %v7214, 119
    %v7907 = vpop.permute.xlu0 %7906
    %7908 = vrot.lane.b32.xlu0 %v5128, 119
    %v7909 = vpop.permute.xlu0 %7908
    %7910 = vrot.lane.b32.xlu0 %v7216, 119
    %v7911 = vpop.permute.xlu0 %7910
    %7912 = vrot.lane.b32.xlu0 %v5131, 119
    %v7913 = vpop.permute.xlu0 %7912
    %7914 = vrot.lane.b32.xlu0 %v7219, 119
    %v7915 = vpop.permute.xlu0 %7914
    %7916 = vrot.lane.b32.xlu0 %v5133, 119
    %v7917 = vpop.permute.xlu0 %7916
    %7918 = vrot.lane.b32.xlu0 %v7221, 119
    %v7919 = vpop.permute.xlu0 %7918
    %7920 = vrot.lane.b32.xlu0 %v5136, 119
    %v7921 = vpop.permute.xlu0 %7920
    %7922 = vrot.lane.b32.xlu0 %v7224, 119
    %v7923 = vpop.permute.xlu0 %7922
    %7924 = vrot.lane.b32.xlu0 %v5138, 119
    %v7925 = vpop.permute.xlu0 %7924
    %7926 = vrot.lane.b32.xlu0 %v7226, 119
    %v7927 = vpop.permute.xlu0 %7926
    %vm7928 = vcmask 973824
    %v7929 = vsel %vm7928, %v7897, %v7899
    %v7930 = vsel %vm7928, %v7901, %v7903
    %v7931 = vsel %vm7928, %v7905, %v7907
    %v7932 = vsel %vm7928, %v7909, %v7911
    %v7933 = vsel %vm7928, %v7913, %v7915
    %v7934 = vsel %vm7928, %v7917, %v7919
    %v7935 = vsel %vm7928, %v7921, %v7923
    %v7936 = vsel %vm7928, %v7925, %v7927
    %v7945 = vadd.f32 %v7872, %v7929
    %v7946 = vadd.f32 %v7873, %v7930
    %v7947 = vadd.f32 %v7874, %v7931
    %v7948 = vadd.f32 %v7875, %v7932
    %v7949 = vadd.f32 %v7876, %v7933
    %v7950 = vadd.f32 %v7877, %v7934
    %v7951 = vadd.f32 %v7878, %v7935
    %v7952 = vadd.f32 %v7879, %v7936
    %7969 = vrot.lane.b32.xlu0 %v5141, 118
    %v7970 = vpop.permute.xlu0 %7969
    %7971 = vrot.lane.b32.xlu0 %v7229, 118
    %v7972 = vpop.permute.xlu0 %7971
    %7973 = vrot.lane.b32.xlu0 %v5143, 118
    %v7974 = vpop.permute.xlu0 %7973
    %7975 = vrot.lane.b32.xlu0 %v7231, 118
    %v7976 = vpop.permute.xlu0 %7975
    %7977 = vrot.lane.b32.xlu0 %v5146, 118
    %v7978 = vpop.permute.xlu0 %7977
    %7979 = vrot.lane.b32.xlu0 %v7234, 118
    %v7980 = vpop.permute.xlu0 %7979
    %7981 = vrot.lane.b32.xlu0 %v5148, 118
    %v7982 = vpop.permute.xlu0 %7981
    %7983 = vrot.lane.b32.xlu0 %v7236, 118
    %v7984 = vpop.permute.xlu0 %7983
    %7985 = vrot.lane.b32.xlu0 %v5151, 118
    %v7986 = vpop.permute.xlu0 %7985
    %7987 = vrot.lane.b32.xlu0 %v7239, 118
    %v7988 = vpop.permute.xlu0 %7987
    %7989 = vrot.lane.b32.xlu0 %v5153, 118
    %v7990 = vpop.permute.xlu0 %7989
    %7991 = vrot.lane.b32.xlu0 %v7241, 118
    %v7992 = vpop.permute.xlu0 %7991
    %7993 = vrot.lane.b32.xlu0 %v5156, 118
    %v7994 = vpop.permute.xlu0 %7993
    %7995 = vrot.lane.b32.xlu0 %v7244, 118
    %v7996 = vpop.permute.xlu0 %7995
    %7997 = vrot.lane.b32.xlu0 %v5158, 118
    %v7998 = vpop.permute.xlu0 %7997
    %7999 = vrot.lane.b32.xlu0 %v7246, 118
    %v8000 = vpop.permute.xlu0 %7999
    %vm8001 = vcmask 965632
    %v8002 = vsel %vm8001, %v7970, %v7972
    %v8003 = vsel %vm8001, %v7974, %v7976
    %v8004 = vsel %vm8001, %v7978, %v7980
    %v8005 = vsel %vm8001, %v7982, %v7984
    %v8006 = vsel %vm8001, %v7986, %v7988
    %v8007 = vsel %vm8001, %v7990, %v7992
    %v8008 = vsel %vm8001, %v7994, %v7996
    %v8009 = vsel %vm8001, %v7998, %v8000
    %v8018 = vadd.f32 %v7945, %v8002
    %v8019 = vadd.f32 %v7946, %v8003
    %v8020 = vadd.f32 %v7947, %v8004
    %v8021 = vadd.f32 %v7948, %v8005
    %v8022 = vadd.f32 %v7949, %v8006
    %v8023 = vadd.f32 %v7950, %v8007
    %v8024 = vadd.f32 %v7951, %v8008
    %v8025 = vadd.f32 %v7952, %v8009
    %8042 = vrot.lane.b32.xlu0 %v5161, 117
    %v8043 = vpop.permute.xlu0 %8042
    %8044 = vrot.lane.b32.xlu0 %v7249, 117
    %v8045 = vpop.permute.xlu0 %8044
    %8046 = vrot.lane.b32.xlu0 %v5163, 117
    %v8047 = vpop.permute.xlu0 %8046
    %8048 = vrot.lane.b32.xlu0 %v7251, 117
    %v8049 = vpop.permute.xlu0 %8048
    %8050 = vrot.lane.b32.xlu0 %v5166, 117
    %v8051 = vpop.permute.xlu0 %8050
    %8052 = vrot.lane.b32.xlu0 %v7254, 117
    %v8053 = vpop.permute.xlu0 %8052
    %8054 = vrot.lane.b32.xlu0 %v5168, 117
    %v8055 = vpop.permute.xlu0 %8054
    %8056 = vrot.lane.b32.xlu0 %v7256, 117
    %v8057 = vpop.permute.xlu0 %8056
    %8058 = vrot.lane.b32.xlu0 %v5171, 117
    %v8059 = vpop.permute.xlu0 %8058
    %8060 = vrot.lane.b32.xlu0 %v7259, 117
    %v8061 = vpop.permute.xlu0 %8060
    %8062 = vrot.lane.b32.xlu0 %v5173, 117
    %v8063 = vpop.permute.xlu0 %8062
    %8064 = vrot.lane.b32.xlu0 %v7261, 117
    %v8065 = vpop.permute.xlu0 %8064
    %8066 = vrot.lane.b32.xlu0 %v5176, 117
    %v8067 = vpop.permute.xlu0 %8066
    %8068 = vrot.lane.b32.xlu0 %v7264, 117
    %v8069 = vpop.permute.xlu0 %8068
    %8070 = vrot.lane.b32.xlu0 %v5178, 117
    %v8071 = vpop.permute.xlu0 %8070
    %8072 = vrot.lane.b32.xlu0 %v7266, 117
    %v8073 = vpop.permute.xlu0 %8072
    %vm8074 = vcmask 957440
    %v8075 = vsel %vm8074, %v8043, %v8045
    %v8076 = vsel %vm8074, %v8047, %v8049
    %v8077 = vsel %vm8074, %v8051, %v8053
    %v8078 = vsel %vm8074, %v8055, %v8057
    %v8079 = vsel %vm8074, %v8059, %v8061
    %v8080 = vsel %vm8074, %v8063, %v8065
    %v8081 = vsel %vm8074, %v8067, %v8069
    %v8082 = vsel %vm8074, %v8071, %v8073
    %v8091 = vadd.f32 %v8018, %v8075
    %v8092 = vadd.f32 %v8019, %v8076
    %v8093 = vadd.f32 %v8020, %v8077
    %v8094 = vadd.f32 %v8021, %v8078
    %v8095 = vadd.f32 %v8022, %v8079
    %v8096 = vadd.f32 %v8023, %v8080
    %v8097 = vadd.f32 %v8024, %v8081
    %v8098 = vadd.f32 %v8025, %v8082
    %8115 = vrot.lane.b32.xlu0 %v5181, 116
    %v8116 = vpop.permute.xlu0 %8115
    %8117 = vrot.lane.b32.xlu0 %v7269, 116
    %v8118 = vpop.permute.xlu0 %8117
    %8119 = vrot.lane.b32.xlu0 %v5183, 116
    %v8120 = vpop.permute.xlu0 %8119
    %8121 = vrot.lane.b32.xlu0 %v7271, 116
    %v8122 = vpop.permute.xlu0 %8121
    %8123 = vrot.lane.b32.xlu0 %v5186, 116
    %v8124 = vpop.permute.xlu0 %8123
    %8125 = vrot.lane.b32.xlu0 %v7274, 116
    %v8126 = vpop.permute.xlu0 %8125
    %8127 = vrot.lane.b32.xlu0 %v5188, 116
    %v8128 = vpop.permute.xlu0 %8127
    %8129 = vrot.lane.b32.xlu0 %v7276, 116
    %v8130 = vpop.permute.xlu0 %8129
    %8131 = vrot.lane.b32.xlu0 %v5191, 116
    %v8132 = vpop.permute.xlu0 %8131
    %8133 = vrot.lane.b32.xlu0 %v7279, 116
    %v8134 = vpop.permute.xlu0 %8133
    %8135 = vrot.lane.b32.xlu0 %v5193, 116
    %v8136 = vpop.permute.xlu0 %8135
    %8137 = vrot.lane.b32.xlu0 %v7281, 116
    %v8138 = vpop.permute.xlu0 %8137
    %8139 = vrot.lane.b32.xlu0 %v5196, 116
    %v8140 = vpop.permute.xlu0 %8139
    %8141 = vrot.lane.b32.xlu0 %v7284, 116
    %v8142 = vpop.permute.xlu0 %8141
    %8143 = vrot.lane.b32.xlu0 %v5198, 116
    %v8144 = vpop.permute.xlu0 %8143
    %8145 = vrot.lane.b32.xlu0 %v7286, 116
    %v8146 = vpop.permute.xlu0 %8145
    %vm8147 = vcmask 949248
    %v8148 = vsel %vm8147, %v8116, %v8118
    %v8149 = vsel %vm8147, %v8120, %v8122
    %v8150 = vsel %vm8147, %v8124, %v8126
    %v8151 = vsel %vm8147, %v8128, %v8130
    %v8152 = vsel %vm8147, %v8132, %v8134
    %v8153 = vsel %vm8147, %v8136, %v8138
    %v8154 = vsel %vm8147, %v8140, %v8142
    %v8155 = vsel %vm8147, %v8144, %v8146
    %v8164 = vadd.f32 %v8091, %v8148
    %v8165 = vadd.f32 %v8092, %v8149
    %v8166 = vadd.f32 %v8093, %v8150
    %v8167 = vadd.f32 %v8094, %v8151
    %v8168 = vadd.f32 %v8095, %v8152
    %v8169 = vadd.f32 %v8096, %v8153
    %v8170 = vadd.f32 %v8097, %v8154
    %v8171 = vadd.f32 %v8098, %v8155
    %v8172 = vtanh.pop %v8164
    %v8173 = vtanh.pop %v8165
    %v8174 = vtanh.pop %v8166
    %v8175 = vtanh.pop %v8167
    %v8176 = vtanh.pop %v8168
    %v8177 = vtanh.pop %v8169
    %v8178 = vtanh.pop %v8170
    %v8179 = vtanh.pop %v8171
    %8180 = vst [vmem:[#allocation2] sm:$0xff] %v8172
    %8181 = vst [vmem:[#allocation2 + $0x8] sm:$0xff] %v8173
    %8182 = vst [vmem:[#allocation2 + $0x10] sm:$0xff] %v8174
    %8183 = vst [vmem:[#allocation2 + $0x18] sm:$0xff] %v8175
    %8184 = vst [vmem:[#allocation2 + $0x20] sm:$0xff] %v8176
    %8185 = vst [vmem:[#allocation2 + $0x28] sm:$0xff] %v8177
    %8186 = vst [vmem:[#allocation2 + $0x30] sm:$0xff] %v8178
    %8187 = vst [vmem:[#allocation2 + $0x38] sm:$0xff] %v8179
    %s8188 = scalar_lea.vmem %s0, 2000
    %v8189 = vld [vmem:[%s8188] sm:$0xff]
    %v8190 = vld [vmem:[%s8188 + $0x8] sm:$0xff]
    %v8191 = vld [vmem:[%s8188 + $0x10] sm:$0xff]
    %v8192 = vld [vmem:[%s8188 + $0x18] sm:$0xff]
    %v8193 = vld [vmem:[%s8188 + $0x20] sm:$0xff]
    %v8194 = vld [vmem:[%s8188 + $0x28] sm:$0xff]
    %v8195 = vld [vmem:[%s8188 + $0x30] sm:$0xff]
    %v8196 = vld [vmem:[%s8188 + $0x38] sm:$0xff]
    %v8197 = vld [vmem:[%s8188 + $0x40] sm:$0xff]
    %v8198 = vld [vmem:[%s8188 + $0x48] sm:$0xff]
    %v8199 = vld [vmem:[%s8188 + $0x50] sm:$0xff]
    %v8200 = vld [vmem:[%s8188 + $0x58] sm:$0xff]
    %v8201 = vld [vmem:[%s8188 + $0x60] sm:$0xff]
    %v8202 = vld [vmem:[%s8188 + $0x68] sm:$0xff]
    %v8203 = vld [vmem:[%s8188 + $0x70] sm:$0xff]
    %v8204 = vld [vmem:[%s8188 + $0x78] sm:$0xff]
    %v8205 = vld [vmem:[%s8188 + $0x80] sm:$0xff]
    %v8206 = vld [vmem:[%s8188 + $0x88] sm:$0xff]
    %v8207 = vld [vmem:[%s8188 + $0x90] sm:$0xff]
    %v8208 = vld [vmem:[%s8188 + $0x98] sm:$0xff]
    %v8209 = vld [vmem:[%s8188 + $0xa0] sm:$0xff]
    %v8210 = vld [vmem:[%s8188 + $0xa8] sm:$0xff]
    %v8211 = vld [vmem:[%s8188 + $0xb0] sm:$0xff]
    %v8212 = vld [vmem:[%s8188 + $0xb8] sm:$0xff]
    %v8213 = vld [vmem:[%s8188 + $0xc0] sm:$0xff]
    %v8214 = vld [vmem:[%s8188 + $0xc8] sm:$0xff]
    %v8215 = vld [vmem:[%s8188 + $0xd0] sm:$0xff]
    %v8216 = vld [vmem:[%s8188 + $0xd8] sm:$0xff]
    %v8217 = vld [vmem:[%s8188 + $0xe0] sm:$0xff]
    %v8218 = vld [vmem:[%s8188 + $0xe8] sm:$0xff]
    %v8219 = vld [vmem:[%s8188 + $0xf0] sm:$0xff]
    %v8220 = vld [vmem:[%s8188 + $0xf8] sm:$0xff]
    %v8221 = vld [vmem:[%s8188 + $0x100] sm:$0xff]
    %v8222 = vld [vmem:[%s8188 + $0x108] sm:$0xff]
    %v8223 = vld [vmem:[%s8188 + $0x110] sm:$0xff]
    %v8224 = vld [vmem:[%s8188 + $0x118] sm:$0xff]
    %v8225 = vld [vmem:[%s8188 + $0x120] sm:$0xff]
    %v8226 = vld [vmem:[%s8188 + $0x128] sm:$0xff]
    %v8227 = vld [vmem:[%s8188 + $0x130] sm:$0xff]
    %v8228 = vld [vmem:[%s8188 + $0x138] sm:$0xff]
    %v8229 = vld [vmem:[%s8188 + $0x140] sm:$0xff]
    %v8230 = vld [vmem:[%s8188 + $0x148] sm:$0xff]
    %v8231 = vld [vmem:[%s8188 + $0x150] sm:$0xff]
    %v8232 = vld [vmem:[%s8188 + $0x158] sm:$0xff]
    %v8233 = vld [vmem:[%s8188 + $0x160] sm:$0xff]
    %v8234 = vld [vmem:[%s8188 + $0x168] sm:$0xff]
    %v8235 = vld [vmem:[%s8188 + $0x170] sm:$0xff]
    %v8236 = vld [vmem:[%s8188 + $0x178] sm:$0xff]
    %v8237 = vld [vmem:[%s8188 + $0x180] sm:$0xff]
    %v8238 = vld [vmem:[%s8188 + $0x188] sm:$0xff]
    %v8239 = vld [vmem:[%s8188 + $0x190] sm:$0xff]
    %v8240 = vld [vmem:[%s8188 + $0x198] sm:$0xff]
    %v8241 = vld [vmem:[%s8188 + $0x1a0] sm:$0xff]
    %v8242 = vld [vmem:[%s8188 + $0x1a8] sm:$0xff]
    %v8243 = vld [vmem:[%s8188 + $0x1b0] sm:$0xff]
    %v8244 = vld [vmem:[%s8188 + $0x1b8] sm:$0xff]
    %v8245 = vld [vmem:[%s8188 + $0x1c0] sm:$0xff]
    %v8246 = vld [vmem:[%s8188 + $0x1c8] sm:$0xff]
    %v8247 = vld [vmem:[%s8188 + $0x1d0] sm:$0xff]
    %v8248 = vld [vmem:[%s8188 + $0x1d8] sm:$0xff]
    %v8249 = vld [vmem:[%s8188 + $0x1e0] sm:$0xff]
    %v8250 = vld [vmem:[%s8188 + $0x1e8] sm:$0xff]
    %v8251 = vld [vmem:[%s8188 + $0x1f0] sm:$0xff]
    %v8252 = vld [vmem:[%s8188 + $0x1f8] sm:$0xff]
    %v8253 = vld [vmem:[%s8188 + $0x200] sm:$0xff]
    %v8254 = vld [vmem:[%s8188 + $0x208] sm:$0xff]
    %v8255 = vld [vmem:[%s8188 + $0x210] sm:$0xff]
    %v8256 = vld [vmem:[%s8188 + $0x218] sm:$0xff]
    %v8257 = vld [vmem:[%s8188 + $0x220] sm:$0xff]
    %v8258 = vld [vmem:[%s8188 + $0x228] sm:$0xff]
    %v8259 = vld [vmem:[%s8188 + $0x230] sm:$0xff]
    %v8260 = vld [vmem:[%s8188 + $0x238] sm:$0xff]
    %v8261 = vld [vmem:[%s8188 + $0x240] sm:$0xff]
    %v8262 = vld [vmem:[%s8188 + $0x248] sm:$0xff]
    %v8263 = vld [vmem:[%s8188 + $0x250] sm:$0xff]
    %v8264 = vld [vmem:[%s8188 + $0x258] sm:$0xff]
    %v8265 = vld [vmem:[%s8188 + $0x260] sm:$0xff]
    %v8266 = vld [vmem:[%s8188 + $0x268] sm:$0xff]
    %v8267 = vld [vmem:[%s8188 + $0x270] sm:$0xff]
    %v8268 = vld [vmem:[%s8188 + $0x278] sm:$0xff]
    %v8269 = vld [vmem:[%s8188 + $0x280] sm:$0xff]
    %v8270 = vld [vmem:[%s8188 + $0x288] sm:$0xff]
    %v8271 = vld [vmem:[%s8188 + $0x290] sm:$0xff]
    %v8272 = vld [vmem:[%s8188 + $0x298] sm:$0xff]
    %v8273 = vld [vmem:[%s8188 + $0x2a0] sm:$0xff]
    %v8274 = vld [vmem:[%s8188 + $0x2a8] sm:$0xff]
    %v8275 = vld [vmem:[%s8188 + $0x2b0] sm:$0xff]
    %v8276 = vld [vmem:[%s8188 + $0x2b8] sm:$0xff]
    %v8277 = vld [vmem:[%s8188 + $0x2c0] sm:$0xff]
    %v8278 = vld [vmem:[%s8188 + $0x2c8] sm:$0xff]
    %v8279 = vld [vmem:[%s8188 + $0x2d0] sm:$0xff]
    %v8280 = vld [vmem:[%s8188 + $0x2d8] sm:$0xff]
    %v8281 = vld [vmem:[%s8188 + $0x2e0] sm:$0xff]
    %v8282 = vld [vmem:[%s8188 + $0x2e8] sm:$0xff]
    %v8283 = vld [vmem:[%s8188 + $0x2f0] sm:$0xff]
    %v8284 = vld [vmem:[%s8188 + $0x2f8] sm:$0xff]
    %v8285 = vld [vmem:[%s8188 + $0x300] sm:$0xff]
    %v8286 = vld [vmem:[%s8188 + $0x308] sm:$0xff]
    %v8287 = vld [vmem:[%s8188 + $0x310] sm:$0xff]
    %v8288 = vld [vmem:[%s8188 + $0x318] sm:$0xff]
    %v8289 = vld [vmem:[%s8188 + $0x320] sm:$0xff]
    %v8290 = vld [vmem:[%s8188 + $0x328] sm:$0xff]
    %v8291 = vld [vmem:[%s8188 + $0x330] sm:$0xff]
    %v8292 = vld [vmem:[%s8188 + $0x338] sm:$0xff]
    %v8293 = vld [vmem:[%s8188 + $0x340] sm:$0xff]
    %v8294 = vld [vmem:[%s8188 + $0x348] sm:$0xff]
    %v8295 = vld [vmem:[%s8188 + $0x350] sm:$0xff]
    %v8296 = vld [vmem:[%s8188 + $0x358] sm:$0xff]
    %v8297 = vld [vmem:[%s8188 + $0x360] sm:$0xff]
    %v8298 = vld [vmem:[%s8188 + $0x368] sm:$0xff]
    %v8299 = vld [vmem:[%s8188 + $0x370] sm:$0xff]
    %v8300 = vld [vmem:[%s8188 + $0x378] sm:$0xff]
    %v8301 = vld [vmem:[%s8188 + $0x380] sm:$0xff]
    %v8302 = vld [vmem:[%s8188 + $0x388] sm:$0xff]
    %v8303 = vld [vmem:[%s8188 + $0x390] sm:$0xff]
    %v8304 = vld [vmem:[%s8188 + $0x398] sm:$0xff]
    %v8305 = vld [vmem:[%s8188 + $0x3a0] sm:$0xff]
    %v8306 = vld [vmem:[%s8188 + $0x3a8] sm:$0xff]
    %v8307 = vld [vmem:[%s8188 + $0x3b0] sm:$0xff]
    %v8308 = vld [vmem:[%s8188 + $0x3b8] sm:$0xff]
    %v8309 = vld [vmem:[%s8188 + $0x3c0] sm:$0xff]
    %v8310 = vld [vmem:[%s8188 + $0x3c8] sm:$0xff]
    %v8311 = vld [vmem:[%s8188 + $0x3d0] sm:$0xff]
    %v8312 = vld [vmem:[%s8188 + $0x3d8] sm:$0xff]
    %v8313 = vld [vmem:[%s8188 + $0x3e0] sm:$0xff]
    %v8314 = vld [vmem:[%s8188 + $0x3e8] sm:$0xff]
    %v8315 = vld [vmem:[%s8188 + $0x3f0] sm:$0xff]
    %v8316 = vld [vmem:[%s8188 + $0x3f8] sm:$0xff]
    %v8317 = vld [vmem:[%s8188 + $0x400] sm:$0xff]
    %v8318 = vld [vmem:[%s8188 + $0x408] sm:$0xff]
    %v8319 = vld [vmem:[%s8188 + $0x410] sm:$0xff]
    %v8320 = vld [vmem:[%s8188 + $0x418] sm:$0xff]
    %v8321 = vld [vmem:[%s8188 + $0x420] sm:$0xff]
    %v8322 = vld [vmem:[%s8188 + $0x428] sm:$0xff]
    %v8323 = vld [vmem:[%s8188 + $0x430] sm:$0xff]
    %v8324 = vld [vmem:[%s8188 + $0x438] sm:$0xff]
    %v8325 = vld [vmem:[%s8188 + $0x440] sm:$0xff]
    %v8326 = vld [vmem:[%s8188 + $0x448] sm:$0xff]
    %v8327 = vld [vmem:[%s8188 + $0x450] sm:$0xff]
    %v8328 = vld [vmem:[%s8188 + $0x458] sm:$0xff]
    %v8329 = vld [vmem:[%s8188 + $0x460] sm:$0xff]
    %v8330 = vld [vmem:[%s8188 + $0x468] sm:$0xff]
    %v8331 = vld [vmem:[%s8188 + $0x470] sm:$0xff]
    %v8332 = vld [vmem:[%s8188 + $0x478] sm:$0xff]
    %v8333 = vld [vmem:[%s8188 + $0x480] sm:$0xff]
    %v8334 = vld [vmem:[%s8188 + $0x488] sm:$0xff]
    %v8335 = vld [vmem:[%s8188 + $0x490] sm:$0xff]
    %v8336 = vld [vmem:[%s8188 + $0x498] sm:$0xff]
    %v8337 = vld [vmem:[%s8188 + $0x4a0] sm:$0xff]
    %v8338 = vld [vmem:[%s8188 + $0x4a8] sm:$0xff]
    %v8339 = vld [vmem:[%s8188 + $0x4b0] sm:$0xff]
    %v8340 = vld [vmem:[%s8188 + $0x4b8] sm:$0xff]
    %v8341 = vld [vmem:[%s8188 + $0x4c0] sm:$0xff]
    %v8342 = vld [vmem:[%s8188 + $0x4c8] sm:$0xff]
    %v8343 = vld [vmem:[%s8188 + $0x4d0] sm:$0xff]
    %v8344 = vld [vmem:[%s8188 + $0x4d8] sm:$0xff]
    %v8345 = vld [vmem:[%s8188 + $0x4e0] sm:$0xff]
    %v8346 = vld [vmem:[%s8188 + $0x4e8] sm:$0xff]
    %v8347 = vld [vmem:[%s8188 + $0x4f0] sm:$0xff]
    %v8348 = vld [vmem:[%s8188 + $0x4f8] sm:$0xff]
    %v8349 = vld [vmem:[%s8188 + $0x500] sm:$0xff]
    %v8350 = vld [vmem:[%s8188 + $0x508] sm:$0xff]
    %v8351 = vld [vmem:[%s8188 + $0x510] sm:$0xff]
    %v8352 = vld [vmem:[%s8188 + $0x518] sm:$0xff]
    %v8353 = vld [vmem:[%s8188 + $0x520] sm:$0xff]
    %v8354 = vld [vmem:[%s8188 + $0x528] sm:$0xff]
    %v8355 = vld [vmem:[%s8188 + $0x530] sm:$0xff]
    %v8356 = vld [vmem:[%s8188 + $0x538] sm:$0xff]
    %v8357 = vld [vmem:[%s8188 + $0x540] sm:$0xff]
    %v8358 = vld [vmem:[%s8188 + $0x548] sm:$0xff]
    %v8359 = vld [vmem:[%s8188 + $0x550] sm:$0xff]
    %v8360 = vld [vmem:[%s8188 + $0x558] sm:$0xff]
    %v8361 = vld [vmem:[%s8188 + $0x560] sm:$0xff]
    %v8362 = vld [vmem:[%s8188 + $0x568] sm:$0xff]
    %v8363 = vld [vmem:[%s8188 + $0x570] sm:$0xff]
    %v8364 = vld [vmem:[%s8188 + $0x578] sm:$0xff]
    %v8365 = vld [vmem:[%s8188 + $0x580] sm:$0xff]
    %v8366 = vld [vmem:[%s8188 + $0x588] sm:$0xff]
    %v8367 = vld [vmem:[%s8188 + $0x590] sm:$0xff]
    %v8368 = vld [vmem:[%s8188 + $0x598] sm:$0xff]
    %v8369 = vld [vmem:[%s8188 + $0x5a0] sm:$0xff]
    %v8370 = vld [vmem:[%s8188 + $0x5a8] sm:$0xff]
    %v8371 = vld [vmem:[%s8188 + $0x5b0] sm:$0xff]
    %v8372 = vld [vmem:[%s8188 + $0x5b8] sm:$0xff]
    %v8373 = vld [vmem:[%s8188 + $0x5c0] sm:$0xff]
    %v8374 = vld [vmem:[%s8188 + $0x5c8] sm:$0xff]
    %v8375 = vld [vmem:[%s8188 + $0x5d0] sm:$0xff]
    %v8376 = vld [vmem:[%s8188 + $0x5d8] sm:$0xff]
    %v8377 = vld [vmem:[%s8188 + $0x5e0] sm:$0xff]
    %v8378 = vld [vmem:[%s8188 + $0x5e8] sm:$0xff]
    %v8379 = vld [vmem:[%s8188 + $0x5f0] sm:$0xff]
    %v8380 = vld [vmem:[%s8188 + $0x5f8] sm:$0xff]
    %v8381 = vld [vmem:[%s8188 + $0x600] sm:$0xff]
    %v8382 = vld [vmem:[%s8188 + $0x608] sm:$0xff]
    %v8383 = vld [vmem:[%s8188 + $0x610] sm:$0xff]
    %v8384 = vld [vmem:[%s8188 + $0x618] sm:$0xff]
    %v8385 = vld [vmem:[%s8188 + $0x620] sm:$0xff]
    %v8386 = vld [vmem:[%s8188 + $0x628] sm:$0xff]
    %v8387 = vld [vmem:[%s8188 + $0x630] sm:$0xff]
    %v8388 = vld [vmem:[%s8188 + $0x638] sm:$0xff]
    %v8389 = vld [vmem:[%s8188 + $0x640] sm:$0xff]
    %v8390 = vld [vmem:[%s8188 + $0x648] sm:$0xff]
    %v8391 = vld [vmem:[%s8188 + $0x650] sm:$0xff]
    %v8392 = vld [vmem:[%s8188 + $0x658] sm:$0xff]
    %v8393 = vld [vmem:[%s8188 + $0x660] sm:$0xff]
    %v8394 = vld [vmem:[%s8188 + $0x668] sm:$0xff]
    %v8395 = vld [vmem:[%s8188 + $0x670] sm:$0xff]
    %v8396 = vld [vmem:[%s8188 + $0x678] sm:$0xff]
    %v8397 = vld [vmem:[%s8188 + $0x680] sm:$0xff]
    %v8398 = vld [vmem:[%s8188 + $0x688] sm:$0xff]
    %v8399 = vld [vmem:[%s8188 + $0x690] sm:$0xff]
    %v8400 = vld [vmem:[%s8188 + $0x698] sm:$0xff]
    %v8401 = vld [vmem:[%s8188 + $0x6a0] sm:$0xff]
    %v8402 = vld [vmem:[%s8188 + $0x6a8] sm:$0xff]
    %v8403 = vld [vmem:[%s8188 + $0x6b0] sm:$0xff]
    %v8404 = vld [vmem:[%s8188 + $0x6b8] sm:$0xff]
    %v8405 = vld [vmem:[%s8188 + $0x6c0] sm:$0xff]
    %v8406 = vld [vmem:[%s8188 + $0x6c8] sm:$0xff]
    %v8407 = vld [vmem:[%s8188 + $0x6d0] sm:$0xff]
    %v8408 = vld [vmem:[%s8188 + $0x6d8] sm:$0xff]
    %v8409 = vld [vmem:[%s8188 + $0x6e0] sm:$0xff]
    %v8410 = vld [vmem:[%s8188 + $0x6e8] sm:$0xff]
    %v8411 = vld [vmem:[%s8188 + $0x6f0] sm:$0xff]
    %v8412 = vld [vmem:[%s8188 + $0x6f8] sm:$0xff]
    %v8413 = vld [vmem:[%s8188 + $0x700] sm:$0xff]
    %v8414 = vld [vmem:[%s8188 + $0x708] sm:$0xff]
    %v8415 = vld [vmem:[%s8188 + $0x710] sm:$0xff]
    %v8416 = vld [vmem:[%s8188 + $0x718] sm:$0xff]
    %v8417 = vld [vmem:[%s8188 + $0x720] sm:$0xff]
    %v8418 = vld [vmem:[%s8188 + $0x728] sm:$0xff]
    %v8419 = vld [vmem:[%s8188 + $0x730] sm:$0xff]
    %v8420 = vld [vmem:[%s8188 + $0x738] sm:$0xff]
    %v8421 = vld [vmem:[%s8188 + $0x740] sm:$0xff]
    %v8422 = vld [vmem:[%s8188 + $0x748] sm:$0xff]
    %v8423 = vld [vmem:[%s8188 + $0x750] sm:$0xff]
    %v8424 = vld [vmem:[%s8188 + $0x758] sm:$0xff]
    %v8425 = vld [vmem:[%s8188 + $0x760] sm:$0xff]
    %v8426 = vld [vmem:[%s8188 + $0x768] sm:$0xff]
    %v8427 = vld [vmem:[%s8188 + $0x770] sm:$0xff]
    %v8428 = vld [vmem:[%s8188 + $0x778] sm:$0xff]
    %v8429 = vld [vmem:[%s8188 + $0x780] sm:$0xff]
    %v8430 = vld [vmem:[%s8188 + $0x788] sm:$0xff]
    %v8431 = vld [vmem:[%s8188 + $0x790] sm:$0xff]
    %v8432 = vld [vmem:[%s8188 + $0x798] sm:$0xff]
    %v8433 = vld [vmem:[%s8188 + $0x7a0] sm:$0xff]
    %v8434 = vld [vmem:[%s8188 + $0x7a8] sm:$0xff]
    %v8435 = vld [vmem:[%s8188 + $0x7b0] sm:$0xff]
    %v8436 = vld [vmem:[%s8188 + $0x7b8] sm:$0xff]
    %v8437 = vld [vmem:[%s8188 + $0x7c0] sm:$0xff]
    %v8438 = vld [vmem:[%s8188 + $0x7c8] sm:$0xff]
    %v8439 = vpack.c.bf16 %v8191, %v8189
    %v8440 = vpack.c.bf16 %v8192, %v8190
    %v8441 = vpack.c.bf16 %v8195, %v8193
    %v8442 = vpack.c.bf16 %v8196, %v8194
    %v8443 = vpack.c.bf16 %v8199, %v8197
    %v8444 = vpack.c.bf16 %v8200, %v8198
    %v8445 = vpack.c.bf16 %v8203, %v8201
    %v8446 = vpack.c.bf16 %v8204, %v8202
    %v8447 = vpack.c.bf16 %v8207, %v8205
    %v8448 = vpack.c.bf16 %v8208, %v8206
    %v8449 = vpack.c.bf16 %v8211, %v8209
    %v8450 = vpack.c.bf16 %v8212, %v8210
    %v8451 = vpack.c.bf16 %v8215, %v8213
    %v8452 = vpack.c.bf16 %v8216, %v8214
    %v8453 = vpack.c.bf16 %v8219, %v8217
    %v8454 = vpack.c.bf16 %v8220, %v8218
    %v8455 = vpack.c.bf16 %v8223, %v8221
    %v8456 = vpack.c.bf16 %v8224, %v8222
    %v8457 = vpack.c.bf16 %v8227, %v8225
    %v8458 = vpack.c.bf16 %v8228, %v8226
    %v8459 = vpack.c.bf16 %v8231, %v8229
    %v8460 = vpack.c.bf16 %v8232, %v8230
    %v8461 = vpack.c.bf16 %v8235, %v8233
    %v8462 = vpack.c.bf16 %v8236, %v8234
    %v8463 = vpack.c.bf16 %v8239, %v8237
    %v8464 = vpack.c.bf16 %v8240, %v8238
    %v8465 = vpack.c.bf16 %v8243, %v8241
    %v8466 = vpack.c.bf16 %v8244, %v8242
    %v8467 = vpack.c.bf16 %v8247, %v8245
    %v8468 = vpack.c.bf16 %v8248, %v8246
    %v8469 = vpack.c.bf16 %v8251, %v8249
    %v8470 = vpack.c.bf16 %v8252, %v8250
    %v8471 = vpack.c.bf16 %v8255, %v8253
    %v8472 = vpack.c.bf16 %v8256, %v8254
    %v8473 = vpack.c.bf16 %v8259, %v8257
    %v8474 = vpack.c.bf16 %v8260, %v8258
    %v8475 = vpack.c.bf16 %v8263, %v8261
    %v8476 = vpack.c.bf16 %v8264, %v8262
    %v8477 = vpack.c.bf16 %v8267, %v8265
    %v8478 = vpack.c.bf16 %v8268, %v8266
    %v8479 = vpack.c.bf16 %v8271, %v8269
    %v8480 = vpack.c.bf16 %v8272, %v8270
    %v8481 = vpack.c.bf16 %v8275, %v8273
    %v8482 = vpack.c.bf16 %v8276, %v8274
    %v8483 = vpack.c.bf16 %v8279, %v8277
    %v8484 = vpack.c.bf16 %v8280, %v8278
    %v8485 = vpack.c.bf16 %v8283, %v8281
    %v8486 = vpack.c.bf16 %v8284, %v8282
    %v8487 = vpack.c.bf16 %v8287, %v8285
    %v8488 = vpack.c.bf16 %v8288, %v8286
    %v8489 = vpack.c.bf16 %v8291, %v8289
    %v8490 = vpack.c.bf16 %v8292, %v8290
    %v8491 = vpack.c.bf16 %v8295, %v8293
    %v8492 = vpack.c.bf16 %v8296, %v8294
    %v8493 = vpack.c.bf16 %v8299, %v8297
    %v8494 = vpack.c.bf16 %v8300, %v8298
    %v8495 = vpack.c.bf16 %v8303, %v8301
    %v8496 = vpack.c.bf16 %v8304, %v8302
    %v8497 = vpack.c.bf16 %v8307, %v8305
    %v8498 = vpack.c.bf16 %v8308, %v8306
    %v8499 = vpack.c.bf16 %v8311, %v8309
    %v8500 = vpack.c.bf16 %v8312, %v8310
    %v8501 = vpack.c.bf16 %v8315, %v8313
    %v8502 = vpack.c.bf16 %v8316, %v8314
    %v8503 = vpack.c.bf16 %v8319, %v8317
    %v8504 = vpack.c.bf16 %v8320, %v8318
    %v8505 = vpack.c.bf16 %v8323, %v8321
    %v8506 = vpack.c.bf16 %v8324, %v8322
    %v8507 = vpack.c.bf16 %v8327, %v8325
    %v8508 = vpack.c.bf16 %v8328, %v8326
    %v8509 = vpack.c.bf16 %v8331, %v8329
    %v8510 = vpack.c.bf16 %v8332, %v8330
    %v8511 = vpack.c.bf16 %v8335, %v8333
    %v8512 = vpack.c.bf16 %v8336, %v8334
    %v8513 = vpack.c.bf16 %v8339, %v8337
    %v8514 = vpack.c.bf16 %v8340, %v8338
    %v8515 = vpack.c.bf16 %v8343, %v8341
    %v8516 = vpack.c.bf16 %v8344, %v8342
    %v8517 = vpack.c.bf16 %v8347, %v8345
    %v8518 = vpack.c.bf16 %v8348, %v8346
    %v8519 = vpack.c.bf16 %v8351, %v8349
    %v8520 = vpack.c.bf16 %v8352, %v8350
    %v8521 = vpack.c.bf16 %v8355, %v8353
    %v8522 = vpack.c.bf16 %v8356, %v8354
    %v8523 = vpack.c.bf16 %v8359, %v8357
    %v8524 = vpack.c.bf16 %v8360, %v8358
    %v8525 = vpack.c.bf16 %v8363, %v8361
    %v8526 = vpack.c.bf16 %v8364, %v8362
    %v8527 = vpack.c.bf16 %v8367, %v8365
    %v8528 = vpack.c.bf16 %v8368, %v8366
    %v8529 = vpack.c.bf16 %v8371, %v8369
    %v8530 = vpack.c.bf16 %v8372, %v8370
    %v8531 = vpack.c.bf16 %v8375, %v8373
    %v8532 = vpack.c.bf16 %v8376, %v8374
    %v8533 = vpack.c.bf16 %v8379, %v8377
    %v8534 = vpack.c.bf16 %v8380, %v8378
    %v8535 = vpack.c.bf16 %v8383, %v8381
    %v8536 = vpack.c.bf16 %v8384, %v8382
    %v8537 = vpack.c.bf16 %v8387, %v8385
    %v8538 = vpack.c.bf16 %v8388, %v8386
    %v8539 = vpack.c.bf16 %v8391, %v8389
    %v8540 = vpack.c.bf16 %v8392, %v8390
    %v8541 = vpack.c.bf16 %v8395, %v8393
    %v8542 = vpack.c.bf16 %v8396, %v8394
    %v8543 = vpack.c.bf16 %v8399, %v8397
    %v8544 = vpack.c.bf16 %v8400, %v8398
    %v8545 = vpack.c.bf16 %v8403, %v8401
    %v8546 = vpack.c.bf16 %v8404, %v8402
    %v8547 = vpack.c.bf16 %v8407, %v8405
    %v8548 = vpack.c.bf16 %v8408, %v8406
    %v8549 = vpack.c.bf16 %v8411, %v8409
    %v8550 = vpack.c.bf16 %v8412, %v8410
    %v8551 = vpack.c.bf16 %v8415, %v8413
    %v8552 = vpack.c.bf16 %v8416, %v8414
    %v8553 = vpack.c.bf16 %v8419, %v8417
    %v8554 = vpack.c.bf16 %v8420, %v8418
    %v8555 = vpack.c.bf16 %v8423, %v8421
    %v8556 = vpack.c.bf16 %v8424, %v8422
    %v8557 = vpack.c.bf16 %v8427, %v8425
    %v8558 = vpack.c.bf16 %v8428, %v8426
    %v8559 = vpack.c.bf16 %v8431, %v8429
    %v8560 = vpack.c.bf16 %v8432, %v8430
    %v8561 = vpack.c.bf16 %v8435, %v8433
    %v8562 = vpack.c.bf16 %v8436, %v8434
    %v8563 = vpack.c.bf16 %v8437, %v8437
    %v8564 = vpack.c.bf16 %v8438, %v8438
    %v8566 = vsel %vm3041, %v8563, 0
    %v8569 = vsel %vm3041, %v8564, 0
    %8571 = vmatpush.bf16.msra.mxu0 %v8453
    %8572 = vmatpush.bf16.msra.mxu0 %v8451
    %8573 = vmatpush.bf16.msra.mxu0 %v8449
    %8574 = vmatpush.bf16.msra.mxu0 %v8447
    %8575 = vmatpush.bf16.msra.mxu0 %v8445
    %8576 = vmatpush.bf16.msra.mxu0 %v8443
    %8577 = vmatpush.bf16.msra.mxu0 %v8441
    %8578 = vmatpush.bf16.msra.mxu0 %v8439
    %8579 = vmatmul.bf16.gmra.mxu0 %v2104
    %v8580 = vpop.f32.mrf.mxu0
    %v8581 = vadd.f32 0.0, %v8580
    %v8582 = vpop.f32.mrf.mxu0
    %v8583 = vadd.f32 0.0, %v8582
    %8584 = vmatmul.bf16.gmra.mxu0 %v2112
    %v8585 = vpop.f32.mrf.mxu0
    %v8586 = vadd.f32 0.0, %v8585
    %v8587 = vpop.f32.mrf.mxu0
    %v8588 = vadd.f32 0.0, %v8587
    %8589 = vmatmul.bf16.gmra.mxu0 %v2120
    %v8590 = vpop.f32.mrf.mxu0
    %v8591 = vadd.f32 0.0, %v8590
    %v8592 = vpop.f32.mrf.mxu0
    %v8593 = vadd.f32 0.0, %v8592
    %8594 = vmatmul.bf16.gmra.mxu0 %v2128
    %v8595 = vpop.f32.mrf.mxu0
    %v8596 = vadd.f32 0.0, %v8595
    %v8597 = vpop.f32.mrf.mxu0
    %v8598 = vadd.f32 0.0, %v8597
    %8599 = vmatmul.bf16.gmra.mxu0 %v2136
    %v8600 = vpop.f32.mrf.mxu0
    %v8601 = vadd.f32 0.0, %v8600
    %v8602 = vpop.f32.mrf.mxu0
    %v8603 = vadd.f32 0.0, %v8602
    %8604 = vmatmul.bf16.gmra.mxu0 %v2144
    %v8605 = vpop.f32.mrf.mxu0
    %v8606 = vadd.f32 0.0, %v8605
    %v8607 = vpop.f32.mrf.mxu0
    %v8608 = vadd.f32 0.0, %v8607
    %8609 = vmatmul.bf16.gmra.mxu0 %v2152
    %v8610 = vpop.f32.mrf.mxu0
    %v8611 = vadd.f32 0.0, %v8610
    %v8612 = vpop.f32.mrf.mxu0
    %v8613 = vadd.f32 0.0, %v8612
    %8614 = vmatmul.bf16.gmra.mxu0 %v2160
    %v8615 = vpop.f32.mrf.mxu0
    %v8616 = vadd.f32 0.0, %v8615
    %v8617 = vpop.f32.mrf.mxu0
    %v8618 = vadd.f32 0.0, %v8617
    %8619 = vmatmul.bf16.gmra.mxu0 %v2168
    %v8620 = vpop.f32.mrf.mxu0
    %v8621 = vadd.f32 0.0, %v8620
    %v8622 = vpop.f32.mrf.mxu0
    %v8623 = vadd.f32 0.0, %v8622
    %8624 = vmatmul.bf16.gmra.mxu0 %v2176
    %v8625 = vpop.f32.mrf.mxu0
    %v8626 = vadd.f32 0.0, %v8625
    %v8627 = vpop.f32.mrf.mxu0
    %v8628 = vadd.f32 0.0, %v8627
    %8629 = vmatmul.bf16.gmra.mxu0 %v2184
    %v8630 = vpop.f32.mrf.mxu0
    %v8631 = vadd.f32 0.0, %v8630
    %v8632 = vpop.f32.mrf.mxu0
    %v8633 = vadd.f32 0.0, %v8632
    %8634 = vmatmul.bf16.gmra.mxu0 %v2192
    %v8635 = vpop.f32.mrf.mxu0
    %v8636 = vadd.f32 0.0, %v8635
    %v8637 = vpop.f32.mrf.mxu0
    %v8638 = vadd.f32 0.0, %v8637
    %8639 = vmatmul.bf16.gmra.mxu0 %v2200
    %v8640 = vpop.f32.mrf.mxu0
    %v8641 = vadd.f32 0.0, %v8640
    %v8642 = vpop.f32.mrf.mxu0
    %v8643 = vadd.f32 0.0, %v8642
    %8644 = vmatmul.bf16.gmra.mxu0 %v2208
    %v8645 = vpop.f32.mrf.mxu0
    %v8646 = vadd.f32 0.0, %v8645
    %v8647 = vpop.f32.mrf.mxu0
    %v8648 = vadd.f32 0.0, %v8647
    %8649 = vmatmul.bf16.gmra.mxu0 %v2216
    %v8650 = vpop.f32.mrf.mxu0
    %v8651 = vadd.f32 0.0, %v8650
    %v8652 = vpop.f32.mrf.mxu0
    %v8653 = vadd.f32 0.0, %v8652
    %8654 = vmatmul.bf16.gmra.mxu0 %v2224
    %v8655 = vpop.f32.mrf.mxu0
    %v8656 = vadd.f32 0.0, %v8655
    %v8657 = vpop.f32.mrf.mxu0
    %v8658 = vadd.f32 0.0, %v8657
    %8659 = vmatmul.bf16.gmra.mxu0 %v2232
    %v8660 = vpop.f32.mrf.mxu0
    %v8661 = vadd.f32 0.0, %v8660
    %v8662 = vpop.f32.mrf.mxu0
    %v8663 = vadd.f32 0.0, %v8662
    %8664 = vmatmul.bf16.gmra.mxu0 %v2240
    %v8665 = vpop.f32.mrf.mxu0
    %v8666 = vadd.f32 0.0, %v8665
    %v8667 = vpop.f32.mrf.mxu0
    %v8668 = vadd.f32 0.0, %v8667
    %8669 = vmatmul.bf16.gmra.mxu0 %v2248
    %v8670 = vpop.f32.mrf.mxu0
    %v8671 = vadd.f32 0.0, %v8670
    %v8672 = vpop.f32.mrf.mxu0
    %v8673 = vadd.f32 0.0, %v8672
    %8674 = vmatmul.bf16.gmra.mxu0 %v2256
    %v8675 = vpop.f32.mrf.mxu0
    %v8676 = vadd.f32 0.0, %v8675
    %v8677 = vpop.f32.mrf.mxu0
    %v8678 = vadd.f32 0.0, %v8677
    %8679 = vmatmul.bf16.gmra.mxu0 %v2264
    %v8680 = vpop.f32.mrf.mxu0
    %v8681 = vadd.f32 0.0, %v8680
    %v8682 = vpop.f32.mrf.mxu0
    %v8683 = vadd.f32 0.0, %v8682
    %8684 = vmatmul.bf16.gmra.mxu0 %v2272
    %v8685 = vpop.f32.mrf.mxu0
    %v8686 = vadd.f32 0.0, %v8685
    %v8687 = vpop.f32.mrf.mxu0
    %v8688 = vadd.f32 0.0, %v8687
    %8689 = vmatmul.bf16.gmra.mxu0 %v2280
    %v8690 = vpop.f32.mrf.mxu0
    %v8691 = vadd.f32 0.0, %v8690
    %v8692 = vpop.f32.mrf.mxu0
    %v8693 = vadd.f32 0.0, %v8692
    %8694 = vmatmul.bf16.gmra.mxu0 %v2288
    %v8695 = vpop.f32.mrf.mxu0
    %v8696 = vadd.f32 0.0, %v8695
    %v8697 = vpop.f32.mrf.mxu0
    %v8698 = vadd.f32 0.0, %v8697
    %8699 = vmatmul.bf16.gmra.mxu0 %v2296
    %v8700 = vpop.f32.mrf.mxu0
    %v8701 = vadd.f32 0.0, %v8700
    %v8702 = vpop.f32.mrf.mxu0
    %v8703 = vadd.f32 0.0, %v8702
    %8704 = vmatmul.bf16.gmra.mxu0 %v2304
    %v8705 = vpop.f32.mrf.mxu0
    %v8706 = vadd.f32 0.0, %v8705
    %v8707 = vpop.f32.mrf.mxu0
    %v8708 = vadd.f32 0.0, %v8707
    %8709 = vmatmul.bf16.gmra.mxu0 %v2312
    %v8710 = vpop.f32.mrf.mxu0
    %v8711 = vadd.f32 0.0, %v8710
    %v8712 = vpop.f32.mrf.mxu0
    %v8713 = vadd.f32 0.0, %v8712
    %8714 = vmatmul.bf16.gmra.mxu0 %v2320
    %v8715 = vpop.f32.mrf.mxu0
    %v8716 = vadd.f32 0.0, %v8715
    %v8717 = vpop.f32.mrf.mxu0
    %v8718 = vadd.f32 0.0, %v8717
    %8719 = vmatmul.bf16.gmra.mxu0 %v2328
    %v8720 = vpop.f32.mrf.mxu0
    %v8721 = vadd.f32 0.0, %v8720
    %v8722 = vpop.f32.mrf.mxu0
    %v8723 = vadd.f32 0.0, %v8722
    %8724 = vmatmul.bf16.gmra.mxu0 %v2336
    %v8725 = vpop.f32.mrf.mxu0
    %v8726 = vadd.f32 0.0, %v8725
    %v8727 = vpop.f32.mrf.mxu0
    %v8728 = vadd.f32 0.0, %v8727
    %8729 = vmatmul.bf16.gmra.mxu0 %v2344
    %v8730 = vpop.f32.mrf.mxu0
    %v8731 = vadd.f32 0.0, %v8730
    %v8732 = vpop.f32.mrf.mxu0
    %v8733 = vadd.f32 0.0, %v8732
    %8734 = vmatmul.bf16.gmra.mxu0 %v2352
    %v8735 = vpop.f32.mrf.mxu0
    %v8736 = vadd.f32 0.0, %v8735
    %v8737 = vpop.f32.mrf.mxu0
    %v8738 = vadd.f32 0.0, %v8737
    %8739 = vmatmul.bf16.gmra.mxu0 %v2360
    %v8740 = vpop.f32.mrf.mxu0
    %v8741 = vadd.f32 0.0, %v8740
    %v8742 = vpop.f32.mrf.mxu0
    %v8743 = vadd.f32 0.0, %v8742
    %8744 = vmatmul.bf16.gmra.mxu0 %v2368
    %v8745 = vpop.f32.mrf.mxu0
    %v8746 = vadd.f32 0.0, %v8745
    %v8747 = vpop.f32.mrf.mxu0
    %v8748 = vadd.f32 0.0, %v8747
    %8749 = vmatmul.bf16.gmra.mxu0 %v2376
    %v8750 = vpop.f32.mrf.mxu0
    %v8751 = vadd.f32 0.0, %v8750
    %v8752 = vpop.f32.mrf.mxu0
    %v8753 = vadd.f32 0.0, %v8752
    %8754 = vmatmul.bf16.gmra.mxu0 %v2384
    %v8755 = vpop.f32.mrf.mxu0
    %v8756 = vadd.f32 0.0, %v8755
    %v8757 = vpop.f32.mrf.mxu0
    %v8758 = vadd.f32 0.0, %v8757
    %8759 = vmatmul.bf16.gmra.mxu0 %v2392
    %v8760 = vpop.f32.mrf.mxu0
    %v8761 = vadd.f32 0.0, %v8760
    %v8762 = vpop.f32.mrf.mxu0
    %v8763 = vadd.f32 0.0, %v8762
    %8764 = vmatmul.bf16.gmra.mxu0 %v2400
    %v8765 = vpop.f32.mrf.mxu0
    %v8766 = vadd.f32 0.0, %v8765
    %v8767 = vpop.f32.mrf.mxu0
    %v8768 = vadd.f32 0.0, %v8767
    %8769 = vmatmul.bf16.gmra.mxu0 %v2408
    %v8770 = vpop.f32.mrf.mxu0
    %v8771 = vadd.f32 0.0, %v8770
    %v8772 = vpop.f32.mrf.mxu0
    %v8773 = vadd.f32 0.0, %v8772
    %8774 = vmatmul.bf16.gmra.mxu0 %v2416
    %v8775 = vpop.f32.mrf.mxu0
    %v8776 = vadd.f32 0.0, %v8775
    %v8777 = vpop.f32.mrf.mxu0
    %v8778 = vadd.f32 0.0, %v8777
    %8779 = vmatmul.bf16.gmra.mxu0 %v2424
    %v8780 = vpop.f32.mrf.mxu0
    %v8781 = vadd.f32 0.0, %v8780
    %v8782 = vpop.f32.mrf.mxu0
    %v8783 = vadd.f32 0.0, %v8782
    %8784 = vmatmul.bf16.gmra.mxu0 %v2432
    %v8785 = vpop.f32.mrf.mxu0
    %v8786 = vadd.f32 0.0, %v8785
    %v8787 = vpop.f32.mrf.mxu0
    %v8788 = vadd.f32 0.0, %v8787
    %8789 = vmatmul.bf16.gmra.mxu0 %v2440
    %v8790 = vpop.f32.mrf.mxu0
    %v8791 = vadd.f32 0.0, %v8790
    %v8792 = vpop.f32.mrf.mxu0
    %v8793 = vadd.f32 0.0, %v8792
    %8794 = vmatmul.bf16.gmra.mxu0 %v2448
    %v8795 = vpop.f32.mrf.mxu0
    %v8796 = vadd.f32 0.0, %v8795
    %v8797 = vpop.f32.mrf.mxu0
    %v8798 = vadd.f32 0.0, %v8797
    %8799 = vmatmul.bf16.gmra.mxu0 %v2456
    %v8800 = vpop.f32.mrf.mxu0
    %v8801 = vadd.f32 0.0, %v8800
    %v8802 = vpop.f32.mrf.mxu0
    %v8803 = vadd.f32 0.0, %v8802
    %8804 = vmatmul.bf16.gmra.mxu0 %v2464
    %v8805 = vpop.f32.mrf.mxu0
    %v8806 = vadd.f32 0.0, %v8805
    %v8807 = vpop.f32.mrf.mxu0
    %v8808 = vadd.f32 0.0, %v8807
    %8809 = vmatmul.bf16.gmra.mxu0 %v2472
    %v8810 = vpop.f32.mrf.mxu0
    %v8811 = vadd.f32 0.0, %v8810
    %v8812 = vpop.f32.mrf.mxu0
    %v8813 = vadd.f32 0.0, %v8812
    %8814 = vmatmul.bf16.gmra.mxu0 %v2480
    %v8815 = vpop.f32.mrf.mxu0
    %v8816 = vadd.f32 0.0, %v8815
    %v8817 = vpop.f32.mrf.mxu0
    %v8818 = vadd.f32 0.0, %v8817
    %8819 = vmatmul.bf16.gmra.mxu0 %v2488
    %v8820 = vpop.f32.mrf.mxu0
    %v8821 = vadd.f32 0.0, %v8820
    %v8822 = vpop.f32.mrf.mxu0
    %v8823 = vadd.f32 0.0, %v8822
    %8824 = vmatmul.bf16.gmra.mxu0 %v2496
    %v8825 = vpop.f32.mrf.mxu0
    %v8826 = vadd.f32 0.0, %v8825
    %v8827 = vpop.f32.mrf.mxu0
    %v8828 = vadd.f32 0.0, %v8827
    %8829 = vmatmul.bf16.gmra.mxu0 %v2504
    %v8830 = vpop.f32.mrf.mxu0
    %v8831 = vadd.f32 0.0, %v8830
    %v8832 = vpop.f32.mrf.mxu0
    %v8833 = vadd.f32 0.0, %v8832
    %8834 = vmatmul.bf16.gmra.mxu0 %v2512
    %v8835 = vpop.f32.mrf.mxu0
    %v8836 = vadd.f32 0.0, %v8835
    %v8837 = vpop.f32.mrf.mxu0
    %v8838 = vadd.f32 0.0, %v8837
    %8839 = vdwg.mxu0
    %8840 = vmatpush.bf16.msra.mxu0 %v8469
    %8841 = vmatpush.bf16.msra.mxu0 %v8467
    %8842 = vmatpush.bf16.msra.mxu0 %v8465
    %8843 = vmatpush.bf16.msra.mxu0 %v8463
    %8844 = vmatpush.bf16.msra.mxu0 %v8461
    %8845 = vmatpush.bf16.msra.mxu0 %v8459
    %8846 = vmatpush.bf16.msra.mxu0 %v8457
    %8847 = vmatpush.bf16.msra.mxu0 %v8455
    %8848 = vmatmul.bf16.gmra.mxu0 %v2105
    %v8849 = vpop.f32.mrf.mxu0
    %v8850 = vadd.f32 %v8581, %v8849
    %v8851 = vpop.f32.mrf.mxu0
    %v8852 = vadd.f32 %v8583, %v8851
    %8853 = vmatmul.bf16.gmra.mxu0 %v2113
    %v8854 = vpop.f32.mrf.mxu0
    %v8855 = vadd.f32 %v8586, %v8854
    %v8856 = vpop.f32.mrf.mxu0
    %v8857 = vadd.f32 %v8588, %v8856
    %8858 = vmatmul.bf16.gmra.mxu0 %v2121
    %v8859 = vpop.f32.mrf.mxu0
    %v8860 = vadd.f32 %v8591, %v8859
    %v8861 = vpop.f32.mrf.mxu0
    %v8862 = vadd.f32 %v8593, %v8861
    %8863 = vmatmul.bf16.gmra.mxu0 %v2129
    %v8864 = vpop.f32.mrf.mxu0
    %v8865 = vadd.f32 %v8596, %v8864
    %v8866 = vpop.f32.mrf.mxu0
    %v8867 = vadd.f32 %v8598, %v8866
    %8868 = vmatmul.bf16.gmra.mxu0 %v2137
    %v8869 = vpop.f32.mrf.mxu0
    %v8870 = vadd.f32 %v8601, %v8869
    %v8871 = vpop.f32.mrf.mxu0
    %v8872 = vadd.f32 %v8603, %v8871
    %8873 = vmatmul.bf16.gmra.mxu0 %v2145
    %v8874 = vpop.f32.mrf.mxu0
    %v8875 = vadd.f32 %v8606, %v8874
    %v8876 = vpop.f32.mrf.mxu0
    %v8877 = vadd.f32 %v8608, %v8876
    %8878 = vmatmul.bf16.gmra.mxu0 %v2153
    %v8879 = vpop.f32.mrf.mxu0
    %v8880 = vadd.f32 %v8611, %v8879
    %v8881 = vpop.f32.mrf.mxu0
    %v8882 = vadd.f32 %v8613, %v8881
    %8883 = vmatmul.bf16.gmra.mxu0 %v2161
    %v8884 = vpop.f32.mrf.mxu0
    %v8885 = vadd.f32 %v8616, %v8884
    %v8886 = vpop.f32.mrf.mxu0
    %v8887 = vadd.f32 %v8618, %v8886
    %8888 = vmatmul.bf16.gmra.mxu0 %v2169
    %v8889 = vpop.f32.mrf.mxu0
    %v8890 = vadd.f32 %v8621, %v8889
    %v8891 = vpop.f32.mrf.mxu0
    %v8892 = vadd.f32 %v8623, %v8891
    %8893 = vmatmul.bf16.gmra.mxu0 %v2177
    %v8894 = vpop.f32.mrf.mxu0
    %v8895 = vadd.f32 %v8626, %v8894
    %v8896 = vpop.f32.mrf.mxu0
    %v8897 = vadd.f32 %v8628, %v8896
    %8898 = vmatmul.bf16.gmra.mxu0 %v2185
    %v8899 = vpop.f32.mrf.mxu0
    %v8900 = vadd.f32 %v8631, %v8899
    %v8901 = vpop.f32.mrf.mxu0
    %v8902 = vadd.f32 %v8633, %v8901
    %8903 = vmatmul.bf16.gmra.mxu0 %v2193
    %v8904 = vpop.f32.mrf.mxu0
    %v8905 = vadd.f32 %v8636, %v8904
    %v8906 = vpop.f32.mrf.mxu0
    %v8907 = vadd.f32 %v8638, %v8906
    %8908 = vmatmul.bf16.gmra.mxu0 %v2201
    %v8909 = vpop.f32.mrf.mxu0
    %v8910 = vadd.f32 %v8641, %v8909
    %v8911 = vpop.f32.mrf.mxu0
    %v8912 = vadd.f32 %v8643, %v8911
    %8913 = vmatmul.bf16.gmra.mxu0 %v2209
    %v8914 = vpop.f32.mrf.mxu0
    %v8915 = vadd.f32 %v8646, %v8914
    %v8916 = vpop.f32.mrf.mxu0
    %v8917 = vadd.f32 %v8648, %v8916
    %8918 = vmatmul.bf16.gmra.mxu0 %v2217
    %v8919 = vpop.f32.mrf.mxu0
    %v8920 = vadd.f32 %v8651, %v8919
    %v8921 = vpop.f32.mrf.mxu0
    %v8922 = vadd.f32 %v8653, %v8921
    %8923 = vmatmul.bf16.gmra.mxu0 %v2225
    %v8924 = vpop.f32.mrf.mxu0
    %v8925 = vadd.f32 %v8656, %v8924
    %v8926 = vpop.f32.mrf.mxu0
    %v8927 = vadd.f32 %v8658, %v8926
    %8928 = vmatmul.bf16.gmra.mxu0 %v2233
    %v8929 = vpop.f32.mrf.mxu0
    %v8930 = vadd.f32 %v8661, %v8929
    %v8931 = vpop.f32.mrf.mxu0
    %v8932 = vadd.f32 %v8663, %v8931
    %8933 = vmatmul.bf16.gmra.mxu0 %v2241
    %v8934 = vpop.f32.mrf.mxu0
    %v8935 = vadd.f32 %v8666, %v8934
    %v8936 = vpop.f32.mrf.mxu0
    %v8937 = vadd.f32 %v8668, %v8936
    %8938 = vmatmul.bf16.gmra.mxu0 %v2249
    %v8939 = vpop.f32.mrf.mxu0
    %v8940 = vadd.f32 %v8671, %v8939
    %v8941 = vpop.f32.mrf.mxu0
    %v8942 = vadd.f32 %v8673, %v8941
    %8943 = vmatmul.bf16.gmra.mxu0 %v2257
    %v8944 = vpop.f32.mrf.mxu0
    %v8945 = vadd.f32 %v8676, %v8944
    %v8946 = vpop.f32.mrf.mxu0
    %v8947 = vadd.f32 %v8678, %v8946
    %8948 = vmatmul.bf16.gmra.mxu0 %v2265
    %v8949 = vpop.f32.mrf.mxu0
    %v8950 = vadd.f32 %v8681, %v8949
    %v8951 = vpop.f32.mrf.mxu0
    %v8952 = vadd.f32 %v8683, %v8951
    %8953 = vmatmul.bf16.gmra.mxu0 %v2273
    %v8954 = vpop.f32.mrf.mxu0
    %v8955 = vadd.f32 %v8686, %v8954
    %v8956 = vpop.f32.mrf.mxu0
    %v8957 = vadd.f32 %v8688, %v8956
    %8958 = vmatmul.bf16.gmra.mxu0 %v2281
    %v8959 = vpop.f32.mrf.mxu0
    %v8960 = vadd.f32 %v8691, %v8959
    %v8961 = vpop.f32.mrf.mxu0
    %v8962 = vadd.f32 %v8693, %v8961
    %8963 = vmatmul.bf16.gmra.mxu0 %v2289
    %v8964 = vpop.f32.mrf.mxu0
    %v8965 = vadd.f32 %v8696, %v8964
    %v8966 = vpop.f32.mrf.mxu0
    %v8967 = vadd.f32 %v8698, %v8966
    %8968 = vmatmul.bf16.gmra.mxu0 %v2297
    %v8969 = vpop.f32.mrf.mxu0
    %v8970 = vadd.f32 %v8701, %v8969
    %v8971 = vpop.f32.mrf.mxu0
    %v8972 = vadd.f32 %v8703, %v8971
    %8973 = vmatmul.bf16.gmra.mxu0 %v2305
    %v8974 = vpop.f32.mrf.mxu0
    %v8975 = vadd.f32 %v8706, %v8974
    %v8976 = vpop.f32.mrf.mxu0
    %v8977 = vadd.f32 %v8708, %v8976
    %8978 = vmatmul.bf16.gmra.mxu0 %v2313
    %v8979 = vpop.f32.mrf.mxu0
    %v8980 = vadd.f32 %v8711, %v8979
    %v8981 = vpop.f32.mrf.mxu0
    %v8982 = vadd.f32 %v8713, %v8981
    %8983 = vmatmul.bf16.gmra.mxu0 %v2321
    %v8984 = vpop.f32.mrf.mxu0
    %v8985 = vadd.f32 %v8716, %v8984
    %v8986 = vpop.f32.mrf.mxu0
    %v8987 = vadd.f32 %v8718, %v8986
    %8988 = vmatmul.bf16.gmra.mxu0 %v2329
    %v8989 = vpop.f32.mrf.mxu0
    %v8990 = vadd.f32 %v8721, %v8989
    %v8991 = vpop.f32.mrf.mxu0
    %v8992 = vadd.f32 %v8723, %v8991
    %8993 = vmatmul.bf16.gmra.mxu0 %v2337
    %v8994 = vpop.f32.mrf.mxu0
    %v8995 = vadd.f32 %v8726, %v8994
    %v8996 = vpop.f32.mrf.mxu0
    %v8997 = vadd.f32 %v8728, %v8996
    %8998 = vmatmul.bf16.gmra.mxu0 %v2345
    %v8999 = vpop.f32.mrf.mxu0
    %v9000 = vadd.f32 %v8731, %v8999
    %v9001 = vpop.f32.mrf.mxu0
    %v9002 = vadd.f32 %v8733, %v9001
    %9003 = vmatmul.bf16.gmra.mxu0 %v2353
    %v9004 = vpop.f32.mrf.mxu0
    %v9005 = vadd.f32 %v8736, %v9004
    %v9006 = vpop.f32.mrf.mxu0
    %v9007 = vadd.f32 %v8738, %v9006
    %9008 = vmatmul.bf16.gmra.mxu0 %v2361
    %v9009 = vpop.f32.mrf.mxu0
    %v9010 = vadd.f32 %v8741, %v9009
    %v9011 = vpop.f32.mrf.mxu0
    %v9012 = vadd.f32 %v8743, %v9011
    %9013 = vmatmul.bf16.gmra.mxu0 %v2369
    %v9014 = vpop.f32.mrf.mxu0
    %v9015 = vadd.f32 %v8746, %v9014
    %v9016 = vpop.f32.mrf.mxu0
    %v9017 = vadd.f32 %v8748, %v9016
    %9018 = vmatmul.bf16.gmra.mxu0 %v2377
    %v9019 = vpop.f32.mrf.mxu0
    %v9020 = vadd.f32 %v8751, %v9019
    %v9021 = vpop.f32.mrf.mxu0
    %v9022 = vadd.f32 %v8753, %v9021
    %9023 = vmatmul.bf16.gmra.mxu0 %v2385
    %v9024 = vpop.f32.mrf.mxu0
    %v9025 = vadd.f32 %v8756, %v9024
    %v9026 = vpop.f32.mrf.mxu0
    %v9027 = vadd.f32 %v8758, %v9026
    %9028 = vmatmul.bf16.gmra.mxu0 %v2393
    %v9029 = vpop.f32.mrf.mxu0
    %v9030 = vadd.f32 %v8761, %v9029
    %v9031 = vpop.f32.mrf.mxu0
    %v9032 = vadd.f32 %v8763, %v9031
    %9033 = vmatmul.bf16.gmra.mxu0 %v2401
    %v9034 = vpop.f32.mrf.mxu0
    %v9035 = vadd.f32 %v8766, %v9034
    %v9036 = vpop.f32.mrf.mxu0
    %v9037 = vadd.f32 %v8768, %v9036
    %9038 = vmatmul.bf16.gmra.mxu0 %v2409
    %v9039 = vpop.f32.mrf.mxu0
    %v9040 = vadd.f32 %v8771, %v9039
    %v9041 = vpop.f32.mrf.mxu0
    %v9042 = vadd.f32 %v8773, %v9041
    %9043 = vmatmul.bf16.gmra.mxu0 %v2417
    %v9044 = vpop.f32.mrf.mxu0
    %v9045 = vadd.f32 %v8776, %v9044
    %v9046 = vpop.f32.mrf.mxu0
    %v9047 = vadd.f32 %v8778, %v9046
    %9048 = vmatmul.bf16.gmra.mxu0 %v2425
    %v9049 = vpop.f32.mrf.mxu0
    %v9050 = vadd.f32 %v8781, %v9049
    %v9051 = vpop.f32.mrf.mxu0
    %v9052 = vadd.f32 %v8783, %v9051
    %9053 = vmatmul.bf16.gmra.mxu0 %v2433
    %v9054 = vpop.f32.mrf.mxu0
    %v9055 = vadd.f32 %v8786, %v9054
    %v9056 = vpop.f32.mrf.mxu0
    %v9057 = vadd.f32 %v8788, %v9056
    %9058 = vmatmul.bf16.gmra.mxu0 %v2441
    %v9059 = vpop.f32.mrf.mxu0
    %v9060 = vadd.f32 %v8791, %v9059
    %v9061 = vpop.f32.mrf.mxu0
    %v9062 = vadd.f32 %v8793, %v9061
    %9063 = vmatmul.bf16.gmra.mxu0 %v2449
    %v9064 = vpop.f32.mrf.mxu0
    %v9065 = vadd.f32 %v8796, %v9064
    %v9066 = vpop.f32.mrf.mxu0
    %v9067 = vadd.f32 %v8798, %v9066
    %9068 = vmatmul.bf16.gmra.mxu0 %v2457
    %v9069 = vpop.f32.mrf.mxu0
    %v9070 = vadd.f32 %v8801, %v9069
    %v9071 = vpop.f32.mrf.mxu0
    %v9072 = vadd.f32 %v8803, %v9071
    %9073 = vmatmul.bf16.gmra.mxu0 %v2465
    %v9074 = vpop.f32.mrf.mxu0
    %v9075 = vadd.f32 %v8806, %v9074
    %v9076 = vpop.f32.mrf.mxu0
    %v9077 = vadd.f32 %v8808, %v9076
    %9078 = vmatmul.bf16.gmra.mxu0 %v2473
    %v9079 = vpop.f32.mrf.mxu0
    %v9080 = vadd.f32 %v8811, %v9079
    %v9081 = vpop.f32.mrf.mxu0
    %v9082 = vadd.f32 %v8813, %v9081
    %9083 = vmatmul.bf16.gmra.mxu0 %v2481
    %v9084 = vpop.f32.mrf.mxu0
    %v9085 = vadd.f32 %v8816, %v9084
    %v9086 = vpop.f32.mrf.mxu0
    %v9087 = vadd.f32 %v8818, %v9086
    %9088 = vmatmul.bf16.gmra.mxu0 %v2489
    %v9089 = vpop.f32.mrf.mxu0
    %v9090 = vadd.f32 %v8821, %v9089
    %v9091 = vpop.f32.mrf.mxu0
    %v9092 = vadd.f32 %v8823, %v9091
    %9093 = vmatmul.bf16.gmra.mxu0 %v2497
    %v9094 = vpop.f32.mrf.mxu0
    %v9095 = vadd.f32 %v8826, %v9094
    %v9096 = vpop.f32.mrf.mxu0
    %v9097 = vadd.f32 %v8828, %v9096
    %9098 = vmatmul.bf16.gmra.mxu0 %v2505
    %v9099 = vpop.f32.mrf.mxu0
    %v9100 = vadd.f32 %v8831, %v9099
    %v9101 = vpop.f32.mrf.mxu0
    %v9102 = vadd.f32 %v8833, %v9101
    %9103 = vmatmul.bf16.gmra.mxu0 %v2513
    %v9104 = vpop.f32.mrf.mxu0
    %v9105 = vadd.f32 %v8836, %v9104
    %v9106 = vpop.f32.mrf.mxu0
    %v9107 = vadd.f32 %v8838, %v9106
    %9108 = vdwg.mxu0
    %9109 = vmatpush.bf16.msra.mxu0 %v8485
    %9110 = vmatpush.bf16.msra.mxu0 %v8483
    %9111 = vmatpush.bf16.msra.mxu0 %v8481
    %9112 = vmatpush.bf16.msra.mxu0 %v8479
    %9113 = vmatpush.bf16.msra.mxu0 %v8477
    %9114 = vmatpush.bf16.msra.mxu0 %v8475
    %9115 = vmatpush.bf16.msra.mxu0 %v8473
    %9116 = vmatpush.bf16.msra.mxu0 %v8471
    %9117 = vmatmul.bf16.gmra.mxu0 %v2106
    %v9118 = vpop.f32.mrf.mxu0
    %v9119 = vadd.f32 %v8850, %v9118
    %v9120 = vpop.f32.mrf.mxu0
    %v9121 = vadd.f32 %v8852, %v9120
    %9122 = vmatmul.bf16.gmra.mxu0 %v2114
    %v9123 = vpop.f32.mrf.mxu0
    %v9124 = vadd.f32 %v8855, %v9123
    %v9125 = vpop.f32.mrf.mxu0
    %v9126 = vadd.f32 %v8857, %v9125
    %9127 = vmatmul.bf16.gmra.mxu0 %v2122
    %v9128 = vpop.f32.mrf.mxu0
    %v9129 = vadd.f32 %v8860, %v9128
    %v9130 = vpop.f32.mrf.mxu0
    %v9131 = vadd.f32 %v8862, %v9130
    %9132 = vmatmul.bf16.gmra.mxu0 %v2130
    %v9133 = vpop.f32.mrf.mxu0
    %v9134 = vadd.f32 %v8865, %v9133
    %v9135 = vpop.f32.mrf.mxu0
    %v9136 = vadd.f32 %v8867, %v9135
    %9137 = vmatmul.bf16.gmra.mxu0 %v2138
    %v9138 = vpop.f32.mrf.mxu0
    %v9139 = vadd.f32 %v8870, %v9138
    %v9140 = vpop.f32.mrf.mxu0
    %v9141 = vadd.f32 %v8872, %v9140
    %9142 = vmatmul.bf16.gmra.mxu0 %v2146
    %v9143 = vpop.f32.mrf.mxu0
    %v9144 = vadd.f32 %v8875, %v9143
    %v9145 = vpop.f32.mrf.mxu0
    %v9146 = vadd.f32 %v8877, %v9145
    %9147 = vmatmul.bf16.gmra.mxu0 %v2154
    %v9148 = vpop.f32.mrf.mxu0
    %v9149 = vadd.f32 %v8880, %v9148
    %v9150 = vpop.f32.mrf.mxu0
    %v9151 = vadd.f32 %v8882, %v9150
    %9152 = vmatmul.bf16.gmra.mxu0 %v2162
    %v9153 = vpop.f32.mrf.mxu0
    %v9154 = vadd.f32 %v8885, %v9153
    %v9155 = vpop.f32.mrf.mxu0
    %v9156 = vadd.f32 %v8887, %v9155
    %9157 = vmatmul.bf16.gmra.mxu0 %v2170
    %v9158 = vpop.f32.mrf.mxu0
    %v9159 = vadd.f32 %v8890, %v9158
    %v9160 = vpop.f32.mrf.mxu0
    %v9161 = vadd.f32 %v8892, %v9160
    %9162 = vmatmul.bf16.gmra.mxu0 %v2178
    %v9163 = vpop.f32.mrf.mxu0
    %v9164 = vadd.f32 %v8895, %v9163
    %v9165 = vpop.f32.mrf.mxu0
    %v9166 = vadd.f32 %v8897, %v9165
    %9167 = vmatmul.bf16.gmra.mxu0 %v2186
    %v9168 = vpop.f32.mrf.mxu0
    %v9169 = vadd.f32 %v8900, %v9168
    %v9170 = vpop.f32.mrf.mxu0
    %v9171 = vadd.f32 %v8902, %v9170
    %9172 = vmatmul.bf16.gmra.mxu0 %v2194
    %v9173 = vpop.f32.mrf.mxu0
    %v9174 = vadd.f32 %v8905, %v9173
    %v9175 = vpop.f32.mrf.mxu0
    %v9176 = vadd.f32 %v8907, %v9175
    %9177 = vmatmul.bf16.gmra.mxu0 %v2202
    %v9178 = vpop.f32.mrf.mxu0
    %v9179 = vadd.f32 %v8910, %v9178
    %v9180 = vpop.f32.mrf.mxu0
    %v9181 = vadd.f32 %v8912, %v9180
    %9182 = vmatmul.bf16.gmra.mxu0 %v2210
    %v9183 = vpop.f32.mrf.mxu0
    %v9184 = vadd.f32 %v8915, %v9183
    %v9185 = vpop.f32.mrf.mxu0
    %v9186 = vadd.f32 %v8917, %v9185
    %9187 = vmatmul.bf16.gmra.mxu0 %v2218
    %v9188 = vpop.f32.mrf.mxu0
    %v9189 = vadd.f32 %v8920, %v9188
    %v9190 = vpop.f32.mrf.mxu0
    %v9191 = vadd.f32 %v8922, %v9190
    %9192 = vmatmul.bf16.gmra.mxu0 %v2226
    %v9193 = vpop.f32.mrf.mxu0
    %v9194 = vadd.f32 %v8925, %v9193
    %v9195 = vpop.f32.mrf.mxu0
    %v9196 = vadd.f32 %v8927, %v9195
    %9197 = vmatmul.bf16.gmra.mxu0 %v2234
    %v9198 = vpop.f32.mrf.mxu0
    %v9199 = vadd.f32 %v8930, %v9198
    %v9200 = vpop.f32.mrf.mxu0
    %v9201 = vadd.f32 %v8932, %v9200
    %9202 = vmatmul.bf16.gmra.mxu0 %v2242
    %v9203 = vpop.f32.mrf.mxu0
    %v9204 = vadd.f32 %v8935, %v9203
    %v9205 = vpop.f32.mrf.mxu0
    %v9206 = vadd.f32 %v8937, %v9205
    %9207 = vmatmul.bf16.gmra.mxu0 %v2250
    %v9208 = vpop.f32.mrf.mxu0
    %v9209 = vadd.f32 %v8940, %v9208
    %v9210 = vpop.f32.mrf.mxu0
    %v9211 = vadd.f32 %v8942, %v9210
    %9212 = vmatmul.bf16.gmra.mxu0 %v2258
    %v9213 = vpop.f32.mrf.mxu0
    %v9214 = vadd.f32 %v8945, %v9213
    %v9215 = vpop.f32.mrf.mxu0
    %v9216 = vadd.f32 %v8947, %v9215
    %9217 = vmatmul.bf16.gmra.mxu0 %v2266
    %v9218 = vpop.f32.mrf.mxu0
    %v9219 = vadd.f32 %v8950, %v9218
    %v9220 = vpop.f32.mrf.mxu0
    %v9221 = vadd.f32 %v8952, %v9220
    %9222 = vmatmul.bf16.gmra.mxu0 %v2274
    %v9223 = vpop.f32.mrf.mxu0
    %v9224 = vadd.f32 %v8955, %v9223
    %v9225 = vpop.f32.mrf.mxu0
    %v9226 = vadd.f32 %v8957, %v9225
    %9227 = vmatmul.bf16.gmra.mxu0 %v2282
    %v9228 = vpop.f32.mrf.mxu0
    %v9229 = vadd.f32 %v8960, %v9228
    %v9230 = vpop.f32.mrf.mxu0
    %v9231 = vadd.f32 %v8962, %v9230
    %9232 = vmatmul.bf16.gmra.mxu0 %v2290
    %v9233 = vpop.f32.mrf.mxu0
    %v9234 = vadd.f32 %v8965, %v9233
    %v9235 = vpop.f32.mrf.mxu0
    %v9236 = vadd.f32 %v8967, %v9235
    %9237 = vmatmul.bf16.gmra.mxu0 %v2298
    %v9238 = vpop.f32.mrf.mxu0
    %v9239 = vadd.f32 %v8970, %v9238
    %v9240 = vpop.f32.mrf.mxu0
    %v9241 = vadd.f32 %v8972, %v9240
    %9242 = vmatmul.bf16.gmra.mxu0 %v2306
    %v9243 = vpop.f32.mrf.mxu0
    %v9244 = vadd.f32 %v8975, %v9243
    %v9245 = vpop.f32.mrf.mxu0
    %v9246 = vadd.f32 %v8977, %v9245
    %9247 = vmatmul.bf16.gmra.mxu0 %v2314
    %v9248 = vpop.f32.mrf.mxu0
    %v9249 = vadd.f32 %v8980, %v9248
    %v9250 = vpop.f32.mrf.mxu0
    %v9251 = vadd.f32 %v8982, %v9250
    %9252 = vmatmul.bf16.gmra.mxu0 %v2322
    %v9253 = vpop.f32.mrf.mxu0
    %v9254 = vadd.f32 %v8985, %v9253
    %v9255 = vpop.f32.mrf.mxu0
    %v9256 = vadd.f32 %v8987, %v9255
    %9257 = vmatmul.bf16.gmra.mxu0 %v2330
    %v9258 = vpop.f32.mrf.mxu0
    %v9259 = vadd.f32 %v8990, %v9258
    %v9260 = vpop.f32.mrf.mxu0
    %v9261 = vadd.f32 %v8992, %v9260
    %9262 = vmatmul.bf16.gmra.mxu0 %v2338
    %v9263 = vpop.f32.mrf.mxu0
    %v9264 = vadd.f32 %v8995, %v9263
    %v9265 = vpop.f32.mrf.mxu0
    %v9266 = vadd.f32 %v8997, %v9265
    %9267 = vmatmul.bf16.gmra.mxu0 %v2346
    %v9268 = vpop.f32.mrf.mxu0
    %v9269 = vadd.f32 %v9000, %v9268
    %v9270 = vpop.f32.mrf.mxu0
    %v9271 = vadd.f32 %v9002, %v9270
    %9272 = vmatmul.bf16.gmra.mxu0 %v2354
    %v9273 = vpop.f32.mrf.mxu0
    %v9274 = vadd.f32 %v9005, %v9273
    %v9275 = vpop.f32.mrf.mxu0
    %v9276 = vadd.f32 %v9007, %v9275
    %9277 = vmatmul.bf16.gmra.mxu0 %v2362
    %v9278 = vpop.f32.mrf.mxu0
    %v9279 = vadd.f32 %v9010, %v9278
    %v9280 = vpop.f32.mrf.mxu0
    %v9281 = vadd.f32 %v9012, %v9280
    %9282 = vmatmul.bf16.gmra.mxu0 %v2370
    %v9283 = vpop.f32.mrf.mxu0
    %v9284 = vadd.f32 %v9015, %v9283
    %v9285 = vpop.f32.mrf.mxu0
    %v9286 = vadd.f32 %v9017, %v9285
    %9287 = vmatmul.bf16.gmra.mxu0 %v2378
    %v9288 = vpop.f32.mrf.mxu0
    %v9289 = vadd.f32 %v9020, %v9288
    %v9290 = vpop.f32.mrf.mxu0
    %v9291 = vadd.f32 %v9022, %v9290
    %9292 = vmatmul.bf16.gmra.mxu0 %v2386
    %v9293 = vpop.f32.mrf.mxu0
    %v9294 = vadd.f32 %v9025, %v9293
    %v9295 = vpop.f32.mrf.mxu0
    %v9296 = vadd.f32 %v9027, %v9295
    %9297 = vmatmul.bf16.gmra.mxu0 %v2394
    %v9298 = vpop.f32.mrf.mxu0
    %v9299 = vadd.f32 %v9030, %v9298
    %v9300 = vpop.f32.mrf.mxu0
    %v9301 = vadd.f32 %v9032, %v9300
    %9302 = vmatmul.bf16.gmra.mxu0 %v2402
    %v9303 = vpop.f32.mrf.mxu0
    %v9304 = vadd.f32 %v9035, %v9303
    %v9305 = vpop.f32.mrf.mxu0
    %v9306 = vadd.f32 %v9037, %v9305
    %9307 = vmatmul.bf16.gmra.mxu0 %v2410
    %v9308 = vpop.f32.mrf.mxu0
    %v9309 = vadd.f32 %v9040, %v9308
    %v9310 = vpop.f32.mrf.mxu0
    %v9311 = vadd.f32 %v9042, %v9310
    %9312 = vmatmul.bf16.gmra.mxu0 %v2418
    %v9313 = vpop.f32.mrf.mxu0
    %v9314 = vadd.f32 %v9045, %v9313
    %v9315 = vpop.f32.mrf.mxu0
    %v9316 = vadd.f32 %v9047, %v9315
    %9317 = vmatmul.bf16.gmra.mxu0 %v2426
    %v9318 = vpop.f32.mrf.mxu0
    %v9319 = vadd.f32 %v9050, %v9318
    %v9320 = vpop.f32.mrf.mxu0
    %v9321 = vadd.f32 %v9052, %v9320
    %9322 = vmatmul.bf16.gmra.mxu0 %v2434
    %v9323 = vpop.f32.mrf.mxu0
    %v9324 = vadd.f32 %v9055, %v9323
    %v9325 = vpop.f32.mrf.mxu0
    %v9326 = vadd.f32 %v9057, %v9325
    %9327 = vmatmul.bf16.gmra.mxu0 %v2442
    %v9328 = vpop.f32.mrf.mxu0
    %v9329 = vadd.f32 %v9060, %v9328
    %v9330 = vpop.f32.mrf.mxu0
    %v9331 = vadd.f32 %v9062, %v9330
    %9332 = vmatmul.bf16.gmra.mxu0 %v2450
    %v9333 = vpop.f32.mrf.mxu0
    %v9334 = vadd.f32 %v9065, %v9333
    %v9335 = vpop.f32.mrf.mxu0
    %v9336 = vadd.f32 %v9067, %v9335
    %9337 = vmatmul.bf16.gmra.mxu0 %v2458
    %v9338 = vpop.f32.mrf.mxu0
    %v9339 = vadd.f32 %v9070, %v9338
    %v9340 = vpop.f32.mrf.mxu0
    %v9341 = vadd.f32 %v9072, %v9340
    %9342 = vmatmul.bf16.gmra.mxu0 %v2466
    %v9343 = vpop.f32.mrf.mxu0
    %v9344 = vadd.f32 %v9075, %v9343
    %v9345 = vpop.f32.mrf.mxu0
    %v9346 = vadd.f32 %v9077, %v9345
    %9347 = vmatmul.bf16.gmra.mxu0 %v2474
    %v9348 = vpop.f32.mrf.mxu0
    %v9349 = vadd.f32 %v9080, %v9348
    %v9350 = vpop.f32.mrf.mxu0
    %v9351 = vadd.f32 %v9082, %v9350
    %9352 = vmatmul.bf16.gmra.mxu0 %v2482
    %v9353 = vpop.f32.mrf.mxu0
    %v9354 = vadd.f32 %v9085, %v9353
    %v9355 = vpop.f32.mrf.mxu0
    %v9356 = vadd.f32 %v9087, %v9355
    %9357 = vmatmul.bf16.gmra.mxu0 %v2490
    %v9358 = vpop.f32.mrf.mxu0
    %v9359 = vadd.f32 %v9090, %v9358
    %v9360 = vpop.f32.mrf.mxu0
    %v9361 = vadd.f32 %v9092, %v9360
    %9362 = vmatmul.bf16.gmra.mxu0 %v2498
    %v9363 = vpop.f32.mrf.mxu0
    %v9364 = vadd.f32 %v9095, %v9363
    %v9365 = vpop.f32.mrf.mxu0
    %v9366 = vadd.f32 %v9097, %v9365
    %9367 = vmatmul.bf16.gmra.mxu0 %v2506
    %v9368 = vpop.f32.mrf.mxu0
    %v9369 = vadd.f32 %v9100, %v9368
    %v9370 = vpop.f32.mrf.mxu0
    %v9371 = vadd.f32 %v9102, %v9370
    %9372 = vmatmul.bf16.gmra.mxu0 %v2514
    %v9373 = vpop.f32.mrf.mxu0
    %v9374 = vadd.f32 %v9105, %v9373
    %v9375 = vpop.f32.mrf.mxu0
    %v9376 = vadd.f32 %v9107, %v9375
    %9377 = vdwg.mxu0
    %9378 = vmatpush.bf16.msra.mxu0 %v8501
    %9379 = vmatpush.bf16.msra.mxu0 %v8499
    %9380 = vmatpush.bf16.msra.mxu0 %v8497
    %9381 = vmatpush.bf16.msra.mxu0 %v8495
    %9382 = vmatpush.bf16.msra.mxu0 %v8493
    %9383 = vmatpush.bf16.msra.mxu0 %v8491
    %9384 = vmatpush.bf16.msra.mxu0 %v8489
    %9385 = vmatpush.bf16.msra.mxu0 %v8487
    %9386 = vmatmul.bf16.gmra.mxu0 %v2107
    %v9387 = vpop.f32.mrf.mxu0
    %v9388 = vadd.f32 %v9119, %v9387
    %v9389 = vpop.f32.mrf.mxu0
    %v9390 = vadd.f32 %v9121, %v9389
    %9391 = vmatmul.bf16.gmra.mxu0 %v2115
    %v9392 = vpop.f32.mrf.mxu0
    %v9393 = vadd.f32 %v9124, %v9392
    %v9394 = vpop.f32.mrf.mxu0
    %v9395 = vadd.f32 %v9126, %v9394
    %9396 = vmatmul.bf16.gmra.mxu0 %v2123
    %v9397 = vpop.f32.mrf.mxu0
    %v9398 = vadd.f32 %v9129, %v9397
    %v9399 = vpop.f32.mrf.mxu0
    %v9400 = vadd.f32 %v9131, %v9399
    %9401 = vmatmul.bf16.gmra.mxu0 %v2131
    %v9402 = vpop.f32.mrf.mxu0
    %v9403 = vadd.f32 %v9134, %v9402
    %v9404 = vpop.f32.mrf.mxu0
    %v9405 = vadd.f32 %v9136, %v9404
    %9406 = vmatmul.bf16.gmra.mxu0 %v2139
    %v9407 = vpop.f32.mrf.mxu0
    %v9408 = vadd.f32 %v9139, %v9407
    %v9409 = vpop.f32.mrf.mxu0
    %v9410 = vadd.f32 %v9141, %v9409
    %9411 = vmatmul.bf16.gmra.mxu0 %v2147
    %v9412 = vpop.f32.mrf.mxu0
    %v9413 = vadd.f32 %v9144, %v9412
    %v9414 = vpop.f32.mrf.mxu0
    %v9415 = vadd.f32 %v9146, %v9414
    %9416 = vmatmul.bf16.gmra.mxu0 %v2155
    %v9417 = vpop.f32.mrf.mxu0
    %v9418 = vadd.f32 %v9149, %v9417
    %v9419 = vpop.f32.mrf.mxu0
    %v9420 = vadd.f32 %v9151, %v9419
    %9421 = vmatmul.bf16.gmra.mxu0 %v2163
    %v9422 = vpop.f32.mrf.mxu0
    %v9423 = vadd.f32 %v9154, %v9422
    %v9424 = vpop.f32.mrf.mxu0
    %v9425 = vadd.f32 %v9156, %v9424
    %9426 = vmatmul.bf16.gmra.mxu0 %v2171
    %v9427 = vpop.f32.mrf.mxu0
    %v9428 = vadd.f32 %v9159, %v9427
    %v9429 = vpop.f32.mrf.mxu0
    %v9430 = vadd.f32 %v9161, %v9429
    %9431 = vmatmul.bf16.gmra.mxu0 %v2179
    %v9432 = vpop.f32.mrf.mxu0
    %v9433 = vadd.f32 %v9164, %v9432
    %v9434 = vpop.f32.mrf.mxu0
    %v9435 = vadd.f32 %v9166, %v9434
    %9436 = vmatmul.bf16.gmra.mxu0 %v2187
    %v9437 = vpop.f32.mrf.mxu0
    %v9438 = vadd.f32 %v9169, %v9437
    %v9439 = vpop.f32.mrf.mxu0
    %v9440 = vadd.f32 %v9171, %v9439
    %9441 = vmatmul.bf16.gmra.mxu0 %v2195
    %v9442 = vpop.f32.mrf.mxu0
    %v9443 = vadd.f32 %v9174, %v9442
    %v9444 = vpop.f32.mrf.mxu0
    %v9445 = vadd.f32 %v9176, %v9444
    %9446 = vmatmul.bf16.gmra.mxu0 %v2203
    %v9447 = vpop.f32.mrf.mxu0
    %v9448 = vadd.f32 %v9179, %v9447
    %v9449 = vpop.f32.mrf.mxu0
    %v9450 = vadd.f32 %v9181, %v9449
    %9451 = vmatmul.bf16.gmra.mxu0 %v2211
    %v9452 = vpop.f32.mrf.mxu0
    %v9453 = vadd.f32 %v9184, %v9452
    %v9454 = vpop.f32.mrf.mxu0
    %v9455 = vadd.f32 %v9186, %v9454
    %9456 = vmatmul.bf16.gmra.mxu0 %v2219
    %v9457 = vpop.f32.mrf.mxu0
    %v9458 = vadd.f32 %v9189, %v9457
    %v9459 = vpop.f32.mrf.mxu0
    %v9460 = vadd.f32 %v9191, %v9459
    %9461 = vmatmul.bf16.gmra.mxu0 %v2227
    %v9462 = vpop.f32.mrf.mxu0
    %v9463 = vadd.f32 %v9194, %v9462
    %v9464 = vpop.f32.mrf.mxu0
    %v9465 = vadd.f32 %v9196, %v9464
    %9466 = vmatmul.bf16.gmra.mxu0 %v2235
    %v9467 = vpop.f32.mrf.mxu0
    %v9468 = vadd.f32 %v9199, %v9467
    %v9469 = vpop.f32.mrf.mxu0
    %v9470 = vadd.f32 %v9201, %v9469
    %9471 = vmatmul.bf16.gmra.mxu0 %v2243
    %v9472 = vpop.f32.mrf.mxu0
    %v9473 = vadd.f32 %v9204, %v9472
    %v9474 = vpop.f32.mrf.mxu0
    %v9475 = vadd.f32 %v9206, %v9474
    %9476 = vmatmul.bf16.gmra.mxu0 %v2251
    %v9477 = vpop.f32.mrf.mxu0
    %v9478 = vadd.f32 %v9209, %v9477
    %v9479 = vpop.f32.mrf.mxu0
    %v9480 = vadd.f32 %v9211, %v9479
    %9481 = vmatmul.bf16.gmra.mxu0 %v2259
    %v9482 = vpop.f32.mrf.mxu0
    %v9483 = vadd.f32 %v9214, %v9482
    %v9484 = vpop.f32.mrf.mxu0
    %v9485 = vadd.f32 %v9216, %v9484
    %9486 = vmatmul.bf16.gmra.mxu0 %v2267
    %v9487 = vpop.f32.mrf.mxu0
    %v9488 = vadd.f32 %v9219, %v9487
    %v9489 = vpop.f32.mrf.mxu0
    %v9490 = vadd.f32 %v9221, %v9489
    %9491 = vmatmul.bf16.gmra.mxu0 %v2275
    %v9492 = vpop.f32.mrf.mxu0
    %v9493 = vadd.f32 %v9224, %v9492
    %v9494 = vpop.f32.mrf.mxu0
    %v9495 = vadd.f32 %v9226, %v9494
    %9496 = vmatmul.bf16.gmra.mxu0 %v2283
    %v9497 = vpop.f32.mrf.mxu0
    %v9498 = vadd.f32 %v9229, %v9497
    %v9499 = vpop.f32.mrf.mxu0
    %v9500 = vadd.f32 %v9231, %v9499
    %9501 = vmatmul.bf16.gmra.mxu0 %v2291
    %v9502 = vpop.f32.mrf.mxu0
    %v9503 = vadd.f32 %v9234, %v9502
    %v9504 = vpop.f32.mrf.mxu0
    %v9505 = vadd.f32 %v9236, %v9504
    %9506 = vmatmul.bf16.gmra.mxu0 %v2299
    %v9507 = vpop.f32.mrf.mxu0
    %v9508 = vadd.f32 %v9239, %v9507
    %v9509 = vpop.f32.mrf.mxu0
    %v9510 = vadd.f32 %v9241, %v9509
    %9511 = vmatmul.bf16.gmra.mxu0 %v2307
    %v9512 = vpop.f32.mrf.mxu0
    %v9513 = vadd.f32 %v9244, %v9512
    %v9514 = vpop.f32.mrf.mxu0
    %v9515 = vadd.f32 %v9246, %v9514
    %9516 = vmatmul.bf16.gmra.mxu0 %v2315
    %v9517 = vpop.f32.mrf.mxu0
    %v9518 = vadd.f32 %v9249, %v9517
    %v9519 = vpop.f32.mrf.mxu0
    %v9520 = vadd.f32 %v9251, %v9519
    %9521 = vmatmul.bf16.gmra.mxu0 %v2323
    %v9522 = vpop.f32.mrf.mxu0
    %v9523 = vadd.f32 %v9254, %v9522
    %v9524 = vpop.f32.mrf.mxu0
    %v9525 = vadd.f32 %v9256, %v9524
    %9526 = vmatmul.bf16.gmra.mxu0 %v2331
    %v9527 = vpop.f32.mrf.mxu0
    %v9528 = vadd.f32 %v9259, %v9527
    %v9529 = vpop.f32.mrf.mxu0
    %v9530 = vadd.f32 %v9261, %v9529
    %9531 = vmatmul.bf16.gmra.mxu0 %v2339
    %v9532 = vpop.f32.mrf.mxu0
    %v9533 = vadd.f32 %v9264, %v9532
    %v9534 = vpop.f32.mrf.mxu0
    %v9535 = vadd.f32 %v9266, %v9534
    %9536 = vmatmul.bf16.gmra.mxu0 %v2347
    %v9537 = vpop.f32.mrf.mxu0
    %v9538 = vadd.f32 %v9269, %v9537
    %v9539 = vpop.f32.mrf.mxu0
    %v9540 = vadd.f32 %v9271, %v9539
    %9541 = vmatmul.bf16.gmra.mxu0 %v2355
    %v9542 = vpop.f32.mrf.mxu0
    %v9543 = vadd.f32 %v9274, %v9542
    %v9544 = vpop.f32.mrf.mxu0
    %v9545 = vadd.f32 %v9276, %v9544
    %9546 = vmatmul.bf16.gmra.mxu0 %v2363
    %v9547 = vpop.f32.mrf.mxu0
    %v9548 = vadd.f32 %v9279, %v9547
    %v9549 = vpop.f32.mrf.mxu0
    %v9550 = vadd.f32 %v9281, %v9549
    %9551 = vmatmul.bf16.gmra.mxu0 %v2371
    %v9552 = vpop.f32.mrf.mxu0
    %v9553 = vadd.f32 %v9284, %v9552
    %v9554 = vpop.f32.mrf.mxu0
    %v9555 = vadd.f32 %v9286, %v9554
    %9556 = vmatmul.bf16.gmra.mxu0 %v2379
    %v9557 = vpop.f32.mrf.mxu0
    %v9558 = vadd.f32 %v9289, %v9557
    %v9559 = vpop.f32.mrf.mxu0
    %v9560 = vadd.f32 %v9291, %v9559
    %9561 = vmatmul.bf16.gmra.mxu0 %v2387
    %v9562 = vpop.f32.mrf.mxu0
    %v9563 = vadd.f32 %v9294, %v9562
    %v9564 = vpop.f32.mrf.mxu0
    %v9565 = vadd.f32 %v9296, %v9564
    %9566 = vmatmul.bf16.gmra.mxu0 %v2395
    %v9567 = vpop.f32.mrf.mxu0
    %v9568 = vadd.f32 %v9299, %v9567
    %v9569 = vpop.f32.mrf.mxu0
    %v9570 = vadd.f32 %v9301, %v9569
    %9571 = vmatmul.bf16.gmra.mxu0 %v2403
    %v9572 = vpop.f32.mrf.mxu0
    %v9573 = vadd.f32 %v9304, %v9572
    %v9574 = vpop.f32.mrf.mxu0
    %v9575 = vadd.f32 %v9306, %v9574
    %9576 = vmatmul.bf16.gmra.mxu0 %v2411
    %v9577 = vpop.f32.mrf.mxu0
    %v9578 = vadd.f32 %v9309, %v9577
    %v9579 = vpop.f32.mrf.mxu0
    %v9580 = vadd.f32 %v9311, %v9579
    %9581 = vmatmul.bf16.gmra.mxu0 %v2419
    %v9582 = vpop.f32.mrf.mxu0
    %v9583 = vadd.f32 %v9314, %v9582
    %v9584 = vpop.f32.mrf.mxu0
    %v9585 = vadd.f32 %v9316, %v9584
    %9586 = vmatmul.bf16.gmra.mxu0 %v2427
    %v9587 = vpop.f32.mrf.mxu0
    %v9588 = vadd.f32 %v9319, %v9587
    %v9589 = vpop.f32.mrf.mxu0
    %v9590 = vadd.f32 %v9321, %v9589
    %9591 = vmatmul.bf16.gmra.mxu0 %v2435
    %v9592 = vpop.f32.mrf.mxu0
    %v9593 = vadd.f32 %v9324, %v9592
    %v9594 = vpop.f32.mrf.mxu0
    %v9595 = vadd.f32 %v9326, %v9594
    %9596 = vmatmul.bf16.gmra.mxu0 %v2443
    %v9597 = vpop.f32.mrf.mxu0
    %v9598 = vadd.f32 %v9329, %v9597
    %v9599 = vpop.f32.mrf.mxu0
    %v9600 = vadd.f32 %v9331, %v9599
    %9601 = vmatmul.bf16.gmra.mxu0 %v2451
    %v9602 = vpop.f32.mrf.mxu0
    %v9603 = vadd.f32 %v9334, %v9602
    %v9604 = vpop.f32.mrf.mxu0
    %v9605 = vadd.f32 %v9336, %v9604
    %9606 = vmatmul.bf16.gmra.mxu0 %v2459
    %v9607 = vpop.f32.mrf.mxu0
    %v9608 = vadd.f32 %v9339, %v9607
    %v9609 = vpop.f32.mrf.mxu0
    %v9610 = vadd.f32 %v9341, %v9609
    %9611 = vmatmul.bf16.gmra.mxu0 %v2467
    %v9612 = vpop.f32.mrf.mxu0
    %v9613 = vadd.f32 %v9344, %v9612
    %v9614 = vpop.f32.mrf.mxu0
    %v9615 = vadd.f32 %v9346, %v9614
    %9616 = vmatmul.bf16.gmra.mxu0 %v2475
    %v9617 = vpop.f32.mrf.mxu0
    %v9618 = vadd.f32 %v9349, %v9617
    %v9619 = vpop.f32.mrf.mxu0
    %v9620 = vadd.f32 %v9351, %v9619
    %9621 = vmatmul.bf16.gmra.mxu0 %v2483
    %v9622 = vpop.f32.mrf.mxu0
    %v9623 = vadd.f32 %v9354, %v9622
    %v9624 = vpop.f32.mrf.mxu0
    %v9625 = vadd.f32 %v9356, %v9624
    %9626 = vmatmul.bf16.gmra.mxu0 %v2491
    %v9627 = vpop.f32.mrf.mxu0
    %v9628 = vadd.f32 %v9359, %v9627
    %v9629 = vpop.f32.mrf.mxu0
    %v9630 = vadd.f32 %v9361, %v9629
    %9631 = vmatmul.bf16.gmra.mxu0 %v2499
    %v9632 = vpop.f32.mrf.mxu0
    %v9633 = vadd.f32 %v9364, %v9632
    %v9634 = vpop.f32.mrf.mxu0
    %v9635 = vadd.f32 %v9366, %v9634
    %9636 = vmatmul.bf16.gmra.mxu0 %v2507
    %v9637 = vpop.f32.mrf.mxu0
    %v9638 = vadd.f32 %v9369, %v9637
    %v9639 = vpop.f32.mrf.mxu0
    %v9640 = vadd.f32 %v9371, %v9639
    %9641 = vmatmul.bf16.gmra.mxu0 %v2515
    %v9642 = vpop.f32.mrf.mxu0
    %v9643 = vadd.f32 %v9374, %v9642
    %v9644 = vpop.f32.mrf.mxu0
    %v9645 = vadd.f32 %v9376, %v9644
    %9646 = vdwg.mxu0
    %9647 = vmatpush.bf16.msra.mxu0 %v8517
    %9648 = vmatpush.bf16.msra.mxu0 %v8515
    %9649 = vmatpush.bf16.msra.mxu0 %v8513
    %9650 = vmatpush.bf16.msra.mxu0 %v8511
    %9651 = vmatpush.bf16.msra.mxu0 %v8509
    %9652 = vmatpush.bf16.msra.mxu0 %v8507
    %9653 = vmatpush.bf16.msra.mxu0 %v8505
    %9654 = vmatpush.bf16.msra.mxu0 %v8503
    %9655 = vmatmul.bf16.gmra.mxu0 %v2108
    %v9656 = vpop.f32.mrf.mxu0
    %v9657 = vadd.f32 %v9388, %v9656
    %v9658 = vpop.f32.mrf.mxu0
    %v9659 = vadd.f32 %v9390, %v9658
    %9660 = vmatmul.bf16.gmra.mxu0 %v2116
    %v9661 = vpop.f32.mrf.mxu0
    %v9662 = vadd.f32 %v9393, %v9661
    %v9663 = vpop.f32.mrf.mxu0
    %v9664 = vadd.f32 %v9395, %v9663
    %9665 = vmatmul.bf16.gmra.mxu0 %v2124
    %v9666 = vpop.f32.mrf.mxu0
    %v9667 = vadd.f32 %v9398, %v9666
    %v9668 = vpop.f32.mrf.mxu0
    %v9669 = vadd.f32 %v9400, %v9668
    %9670 = vmatmul.bf16.gmra.mxu0 %v2132
    %v9671 = vpop.f32.mrf.mxu0
    %v9672 = vadd.f32 %v9403, %v9671
    %v9673 = vpop.f32.mrf.mxu0
    %v9674 = vadd.f32 %v9405, %v9673
    %9675 = vmatmul.bf16.gmra.mxu0 %v2140
    %v9676 = vpop.f32.mrf.mxu0
    %v9677 = vadd.f32 %v9408, %v9676
    %v9678 = vpop.f32.mrf.mxu0
    %v9679 = vadd.f32 %v9410, %v9678
    %9680 = vmatmul.bf16.gmra.mxu0 %v2148
    %v9681 = vpop.f32.mrf.mxu0
    %v9682 = vadd.f32 %v9413, %v9681
    %v9683 = vpop.f32.mrf.mxu0
    %v9684 = vadd.f32 %v9415, %v9683
    %9685 = vmatmul.bf16.gmra.mxu0 %v2156
    %v9686 = vpop.f32.mrf.mxu0
    %v9687 = vadd.f32 %v9418, %v9686
    %v9688 = vpop.f32.mrf.mxu0
    %v9689 = vadd.f32 %v9420, %v9688
    %9690 = vmatmul.bf16.gmra.mxu0 %v2164
    %v9691 = vpop.f32.mrf.mxu0
    %v9692 = vadd.f32 %v9423, %v9691
    %v9693 = vpop.f32.mrf.mxu0
    %v9694 = vadd.f32 %v9425, %v9693
    %9695 = vmatmul.bf16.gmra.mxu0 %v2172
    %v9696 = vpop.f32.mrf.mxu0
    %v9697 = vadd.f32 %v9428, %v9696
    %v9698 = vpop.f32.mrf.mxu0
    %v9699 = vadd.f32 %v9430, %v9698
    %9700 = vmatmul.bf16.gmra.mxu0 %v2180
    %v9701 = vpop.f32.mrf.mxu0
    %v9702 = vadd.f32 %v9433, %v9701
    %v9703 = vpop.f32.mrf.mxu0
    %v9704 = vadd.f32 %v9435, %v9703
    %9705 = vmatmul.bf16.gmra.mxu0 %v2188
    %v9706 = vpop.f32.mrf.mxu0
    %v9707 = vadd.f32 %v9438, %v9706
    %v9708 = vpop.f32.mrf.mxu0
    %v9709 = vadd.f32 %v9440, %v9708
    %9710 = vmatmul.bf16.gmra.mxu0 %v2196
    %v9711 = vpop.f32.mrf.mxu0
    %v9712 = vadd.f32 %v9443, %v9711
    %v9713 = vpop.f32.mrf.mxu0
    %v9714 = vadd.f32 %v9445, %v9713
    %9715 = vmatmul.bf16.gmra.mxu0 %v2204
    %v9716 = vpop.f32.mrf.mxu0
    %v9717 = vadd.f32 %v9448, %v9716
    %v9718 = vpop.f32.mrf.mxu0
    %v9719 = vadd.f32 %v9450, %v9718
    %9720 = vmatmul.bf16.gmra.mxu0 %v2212
    %v9721 = vpop.f32.mrf.mxu0
    %v9722 = vadd.f32 %v9453, %v9721
    %v9723 = vpop.f32.mrf.mxu0
    %v9724 = vadd.f32 %v9455, %v9723
    %9725 = vmatmul.bf16.gmra.mxu0 %v2220
    %v9726 = vpop.f32.mrf.mxu0
    %v9727 = vadd.f32 %v9458, %v9726
    %v9728 = vpop.f32.mrf.mxu0
    %v9729 = vadd.f32 %v9460, %v9728
    %9730 = vmatmul.bf16.gmra.mxu0 %v2228
    %v9731 = vpop.f32.mrf.mxu0
    %v9732 = vadd.f32 %v9463, %v9731
    %v9733 = vpop.f32.mrf.mxu0
    %v9734 = vadd.f32 %v9465, %v9733
    %9735 = vmatmul.bf16.gmra.mxu0 %v2236
    %v9736 = vpop.f32.mrf.mxu0
    %v9737 = vadd.f32 %v9468, %v9736
    %v9738 = vpop.f32.mrf.mxu0
    %v9739 = vadd.f32 %v9470, %v9738
    %9740 = vmatmul.bf16.gmra.mxu0 %v2244
    %v9741 = vpop.f32.mrf.mxu0
    %v9742 = vadd.f32 %v9473, %v9741
    %v9743 = vpop.f32.mrf.mxu0
    %v9744 = vadd.f32 %v9475, %v9743
    %9745 = vmatmul.bf16.gmra.mxu0 %v2252
    %v9746 = vpop.f32.mrf.mxu0
    %v9747 = vadd.f32 %v9478, %v9746
    %v9748 = vpop.f32.mrf.mxu0
    %v9749 = vadd.f32 %v9480, %v9748
    %9750 = vmatmul.bf16.gmra.mxu0 %v2260
    %v9751 = vpop.f32.mrf.mxu0
    %v9752 = vadd.f32 %v9483, %v9751
    %v9753 = vpop.f32.mrf.mxu0
    %v9754 = vadd.f32 %v9485, %v9753
    %9755 = vmatmul.bf16.gmra.mxu0 %v2268
    %v9756 = vpop.f32.mrf.mxu0
    %v9757 = vadd.f32 %v9488, %v9756
    %v9758 = vpop.f32.mrf.mxu0
    %v9759 = vadd.f32 %v9490, %v9758
    %9760 = vmatmul.bf16.gmra.mxu0 %v2276
    %v9761 = vpop.f32.mrf.mxu0
    %v9762 = vadd.f32 %v9493, %v9761
    %v9763 = vpop.f32.mrf.mxu0
    %v9764 = vadd.f32 %v9495, %v9763
    %9765 = vmatmul.bf16.gmra.mxu0 %v2284
    %v9766 = vpop.f32.mrf.mxu0
    %v9767 = vadd.f32 %v9498, %v9766
    %v9768 = vpop.f32.mrf.mxu0
    %v9769 = vadd.f32 %v9500, %v9768
    %9770 = vmatmul.bf16.gmra.mxu0 %v2292
    %v9771 = vpop.f32.mrf.mxu0
    %v9772 = vadd.f32 %v9503, %v9771
    %v9773 = vpop.f32.mrf.mxu0
    %v9774 = vadd.f32 %v9505, %v9773
    %9775 = vmatmul.bf16.gmra.mxu0 %v2300
    %v9776 = vpop.f32.mrf.mxu0
    %v9777 = vadd.f32 %v9508, %v9776
    %v9778 = vpop.f32.mrf.mxu0
    %v9779 = vadd.f32 %v9510, %v9778
    %9780 = vmatmul.bf16.gmra.mxu0 %v2308
    %v9781 = vpop.f32.mrf.mxu0
    %v9782 = vadd.f32 %v9513, %v9781
    %v9783 = vpop.f32.mrf.mxu0
    %v9784 = vadd.f32 %v9515, %v9783
    %9785 = vmatmul.bf16.gmra.mxu0 %v2316
    %v9786 = vpop.f32.mrf.mxu0
    %v9787 = vadd.f32 %v9518, %v9786
    %v9788 = vpop.f32.mrf.mxu0
    %v9789 = vadd.f32 %v9520, %v9788
    %9790 = vmatmul.bf16.gmra.mxu0 %v2324
    %v9791 = vpop.f32.mrf.mxu0
    %v9792 = vadd.f32 %v9523, %v9791
    %v9793 = vpop.f32.mrf.mxu0
    %v9794 = vadd.f32 %v9525, %v9793
    %9795 = vmatmul.bf16.gmra.mxu0 %v2332
    %v9796 = vpop.f32.mrf.mxu0
    %v9797 = vadd.f32 %v9528, %v9796
    %v9798 = vpop.f32.mrf.mxu0
    %v9799 = vadd.f32 %v9530, %v9798
    %9800 = vmatmul.bf16.gmra.mxu0 %v2340
    %v9801 = vpop.f32.mrf.mxu0
    %v9802 = vadd.f32 %v9533, %v9801
    %v9803 = vpop.f32.mrf.mxu0
    %v9804 = vadd.f32 %v9535, %v9803
    %9805 = vmatmul.bf16.gmra.mxu0 %v2348
    %v9806 = vpop.f32.mrf.mxu0
    %v9807 = vadd.f32 %v9538, %v9806
    %v9808 = vpop.f32.mrf.mxu0
    %v9809 = vadd.f32 %v9540, %v9808
    %9810 = vmatmul.bf16.gmra.mxu0 %v2356
    %v9811 = vpop.f32.mrf.mxu0
    %v9812 = vadd.f32 %v9543, %v9811
    %v9813 = vpop.f32.mrf.mxu0
    %v9814 = vadd.f32 %v9545, %v9813
    %9815 = vmatmul.bf16.gmra.mxu0 %v2364
    %v9816 = vpop.f32.mrf.mxu0
    %v9817 = vadd.f32 %v9548, %v9816
    %v9818 = vpop.f32.mrf.mxu0
    %v9819 = vadd.f32 %v9550, %v9818
    %9820 = vmatmul.bf16.gmra.mxu0 %v2372
    %v9821 = vpop.f32.mrf.mxu0
    %v9822 = vadd.f32 %v9553, %v9821
    %v9823 = vpop.f32.mrf.mxu0
    %v9824 = vadd.f32 %v9555, %v9823
    %9825 = vmatmul.bf16.gmra.mxu0 %v2380
    %v9826 = vpop.f32.mrf.mxu0
    %v9827 = vadd.f32 %v9558, %v9826
    %v9828 = vpop.f32.mrf.mxu0
    %v9829 = vadd.f32 %v9560, %v9828
    %9830 = vmatmul.bf16.gmra.mxu0 %v2388
    %v9831 = vpop.f32.mrf.mxu0
    %v9832 = vadd.f32 %v9563, %v9831
    %v9833 = vpop.f32.mrf.mxu0
    %v9834 = vadd.f32 %v9565, %v9833
    %9835 = vmatmul.bf16.gmra.mxu0 %v2396
    %v9836 = vpop.f32.mrf.mxu0
    %v9837 = vadd.f32 %v9568, %v9836
    %v9838 = vpop.f32.mrf.mxu0
    %v9839 = vadd.f32 %v9570, %v9838
    %9840 = vmatmul.bf16.gmra.mxu0 %v2404
    %v9841 = vpop.f32.mrf.mxu0
    %v9842 = vadd.f32 %v9573, %v9841
    %v9843 = vpop.f32.mrf.mxu0
    %v9844 = vadd.f32 %v9575, %v9843
    %9845 = vmatmul.bf16.gmra.mxu0 %v2412
    %v9846 = vpop.f32.mrf.mxu0
    %v9847 = vadd.f32 %v9578, %v9846
    %v9848 = vpop.f32.mrf.mxu0
    %v9849 = vadd.f32 %v9580, %v9848
    %9850 = vmatmul.bf16.gmra.mxu0 %v2420
    %v9851 = vpop.f32.mrf.mxu0
    %v9852 = vadd.f32 %v9583, %v9851
    %v9853 = vpop.f32.mrf.mxu0
    %v9854 = vadd.f32 %v9585, %v9853
    %9855 = vmatmul.bf16.gmra.mxu0 %v2428
    %v9856 = vpop.f32.mrf.mxu0
    %v9857 = vadd.f32 %v9588, %v9856
    %v9858 = vpop.f32.mrf.mxu0
    %v9859 = vadd.f32 %v9590, %v9858
    %9860 = vmatmul.bf16.gmra.mxu0 %v2436
    %v9861 = vpop.f32.mrf.mxu0
    %v9862 = vadd.f32 %v9593, %v9861
    %v9863 = vpop.f32.mrf.mxu0
    %v9864 = vadd.f32 %v9595, %v9863
    %9865 = vmatmul.bf16.gmra.mxu0 %v2444
    %v9866 = vpop.f32.mrf.mxu0
    %v9867 = vadd.f32 %v9598, %v9866
    %v9868 = vpop.f32.mrf.mxu0
    %v9869 = vadd.f32 %v9600, %v9868
    %9870 = vmatmul.bf16.gmra.mxu0 %v2452
    %v9871 = vpop.f32.mrf.mxu0
    %v9872 = vadd.f32 %v9603, %v9871
    %v9873 = vpop.f32.mrf.mxu0
    %v9874 = vadd.f32 %v9605, %v9873
    %9875 = vmatmul.bf16.gmra.mxu0 %v2460
    %v9876 = vpop.f32.mrf.mxu0
    %v9877 = vadd.f32 %v9608, %v9876
    %v9878 = vpop.f32.mrf.mxu0
    %v9879 = vadd.f32 %v9610, %v9878
    %9880 = vmatmul.bf16.gmra.mxu0 %v2468
    %v9881 = vpop.f32.mrf.mxu0
    %v9882 = vadd.f32 %v9613, %v9881
    %v9883 = vpop.f32.mrf.mxu0
    %v9884 = vadd.f32 %v9615, %v9883
    %9885 = vmatmul.bf16.gmra.mxu0 %v2476
    %v9886 = vpop.f32.mrf.mxu0
    %v9887 = vadd.f32 %v9618, %v9886
    %v9888 = vpop.f32.mrf.mxu0
    %v9889 = vadd.f32 %v9620, %v9888
    %9890 = vmatmul.bf16.gmra.mxu0 %v2484
    %v9891 = vpop.f32.mrf.mxu0
    %v9892 = vadd.f32 %v9623, %v9891
    %v9893 = vpop.f32.mrf.mxu0
    %v9894 = vadd.f32 %v9625, %v9893
    %9895 = vmatmul.bf16.gmra.mxu0 %v2492
    %v9896 = vpop.f32.mrf.mxu0
    %v9897 = vadd.f32 %v9628, %v9896
    %v9898 = vpop.f32.mrf.mxu0
    %v9899 = vadd.f32 %v9630, %v9898
    %9900 = vmatmul.bf16.gmra.mxu0 %v2500
    %v9901 = vpop.f32.mrf.mxu0
    %v9902 = vadd.f32 %v9633, %v9901
    %v9903 = vpop.f32.mrf.mxu0
    %v9904 = vadd.f32 %v9635, %v9903
    %9905 = vmatmul.bf16.gmra.mxu0 %v2508
    %v9906 = vpop.f32.mrf.mxu0
    %v9907 = vadd.f32 %v9638, %v9906
    %v9908 = vpop.f32.mrf.mxu0
    %v9909 = vadd.f32 %v9640, %v9908
    %9910 = vmatmul.bf16.gmra.mxu0 %v2516
    %v9911 = vpop.f32.mrf.mxu0
    %v9912 = vadd.f32 %v9643, %v9911
    %v9913 = vpop.f32.mrf.mxu0
    %v9914 = vadd.f32 %v9645, %v9913
    %9915 = vdwg.mxu0
    %9916 = vmatpush.bf16.msra.mxu0 %v8533
    %9917 = vmatpush.bf16.msra.mxu0 %v8531
    %9918 = vmatpush.bf16.msra.mxu0 %v8529
    %9919 = vmatpush.bf16.msra.mxu0 %v8527
    %9920 = vmatpush.bf16.msra.mxu0 %v8525
    %9921 = vmatpush.bf16.msra.mxu0 %v8523
    %9922 = vmatpush.bf16.msra.mxu0 %v8521
    %9923 = vmatpush.bf16.msra.mxu0 %v8519
    %9924 = vmatmul.bf16.gmra.mxu0 %v2109
    %v9925 = vpop.f32.mrf.mxu0
    %v9926 = vadd.f32 %v9657, %v9925
    %v9927 = vpop.f32.mrf.mxu0
    %v9928 = vadd.f32 %v9659, %v9927
    %9929 = vmatmul.bf16.gmra.mxu0 %v2117
    %v9930 = vpop.f32.mrf.mxu0
    %v9931 = vadd.f32 %v9662, %v9930
    %v9932 = vpop.f32.mrf.mxu0
    %v9933 = vadd.f32 %v9664, %v9932
    %9934 = vmatmul.bf16.gmra.mxu0 %v2125
    %v9935 = vpop.f32.mrf.mxu0
    %v9936 = vadd.f32 %v9667, %v9935
    %v9937 = vpop.f32.mrf.mxu0
    %v9938 = vadd.f32 %v9669, %v9937
    %9939 = vmatmul.bf16.gmra.mxu0 %v2133
    %v9940 = vpop.f32.mrf.mxu0
    %v9941 = vadd.f32 %v9672, %v9940
    %v9942 = vpop.f32.mrf.mxu0
    %v9943 = vadd.f32 %v9674, %v9942
    %9944 = vmatmul.bf16.gmra.mxu0 %v2141
    %v9945 = vpop.f32.mrf.mxu0
    %v9946 = vadd.f32 %v9677, %v9945
    %v9947 = vpop.f32.mrf.mxu0
    %v9948 = vadd.f32 %v9679, %v9947
    %9949 = vmatmul.bf16.gmra.mxu0 %v2149
    %v9950 = vpop.f32.mrf.mxu0
    %v9951 = vadd.f32 %v9682, %v9950
    %v9952 = vpop.f32.mrf.mxu0
    %v9953 = vadd.f32 %v9684, %v9952
    %9954 = vmatmul.bf16.gmra.mxu0 %v2157
    %v9955 = vpop.f32.mrf.mxu0
    %v9956 = vadd.f32 %v9687, %v9955
    %v9957 = vpop.f32.mrf.mxu0
    %v9958 = vadd.f32 %v9689, %v9957
    %9959 = vmatmul.bf16.gmra.mxu0 %v2165
    %v9960 = vpop.f32.mrf.mxu0
    %v9961 = vadd.f32 %v9692, %v9960
    %v9962 = vpop.f32.mrf.mxu0
    %v9963 = vadd.f32 %v9694, %v9962
    %9964 = vmatmul.bf16.gmra.mxu0 %v2173
    %v9965 = vpop.f32.mrf.mxu0
    %v9966 = vadd.f32 %v9697, %v9965
    %v9967 = vpop.f32.mrf.mxu0
    %v9968 = vadd.f32 %v9699, %v9967
    %9969 = vmatmul.bf16.gmra.mxu0 %v2181
    %v9970 = vpop.f32.mrf.mxu0
    %v9971 = vadd.f32 %v9702, %v9970
    %v9972 = vpop.f32.mrf.mxu0
    %v9973 = vadd.f32 %v9704, %v9972
    %9974 = vmatmul.bf16.gmra.mxu0 %v2189
    %v9975 = vpop.f32.mrf.mxu0
    %v9976 = vadd.f32 %v9707, %v9975
    %v9977 = vpop.f32.mrf.mxu0
    %v9978 = vadd.f32 %v9709, %v9977
    %9979 = vmatmul.bf16.gmra.mxu0 %v2197
    %v9980 = vpop.f32.mrf.mxu0
    %v9981 = vadd.f32 %v9712, %v9980
    %v9982 = vpop.f32.mrf.mxu0
    %v9983 = vadd.f32 %v9714, %v9982
    %9984 = vmatmul.bf16.gmra.mxu0 %v2205
    %v9985 = vpop.f32.mrf.mxu0
    %v9986 = vadd.f32 %v9717, %v9985
    %v9987 = vpop.f32.mrf.mxu0
    %v9988 = vadd.f32 %v9719, %v9987
    %9989 = vmatmul.bf16.gmra.mxu0 %v2213
    %v9990 = vpop.f32.mrf.mxu0
    %v9991 = vadd.f32 %v9722, %v9990
    %v9992 = vpop.f32.mrf.mxu0
    %v9993 = vadd.f32 %v9724, %v9992
    %9994 = vmatmul.bf16.gmra.mxu0 %v2221
    %v9995 = vpop.f32.mrf.mxu0
    %v9996 = vadd.f32 %v9727, %v9995
    %v9997 = vpop.f32.mrf.mxu0
    %v9998 = vadd.f32 %v9729, %v9997
    %9999 = vmatmul.bf16.gmra.mxu0 %v2229
    %v10000 = vpop.f32.mrf.mxu0
    %v10001 = vadd.f32 %v9732, %v10000
    %v10002 = vpop.f32.mrf.mxu0
    %v10003 = vadd.f32 %v9734, %v10002
    %10004 = vmatmul.bf16.gmra.mxu0 %v2237
    %v10005 = vpop.f32.mrf.mxu0
    %v10006 = vadd.f32 %v9737, %v10005
    %v10007 = vpop.f32.mrf.mxu0
    %v10008 = vadd.f32 %v9739, %v10007
    %10009 = vmatmul.bf16.gmra.mxu0 %v2245
    %v10010 = vpop.f32.mrf.mxu0
    %v10011 = vadd.f32 %v9742, %v10010
    %v10012 = vpop.f32.mrf.mxu0
    %v10013 = vadd.f32 %v9744, %v10012
    %10014 = vmatmul.bf16.gmra.mxu0 %v2253
    %v10015 = vpop.f32.mrf.mxu0
    %v10016 = vadd.f32 %v9747, %v10015
    %v10017 = vpop.f32.mrf.mxu0
    %v10018 = vadd.f32 %v9749, %v10017
    %10019 = vmatmul.bf16.gmra.mxu0 %v2261
    %v10020 = vpop.f32.mrf.mxu0
    %v10021 = vadd.f32 %v9752, %v10020
    %v10022 = vpop.f32.mrf.mxu0
    %v10023 = vadd.f32 %v9754, %v10022
    %10024 = vmatmul.bf16.gmra.mxu0 %v2269
    %v10025 = vpop.f32.mrf.mxu0
    %v10026 = vadd.f32 %v9757, %v10025
    %v10027 = vpop.f32.mrf.mxu0
    %v10028 = vadd.f32 %v9759, %v10027
    %10029 = vmatmul.bf16.gmra.mxu0 %v2277
    %v10030 = vpop.f32.mrf.mxu0
    %v10031 = vadd.f32 %v9762, %v10030
    %v10032 = vpop.f32.mrf.mxu0
    %v10033 = vadd.f32 %v9764, %v10032
    %10034 = vmatmul.bf16.gmra.mxu0 %v2285
    %v10035 = vpop.f32.mrf.mxu0
    %v10036 = vadd.f32 %v9767, %v10035
    %v10037 = vpop.f32.mrf.mxu0
    %v10038 = vadd.f32 %v9769, %v10037
    %10039 = vmatmul.bf16.gmra.mxu0 %v2293
    %v10040 = vpop.f32.mrf.mxu0
    %v10041 = vadd.f32 %v9772, %v10040
    %v10042 = vpop.f32.mrf.mxu0
    %v10043 = vadd.f32 %v9774, %v10042
    %10044 = vmatmul.bf16.gmra.mxu0 %v2301
    %v10045 = vpop.f32.mrf.mxu0
    %v10046 = vadd.f32 %v9777, %v10045
    %v10047 = vpop.f32.mrf.mxu0
    %v10048 = vadd.f32 %v9779, %v10047
    %10049 = vmatmul.bf16.gmra.mxu0 %v2309
    %v10050 = vpop.f32.mrf.mxu0
    %v10051 = vadd.f32 %v9782, %v10050
    %v10052 = vpop.f32.mrf.mxu0
    %v10053 = vadd.f32 %v9784, %v10052
    %10054 = vmatmul.bf16.gmra.mxu0 %v2317
    %v10055 = vpop.f32.mrf.mxu0
    %v10056 = vadd.f32 %v9787, %v10055
    %v10057 = vpop.f32.mrf.mxu0
    %v10058 = vadd.f32 %v9789, %v10057
    %10059 = vmatmul.bf16.gmra.mxu0 %v2325
    %v10060 = vpop.f32.mrf.mxu0
    %v10061 = vadd.f32 %v9792, %v10060
    %v10062 = vpop.f32.mrf.mxu0
    %v10063 = vadd.f32 %v9794, %v10062
    %10064 = vmatmul.bf16.gmra.mxu0 %v2333
    %v10065 = vpop.f32.mrf.mxu0
    %v10066 = vadd.f32 %v9797, %v10065
    %v10067 = vpop.f32.mrf.mxu0
    %v10068 = vadd.f32 %v9799, %v10067
    %10069 = vmatmul.bf16.gmra.mxu0 %v2341
    %v10070 = vpop.f32.mrf.mxu0
    %v10071 = vadd.f32 %v9802, %v10070
    %v10072 = vpop.f32.mrf.mxu0
    %v10073 = vadd.f32 %v9804, %v10072
    %10074 = vmatmul.bf16.gmra.mxu0 %v2349
    %v10075 = vpop.f32.mrf.mxu0
    %v10076 = vadd.f32 %v9807, %v10075
    %v10077 = vpop.f32.mrf.mxu0
    %v10078 = vadd.f32 %v9809, %v10077
    %10079 = vmatmul.bf16.gmra.mxu0 %v2357
    %v10080 = vpop.f32.mrf.mxu0
    %v10081 = vadd.f32 %v9812, %v10080
    %v10082 = vpop.f32.mrf.mxu0
    %v10083 = vadd.f32 %v9814, %v10082
    %10084 = vmatmul.bf16.gmra.mxu0 %v2365
    %v10085 = vpop.f32.mrf.mxu0
    %v10086 = vadd.f32 %v9817, %v10085
    %v10087 = vpop.f32.mrf.mxu0
    %v10088 = vadd.f32 %v9819, %v10087
    %10089 = vmatmul.bf16.gmra.mxu0 %v2373
    %v10090 = vpop.f32.mrf.mxu0
    %v10091 = vadd.f32 %v9822, %v10090
    %v10092 = vpop.f32.mrf.mxu0
    %v10093 = vadd.f32 %v9824, %v10092
    %10094 = vmatmul.bf16.gmra.mxu0 %v2381
    %v10095 = vpop.f32.mrf.mxu0
    %v10096 = vadd.f32 %v9827, %v10095
    %v10097 = vpop.f32.mrf.mxu0
    %v10098 = vadd.f32 %v9829, %v10097
    %10099 = vmatmul.bf16.gmra.mxu0 %v2389
    %v10100 = vpop.f32.mrf.mxu0
    %v10101 = vadd.f32 %v9832, %v10100
    %v10102 = vpop.f32.mrf.mxu0
    %v10103 = vadd.f32 %v9834, %v10102
    %10104 = vmatmul.bf16.gmra.mxu0 %v2397
    %v10105 = vpop.f32.mrf.mxu0
    %v10106 = vadd.f32 %v9837, %v10105
    %v10107 = vpop.f32.mrf.mxu0
    %v10108 = vadd.f32 %v9839, %v10107
    %10109 = vmatmul.bf16.gmra.mxu0 %v2405
    %v10110 = vpop.f32.mrf.mxu0
    %v10111 = vadd.f32 %v9842, %v10110
    %v10112 = vpop.f32.mrf.mxu0
    %v10113 = vadd.f32 %v9844, %v10112
    %10114 = vmatmul.bf16.gmra.mxu0 %v2413
    %v10115 = vpop.f32.mrf.mxu0
    %v10116 = vadd.f32 %v9847, %v10115
    %v10117 = vpop.f32.mrf.mxu0
    %v10118 = vadd.f32 %v9849, %v10117
    %10119 = vmatmul.bf16.gmra.mxu0 %v2421
    %v10120 = vpop.f32.mrf.mxu0
    %v10121 = vadd.f32 %v9852, %v10120
    %v10122 = vpop.f32.mrf.mxu0
    %v10123 = vadd.f32 %v9854, %v10122
    %10124 = vmatmul.bf16.gmra.mxu0 %v2429
    %v10125 = vpop.f32.mrf.mxu0
    %v10126 = vadd.f32 %v9857, %v10125
    %v10127 = vpop.f32.mrf.mxu0
    %v10128 = vadd.f32 %v9859, %v10127
    %10129 = vmatmul.bf16.gmra.mxu0 %v2437
    %v10130 = vpop.f32.mrf.mxu0
    %v10131 = vadd.f32 %v9862, %v10130
    %v10132 = vpop.f32.mrf.mxu0
    %v10133 = vadd.f32 %v9864, %v10132
    %10134 = vmatmul.bf16.gmra.mxu0 %v2445
    %v10135 = vpop.f32.mrf.mxu0
    %v10136 = vadd.f32 %v9867, %v10135
    %v10137 = vpop.f32.mrf.mxu0
    %v10138 = vadd.f32 %v9869, %v10137
    %10139 = vmatmul.bf16.gmra.mxu0 %v2453
    %v10140 = vpop.f32.mrf.mxu0
    %v10141 = vadd.f32 %v9872, %v10140
    %v10142 = vpop.f32.mrf.mxu0
    %v10143 = vadd.f32 %v9874, %v10142
    %10144 = vmatmul.bf16.gmra.mxu0 %v2461
    %v10145 = vpop.f32.mrf.mxu0
    %v10146 = vadd.f32 %v9877, %v10145
    %v10147 = vpop.f32.mrf.mxu0
    %v10148 = vadd.f32 %v9879, %v10147
    %10149 = vmatmul.bf16.gmra.mxu0 %v2469
    %v10150 = vpop.f32.mrf.mxu0
    %v10151 = vadd.f32 %v9882, %v10150
    %v10152 = vpop.f32.mrf.mxu0
    %v10153 = vadd.f32 %v9884, %v10152
    %10154 = vmatmul.bf16.gmra.mxu0 %v2477
    %v10155 = vpop.f32.mrf.mxu0
    %v10156 = vadd.f32 %v9887, %v10155
    %v10157 = vpop.f32.mrf.mxu0
    %v10158 = vadd.f32 %v9889, %v10157
    %10159 = vmatmul.bf16.gmra.mxu0 %v2485
    %v10160 = vpop.f32.mrf.mxu0
    %v10161 = vadd.f32 %v9892, %v10160
    %v10162 = vpop.f32.mrf.mxu0
    %v10163 = vadd.f32 %v9894, %v10162
    %10164 = vmatmul.bf16.gmra.mxu0 %v2493
    %v10165 = vpop.f32.mrf.mxu0
    %v10166 = vadd.f32 %v9897, %v10165
    %v10167 = vpop.f32.mrf.mxu0
    %v10168 = vadd.f32 %v9899, %v10167
    %10169 = vmatmul.bf16.gmra.mxu0 %v2501
    %v10170 = vpop.f32.mrf.mxu0
    %v10171 = vadd.f32 %v9902, %v10170
    %v10172 = vpop.f32.mrf.mxu0
    %v10173 = vadd.f32 %v9904, %v10172
    %10174 = vmatmul.bf16.gmra.mxu0 %v2509
    %v10175 = vpop.f32.mrf.mxu0
    %v10176 = vadd.f32 %v9907, %v10175
    %v10177 = vpop.f32.mrf.mxu0
    %v10178 = vadd.f32 %v9909, %v10177
    %10179 = vmatmul.bf16.gmra.mxu0 %v2517
    %v10180 = vpop.f32.mrf.mxu0
    %v10181 = vadd.f32 %v9912, %v10180
    %v10182 = vpop.f32.mrf.mxu0
    %v10183 = vadd.f32 %v9914, %v10182
    %10184 = vdwg.mxu0
    %10185 = vmatpush.bf16.msra.mxu0 %v8549
    %10186 = vmatpush.bf16.msra.mxu0 %v8547
    %10187 = vmatpush.bf16.msra.mxu0 %v8545
    %10188 = vmatpush.bf16.msra.mxu0 %v8543
    %10189 = vmatpush.bf16.msra.mxu0 %v8541
    %10190 = vmatpush.bf16.msra.mxu0 %v8539
    %10191 = vmatpush.bf16.msra.mxu0 %v8537
    %10192 = vmatpush.bf16.msra.mxu0 %v8535
    %10193 = vmatmul.bf16.gmra.mxu0 %v2110
    %v10194 = vpop.f32.mrf.mxu0
    %v10195 = vadd.f32 %v9926, %v10194
    %v10196 = vpop.f32.mrf.mxu0
    %v10197 = vadd.f32 %v9928, %v10196
    %10198 = vmatmul.bf16.gmra.mxu0 %v2118
    %v10199 = vpop.f32.mrf.mxu0
    %v10200 = vadd.f32 %v9931, %v10199
    %v10201 = vpop.f32.mrf.mxu0
    %v10202 = vadd.f32 %v9933, %v10201
    %10203 = vmatmul.bf16.gmra.mxu0 %v2126
    %v10204 = vpop.f32.mrf.mxu0
    %v10205 = vadd.f32 %v9936, %v10204
    %v10206 = vpop.f32.mrf.mxu0
    %v10207 = vadd.f32 %v9938, %v10206
    %10208 = vmatmul.bf16.gmra.mxu0 %v2134
    %v10209 = vpop.f32.mrf.mxu0
    %v10210 = vadd.f32 %v9941, %v10209
    %v10211 = vpop.f32.mrf.mxu0
    %v10212 = vadd.f32 %v9943, %v10211
    %10213 = vmatmul.bf16.gmra.mxu0 %v2142
    %v10214 = vpop.f32.mrf.mxu0
    %v10215 = vadd.f32 %v9946, %v10214
    %v10216 = vpop.f32.mrf.mxu0
    %v10217 = vadd.f32 %v9948, %v10216
    %10218 = vmatmul.bf16.gmra.mxu0 %v2150
    %v10219 = vpop.f32.mrf.mxu0
    %v10220 = vadd.f32 %v9951, %v10219
    %v10221 = vpop.f32.mrf.mxu0
    %v10222 = vadd.f32 %v9953, %v10221
    %10223 = vmatmul.bf16.gmra.mxu0 %v2158
    %v10224 = vpop.f32.mrf.mxu0
    %v10225 = vadd.f32 %v9956, %v10224
    %v10226 = vpop.f32.mrf.mxu0
    %v10227 = vadd.f32 %v9958, %v10226
    %10228 = vmatmul.bf16.gmra.mxu0 %v2166
    %v10229 = vpop.f32.mrf.mxu0
    %v10230 = vadd.f32 %v9961, %v10229
    %v10231 = vpop.f32.mrf.mxu0
    %v10232 = vadd.f32 %v9963, %v10231
    %10233 = vmatmul.bf16.gmra.mxu0 %v2174
    %v10234 = vpop.f32.mrf.mxu0
    %v10235 = vadd.f32 %v9966, %v10234
    %v10236 = vpop.f32.mrf.mxu0
    %v10237 = vadd.f32 %v9968, %v10236
    %10238 = vmatmul.bf16.gmra.mxu0 %v2182
    %v10239 = vpop.f32.mrf.mxu0
    %v10240 = vadd.f32 %v9971, %v10239
    %v10241 = vpop.f32.mrf.mxu0
    %v10242 = vadd.f32 %v9973, %v10241
    %10243 = vmatmul.bf16.gmra.mxu0 %v2190
    %v10244 = vpop.f32.mrf.mxu0
    %v10245 = vadd.f32 %v9976, %v10244
    %v10246 = vpop.f32.mrf.mxu0
    %v10247 = vadd.f32 %v9978, %v10246
    %10248 = vmatmul.bf16.gmra.mxu0 %v2198
    %v10249 = vpop.f32.mrf.mxu0
    %v10250 = vadd.f32 %v9981, %v10249
    %v10251 = vpop.f32.mrf.mxu0
    %v10252 = vadd.f32 %v9983, %v10251
    %10253 = vmatmul.bf16.gmra.mxu0 %v2206
    %v10254 = vpop.f32.mrf.mxu0
    %v10255 = vadd.f32 %v9986, %v10254
    %v10256 = vpop.f32.mrf.mxu0
    %v10257 = vadd.f32 %v9988, %v10256
    %10258 = vmatmul.bf16.gmra.mxu0 %v2214
    %v10259 = vpop.f32.mrf.mxu0
    %v10260 = vadd.f32 %v9991, %v10259
    %v10261 = vpop.f32.mrf.mxu0
    %v10262 = vadd.f32 %v9993, %v10261
    %10263 = vmatmul.bf16.gmra.mxu0 %v2222
    %v10264 = vpop.f32.mrf.mxu0
    %v10265 = vadd.f32 %v9996, %v10264
    %v10266 = vpop.f32.mrf.mxu0
    %v10267 = vadd.f32 %v9998, %v10266
    %10268 = vmatmul.bf16.gmra.mxu0 %v2230
    %v10269 = vpop.f32.mrf.mxu0
    %v10270 = vadd.f32 %v10001, %v10269
    %v10271 = vpop.f32.mrf.mxu0
    %v10272 = vadd.f32 %v10003, %v10271
    %10273 = vmatmul.bf16.gmra.mxu0 %v2238
    %v10274 = vpop.f32.mrf.mxu0
    %v10275 = vadd.f32 %v10006, %v10274
    %v10276 = vpop.f32.mrf.mxu0
    %v10277 = vadd.f32 %v10008, %v10276
    %10278 = vmatmul.bf16.gmra.mxu0 %v2246
    %v10279 = vpop.f32.mrf.mxu0
    %v10280 = vadd.f32 %v10011, %v10279
    %v10281 = vpop.f32.mrf.mxu0
    %v10282 = vadd.f32 %v10013, %v10281
    %10283 = vmatmul.bf16.gmra.mxu0 %v2254
    %v10284 = vpop.f32.mrf.mxu0
    %v10285 = vadd.f32 %v10016, %v10284
    %v10286 = vpop.f32.mrf.mxu0
    %v10287 = vadd.f32 %v10018, %v10286
    %10288 = vmatmul.bf16.gmra.mxu0 %v2262
    %v10289 = vpop.f32.mrf.mxu0
    %v10290 = vadd.f32 %v10021, %v10289
    %v10291 = vpop.f32.mrf.mxu0
    %v10292 = vadd.f32 %v10023, %v10291
    %10293 = vmatmul.bf16.gmra.mxu0 %v2270
    %v10294 = vpop.f32.mrf.mxu0
    %v10295 = vadd.f32 %v10026, %v10294
    %v10296 = vpop.f32.mrf.mxu0
    %v10297 = vadd.f32 %v10028, %v10296
    %10298 = vmatmul.bf16.gmra.mxu0 %v2278
    %v10299 = vpop.f32.mrf.mxu0
    %v10300 = vadd.f32 %v10031, %v10299
    %v10301 = vpop.f32.mrf.mxu0
    %v10302 = vadd.f32 %v10033, %v10301
    %10303 = vmatmul.bf16.gmra.mxu0 %v2286
    %v10304 = vpop.f32.mrf.mxu0
    %v10305 = vadd.f32 %v10036, %v10304
    %v10306 = vpop.f32.mrf.mxu0
    %v10307 = vadd.f32 %v10038, %v10306
    %10308 = vmatmul.bf16.gmra.mxu0 %v2294
    %v10309 = vpop.f32.mrf.mxu0
    %v10310 = vadd.f32 %v10041, %v10309
    %v10311 = vpop.f32.mrf.mxu0
    %v10312 = vadd.f32 %v10043, %v10311
    %10313 = vmatmul.bf16.gmra.mxu0 %v2302
    %v10314 = vpop.f32.mrf.mxu0
    %v10315 = vadd.f32 %v10046, %v10314
    %v10316 = vpop.f32.mrf.mxu0
    %v10317 = vadd.f32 %v10048, %v10316
    %10318 = vmatmul.bf16.gmra.mxu0 %v2310
    %v10319 = vpop.f32.mrf.mxu0
    %v10320 = vadd.f32 %v10051, %v10319
    %v10321 = vpop.f32.mrf.mxu0
    %v10322 = vadd.f32 %v10053, %v10321
    %10323 = vmatmul.bf16.gmra.mxu0 %v2318
    %v10324 = vpop.f32.mrf.mxu0
    %v10325 = vadd.f32 %v10056, %v10324
    %v10326 = vpop.f32.mrf.mxu0
    %v10327 = vadd.f32 %v10058, %v10326
    %10328 = vmatmul.bf16.gmra.mxu0 %v2326
    %v10329 = vpop.f32.mrf.mxu0
    %v10330 = vadd.f32 %v10061, %v10329
    %v10331 = vpop.f32.mrf.mxu0
    %v10332 = vadd.f32 %v10063, %v10331
    %10333 = vmatmul.bf16.gmra.mxu0 %v2334
    %v10334 = vpop.f32.mrf.mxu0
    %v10335 = vadd.f32 %v10066, %v10334
    %v10336 = vpop.f32.mrf.mxu0
    %v10337 = vadd.f32 %v10068, %v10336
    %10338 = vmatmul.bf16.gmra.mxu0 %v2342
    %v10339 = vpop.f32.mrf.mxu0
    %v10340 = vadd.f32 %v10071, %v10339
    %v10341 = vpop.f32.mrf.mxu0
    %v10342 = vadd.f32 %v10073, %v10341
    %10343 = vmatmul.bf16.gmra.mxu0 %v2350
    %v10344 = vpop.f32.mrf.mxu0
    %v10345 = vadd.f32 %v10076, %v10344
    %v10346 = vpop.f32.mrf.mxu0
    %v10347 = vadd.f32 %v10078, %v10346
    %10348 = vmatmul.bf16.gmra.mxu0 %v2358
    %v10349 = vpop.f32.mrf.mxu0
    %v10350 = vadd.f32 %v10081, %v10349
    %v10351 = vpop.f32.mrf.mxu0
    %v10352 = vadd.f32 %v10083, %v10351
    %10353 = vmatmul.bf16.gmra.mxu0 %v2366
    %v10354 = vpop.f32.mrf.mxu0
    %v10355 = vadd.f32 %v10086, %v10354
    %v10356 = vpop.f32.mrf.mxu0
    %v10357 = vadd.f32 %v10088, %v10356
    %10358 = vmatmul.bf16.gmra.mxu0 %v2374
    %v10359 = vpop.f32.mrf.mxu0
    %v10360 = vadd.f32 %v10091, %v10359
    %v10361 = vpop.f32.mrf.mxu0
    %v10362 = vadd.f32 %v10093, %v10361
    %10363 = vmatmul.bf16.gmra.mxu0 %v2382
    %v10364 = vpop.f32.mrf.mxu0
    %v10365 = vadd.f32 %v10096, %v10364
    %v10366 = vpop.f32.mrf.mxu0
    %v10367 = vadd.f32 %v10098, %v10366
    %10368 = vmatmul.bf16.gmra.mxu0 %v2390
    %v10369 = vpop.f32.mrf.mxu0
    %v10370 = vadd.f32 %v10101, %v10369
    %v10371 = vpop.f32.mrf.mxu0
    %v10372 = vadd.f32 %v10103, %v10371
    %10373 = vmatmul.bf16.gmra.mxu0 %v2398
    %v10374 = vpop.f32.mrf.mxu0
    %v10375 = vadd.f32 %v10106, %v10374
    %v10376 = vpop.f32.mrf.mxu0
    %v10377 = vadd.f32 %v10108, %v10376
    %10378 = vmatmul.bf16.gmra.mxu0 %v2406
    %v10379 = vpop.f32.mrf.mxu0
    %v10380 = vadd.f32 %v10111, %v10379
    %v10381 = vpop.f32.mrf.mxu0
    %v10382 = vadd.f32 %v10113, %v10381
    %10383 = vmatmul.bf16.gmra.mxu0 %v2414
    %v10384 = vpop.f32.mrf.mxu0
    %v10385 = vadd.f32 %v10116, %v10384
    %v10386 = vpop.f32.mrf.mxu0
    %v10387 = vadd.f32 %v10118, %v10386
    %10388 = vmatmul.bf16.gmra.mxu0 %v2422
    %v10389 = vpop.f32.mrf.mxu0
    %v10390 = vadd.f32 %v10121, %v10389
    %v10391 = vpop.f32.mrf.mxu0
    %v10392 = vadd.f32 %v10123, %v10391
    %10393 = vmatmul.bf16.gmra.mxu0 %v2430
    %v10394 = vpop.f32.mrf.mxu0
    %v10395 = vadd.f32 %v10126, %v10394
    %v10396 = vpop.f32.mrf.mxu0
    %v10397 = vadd.f32 %v10128, %v10396
    %10398 = vmatmul.bf16.gmra.mxu0 %v2438
    %v10399 = vpop.f32.mrf.mxu0
    %v10400 = vadd.f32 %v10131, %v10399
    %v10401 = vpop.f32.mrf.mxu0
    %v10402 = vadd.f32 %v10133, %v10401
    %10403 = vmatmul.bf16.gmra.mxu0 %v2446
    %v10404 = vpop.f32.mrf.mxu0
    %v10405 = vadd.f32 %v10136, %v10404
    %v10406 = vpop.f32.mrf.mxu0
    %v10407 = vadd.f32 %v10138, %v10406
    %10408 = vmatmul.bf16.gmra.mxu0 %v2454
    %v10409 = vpop.f32.mrf.mxu0
    %v10410 = vadd.f32 %v10141, %v10409
    %v10411 = vpop.f32.mrf.mxu0
    %v10412 = vadd.f32 %v10143, %v10411
    %10413 = vmatmul.bf16.gmra.mxu0 %v2462
    %v10414 = vpop.f32.mrf.mxu0
    %v10415 = vadd.f32 %v10146, %v10414
    %v10416 = vpop.f32.mrf.mxu0
    %v10417 = vadd.f32 %v10148, %v10416
    %10418 = vmatmul.bf16.gmra.mxu0 %v2470
    %v10419 = vpop.f32.mrf.mxu0
    %v10420 = vadd.f32 %v10151, %v10419
    %v10421 = vpop.f32.mrf.mxu0
    %v10422 = vadd.f32 %v10153, %v10421
    %10423 = vmatmul.bf16.gmra.mxu0 %v2478
    %v10424 = vpop.f32.mrf.mxu0
    %v10425 = vadd.f32 %v10156, %v10424
    %v10426 = vpop.f32.mrf.mxu0
    %v10427 = vadd.f32 %v10158, %v10426
    %10428 = vmatmul.bf16.gmra.mxu0 %v2486
    %v10429 = vpop.f32.mrf.mxu0
    %v10430 = vadd.f32 %v10161, %v10429
    %v10431 = vpop.f32.mrf.mxu0
    %v10432 = vadd.f32 %v10163, %v10431
    %10433 = vmatmul.bf16.gmra.mxu0 %v2494
    %v10434 = vpop.f32.mrf.mxu0
    %v10435 = vadd.f32 %v10166, %v10434
    %v10436 = vpop.f32.mrf.mxu0
    %v10437 = vadd.f32 %v10168, %v10436
    %10438 = vmatmul.bf16.gmra.mxu0 %v2502
    %v10439 = vpop.f32.mrf.mxu0
    %v10440 = vadd.f32 %v10171, %v10439
    %v10441 = vpop.f32.mrf.mxu0
    %v10442 = vadd.f32 %v10173, %v10441
    %10443 = vmatmul.bf16.gmra.mxu0 %v2510
    %v10444 = vpop.f32.mrf.mxu0
    %v10445 = vadd.f32 %v10176, %v10444
    %v10446 = vpop.f32.mrf.mxu0
    %v10447 = vadd.f32 %v10178, %v10446
    %10448 = vmatmul.bf16.gmra.mxu0 %v2518
    %v10449 = vpop.f32.mrf.mxu0
    %v10450 = vadd.f32 %v10181, %v10449
    %v10451 = vpop.f32.mrf.mxu0
    %v10452 = vadd.f32 %v10183, %v10451
    %10453 = vdwg.mxu0
    %10454 = vmatpush.bf16.msra.mxu0 0
    %10455 = vmatpush.bf16.msra.mxu0 %v8566
    %10456 = vmatpush.bf16.msra.mxu0 %v8561
    %10457 = vmatpush.bf16.msra.mxu0 %v8559
    %10458 = vmatpush.bf16.msra.mxu0 %v8557
    %10459 = vmatpush.bf16.msra.mxu0 %v8555
    %10460 = vmatpush.bf16.msra.mxu0 %v8553
    %10461 = vmatpush.bf16.msra.mxu0 %v8551
    %10462 = vmatmul.bf16.gmra.mxu0 %v2886
    %v10463 = vpop.f32.mrf.mxu0
    %v10464 = vadd.f32 %v10195, %v10463
    %v10465 = vpop.f32.mrf.mxu0
    %v10466 = vadd.f32 %v10197, %v10465
    %10467 = vmatmul.bf16.gmra.mxu0 %v2889
    %v10468 = vpop.f32.mrf.mxu0
    %v10469 = vadd.f32 %v10200, %v10468
    %v10470 = vpop.f32.mrf.mxu0
    %v10471 = vadd.f32 %v10202, %v10470
    %10472 = vmatmul.bf16.gmra.mxu0 %v2892
    %v10473 = vpop.f32.mrf.mxu0
    %v10474 = vadd.f32 %v10205, %v10473
    %v10475 = vpop.f32.mrf.mxu0
    %v10476 = vadd.f32 %v10207, %v10475
    %10477 = vmatmul.bf16.gmra.mxu0 %v2895
    %v10478 = vpop.f32.mrf.mxu0
    %v10479 = vadd.f32 %v10210, %v10478
    %v10480 = vpop.f32.mrf.mxu0
    %v10481 = vadd.f32 %v10212, %v10480
    %10482 = vmatmul.bf16.gmra.mxu0 %v2898
    %v10483 = vpop.f32.mrf.mxu0
    %v10484 = vadd.f32 %v10215, %v10483
    %v10485 = vpop.f32.mrf.mxu0
    %v10486 = vadd.f32 %v10217, %v10485
    %10487 = vmatmul.bf16.gmra.mxu0 %v2901
    %v10488 = vpop.f32.mrf.mxu0
    %v10489 = vadd.f32 %v10220, %v10488
    %v10490 = vpop.f32.mrf.mxu0
    %v10491 = vadd.f32 %v10222, %v10490
    %10492 = vmatmul.bf16.gmra.mxu0 %v2904
    %v10493 = vpop.f32.mrf.mxu0
    %v10494 = vadd.f32 %v10225, %v10493
    %v10495 = vpop.f32.mrf.mxu0
    %v10496 = vadd.f32 %v10227, %v10495
    %10497 = vmatmul.bf16.gmra.mxu0 %v2907
    %v10498 = vpop.f32.mrf.mxu0
    %v10499 = vadd.f32 %v10230, %v10498
    %v10500 = vpop.f32.mrf.mxu0
    %v10501 = vadd.f32 %v10232, %v10500
    %10502 = vmatmul.bf16.gmra.mxu0 %v2910
    %v10503 = vpop.f32.mrf.mxu0
    %v10504 = vadd.f32 %v10235, %v10503
    %v10505 = vpop.f32.mrf.mxu0
    %v10506 = vadd.f32 %v10237, %v10505
    %10507 = vmatmul.bf16.gmra.mxu0 %v2913
    %v10508 = vpop.f32.mrf.mxu0
    %v10509 = vadd.f32 %v10240, %v10508
    %v10510 = vpop.f32.mrf.mxu0
    %v10511 = vadd.f32 %v10242, %v10510
    %10512 = vmatmul.bf16.gmra.mxu0 %v2916
    %v10513 = vpop.f32.mrf.mxu0
    %v10514 = vadd.f32 %v10245, %v10513
    %v10515 = vpop.f32.mrf.mxu0
    %v10516 = vadd.f32 %v10247, %v10515
    %10517 = vmatmul.bf16.gmra.mxu0 %v2919
    %v10518 = vpop.f32.mrf.mxu0
    %v10519 = vadd.f32 %v10250, %v10518
    %v10520 = vpop.f32.mrf.mxu0
    %v10521 = vadd.f32 %v10252, %v10520
    %10522 = vmatmul.bf16.gmra.mxu0 %v2922
    %v10523 = vpop.f32.mrf.mxu0
    %v10524 = vadd.f32 %v10255, %v10523
    %v10525 = vpop.f32.mrf.mxu0
    %v10526 = vadd.f32 %v10257, %v10525
    %10527 = vmatmul.bf16.gmra.mxu0 %v2925
    %v10528 = vpop.f32.mrf.mxu0
    %v10529 = vadd.f32 %v10260, %v10528
    %v10530 = vpop.f32.mrf.mxu0
    %v10531 = vadd.f32 %v10262, %v10530
    %10532 = vmatmul.bf16.gmra.mxu0 %v2928
    %v10533 = vpop.f32.mrf.mxu0
    %v10534 = vadd.f32 %v10265, %v10533
    %v10535 = vpop.f32.mrf.mxu0
    %v10536 = vadd.f32 %v10267, %v10535
    %10537 = vmatmul.bf16.gmra.mxu0 %v2931
    %v10538 = vpop.f32.mrf.mxu0
    %v10539 = vadd.f32 %v10270, %v10538
    %v10540 = vpop.f32.mrf.mxu0
    %v10541 = vadd.f32 %v10272, %v10540
    %10542 = vmatmul.bf16.gmra.mxu0 %v2934
    %v10543 = vpop.f32.mrf.mxu0
    %v10544 = vadd.f32 %v10275, %v10543
    %v10545 = vpop.f32.mrf.mxu0
    %v10546 = vadd.f32 %v10277, %v10545
    %10547 = vmatmul.bf16.gmra.mxu0 %v2937
    %v10548 = vpop.f32.mrf.mxu0
    %v10549 = vadd.f32 %v10280, %v10548
    %v10550 = vpop.f32.mrf.mxu0
    %v10551 = vadd.f32 %v10282, %v10550
    %10552 = vmatmul.bf16.gmra.mxu0 %v2940
    %v10553 = vpop.f32.mrf.mxu0
    %v10554 = vadd.f32 %v10285, %v10553
    %v10555 = vpop.f32.mrf.mxu0
    %v10556 = vadd.f32 %v10287, %v10555
    %10557 = vmatmul.bf16.gmra.mxu0 %v2943
    %v10558 = vpop.f32.mrf.mxu0
    %v10559 = vadd.f32 %v10290, %v10558
    %v10560 = vpop.f32.mrf.mxu0
    %v10561 = vadd.f32 %v10292, %v10560
    %10562 = vmatmul.bf16.gmra.mxu0 %v2946
    %v10563 = vpop.f32.mrf.mxu0
    %v10564 = vadd.f32 %v10295, %v10563
    %v10565 = vpop.f32.mrf.mxu0
    %v10566 = vadd.f32 %v10297, %v10565
    %10567 = vmatmul.bf16.gmra.mxu0 %v2949
    %v10568 = vpop.f32.mrf.mxu0
    %v10569 = vadd.f32 %v10300, %v10568
    %v10570 = vpop.f32.mrf.mxu0
    %v10571 = vadd.f32 %v10302, %v10570
    %10572 = vmatmul.bf16.gmra.mxu0 %v2952
    %v10573 = vpop.f32.mrf.mxu0
    %v10574 = vadd.f32 %v10305, %v10573
    %v10575 = vpop.f32.mrf.mxu0
    %v10576 = vadd.f32 %v10307, %v10575
    %10577 = vmatmul.bf16.gmra.mxu0 %v2955
    %v10578 = vpop.f32.mrf.mxu0
    %v10579 = vadd.f32 %v10310, %v10578
    %v10580 = vpop.f32.mrf.mxu0
    %v10581 = vadd.f32 %v10312, %v10580
    %10582 = vmatmul.bf16.gmra.mxu0 %v2958
    %v10583 = vpop.f32.mrf.mxu0
    %v10584 = vadd.f32 %v10315, %v10583
    %v10585 = vpop.f32.mrf.mxu0
    %v10586 = vadd.f32 %v10317, %v10585
    %10587 = vmatmul.bf16.gmra.mxu0 %v2961
    %v10588 = vpop.f32.mrf.mxu0
    %v10589 = vadd.f32 %v10320, %v10588
    %v10590 = vpop.f32.mrf.mxu0
    %v10591 = vadd.f32 %v10322, %v10590
    %10592 = vmatmul.bf16.gmra.mxu0 %v2964
    %v10593 = vpop.f32.mrf.mxu0
    %v10594 = vadd.f32 %v10325, %v10593
    %v10595 = vpop.f32.mrf.mxu0
    %v10596 = vadd.f32 %v10327, %v10595
    %10597 = vmatmul.bf16.gmra.mxu0 %v2967
    %v10598 = vpop.f32.mrf.mxu0
    %v10599 = vadd.f32 %v10330, %v10598
    %v10600 = vpop.f32.mrf.mxu0
    %v10601 = vadd.f32 %v10332, %v10600
    %10602 = vmatmul.bf16.gmra.mxu0 %v2970
    %v10603 = vpop.f32.mrf.mxu0
    %v10604 = vadd.f32 %v10335, %v10603
    %v10605 = vpop.f32.mrf.mxu0
    %v10606 = vadd.f32 %v10337, %v10605
    %10607 = vmatmul.bf16.gmra.mxu0 %v2973
    %v10608 = vpop.f32.mrf.mxu0
    %v10609 = vadd.f32 %v10340, %v10608
    %v10610 = vpop.f32.mrf.mxu0
    %v10611 = vadd.f32 %v10342, %v10610
    %10612 = vmatmul.bf16.gmra.mxu0 %v2976
    %v10613 = vpop.f32.mrf.mxu0
    %v10614 = vadd.f32 %v10345, %v10613
    %v10615 = vpop.f32.mrf.mxu0
    %v10616 = vadd.f32 %v10347, %v10615
    %10617 = vmatmul.bf16.gmra.mxu0 %v2979
    %v10618 = vpop.f32.mrf.mxu0
    %v10619 = vadd.f32 %v10350, %v10618
    %v10620 = vpop.f32.mrf.mxu0
    %v10621 = vadd.f32 %v10352, %v10620
    %10622 = vmatmul.bf16.gmra.mxu0 %v2982
    %v10623 = vpop.f32.mrf.mxu0
    %v10624 = vadd.f32 %v10355, %v10623
    %v10625 = vpop.f32.mrf.mxu0
    %v10626 = vadd.f32 %v10357, %v10625
    %10627 = vmatmul.bf16.gmra.mxu0 %v2985
    %v10628 = vpop.f32.mrf.mxu0
    %v10629 = vadd.f32 %v10360, %v10628
    %v10630 = vpop.f32.mrf.mxu0
    %v10631 = vadd.f32 %v10362, %v10630
    %10632 = vmatmul.bf16.gmra.mxu0 %v2988
    %v10633 = vpop.f32.mrf.mxu0
    %v10634 = vadd.f32 %v10365, %v10633
    %v10635 = vpop.f32.mrf.mxu0
    %v10636 = vadd.f32 %v10367, %v10635
    %10637 = vmatmul.bf16.gmra.mxu0 %v2991
    %v10638 = vpop.f32.mrf.mxu0
    %v10639 = vadd.f32 %v10370, %v10638
    %v10640 = vpop.f32.mrf.mxu0
    %v10641 = vadd.f32 %v10372, %v10640
    %10642 = vmatmul.bf16.gmra.mxu0 %v2994
    %v10643 = vpop.f32.mrf.mxu0
    %v10644 = vadd.f32 %v10375, %v10643
    %v10645 = vpop.f32.mrf.mxu0
    %v10646 = vadd.f32 %v10377, %v10645
    %10647 = vmatmul.bf16.gmra.mxu0 %v2997
    %v10648 = vpop.f32.mrf.mxu0
    %v10649 = vadd.f32 %v10380, %v10648
    %v10650 = vpop.f32.mrf.mxu0
    %v10651 = vadd.f32 %v10382, %v10650
    %10652 = vmatmul.bf16.gmra.mxu0 %v3000
    %v10653 = vpop.f32.mrf.mxu0
    %v10654 = vadd.f32 %v10385, %v10653
    %v10655 = vpop.f32.mrf.mxu0
    %v10656 = vadd.f32 %v10387, %v10655
    %10657 = vmatmul.bf16.gmra.mxu0 %v3003
    %v10658 = vpop.f32.mrf.mxu0
    %v10659 = vadd.f32 %v10390, %v10658
    %v10660 = vpop.f32.mrf.mxu0
    %v10661 = vadd.f32 %v10392, %v10660
    %10662 = vmatmul.bf16.gmra.mxu0 %v3006
    %v10663 = vpop.f32.mrf.mxu0
    %v10664 = vadd.f32 %v10395, %v10663
    %v10665 = vpop.f32.mrf.mxu0
    %v10666 = vadd.f32 %v10397, %v10665
    %10667 = vmatmul.bf16.gmra.mxu0 %v3009
    %v10668 = vpop.f32.mrf.mxu0
    %v10669 = vadd.f32 %v10400, %v10668
    %v10670 = vpop.f32.mrf.mxu0
    %v10671 = vadd.f32 %v10402, %v10670
    %10672 = vmatmul.bf16.gmra.mxu0 %v3012
    %v10673 = vpop.f32.mrf.mxu0
    %v10674 = vadd.f32 %v10405, %v10673
    %v10675 = vpop.f32.mrf.mxu0
    %v10676 = vadd.f32 %v10407, %v10675
    %10677 = vmatmul.bf16.gmra.mxu0 %v3015
    %v10678 = vpop.f32.mrf.mxu0
    %v10679 = vadd.f32 %v10410, %v10678
    %v10680 = vpop.f32.mrf.mxu0
    %v10681 = vadd.f32 %v10412, %v10680
    %10682 = vmatmul.bf16.gmra.mxu0 %v3018
    %v10683 = vpop.f32.mrf.mxu0
    %v10684 = vadd.f32 %v10415, %v10683
    %v10685 = vpop.f32.mrf.mxu0
    %v10686 = vadd.f32 %v10417, %v10685
    %10687 = vmatmul.bf16.gmra.mxu0 %v3021
    %v10688 = vpop.f32.mrf.mxu0
    %v10689 = vadd.f32 %v10420, %v10688
    %v10690 = vpop.f32.mrf.mxu0
    %v10691 = vadd.f32 %v10422, %v10690
    %10692 = vmatmul.bf16.gmra.mxu0 %v3024
    %v10693 = vpop.f32.mrf.mxu0
    %v10694 = vadd.f32 %v10425, %v10693
    %v10695 = vpop.f32.mrf.mxu0
    %v10696 = vadd.f32 %v10427, %v10695
    %10697 = vmatmul.bf16.gmra.mxu0 %v3027
    %v10698 = vpop.f32.mrf.mxu0
    %v10699 = vadd.f32 %v10430, %v10698
    %v10700 = vpop.f32.mrf.mxu0
    %v10701 = vadd.f32 %v10432, %v10700
    %10702 = vmatmul.bf16.gmra.mxu0 %v3030
    %v10703 = vpop.f32.mrf.mxu0
    %v10704 = vadd.f32 %v10435, %v10703
    %v10705 = vpop.f32.mrf.mxu0
    %v10706 = vadd.f32 %v10437, %v10705
    %10707 = vmatmul.bf16.gmra.mxu0 %v3033
    %v10708 = vpop.f32.mrf.mxu0
    %v10709 = vadd.f32 %v10440, %v10708
    %v10710 = vpop.f32.mrf.mxu0
    %v10711 = vadd.f32 %v10442, %v10710
    %10712 = vmatmul.bf16.gmra.mxu0 %v3036
    %v10713 = vpop.f32.mrf.mxu0
    %v10714 = vadd.f32 %v10445, %v10713
    %v10715 = vpop.f32.mrf.mxu0
    %v10716 = vadd.f32 %v10447, %v10715
    %10717 = vmatmul.bf16.gmra.mxu0 %v3039
    %v10718 = vpop.f32.mrf.mxu0
    %v10719 = vadd.f32 %v10450, %v10718
    %v10720 = vpop.f32.mrf.mxu0
    %v10721 = vadd.f32 %v10452, %v10720
    %10722 = vdwg.mxu0
    %10723 = vmatpush.bf16.msra.mxu0 %v8454
    %10724 = vmatpush.bf16.msra.mxu0 %v8452
    %10725 = vmatpush.bf16.msra.mxu0 %v8450
    %10726 = vmatpush.bf16.msra.mxu0 %v8448
    %10727 = vmatpush.bf16.msra.mxu0 %v8446
    %10728 = vmatpush.bf16.msra.mxu0 %v8444
    %10729 = vmatpush.bf16.msra.mxu0 %v8442
    %10730 = vmatpush.bf16.msra.mxu0 %v8440
    %10731 = vmatmul.bf16.gmra.mxu0 %v2104
    %v10732 = vpop.f32.mrf.mxu0
    %v10733 = vpop.f32.mrf.mxu0
    %10734 = vmatmul.bf16.gmra.mxu0 %v2112
    %v10735 = vpop.f32.mrf.mxu0
    %v10736 = vpop.f32.mrf.mxu0
    %10737 = vmatmul.bf16.gmra.mxu0 %v2120
    %v10738 = vpop.f32.mrf.mxu0
    %v10739 = vpop.f32.mrf.mxu0
    %10740 = vmatmul.bf16.gmra.mxu0 %v2128
    %v10741 = vpop.f32.mrf.mxu0
    %v10742 = vpop.f32.mrf.mxu0
    %10743 = vmatmul.bf16.gmra.mxu0 %v2136
    %v10744 = vpop.f32.mrf.mxu0
    %v10745 = vadd.f32 0.0, %v10744
    %v10746 = vpop.f32.mrf.mxu0
    %v10747 = vadd.f32 0.0, %v10746
    %10748 = vmatmul.bf16.gmra.mxu0 %v2144
    %v10749 = vpop.f32.mrf.mxu0
    %v10750 = vadd.f32 0.0, %v10749
    %v10751 = vpop.f32.mrf.mxu0
    %v10752 = vadd.f32 0.0, %v10751
    %10753 = vmatmul.bf16.gmra.mxu0 %v2152
    %v10754 = vpop.f32.mrf.mxu0
    %v10755 = vadd.f32 0.0, %v10754
    %v10756 = vpop.f32.mrf.mxu0
    %v10757 = vadd.f32 0.0, %v10756
    %10758 = vmatmul.bf16.gmra.mxu0 %v2160
    %v10759 = vpop.f32.mrf.mxu0
    %v10760 = vadd.f32 0.0, %v10759
    %v10761 = vpop.f32.mrf.mxu0
    %v10762 = vadd.f32 0.0, %v10761
    %10763 = vmatmul.bf16.gmra.mxu0 %v2168
    %v10764 = vpop.f32.mrf.mxu0
    %v10765 = vadd.f32 0.0, %v10764
    %v10766 = vpop.f32.mrf.mxu0
    %v10767 = vadd.f32 0.0, %v10766
    %10768 = vmatmul.bf16.gmra.mxu0 %v2176
    %v10769 = vpop.f32.mrf.mxu0
    %v10770 = vadd.f32 0.0, %v10769
    %v10771 = vpop.f32.mrf.mxu0
    %v10772 = vadd.f32 0.0, %v10771
    %10773 = vmatmul.bf16.gmra.mxu0 %v2184
    %v10774 = vpop.f32.mrf.mxu0
    %v10775 = vadd.f32 0.0, %v10774
    %v10776 = vpop.f32.mrf.mxu0
    %v10777 = vadd.f32 0.0, %v10776
    %10778 = vmatmul.bf16.gmra.mxu0 %v2192
    %v10779 = vpop.f32.mrf.mxu0
    %v10780 = vadd.f32 0.0, %v10779
    %v10781 = vpop.f32.mrf.mxu0
    %v10782 = vadd.f32 0.0, %v10781
    %10783 = vmatmul.bf16.gmra.mxu0 %v2200
    %v10784 = vpop.f32.mrf.mxu0
    %v10785 = vadd.f32 0.0, %v10784
    %v10786 = vpop.f32.mrf.mxu0
    %v10787 = vadd.f32 0.0, %v10786
    %10788 = vmatmul.bf16.gmra.mxu0 %v2208
    %v10789 = vpop.f32.mrf.mxu0
    %v10790 = vadd.f32 0.0, %v10789
    %v10791 = vpop.f32.mrf.mxu0
    %v10792 = vadd.f32 0.0, %v10791
    %10793 = vmatmul.bf16.gmra.mxu0 %v2216
    %v10794 = vpop.f32.mrf.mxu0
    %v10795 = vadd.f32 0.0, %v10794
    %v10796 = vpop.f32.mrf.mxu0
    %v10797 = vadd.f32 0.0, %v10796
    %10798 = vmatmul.bf16.gmra.mxu0 %v2224
    %v10799 = vpop.f32.mrf.mxu0
    %v10800 = vadd.f32 0.0, %v10799
    %v10801 = vpop.f32.mrf.mxu0
    %v10802 = vadd.f32 0.0, %v10801
    %10803 = vmatmul.bf16.gmra.mxu0 %v2232
    %v10804 = vpop.f32.mrf.mxu0
    %v10805 = vadd.f32 0.0, %v10804
    %v10806 = vpop.f32.mrf.mxu0
    %v10807 = vadd.f32 0.0, %v10806
    %10808 = vmatmul.bf16.gmra.mxu0 %v2240
    %v10809 = vpop.f32.mrf.mxu0
    %v10810 = vadd.f32 0.0, %v10809
    %v10811 = vpop.f32.mrf.mxu0
    %v10812 = vadd.f32 0.0, %v10811
    %10813 = vmatmul.bf16.gmra.mxu0 %v2248
    %v10814 = vpop.f32.mrf.mxu0
    %v10815 = vadd.f32 0.0, %v10814
    %v10816 = vpop.f32.mrf.mxu0
    %v10817 = vadd.f32 0.0, %v10816
    %10818 = vmatmul.bf16.gmra.mxu0 %v2256
    %v10819 = vpop.f32.mrf.mxu0
    %v10820 = vadd.f32 0.0, %v10819
    %v10821 = vpop.f32.mrf.mxu0
    %v10822 = vadd.f32 0.0, %v10821
    %10823 = vmatmul.bf16.gmra.mxu0 %v2264
    %v10824 = vpop.f32.mrf.mxu0
    %v10825 = vadd.f32 0.0, %v10824
    %v10826 = vpop.f32.mrf.mxu0
    %v10827 = vadd.f32 0.0, %v10826
    %10828 = vmatmul.bf16.gmra.mxu0 %v2272
    %v10829 = vpop.f32.mrf.mxu0
    %v10830 = vadd.f32 0.0, %v10829
    %v10831 = vpop.f32.mrf.mxu0
    %v10832 = vadd.f32 0.0, %v10831
    %10833 = vmatmul.bf16.gmra.mxu0 %v2280
    %v10834 = vpop.f32.mrf.mxu0
    %v10835 = vadd.f32 0.0, %v10834
    %v10836 = vpop.f32.mrf.mxu0
    %v10837 = vadd.f32 0.0, %v10836
    %10838 = vmatmul.bf16.gmra.mxu0 %v2288
    %v10839 = vpop.f32.mrf.mxu0
    %v10840 = vadd.f32 0.0, %v10839
    %v10841 = vpop.f32.mrf.mxu0
    %v10842 = vadd.f32 0.0, %v10841
    %10843 = vmatmul.bf16.gmra.mxu0 %v2296
    %v10844 = vpop.f32.mrf.mxu0
    %v10845 = vadd.f32 0.0, %v10844
    %v10846 = vpop.f32.mrf.mxu0
    %v10847 = vadd.f32 0.0, %v10846
    %10848 = vmatmul.bf16.gmra.mxu0 %v2304
    %v10849 = vpop.f32.mrf.mxu0
    %v10850 = vadd.f32 0.0, %v10849
    %v10851 = vpop.f32.mrf.mxu0
    %v10852 = vadd.f32 0.0, %v10851
    %10853 = vmatmul.bf16.gmra.mxu0 %v2312
    %v10854 = vpop.f32.mrf.mxu0
    %v10855 = vadd.f32 0.0, %v10854
    %v10856 = vpop.f32.mrf.mxu0
    %v10857 = vadd.f32 0.0, %v10856
    %10858 = vmatmul.bf16.gmra.mxu0 %v2320
    %v10859 = vpop.f32.mrf.mxu0
    %v10860 = vadd.f32 0.0, %v10859
    %v10861 = vpop.f32.mrf.mxu0
    %v10862 = vadd.f32 0.0, %v10861
    %10863 = vmatmul.bf16.gmra.mxu0 %v2328
    %v10864 = vpop.f32.mrf.mxu0
    %v10865 = vadd.f32 0.0, %v10864
    %v10866 = vpop.f32.mrf.mxu0
    %v10867 = vadd.f32 0.0, %v10866
    %10868 = vmatmul.bf16.gmra.mxu0 %v2336
    %v10869 = vpop.f32.mrf.mxu0
    %v10870 = vadd.f32 0.0, %v10869
    %v10871 = vpop.f32.mrf.mxu0
    %v10872 = vadd.f32 0.0, %v10871
    %10873 = vmatmul.bf16.gmra.mxu0 %v2344
    %v10874 = vpop.f32.mrf.mxu0
    %v10875 = vadd.f32 0.0, %v10874
    %v10876 = vpop.f32.mrf.mxu0
    %v10877 = vadd.f32 0.0, %v10876
    %10878 = vmatmul.bf16.gmra.mxu0 %v2352
    %v10879 = vpop.f32.mrf.mxu0
    %v10880 = vadd.f32 0.0, %v10879
    %v10881 = vpop.f32.mrf.mxu0
    %v10882 = vadd.f32 0.0, %v10881
    %10883 = vmatmul.bf16.gmra.mxu0 %v2360
    %v10884 = vpop.f32.mrf.mxu0
    %v10885 = vadd.f32 0.0, %v10884
    %v10886 = vpop.f32.mrf.mxu0
    %v10887 = vadd.f32 0.0, %v10886
    %10888 = vmatmul.bf16.gmra.mxu0 %v2368
    %v10889 = vpop.f32.mrf.mxu0
    %v10890 = vadd.f32 0.0, %v10889
    %v10891 = vpop.f32.mrf.mxu0
    %v10892 = vadd.f32 0.0, %v10891
    %10893 = vmatmul.bf16.gmra.mxu0 %v2376
    %v10894 = vpop.f32.mrf.mxu0
    %v10895 = vadd.f32 0.0, %v10894
    %v10896 = vpop.f32.mrf.mxu0
    %v10897 = vadd.f32 0.0, %v10896
    %10898 = vmatmul.bf16.gmra.mxu0 %v2384
    %v10899 = vpop.f32.mrf.mxu0
    %v10900 = vadd.f32 0.0, %v10899
    %v10901 = vpop.f32.mrf.mxu0
    %v10902 = vadd.f32 0.0, %v10901
    %10903 = vmatmul.bf16.gmra.mxu0 %v2392
    %v10904 = vpop.f32.mrf.mxu0
    %v10905 = vadd.f32 0.0, %v10904
    %v10906 = vpop.f32.mrf.mxu0
    %v10907 = vadd.f32 0.0, %v10906
    %10908 = vmatmul.bf16.gmra.mxu0 %v2400
    %v10909 = vpop.f32.mrf.mxu0
    %v10910 = vadd.f32 0.0, %v10909
    %v10911 = vpop.f32.mrf.mxu0
    %v10912 = vadd.f32 0.0, %v10911
    %10913 = vmatmul.bf16.gmra.mxu0 %v2408
    %v10914 = vpop.f32.mrf.mxu0
    %v10915 = vadd.f32 0.0, %v10914
    %v10916 = vpop.f32.mrf.mxu0
    %v10917 = vadd.f32 0.0, %v10916
    %10918 = vmatmul.bf16.gmra.mxu0 %v2416
    %v10919 = vpop.f32.mrf.mxu0
    %v10920 = vadd.f32 0.0, %v10919
    %v10921 = vpop.f32.mrf.mxu0
    %v10922 = vadd.f32 0.0, %v10921
    %10923 = vmatmul.bf16.gmra.mxu0 %v2424
    %v10924 = vpop.f32.mrf.mxu0
    %v10925 = vadd.f32 0.0, %v10924
    %v10926 = vpop.f32.mrf.mxu0
    %v10927 = vadd.f32 0.0, %v10926
    %10928 = vmatmul.bf16.gmra.mxu0 %v2432
    %v10929 = vpop.f32.mrf.mxu0
    %v10930 = vadd.f32 0.0, %v10929
    %v10931 = vpop.f32.mrf.mxu0
    %v10932 = vadd.f32 0.0, %v10931
    %10933 = vmatmul.bf16.gmra.mxu0 %v2440
    %v10934 = vpop.f32.mrf.mxu0
    %v10935 = vadd.f32 0.0, %v10934
    %v10936 = vpop.f32.mrf.mxu0
    %v10937 = vadd.f32 0.0, %v10936
    %10938 = vmatmul.bf16.gmra.mxu0 %v2448
    %v10939 = vpop.f32.mrf.mxu0
    %v10940 = vadd.f32 0.0, %v10939
    %v10941 = vpop.f32.mrf.mxu0
    %v10942 = vadd.f32 0.0, %v10941
    %10943 = vmatmul.bf16.gmra.mxu0 %v2456
    %v10944 = vpop.f32.mrf.mxu0
    %v10945 = vadd.f32 0.0, %v10944
    %v10946 = vpop.f32.mrf.mxu0
    %v10947 = vadd.f32 0.0, %v10946
    %10948 = vmatmul.bf16.gmra.mxu0 %v2464
    %v10949 = vpop.f32.mrf.mxu0
    %v10950 = vadd.f32 0.0, %v10949
    %v10951 = vpop.f32.mrf.mxu0
    %v10952 = vadd.f32 0.0, %v10951
    %10953 = vmatmul.bf16.gmra.mxu0 %v2472
    %v10954 = vpop.f32.mrf.mxu0
    %v10955 = vadd.f32 0.0, %v10954
    %v10956 = vpop.f32.mrf.mxu0
    %v10957 = vadd.f32 0.0, %v10956
    %10958 = vmatmul.bf16.gmra.mxu0 %v2480
    %v10959 = vpop.f32.mrf.mxu0
    %v10960 = vadd.f32 0.0, %v10959
    %v10961 = vpop.f32.mrf.mxu0
    %v10962 = vadd.f32 0.0, %v10961
    %10963 = vmatmul.bf16.gmra.mxu0 %v2488
    %v10964 = vpop.f32.mrf.mxu0
    %v10965 = vadd.f32 0.0, %v10964
    %v10966 = vpop.f32.mrf.mxu0
    %v10967 = vadd.f32 0.0, %v10966
    %10968 = vmatmul.bf16.gmra.mxu0 %v2496
    %v10969 = vpop.f32.mrf.mxu0
    %v10970 = vadd.f32 0.0, %v10969
    %v10971 = vpop.f32.mrf.mxu0
    %v10972 = vadd.f32 0.0, %v10971
    %10973 = vmatmul.bf16.gmra.mxu0 %v2504
    %v10974 = vpop.f32.mrf.mxu0
    %v10975 = vadd.f32 0.0, %v10974
    %v10976 = vpop.f32.mrf.mxu0
    %v10977 = vadd.f32 0.0, %v10976
    %10978 = vmatmul.bf16.gmra.mxu0 %v2512
    %v10979 = vpop.f32.mrf.mxu0
    %v10980 = vadd.f32 0.0, %v10979
    %v10981 = vpop.f32.mrf.mxu0
    %v10982 = vadd.f32 0.0, %v10981
    %10983 = vdwg.mxu0
    %10984 = vmatpush.bf16.msra.mxu0 %v8470
    %10985 = vmatpush.bf16.msra.mxu0 %v8468
    %10986 = vmatpush.bf16.msra.mxu0 %v8466
    %10987 = vmatpush.bf16.msra.mxu0 %v8464
    %10988 = vmatpush.bf16.msra.mxu0 %v8462
    %10989 = vmatpush.bf16.msra.mxu0 %v8460
    %10990 = vmatpush.bf16.msra.mxu0 %v8458
    %10991 = vmatpush.bf16.msra.mxu0 %v8456
    %10992 = vmatmul.bf16.gmra.mxu0 %v2105
    %v10993 = vpop.f32.mrf.mxu0
    %v10994 = vpop.f32.mrf.mxu0
    %10995 = vmatmul.bf16.gmra.mxu0 %v2113
    %v10996 = vpop.f32.mrf.mxu0
    %v10997 = vpop.f32.mrf.mxu0
    %10998 = vmatmul.bf16.gmra.mxu0 %v2121
    %v10999 = vpop.f32.mrf.mxu0
    %v11000 = vpop.f32.mrf.mxu0
    %11001 = vmatmul.bf16.gmra.mxu0 %v2129
    %v11002 = vpop.f32.mrf.mxu0
    %v11003 = vpop.f32.mrf.mxu0
    %11004 = vmatmul.bf16.gmra.mxu0 %v2137
    %v11005 = vpop.f32.mrf.mxu0
    %v11006 = vadd.f32 %v10745, %v11005
    %v11007 = vpop.f32.mrf.mxu0
    %v11008 = vadd.f32 %v10747, %v11007
    %11009 = vmatmul.bf16.gmra.mxu0 %v2145
    %v11010 = vpop.f32.mrf.mxu0
    %v11011 = vadd.f32 %v10750, %v11010
    %v11012 = vpop.f32.mrf.mxu0
    %v11013 = vadd.f32 %v10752, %v11012
    %11014 = vmatmul.bf16.gmra.mxu0 %v2153
    %v11015 = vpop.f32.mrf.mxu0
    %v11016 = vadd.f32 %v10755, %v11015
    %v11017 = vpop.f32.mrf.mxu0
    %v11018 = vadd.f32 %v10757, %v11017
    %11019 = vmatmul.bf16.gmra.mxu0 %v2161
    %v11020 = vpop.f32.mrf.mxu0
    %v11021 = vadd.f32 %v10760, %v11020
    %v11022 = vpop.f32.mrf.mxu0
    %v11023 = vadd.f32 %v10762, %v11022
    %11024 = vmatmul.bf16.gmra.mxu0 %v2169
    %v11025 = vpop.f32.mrf.mxu0
    %v11026 = vadd.f32 %v10765, %v11025
    %v11027 = vpop.f32.mrf.mxu0
    %v11028 = vadd.f32 %v10767, %v11027
    %11029 = vmatmul.bf16.gmra.mxu0 %v2177
    %v11030 = vpop.f32.mrf.mxu0
    %v11031 = vadd.f32 %v10770, %v11030
    %v11032 = vpop.f32.mrf.mxu0
    %v11033 = vadd.f32 %v10772, %v11032
    %11034 = vmatmul.bf16.gmra.mxu0 %v2185
    %v11035 = vpop.f32.mrf.mxu0
    %v11036 = vadd.f32 %v10775, %v11035
    %v11037 = vpop.f32.mrf.mxu0
    %v11038 = vadd.f32 %v10777, %v11037
    %11039 = vmatmul.bf16.gmra.mxu0 %v2193
    %v11040 = vpop.f32.mrf.mxu0
    %v11041 = vadd.f32 %v10780, %v11040
    %v11042 = vpop.f32.mrf.mxu0
    %v11043 = vadd.f32 %v10782, %v11042
    %11044 = vmatmul.bf16.gmra.mxu0 %v2201
    %v11045 = vpop.f32.mrf.mxu0
    %v11046 = vadd.f32 %v10785, %v11045
    %v11047 = vpop.f32.mrf.mxu0
    %v11048 = vadd.f32 %v10787, %v11047
    %11049 = vmatmul.bf16.gmra.mxu0 %v2209
    %v11050 = vpop.f32.mrf.mxu0
    %v11051 = vadd.f32 %v10790, %v11050
    %v11052 = vpop.f32.mrf.mxu0
    %v11053 = vadd.f32 %v10792, %v11052
    %11054 = vmatmul.bf16.gmra.mxu0 %v2217
    %v11055 = vpop.f32.mrf.mxu0
    %v11056 = vadd.f32 %v10795, %v11055
    %v11057 = vpop.f32.mrf.mxu0
    %v11058 = vadd.f32 %v10797, %v11057
    %11059 = vmatmul.bf16.gmra.mxu0 %v2225
    %v11060 = vpop.f32.mrf.mxu0
    %v11061 = vadd.f32 %v10800, %v11060
    %v11062 = vpop.f32.mrf.mxu0
    %v11063 = vadd.f32 %v10802, %v11062
    %11064 = vmatmul.bf16.gmra.mxu0 %v2233
    %v11065 = vpop.f32.mrf.mxu0
    %v11066 = vadd.f32 %v10805, %v11065
    %v11067 = vpop.f32.mrf.mxu0
    %v11068 = vadd.f32 %v10807, %v11067
    %11069 = vmatmul.bf16.gmra.mxu0 %v2241
    %v11070 = vpop.f32.mrf.mxu0
    %v11071 = vadd.f32 %v10810, %v11070
    %v11072 = vpop.f32.mrf.mxu0
    %v11073 = vadd.f32 %v10812, %v11072
    %11074 = vmatmul.bf16.gmra.mxu0 %v2249
    %v11075 = vpop.f32.mrf.mxu0
    %v11076 = vadd.f32 %v10815, %v11075
    %v11077 = vpop.f32.mrf.mxu0
    %v11078 = vadd.f32 %v10817, %v11077
    %11079 = vmatmul.bf16.gmra.mxu0 %v2257
    %v11080 = vpop.f32.mrf.mxu0
    %v11081 = vadd.f32 %v10820, %v11080
    %v11082 = vpop.f32.mrf.mxu0
    %v11083 = vadd.f32 %v10822, %v11082
    %11084 = vmatmul.bf16.gmra.mxu0 %v2265
    %v11085 = vpop.f32.mrf.mxu0
    %v11086 = vadd.f32 %v10825, %v11085
    %v11087 = vpop.f32.mrf.mxu0
    %v11088 = vadd.f32 %v10827, %v11087
    %11089 = vmatmul.bf16.gmra.mxu0 %v2273
    %v11090 = vpop.f32.mrf.mxu0
    %v11091 = vadd.f32 %v10830, %v11090
    %v11092 = vpop.f32.mrf.mxu0
    %v11093 = vadd.f32 %v10832, %v11092
    %11094 = vmatmul.bf16.gmra.mxu0 %v2281
    %v11095 = vpop.f32.mrf.mxu0
    %v11096 = vadd.f32 %v10835, %v11095
    %v11097 = vpop.f32.mrf.mxu0
    %v11098 = vadd.f32 %v10837, %v11097
    %11099 = vmatmul.bf16.gmra.mxu0 %v2289
    %v11100 = vpop.f32.mrf.mxu0
    %v11101 = vadd.f32 %v10840, %v11100
    %v11102 = vpop.f32.mrf.mxu0
    %v11103 = vadd.f32 %v10842, %v11102
    %11104 = vmatmul.bf16.gmra.mxu0 %v2297
    %v11105 = vpop.f32.mrf.mxu0
    %v11106 = vadd.f32 %v10845, %v11105
    %v11107 = vpop.f32.mrf.mxu0
    %v11108 = vadd.f32 %v10847, %v11107
    %11109 = vmatmul.bf16.gmra.mxu0 %v2305
    %v11110 = vpop.f32.mrf.mxu0
    %v11111 = vadd.f32 %v10850, %v11110
    %v11112 = vpop.f32.mrf.mxu0
    %v11113 = vadd.f32 %v10852, %v11112
    %11114 = vmatmul.bf16.gmra.mxu0 %v2313
    %v11115 = vpop.f32.mrf.mxu0
    %v11116 = vadd.f32 %v10855, %v11115
    %v11117 = vpop.f32.mrf.mxu0
    %v11118 = vadd.f32 %v10857, %v11117
    %11119 = vmatmul.bf16.gmra.mxu0 %v2321
    %v11120 = vpop.f32.mrf.mxu0
    %v11121 = vadd.f32 %v10860, %v11120
    %v11122 = vpop.f32.mrf.mxu0
    %v11123 = vadd.f32 %v10862, %v11122
    %11124 = vmatmul.bf16.gmra.mxu0 %v2329
    %v11125 = vpop.f32.mrf.mxu0
    %v11126 = vadd.f32 %v10865, %v11125
    %v11127 = vpop.f32.mrf.mxu0
    %v11128 = vadd.f32 %v10867, %v11127
    %11129 = vmatmul.bf16.gmra.mxu0 %v2337
    %v11130 = vpop.f32.mrf.mxu0
    %v11131 = vadd.f32 %v10870, %v11130
    %v11132 = vpop.f32.mrf.mxu0
    %v11133 = vadd.f32 %v10872, %v11132
    %11134 = vmatmul.bf16.gmra.mxu0 %v2345
    %v11135 = vpop.f32.mrf.mxu0
    %v11136 = vadd.f32 %v10875, %v11135
    %v11137 = vpop.f32.mrf.mxu0
    %v11138 = vadd.f32 %v10877, %v11137
    %11139 = vmatmul.bf16.gmra.mxu0 %v2353
    %v11140 = vpop.f32.mrf.mxu0
    %v11141 = vadd.f32 %v10880, %v11140
    %v11142 = vpop.f32.mrf.mxu0
    %v11143 = vadd.f32 %v10882, %v11142
    %11144 = vmatmul.bf16.gmra.mxu0 %v2361
    %v11145 = vpop.f32.mrf.mxu0
    %v11146 = vadd.f32 %v10885, %v11145
    %v11147 = vpop.f32.mrf.mxu0
    %v11148 = vadd.f32 %v10887, %v11147
    %11149 = vmatmul.bf16.gmra.mxu0 %v2369
    %v11150 = vpop.f32.mrf.mxu0
    %v11151 = vadd.f32 %v10890, %v11150
    %v11152 = vpop.f32.mrf.mxu0
    %v11153 = vadd.f32 %v10892, %v11152
    %11154 = vmatmul.bf16.gmra.mxu0 %v2377
    %v11155 = vpop.f32.mrf.mxu0
    %v11156 = vadd.f32 %v10895, %v11155
    %v11157 = vpop.f32.mrf.mxu0
    %v11158 = vadd.f32 %v10897, %v11157
    %11159 = vmatmul.bf16.gmra.mxu0 %v2385
    %v11160 = vpop.f32.mrf.mxu0
    %v11161 = vadd.f32 %v10900, %v11160
    %v11162 = vpop.f32.mrf.mxu0
    %v11163 = vadd.f32 %v10902, %v11162
    %11164 = vmatmul.bf16.gmra.mxu0 %v2393
    %v11165 = vpop.f32.mrf.mxu0
    %v11166 = vadd.f32 %v10905, %v11165
    %v11167 = vpop.f32.mrf.mxu0
    %v11168 = vadd.f32 %v10907, %v11167
    %11169 = vmatmul.bf16.gmra.mxu0 %v2401
    %v11170 = vpop.f32.mrf.mxu0
    %v11171 = vadd.f32 %v10910, %v11170
    %v11172 = vpop.f32.mrf.mxu0
    %v11173 = vadd.f32 %v10912, %v11172
    %11174 = vmatmul.bf16.gmra.mxu0 %v2409
    %v11175 = vpop.f32.mrf.mxu0
    %v11176 = vadd.f32 %v10915, %v11175
    %v11177 = vpop.f32.mrf.mxu0
    %v11178 = vadd.f32 %v10917, %v11177
    %11179 = vmatmul.bf16.gmra.mxu0 %v2417
    %v11180 = vpop.f32.mrf.mxu0
    %v11181 = vadd.f32 %v10920, %v11180
    %v11182 = vpop.f32.mrf.mxu0
    %v11183 = vadd.f32 %v10922, %v11182
    %11184 = vmatmul.bf16.gmra.mxu0 %v2425
    %v11185 = vpop.f32.mrf.mxu0
    %v11186 = vadd.f32 %v10925, %v11185
    %v11187 = vpop.f32.mrf.mxu0
    %v11188 = vadd.f32 %v10927, %v11187
    %11189 = vmatmul.bf16.gmra.mxu0 %v2433
    %v11190 = vpop.f32.mrf.mxu0
    %v11191 = vadd.f32 %v10930, %v11190
    %v11192 = vpop.f32.mrf.mxu0
    %v11193 = vadd.f32 %v10932, %v11192
    %11194 = vmatmul.bf16.gmra.mxu0 %v2441
    %v11195 = vpop.f32.mrf.mxu0
    %v11196 = vadd.f32 %v10935, %v11195
    %v11197 = vpop.f32.mrf.mxu0
    %v11198 = vadd.f32 %v10937, %v11197
    %11199 = vmatmul.bf16.gmra.mxu0 %v2449
    %v11200 = vpop.f32.mrf.mxu0
    %v11201 = vadd.f32 %v10940, %v11200
    %v11202 = vpop.f32.mrf.mxu0
    %v11203 = vadd.f32 %v10942, %v11202
    %11204 = vmatmul.bf16.gmra.mxu0 %v2457
    %v11205 = vpop.f32.mrf.mxu0
    %v11206 = vadd.f32 %v10945, %v11205
    %v11207 = vpop.f32.mrf.mxu0
    %v11208 = vadd.f32 %v10947, %v11207
    %11209 = vmatmul.bf16.gmra.mxu0 %v2465
    %v11210 = vpop.f32.mrf.mxu0
    %v11211 = vadd.f32 %v10950, %v11210
    %v11212 = vpop.f32.mrf.mxu0
    %v11213 = vadd.f32 %v10952, %v11212
    %11214 = vmatmul.bf16.gmra.mxu0 %v2473
    %v11215 = vpop.f32.mrf.mxu0
    %v11216 = vadd.f32 %v10955, %v11215
    %v11217 = vpop.f32.mrf.mxu0
    %v11218 = vadd.f32 %v10957, %v11217
    %11219 = vmatmul.bf16.gmra.mxu0 %v2481
    %v11220 = vpop.f32.mrf.mxu0
    %v11221 = vadd.f32 %v10960, %v11220
    %v11222 = vpop.f32.mrf.mxu0
    %v11223 = vadd.f32 %v10962, %v11222
    %11224 = vmatmul.bf16.gmra.mxu0 %v2489
    %v11225 = vpop.f32.mrf.mxu0
    %v11226 = vadd.f32 %v10965, %v11225
    %v11227 = vpop.f32.mrf.mxu0
    %v11228 = vadd.f32 %v10967, %v11227
    %11229 = vmatmul.bf16.gmra.mxu0 %v2497
    %v11230 = vpop.f32.mrf.mxu0
    %v11231 = vadd.f32 %v10970, %v11230
    %v11232 = vpop.f32.mrf.mxu0
    %v11233 = vadd.f32 %v10972, %v11232
    %11234 = vmatmul.bf16.gmra.mxu0 %v2505
    %v11235 = vpop.f32.mrf.mxu0
    %v11236 = vadd.f32 %v10975, %v11235
    %v11237 = vpop.f32.mrf.mxu0
    %v11238 = vadd.f32 %v10977, %v11237
    %11239 = vmatmul.bf16.gmra.mxu0 %v2513
    %v11240 = vpop.f32.mrf.mxu0
    %v11241 = vadd.f32 %v10980, %v11240
    %v11242 = vpop.f32.mrf.mxu0
    %v11243 = vadd.f32 %v10982, %v11242
    %11244 = vdwg.mxu0
    %11245 = vmatpush.bf16.msra.mxu0 %v8486
    %11246 = vmatpush.bf16.msra.mxu0 %v8484
    %11247 = vmatpush.bf16.msra.mxu0 %v8482
    %11248 = vmatpush.bf16.msra.mxu0 %v8480
    %11249 = vmatpush.bf16.msra.mxu0 %v8478
    %11250 = vmatpush.bf16.msra.mxu0 %v8476
    %11251 = vmatpush.bf16.msra.mxu0 %v8474
    %11252 = vmatpush.bf16.msra.mxu0 %v8472
    %11253 = vmatmul.bf16.gmra.mxu0 %v2106
    %v11254 = vpop.f32.mrf.mxu0
    %v11255 = vpop.f32.mrf.mxu0
    %11256 = vmatmul.bf16.gmra.mxu0 %v2114
    %v11257 = vpop.f32.mrf.mxu0
    %v11258 = vpop.f32.mrf.mxu0
    %11259 = vmatmul.bf16.gmra.mxu0 %v2122
    %v11260 = vpop.f32.mrf.mxu0
    %v11261 = vpop.f32.mrf.mxu0
    %11262 = vmatmul.bf16.gmra.mxu0 %v2130
    %v11263 = vpop.f32.mrf.mxu0
    %v11264 = vpop.f32.mrf.mxu0
    %11265 = vmatmul.bf16.gmra.mxu0 %v2138
    %v11266 = vpop.f32.mrf.mxu0
    %v11267 = vadd.f32 %v11006, %v11266
    %v11268 = vpop.f32.mrf.mxu0
    %v11269 = vadd.f32 %v11008, %v11268
    %11270 = vmatmul.bf16.gmra.mxu0 %v2146
    %v11271 = vpop.f32.mrf.mxu0
    %v11272 = vadd.f32 %v11011, %v11271
    %v11273 = vpop.f32.mrf.mxu0
    %v11274 = vadd.f32 %v11013, %v11273
    %11275 = vmatmul.bf16.gmra.mxu0 %v2154
    %v11276 = vpop.f32.mrf.mxu0
    %v11277 = vadd.f32 %v11016, %v11276
    %v11278 = vpop.f32.mrf.mxu0
    %v11279 = vadd.f32 %v11018, %v11278
    %11280 = vmatmul.bf16.gmra.mxu0 %v2162
    %v11281 = vpop.f32.mrf.mxu0
    %v11282 = vadd.f32 %v11021, %v11281
    %v11283 = vpop.f32.mrf.mxu0
    %v11284 = vadd.f32 %v11023, %v11283
    %11285 = vmatmul.bf16.gmra.mxu0 %v2170
    %v11286 = vpop.f32.mrf.mxu0
    %v11287 = vadd.f32 %v11026, %v11286
    %v11288 = vpop.f32.mrf.mxu0
    %v11289 = vadd.f32 %v11028, %v11288
    %11290 = vmatmul.bf16.gmra.mxu0 %v2178
    %v11291 = vpop.f32.mrf.mxu0
    %v11292 = vadd.f32 %v11031, %v11291
    %v11293 = vpop.f32.mrf.mxu0
    %v11294 = vadd.f32 %v11033, %v11293
    %11295 = vmatmul.bf16.gmra.mxu0 %v2186
    %v11296 = vpop.f32.mrf.mxu0
    %v11297 = vadd.f32 %v11036, %v11296
    %v11298 = vpop.f32.mrf.mxu0
    %v11299 = vadd.f32 %v11038, %v11298
    %11300 = vmatmul.bf16.gmra.mxu0 %v2194
    %v11301 = vpop.f32.mrf.mxu0
    %v11302 = vadd.f32 %v11041, %v11301
    %v11303 = vpop.f32.mrf.mxu0
    %v11304 = vadd.f32 %v11043, %v11303
    %11305 = vmatmul.bf16.gmra.mxu0 %v2202
    %v11306 = vpop.f32.mrf.mxu0
    %v11307 = vadd.f32 %v11046, %v11306
    %v11308 = vpop.f32.mrf.mxu0
    %v11309 = vadd.f32 %v11048, %v11308
    %11310 = vmatmul.bf16.gmra.mxu0 %v2210
    %v11311 = vpop.f32.mrf.mxu0
    %v11312 = vadd.f32 %v11051, %v11311
    %v11313 = vpop.f32.mrf.mxu0
    %v11314 = vadd.f32 %v11053, %v11313
    %11315 = vmatmul.bf16.gmra.mxu0 %v2218
    %v11316 = vpop.f32.mrf.mxu0
    %v11317 = vadd.f32 %v11056, %v11316
    %v11318 = vpop.f32.mrf.mxu0
    %v11319 = vadd.f32 %v11058, %v11318
    %11320 = vmatmul.bf16.gmra.mxu0 %v2226
    %v11321 = vpop.f32.mrf.mxu0
    %v11322 = vadd.f32 %v11061, %v11321
    %v11323 = vpop.f32.mrf.mxu0
    %v11324 = vadd.f32 %v11063, %v11323
    %11325 = vmatmul.bf16.gmra.mxu0 %v2234
    %v11326 = vpop.f32.mrf.mxu0
    %v11327 = vadd.f32 %v11066, %v11326
    %v11328 = vpop.f32.mrf.mxu0
    %v11329 = vadd.f32 %v11068, %v11328
    %11330 = vmatmul.bf16.gmra.mxu0 %v2242
    %v11331 = vpop.f32.mrf.mxu0
    %v11332 = vadd.f32 %v11071, %v11331
    %v11333 = vpop.f32.mrf.mxu0
    %v11334 = vadd.f32 %v11073, %v11333
    %11335 = vmatmul.bf16.gmra.mxu0 %v2250
    %v11336 = vpop.f32.mrf.mxu0
    %v11337 = vadd.f32 %v11076, %v11336
    %v11338 = vpop.f32.mrf.mxu0
    %v11339 = vadd.f32 %v11078, %v11338
    %11340 = vmatmul.bf16.gmra.mxu0 %v2258
    %v11341 = vpop.f32.mrf.mxu0
    %v11342 = vadd.f32 %v11081, %v11341
    %v11343 = vpop.f32.mrf.mxu0
    %v11344 = vadd.f32 %v11083, %v11343
    %11345 = vmatmul.bf16.gmra.mxu0 %v2266
    %v11346 = vpop.f32.mrf.mxu0
    %v11347 = vadd.f32 %v11086, %v11346
    %v11348 = vpop.f32.mrf.mxu0
    %v11349 = vadd.f32 %v11088, %v11348
    %11350 = vmatmul.bf16.gmra.mxu0 %v2274
    %v11351 = vpop.f32.mrf.mxu0
    %v11352 = vadd.f32 %v11091, %v11351
    %v11353 = vpop.f32.mrf.mxu0
    %v11354 = vadd.f32 %v11093, %v11353
    %11355 = vmatmul.bf16.gmra.mxu0 %v2282
    %v11356 = vpop.f32.mrf.mxu0
    %v11357 = vadd.f32 %v11096, %v11356
    %v11358 = vpop.f32.mrf.mxu0
    %v11359 = vadd.f32 %v11098, %v11358
    %11360 = vmatmul.bf16.gmra.mxu0 %v2290
    %v11361 = vpop.f32.mrf.mxu0
    %v11362 = vadd.f32 %v11101, %v11361
    %v11363 = vpop.f32.mrf.mxu0
    %v11364 = vadd.f32 %v11103, %v11363
    %11365 = vmatmul.bf16.gmra.mxu0 %v2298
    %v11366 = vpop.f32.mrf.mxu0
    %v11367 = vadd.f32 %v11106, %v11366
    %v11368 = vpop.f32.mrf.mxu0
    %v11369 = vadd.f32 %v11108, %v11368
    %11370 = vmatmul.bf16.gmra.mxu0 %v2306
    %v11371 = vpop.f32.mrf.mxu0
    %v11372 = vadd.f32 %v11111, %v11371
    %v11373 = vpop.f32.mrf.mxu0
    %v11374 = vadd.f32 %v11113, %v11373
    %11375 = vmatmul.bf16.gmra.mxu0 %v2314
    %v11376 = vpop.f32.mrf.mxu0
    %v11377 = vadd.f32 %v11116, %v11376
    %v11378 = vpop.f32.mrf.mxu0
    %v11379 = vadd.f32 %v11118, %v11378
    %11380 = vmatmul.bf16.gmra.mxu0 %v2322
    %v11381 = vpop.f32.mrf.mxu0
    %v11382 = vadd.f32 %v11121, %v11381
    %v11383 = vpop.f32.mrf.mxu0
    %v11384 = vadd.f32 %v11123, %v11383
    %11385 = vmatmul.bf16.gmra.mxu0 %v2330
    %v11386 = vpop.f32.mrf.mxu0
    %v11387 = vadd.f32 %v11126, %v11386
    %v11388 = vpop.f32.mrf.mxu0
    %v11389 = vadd.f32 %v11128, %v11388
    %11390 = vmatmul.bf16.gmra.mxu0 %v2338
    %v11391 = vpop.f32.mrf.mxu0
    %v11392 = vadd.f32 %v11131, %v11391
    %v11393 = vpop.f32.mrf.mxu0
    %v11394 = vadd.f32 %v11133, %v11393
    %11395 = vmatmul.bf16.gmra.mxu0 %v2346
    %v11396 = vpop.f32.mrf.mxu0
    %v11397 = vadd.f32 %v11136, %v11396
    %v11398 = vpop.f32.mrf.mxu0
    %v11399 = vadd.f32 %v11138, %v11398
    %11400 = vmatmul.bf16.gmra.mxu0 %v2354
    %v11401 = vpop.f32.mrf.mxu0
    %v11402 = vadd.f32 %v11141, %v11401
    %v11403 = vpop.f32.mrf.mxu0
    %v11404 = vadd.f32 %v11143, %v11403
    %11405 = vmatmul.bf16.gmra.mxu0 %v2362
    %v11406 = vpop.f32.mrf.mxu0
    %v11407 = vadd.f32 %v11146, %v11406
    %v11408 = vpop.f32.mrf.mxu0
    %v11409 = vadd.f32 %v11148, %v11408
    %11410 = vmatmul.bf16.gmra.mxu0 %v2370
    %v11411 = vpop.f32.mrf.mxu0
    %v11412 = vadd.f32 %v11151, %v11411
    %v11413 = vpop.f32.mrf.mxu0
    %v11414 = vadd.f32 %v11153, %v11413
    %11415 = vmatmul.bf16.gmra.mxu0 %v2378
    %v11416 = vpop.f32.mrf.mxu0
    %v11417 = vadd.f32 %v11156, %v11416
    %v11418 = vpop.f32.mrf.mxu0
    %v11419 = vadd.f32 %v11158, %v11418
    %11420 = vmatmul.bf16.gmra.mxu0 %v2386
    %v11421 = vpop.f32.mrf.mxu0
    %v11422 = vadd.f32 %v11161, %v11421
    %v11423 = vpop.f32.mrf.mxu0
    %v11424 = vadd.f32 %v11163, %v11423
    %11425 = vmatmul.bf16.gmra.mxu0 %v2394
    %v11426 = vpop.f32.mrf.mxu0
    %v11427 = vadd.f32 %v11166, %v11426
    %v11428 = vpop.f32.mrf.mxu0
    %v11429 = vadd.f32 %v11168, %v11428
    %11430 = vmatmul.bf16.gmra.mxu0 %v2402
    %v11431 = vpop.f32.mrf.mxu0
    %v11432 = vadd.f32 %v11171, %v11431
    %v11433 = vpop.f32.mrf.mxu0
    %v11434 = vadd.f32 %v11173, %v11433
    %11435 = vmatmul.bf16.gmra.mxu0 %v2410
    %v11436 = vpop.f32.mrf.mxu0
    %v11437 = vadd.f32 %v11176, %v11436
    %v11438 = vpop.f32.mrf.mxu0
    %v11439 = vadd.f32 %v11178, %v11438
    %11440 = vmatmul.bf16.gmra.mxu0 %v2418
    %v11441 = vpop.f32.mrf.mxu0
    %v11442 = vadd.f32 %v11181, %v11441
    %v11443 = vpop.f32.mrf.mxu0
    %v11444 = vadd.f32 %v11183, %v11443
    %11445 = vmatmul.bf16.gmra.mxu0 %v2426
    %v11446 = vpop.f32.mrf.mxu0
    %v11447 = vadd.f32 %v11186, %v11446
    %v11448 = vpop.f32.mrf.mxu0
    %v11449 = vadd.f32 %v11188, %v11448
    %11450 = vmatmul.bf16.gmra.mxu0 %v2434
    %v11451 = vpop.f32.mrf.mxu0
    %v11452 = vadd.f32 %v11191, %v11451
    %v11453 = vpop.f32.mrf.mxu0
    %v11454 = vadd.f32 %v11193, %v11453
    %11455 = vmatmul.bf16.gmra.mxu0 %v2442
    %v11456 = vpop.f32.mrf.mxu0
    %v11457 = vadd.f32 %v11196, %v11456
    %v11458 = vpop.f32.mrf.mxu0
    %v11459 = vadd.f32 %v11198, %v11458
    %11460 = vmatmul.bf16.gmra.mxu0 %v2450
    %v11461 = vpop.f32.mrf.mxu0
    %v11462 = vadd.f32 %v11201, %v11461
    %v11463 = vpop.f32.mrf.mxu0
    %v11464 = vadd.f32 %v11203, %v11463
    %11465 = vmatmul.bf16.gmra.mxu0 %v2458
    %v11466 = vpop.f32.mrf.mxu0
    %v11467 = vadd.f32 %v11206, %v11466
    %v11468 = vpop.f32.mrf.mxu0
    %v11469 = vadd.f32 %v11208, %v11468
    %11470 = vmatmul.bf16.gmra.mxu0 %v2466
    %v11471 = vpop.f32.mrf.mxu0
    %v11472 = vadd.f32 %v11211, %v11471
    %v11473 = vpop.f32.mrf.mxu0
    %v11474 = vadd.f32 %v11213, %v11473
    %11475 = vmatmul.bf16.gmra.mxu0 %v2474
    %v11476 = vpop.f32.mrf.mxu0
    %v11477 = vadd.f32 %v11216, %v11476
    %v11478 = vpop.f32.mrf.mxu0
    %v11479 = vadd.f32 %v11218, %v11478
    %11480 = vmatmul.bf16.gmra.mxu0 %v2482
    %v11481 = vpop.f32.mrf.mxu0
    %v11482 = vadd.f32 %v11221, %v11481
    %v11483 = vpop.f32.mrf.mxu0
    %v11484 = vadd.f32 %v11223, %v11483
    %11485 = vmatmul.bf16.gmra.mxu0 %v2490
    %v11486 = vpop.f32.mrf.mxu0
    %v11487 = vadd.f32 %v11226, %v11486
    %v11488 = vpop.f32.mrf.mxu0
    %v11489 = vadd.f32 %v11228, %v11488
    %11490 = vmatmul.bf16.gmra.mxu0 %v2498
    %v11491 = vpop.f32.mrf.mxu0
    %v11492 = vadd.f32 %v11231, %v11491
    %v11493 = vpop.f32.mrf.mxu0
    %v11494 = vadd.f32 %v11233, %v11493
    %11495 = vmatmul.bf16.gmra.mxu0 %v2506
    %v11496 = vpop.f32.mrf.mxu0
    %v11497 = vadd.f32 %v11236, %v11496
    %v11498 = vpop.f32.mrf.mxu0
    %v11499 = vadd.f32 %v11238, %v11498
    %11500 = vmatmul.bf16.gmra.mxu0 %v2514
    %v11501 = vpop.f32.mrf.mxu0
    %v11502 = vadd.f32 %v11241, %v11501
    %v11503 = vpop.f32.mrf.mxu0
    %v11504 = vadd.f32 %v11243, %v11503
    %11505 = vdwg.mxu0
    %11506 = vmatpush.bf16.msra.mxu0 %v8502
    %11507 = vmatpush.bf16.msra.mxu0 %v8500
    %11508 = vmatpush.bf16.msra.mxu0 %v8498
    %11509 = vmatpush.bf16.msra.mxu0 %v8496
    %11510 = vmatpush.bf16.msra.mxu0 %v8494
    %11511 = vmatpush.bf16.msra.mxu0 %v8492
    %11512 = vmatpush.bf16.msra.mxu0 %v8490
    %11513 = vmatpush.bf16.msra.mxu0 %v8488
    %11514 = vmatmul.bf16.gmra.mxu0 %v2107
    %v11515 = vpop.f32.mrf.mxu0
    %v11516 = vpop.f32.mrf.mxu0
    %11517 = vmatmul.bf16.gmra.mxu0 %v2115
    %v11518 = vpop.f32.mrf.mxu0
    %v11519 = vpop.f32.mrf.mxu0
    %11520 = vmatmul.bf16.gmra.mxu0 %v2123
    %v11521 = vpop.f32.mrf.mxu0
    %v11522 = vpop.f32.mrf.mxu0
    %11523 = vmatmul.bf16.gmra.mxu0 %v2131
    %v11524 = vpop.f32.mrf.mxu0
    %v11525 = vpop.f32.mrf.mxu0
    %11526 = vmatmul.bf16.gmra.mxu0 %v2139
    %v11527 = vpop.f32.mrf.mxu0
    %v11528 = vadd.f32 %v11267, %v11527
    %v11529 = vpop.f32.mrf.mxu0
    %v11530 = vadd.f32 %v11269, %v11529
    %11531 = vmatmul.bf16.gmra.mxu0 %v2147
    %v11532 = vpop.f32.mrf.mxu0
    %v11533 = vadd.f32 %v11272, %v11532
    %v11534 = vpop.f32.mrf.mxu0
    %v11535 = vadd.f32 %v11274, %v11534
    %11536 = vmatmul.bf16.gmra.mxu0 %v2155
    %v11537 = vpop.f32.mrf.mxu0
    %v11538 = vadd.f32 %v11277, %v11537
    %v11539 = vpop.f32.mrf.mxu0
    %v11540 = vadd.f32 %v11279, %v11539
    %11541 = vmatmul.bf16.gmra.mxu0 %v2163
    %v11542 = vpop.f32.mrf.mxu0
    %v11543 = vadd.f32 %v11282, %v11542
    %v11544 = vpop.f32.mrf.mxu0
    %v11545 = vadd.f32 %v11284, %v11544
    %11546 = vmatmul.bf16.gmra.mxu0 %v2171
    %v11547 = vpop.f32.mrf.mxu0
    %v11548 = vadd.f32 %v11287, %v11547
    %v11549 = vpop.f32.mrf.mxu0
    %v11550 = vadd.f32 %v11289, %v11549
    %11551 = vmatmul.bf16.gmra.mxu0 %v2179
    %v11552 = vpop.f32.mrf.mxu0
    %v11553 = vadd.f32 %v11292, %v11552
    %v11554 = vpop.f32.mrf.mxu0
    %v11555 = vadd.f32 %v11294, %v11554
    %11556 = vmatmul.bf16.gmra.mxu0 %v2187
    %v11557 = vpop.f32.mrf.mxu0
    %v11558 = vadd.f32 %v11297, %v11557
    %v11559 = vpop.f32.mrf.mxu0
    %v11560 = vadd.f32 %v11299, %v11559
    %11561 = vmatmul.bf16.gmra.mxu0 %v2195
    %v11562 = vpop.f32.mrf.mxu0
    %v11563 = vadd.f32 %v11302, %v11562
    %v11564 = vpop.f32.mrf.mxu0
    %v11565 = vadd.f32 %v11304, %v11564
    %11566 = vmatmul.bf16.gmra.mxu0 %v2203
    %v11567 = vpop.f32.mrf.mxu0
    %v11568 = vadd.f32 %v11307, %v11567
    %v11569 = vpop.f32.mrf.mxu0
    %v11570 = vadd.f32 %v11309, %v11569
    %11571 = vmatmul.bf16.gmra.mxu0 %v2211
    %v11572 = vpop.f32.mrf.mxu0
    %v11573 = vadd.f32 %v11312, %v11572
    %v11574 = vpop.f32.mrf.mxu0
    %v11575 = vadd.f32 %v11314, %v11574
    %11576 = vmatmul.bf16.gmra.mxu0 %v2219
    %v11577 = vpop.f32.mrf.mxu0
    %v11578 = vadd.f32 %v11317, %v11577
    %v11579 = vpop.f32.mrf.mxu0
    %v11580 = vadd.f32 %v11319, %v11579
    %11581 = vmatmul.bf16.gmra.mxu0 %v2227
    %v11582 = vpop.f32.mrf.mxu0
    %v11583 = vadd.f32 %v11322, %v11582
    %v11584 = vpop.f32.mrf.mxu0
    %v11585 = vadd.f32 %v11324, %v11584
    %11586 = vmatmul.bf16.gmra.mxu0 %v2235
    %v11587 = vpop.f32.mrf.mxu0
    %v11588 = vadd.f32 %v11327, %v11587
    %v11589 = vpop.f32.mrf.mxu0
    %v11590 = vadd.f32 %v11329, %v11589
    %11591 = vmatmul.bf16.gmra.mxu0 %v2243
    %v11592 = vpop.f32.mrf.mxu0
    %v11593 = vadd.f32 %v11332, %v11592
    %v11594 = vpop.f32.mrf.mxu0
    %v11595 = vadd.f32 %v11334, %v11594
    %11596 = vmatmul.bf16.gmra.mxu0 %v2251
    %v11597 = vpop.f32.mrf.mxu0
    %v11598 = vadd.f32 %v11337, %v11597
    %v11599 = vpop.f32.mrf.mxu0
    %v11600 = vadd.f32 %v11339, %v11599
    %11601 = vmatmul.bf16.gmra.mxu0 %v2259
    %v11602 = vpop.f32.mrf.mxu0
    %v11603 = vadd.f32 %v11342, %v11602
    %v11604 = vpop.f32.mrf.mxu0
    %v11605 = vadd.f32 %v11344, %v11604
    %11606 = vmatmul.bf16.gmra.mxu0 %v2267
    %v11607 = vpop.f32.mrf.mxu0
    %v11608 = vadd.f32 %v11347, %v11607
    %v11609 = vpop.f32.mrf.mxu0
    %v11610 = vadd.f32 %v11349, %v11609
    %11611 = vmatmul.bf16.gmra.mxu0 %v2275
    %v11612 = vpop.f32.mrf.mxu0
    %v11613 = vadd.f32 %v11352, %v11612
    %v11614 = vpop.f32.mrf.mxu0
    %v11615 = vadd.f32 %v11354, %v11614
    %11616 = vmatmul.bf16.gmra.mxu0 %v2283
    %v11617 = vpop.f32.mrf.mxu0
    %v11618 = vadd.f32 %v11357, %v11617
    %v11619 = vpop.f32.mrf.mxu0
    %v11620 = vadd.f32 %v11359, %v11619
    %11621 = vmatmul.bf16.gmra.mxu0 %v2291
    %v11622 = vpop.f32.mrf.mxu0
    %v11623 = vadd.f32 %v11362, %v11622
    %v11624 = vpop.f32.mrf.mxu0
    %v11625 = vadd.f32 %v11364, %v11624
    %11626 = vmatmul.bf16.gmra.mxu0 %v2299
    %v11627 = vpop.f32.mrf.mxu0
    %v11628 = vadd.f32 %v11367, %v11627
    %v11629 = vpop.f32.mrf.mxu0
    %v11630 = vadd.f32 %v11369, %v11629
    %11631 = vmatmul.bf16.gmra.mxu0 %v2307
    %v11632 = vpop.f32.mrf.mxu0
    %v11633 = vadd.f32 %v11372, %v11632
    %v11634 = vpop.f32.mrf.mxu0
    %v11635 = vadd.f32 %v11374, %v11634
    %11636 = vmatmul.bf16.gmra.mxu0 %v2315
    %v11637 = vpop.f32.mrf.mxu0
    %v11638 = vadd.f32 %v11377, %v11637
    %v11639 = vpop.f32.mrf.mxu0
    %v11640 = vadd.f32 %v11379, %v11639
    %11641 = vmatmul.bf16.gmra.mxu0 %v2323
    %v11642 = vpop.f32.mrf.mxu0
    %v11643 = vadd.f32 %v11382, %v11642
    %v11644 = vpop.f32.mrf.mxu0
    %v11645 = vadd.f32 %v11384, %v11644
    %11646 = vmatmul.bf16.gmra.mxu0 %v2331
    %v11647 = vpop.f32.mrf.mxu0
    %v11648 = vadd.f32 %v11387, %v11647
    %v11649 = vpop.f32.mrf.mxu0
    %v11650 = vadd.f32 %v11389, %v11649
    %11651 = vmatmul.bf16.gmra.mxu0 %v2339
    %v11652 = vpop.f32.mrf.mxu0
    %v11653 = vadd.f32 %v11392, %v11652
    %v11654 = vpop.f32.mrf.mxu0
    %v11655 = vadd.f32 %v11394, %v11654
    %11656 = vmatmul.bf16.gmra.mxu0 %v2347
    %v11657 = vpop.f32.mrf.mxu0
    %v11658 = vadd.f32 %v11397, %v11657
    %v11659 = vpop.f32.mrf.mxu0
    %v11660 = vadd.f32 %v11399, %v11659
    %11661 = vmatmul.bf16.gmra.mxu0 %v2355
    %v11662 = vpop.f32.mrf.mxu0
    %v11663 = vadd.f32 %v11402, %v11662
    %v11664 = vpop.f32.mrf.mxu0
    %v11665 = vadd.f32 %v11404, %v11664
    %11666 = vmatmul.bf16.gmra.mxu0 %v2363
    %v11667 = vpop.f32.mrf.mxu0
    %v11668 = vadd.f32 %v11407, %v11667
    %v11669 = vpop.f32.mrf.mxu0
    %v11670 = vadd.f32 %v11409, %v11669
    %11671 = vmatmul.bf16.gmra.mxu0 %v2371
    %v11672 = vpop.f32.mrf.mxu0
    %v11673 = vadd.f32 %v11412, %v11672
    %v11674 = vpop.f32.mrf.mxu0
    %v11675 = vadd.f32 %v11414, %v11674
    %11676 = vmatmul.bf16.gmra.mxu0 %v2379
    %v11677 = vpop.f32.mrf.mxu0
    %v11678 = vadd.f32 %v11417, %v11677
    %v11679 = vpop.f32.mrf.mxu0
    %v11680 = vadd.f32 %v11419, %v11679
    %11681 = vmatmul.bf16.gmra.mxu0 %v2387
    %v11682 = vpop.f32.mrf.mxu0
    %v11683 = vadd.f32 %v11422, %v11682
    %v11684 = vpop.f32.mrf.mxu0
    %v11685 = vadd.f32 %v11424, %v11684
    %11686 = vmatmul.bf16.gmra.mxu0 %v2395
    %v11687 = vpop.f32.mrf.mxu0
    %v11688 = vadd.f32 %v11427, %v11687
    %v11689 = vpop.f32.mrf.mxu0
    %v11690 = vadd.f32 %v11429, %v11689
    %11691 = vmatmul.bf16.gmra.mxu0 %v2403
    %v11692 = vpop.f32.mrf.mxu0
    %v11693 = vadd.f32 %v11432, %v11692
    %v11694 = vpop.f32.mrf.mxu0
    %v11695 = vadd.f32 %v11434, %v11694
    %11696 = vmatmul.bf16.gmra.mxu0 %v2411
    %v11697 = vpop.f32.mrf.mxu0
    %v11698 = vadd.f32 %v11437, %v11697
    %v11699 = vpop.f32.mrf.mxu0
    %v11700 = vadd.f32 %v11439, %v11699
    %11701 = vmatmul.bf16.gmra.mxu0 %v2419
    %v11702 = vpop.f32.mrf.mxu0
    %v11703 = vadd.f32 %v11442, %v11702
    %v11704 = vpop.f32.mrf.mxu0
    %v11705 = vadd.f32 %v11444, %v11704
    %11706 = vmatmul.bf16.gmra.mxu0 %v2427
    %v11707 = vpop.f32.mrf.mxu0
    %v11708 = vadd.f32 %v11447, %v11707
    %v11709 = vpop.f32.mrf.mxu0
    %v11710 = vadd.f32 %v11449, %v11709
    %11711 = vmatmul.bf16.gmra.mxu0 %v2435
    %v11712 = vpop.f32.mrf.mxu0
    %v11713 = vadd.f32 %v11452, %v11712
    %v11714 = vpop.f32.mrf.mxu0
    %v11715 = vadd.f32 %v11454, %v11714
    %11716 = vmatmul.bf16.gmra.mxu0 %v2443
    %v11717 = vpop.f32.mrf.mxu0
    %v11718 = vadd.f32 %v11457, %v11717
    %v11719 = vpop.f32.mrf.mxu0
    %v11720 = vadd.f32 %v11459, %v11719
    %11721 = vmatmul.bf16.gmra.mxu0 %v2451
    %v11722 = vpop.f32.mrf.mxu0
    %v11723 = vadd.f32 %v11462, %v11722
    %v11724 = vpop.f32.mrf.mxu0
    %v11725 = vadd.f32 %v11464, %v11724
    %11726 = vmatmul.bf16.gmra.mxu0 %v2459
    %v11727 = vpop.f32.mrf.mxu0
    %v11728 = vadd.f32 %v11467, %v11727
    %v11729 = vpop.f32.mrf.mxu0
    %v11730 = vadd.f32 %v11469, %v11729
    %11731 = vmatmul.bf16.gmra.mxu0 %v2467
    %v11732 = vpop.f32.mrf.mxu0
    %v11733 = vadd.f32 %v11472, %v11732
    %v11734 = vpop.f32.mrf.mxu0
    %v11735 = vadd.f32 %v11474, %v11734
    %11736 = vmatmul.bf16.gmra.mxu0 %v2475
    %v11737 = vpop.f32.mrf.mxu0
    %v11738 = vadd.f32 %v11477, %v11737
    %v11739 = vpop.f32.mrf.mxu0
    %v11740 = vadd.f32 %v11479, %v11739
    %11741 = vmatmul.bf16.gmra.mxu0 %v2483
    %v11742 = vpop.f32.mrf.mxu0
    %v11743 = vadd.f32 %v11482, %v11742
    %v11744 = vpop.f32.mrf.mxu0
    %v11745 = vadd.f32 %v11484, %v11744
    %11746 = vmatmul.bf16.gmra.mxu0 %v2491
    %v11747 = vpop.f32.mrf.mxu0
    %v11748 = vadd.f32 %v11487, %v11747
    %v11749 = vpop.f32.mrf.mxu0
    %v11750 = vadd.f32 %v11489, %v11749
    %11751 = vmatmul.bf16.gmra.mxu0 %v2499
    %v11752 = vpop.f32.mrf.mxu0
    %v11753 = vadd.f32 %v11492, %v11752
    %v11754 = vpop.f32.mrf.mxu0
    %v11755 = vadd.f32 %v11494, %v11754
    %11756 = vmatmul.bf16.gmra.mxu0 %v2507
    %v11757 = vpop.f32.mrf.mxu0
    %v11758 = vadd.f32 %v11497, %v11757
    %v11759 = vpop.f32.mrf.mxu0
    %v11760 = vadd.f32 %v11499, %v11759
    %11761 = vmatmul.bf16.gmra.mxu0 %v2515
    %v11762 = vpop.f32.mrf.mxu0
    %v11763 = vadd.f32 %v11502, %v11762
    %v11764 = vpop.f32.mrf.mxu0
    %v11765 = vadd.f32 %v11504, %v11764
    %11766 = vdwg.mxu0
    %11767 = vmatpush.bf16.msra.mxu0 %v8518
    %11768 = vmatpush.bf16.msra.mxu0 %v8516
    %11769 = vmatpush.bf16.msra.mxu0 %v8514
    %11770 = vmatpush.bf16.msra.mxu0 %v8512
    %11771 = vmatpush.bf16.msra.mxu0 %v8510
    %11772 = vmatpush.bf16.msra.mxu0 %v8508
    %11773 = vmatpush.bf16.msra.mxu0 %v8506
    %11774 = vmatpush.bf16.msra.mxu0 %v8504
    %11775 = vmatmul.bf16.gmra.mxu0 %v2108
    %v11776 = vpop.f32.mrf.mxu0
    %v11777 = vpop.f32.mrf.mxu0
    %11778 = vmatmul.bf16.gmra.mxu0 %v2116
    %v11779 = vpop.f32.mrf.mxu0
    %v11780 = vpop.f32.mrf.mxu0
    %11781 = vmatmul.bf16.gmra.mxu0 %v2124
    %v11782 = vpop.f32.mrf.mxu0
    %v11783 = vpop.f32.mrf.mxu0
    %11784 = vmatmul.bf16.gmra.mxu0 %v2132
    %v11785 = vpop.f32.mrf.mxu0
    %v11786 = vpop.f32.mrf.mxu0
    %11787 = vmatmul.bf16.gmra.mxu0 %v2140
    %v11788 = vpop.f32.mrf.mxu0
    %v11789 = vadd.f32 %v11528, %v11788
    %v11790 = vpop.f32.mrf.mxu0
    %v11791 = vadd.f32 %v11530, %v11790
    %11792 = vmatmul.bf16.gmra.mxu0 %v2148
    %v11793 = vpop.f32.mrf.mxu0
    %v11794 = vadd.f32 %v11533, %v11793
    %v11795 = vpop.f32.mrf.mxu0
    %v11796 = vadd.f32 %v11535, %v11795
    %11797 = vmatmul.bf16.gmra.mxu0 %v2156
    %v11798 = vpop.f32.mrf.mxu0
    %v11799 = vadd.f32 %v11538, %v11798
    %v11800 = vpop.f32.mrf.mxu0
    %v11801 = vadd.f32 %v11540, %v11800
    %11802 = vmatmul.bf16.gmra.mxu0 %v2164
    %v11803 = vpop.f32.mrf.mxu0
    %v11804 = vadd.f32 %v11543, %v11803
    %v11805 = vpop.f32.mrf.mxu0
    %v11806 = vadd.f32 %v11545, %v11805
    %11807 = vmatmul.bf16.gmra.mxu0 %v2172
    %v11808 = vpop.f32.mrf.mxu0
    %v11809 = vadd.f32 %v11548, %v11808
    %v11810 = vpop.f32.mrf.mxu0
    %v11811 = vadd.f32 %v11550, %v11810
    %11812 = vmatmul.bf16.gmra.mxu0 %v2180
    %v11813 = vpop.f32.mrf.mxu0
    %v11814 = vadd.f32 %v11553, %v11813
    %v11815 = vpop.f32.mrf.mxu0
    %v11816 = vadd.f32 %v11555, %v11815
    %11817 = vmatmul.bf16.gmra.mxu0 %v2188
    %v11818 = vpop.f32.mrf.mxu0
    %v11819 = vadd.f32 %v11558, %v11818
    %v11820 = vpop.f32.mrf.mxu0
    %v11821 = vadd.f32 %v11560, %v11820
    %11822 = vmatmul.bf16.gmra.mxu0 %v2196
    %v11823 = vpop.f32.mrf.mxu0
    %v11824 = vadd.f32 %v11563, %v11823
    %v11825 = vpop.f32.mrf.mxu0
    %v11826 = vadd.f32 %v11565, %v11825
    %11827 = vmatmul.bf16.gmra.mxu0 %v2204
    %v11828 = vpop.f32.mrf.mxu0
    %v11829 = vadd.f32 %v11568, %v11828
    %v11830 = vpop.f32.mrf.mxu0
    %v11831 = vadd.f32 %v11570, %v11830
    %11832 = vmatmul.bf16.gmra.mxu0 %v2212
    %v11833 = vpop.f32.mrf.mxu0
    %v11834 = vadd.f32 %v11573, %v11833
    %v11835 = vpop.f32.mrf.mxu0
    %v11836 = vadd.f32 %v11575, %v11835
    %11837 = vmatmul.bf16.gmra.mxu0 %v2220
    %v11838 = vpop.f32.mrf.mxu0
    %v11839 = vadd.f32 %v11578, %v11838
    %v11840 = vpop.f32.mrf.mxu0
    %v11841 = vadd.f32 %v11580, %v11840
    %11842 = vmatmul.bf16.gmra.mxu0 %v2228
    %v11843 = vpop.f32.mrf.mxu0
    %v11844 = vadd.f32 %v11583, %v11843
    %v11845 = vpop.f32.mrf.mxu0
    %v11846 = vadd.f32 %v11585, %v11845
    %11847 = vmatmul.bf16.gmra.mxu0 %v2236
    %v11848 = vpop.f32.mrf.mxu0
    %v11849 = vadd.f32 %v11588, %v11848
    %v11850 = vpop.f32.mrf.mxu0
    %v11851 = vadd.f32 %v11590, %v11850
    %11852 = vmatmul.bf16.gmra.mxu0 %v2244
    %v11853 = vpop.f32.mrf.mxu0
    %v11854 = vadd.f32 %v11593, %v11853
    %v11855 = vpop.f32.mrf.mxu0
    %v11856 = vadd.f32 %v11595, %v11855
    %11857 = vmatmul.bf16.gmra.mxu0 %v2252
    %v11858 = vpop.f32.mrf.mxu0
    %v11859 = vadd.f32 %v11598, %v11858
    %v11860 = vpop.f32.mrf.mxu0
    %v11861 = vadd.f32 %v11600, %v11860
    %11862 = vmatmul.bf16.gmra.mxu0 %v2260
    %v11863 = vpop.f32.mrf.mxu0
    %v11864 = vadd.f32 %v11603, %v11863
    %v11865 = vpop.f32.mrf.mxu0
    %v11866 = vadd.f32 %v11605, %v11865
    %11867 = vmatmul.bf16.gmra.mxu0 %v2268
    %v11868 = vpop.f32.mrf.mxu0
    %v11869 = vadd.f32 %v11608, %v11868
    %v11870 = vpop.f32.mrf.mxu0
    %v11871 = vadd.f32 %v11610, %v11870
    %11872 = vmatmul.bf16.gmra.mxu0 %v2276
    %v11873 = vpop.f32.mrf.mxu0
    %v11874 = vadd.f32 %v11613, %v11873
    %v11875 = vpop.f32.mrf.mxu0
    %v11876 = vadd.f32 %v11615, %v11875
    %11877 = vmatmul.bf16.gmra.mxu0 %v2284
    %v11878 = vpop.f32.mrf.mxu0
    %v11879 = vadd.f32 %v11618, %v11878
    %v11880 = vpop.f32.mrf.mxu0
    %v11881 = vadd.f32 %v11620, %v11880
    %11882 = vmatmul.bf16.gmra.mxu0 %v2292
    %v11883 = vpop.f32.mrf.mxu0
    %v11884 = vadd.f32 %v11623, %v11883
    %v11885 = vpop.f32.mrf.mxu0
    %v11886 = vadd.f32 %v11625, %v11885
    %11887 = vmatmul.bf16.gmra.mxu0 %v2300
    %v11888 = vpop.f32.mrf.mxu0
    %v11889 = vadd.f32 %v11628, %v11888
    %v11890 = vpop.f32.mrf.mxu0
    %v11891 = vadd.f32 %v11630, %v11890
    %11892 = vmatmul.bf16.gmra.mxu0 %v2308
    %v11893 = vpop.f32.mrf.mxu0
    %v11894 = vadd.f32 %v11633, %v11893
    %v11895 = vpop.f32.mrf.mxu0
    %v11896 = vadd.f32 %v11635, %v11895
    %11897 = vmatmul.bf16.gmra.mxu0 %v2316
    %v11898 = vpop.f32.mrf.mxu0
    %v11899 = vadd.f32 %v11638, %v11898
    %v11900 = vpop.f32.mrf.mxu0
    %v11901 = vadd.f32 %v11640, %v11900
    %11902 = vmatmul.bf16.gmra.mxu0 %v2324
    %v11903 = vpop.f32.mrf.mxu0
    %v11904 = vadd.f32 %v11643, %v11903
    %v11905 = vpop.f32.mrf.mxu0
    %v11906 = vadd.f32 %v11645, %v11905
    %11907 = vmatmul.bf16.gmra.mxu0 %v2332
    %v11908 = vpop.f32.mrf.mxu0
    %v11909 = vadd.f32 %v11648, %v11908
    %v11910 = vpop.f32.mrf.mxu0
    %v11911 = vadd.f32 %v11650, %v11910
    %11912 = vmatmul.bf16.gmra.mxu0 %v2340
    %v11913 = vpop.f32.mrf.mxu0
    %v11914 = vadd.f32 %v11653, %v11913
    %v11915 = vpop.f32.mrf.mxu0
    %v11916 = vadd.f32 %v11655, %v11915
    %11917 = vmatmul.bf16.gmra.mxu0 %v2348
    %v11918 = vpop.f32.mrf.mxu0
    %v11919 = vadd.f32 %v11658, %v11918
    %v11920 = vpop.f32.mrf.mxu0
    %v11921 = vadd.f32 %v11660, %v11920
    %11922 = vmatmul.bf16.gmra.mxu0 %v2356
    %v11923 = vpop.f32.mrf.mxu0
    %v11924 = vadd.f32 %v11663, %v11923
    %v11925 = vpop.f32.mrf.mxu0
    %v11926 = vadd.f32 %v11665, %v11925
    %11927 = vmatmul.bf16.gmra.mxu0 %v2364
    %v11928 = vpop.f32.mrf.mxu0
    %v11929 = vadd.f32 %v11668, %v11928
    %v11930 = vpop.f32.mrf.mxu0
    %v11931 = vadd.f32 %v11670, %v11930
    %11932 = vmatmul.bf16.gmra.mxu0 %v2372
    %v11933 = vpop.f32.mrf.mxu0
    %v11934 = vadd.f32 %v11673, %v11933
    %v11935 = vpop.f32.mrf.mxu0
    %v11936 = vadd.f32 %v11675, %v11935
    %11937 = vmatmul.bf16.gmra.mxu0 %v2380
    %v11938 = vpop.f32.mrf.mxu0
    %v11939 = vadd.f32 %v11678, %v11938
    %v11940 = vpop.f32.mrf.mxu0
    %v11941 = vadd.f32 %v11680, %v11940
    %11942 = vmatmul.bf16.gmra.mxu0 %v2388
    %v11943 = vpop.f32.mrf.mxu0
    %v11944 = vadd.f32 %v11683, %v11943
    %v11945 = vpop.f32.mrf.mxu0
    %v11946 = vadd.f32 %v11685, %v11945
    %11947 = vmatmul.bf16.gmra.mxu0 %v2396
    %v11948 = vpop.f32.mrf.mxu0
    %v11949 = vadd.f32 %v11688, %v11948
    %v11950 = vpop.f32.mrf.mxu0
    %v11951 = vadd.f32 %v11690, %v11950
    %11952 = vmatmul.bf16.gmra.mxu0 %v2404
    %v11953 = vpop.f32.mrf.mxu0
    %v11954 = vadd.f32 %v11693, %v11953
    %v11955 = vpop.f32.mrf.mxu0
    %v11956 = vadd.f32 %v11695, %v11955
    %11957 = vmatmul.bf16.gmra.mxu0 %v2412
    %v11958 = vpop.f32.mrf.mxu0
    %v11959 = vadd.f32 %v11698, %v11958
    %v11960 = vpop.f32.mrf.mxu0
    %v11961 = vadd.f32 %v11700, %v11960
    %11962 = vmatmul.bf16.gmra.mxu0 %v2420
    %v11963 = vpop.f32.mrf.mxu0
    %v11964 = vadd.f32 %v11703, %v11963
    %v11965 = vpop.f32.mrf.mxu0
    %v11966 = vadd.f32 %v11705, %v11965
    %11967 = vmatmul.bf16.gmra.mxu0 %v2428
    %v11968 = vpop.f32.mrf.mxu0
    %v11969 = vadd.f32 %v11708, %v11968
    %v11970 = vpop.f32.mrf.mxu0
    %v11971 = vadd.f32 %v11710, %v11970
    %11972 = vmatmul.bf16.gmra.mxu0 %v2436
    %v11973 = vpop.f32.mrf.mxu0
    %v11974 = vadd.f32 %v11713, %v11973
    %v11975 = vpop.f32.mrf.mxu0
    %v11976 = vadd.f32 %v11715, %v11975
    %11977 = vmatmul.bf16.gmra.mxu0 %v2444
    %v11978 = vpop.f32.mrf.mxu0
    %v11979 = vadd.f32 %v11718, %v11978
    %v11980 = vpop.f32.mrf.mxu0
    %v11981 = vadd.f32 %v11720, %v11980
    %11982 = vmatmul.bf16.gmra.mxu0 %v2452
    %v11983 = vpop.f32.mrf.mxu0
    %v11984 = vadd.f32 %v11723, %v11983
    %v11985 = vpop.f32.mrf.mxu0
    %v11986 = vadd.f32 %v11725, %v11985
    %11987 = vmatmul.bf16.gmra.mxu0 %v2460
    %v11988 = vpop.f32.mrf.mxu0
    %v11989 = vadd.f32 %v11728, %v11988
    %v11990 = vpop.f32.mrf.mxu0
    %v11991 = vadd.f32 %v11730, %v11990
    %11992 = vmatmul.bf16.gmra.mxu0 %v2468
    %v11993 = vpop.f32.mrf.mxu0
    %v11994 = vadd.f32 %v11733, %v11993
    %v11995 = vpop.f32.mrf.mxu0
    %v11996 = vadd.f32 %v11735, %v11995
    %11997 = vmatmul.bf16.gmra.mxu0 %v2476
    %v11998 = vpop.f32.mrf.mxu0
    %v11999 = vadd.f32 %v11738, %v11998
    %v12000 = vpop.f32.mrf.mxu0
    %v12001 = vadd.f32 %v11740, %v12000
    %12002 = vmatmul.bf16.gmra.mxu0 %v2484
    %v12003 = vpop.f32.mrf.mxu0
    %v12004 = vadd.f32 %v11743, %v12003
    %v12005 = vpop.f32.mrf.mxu0
    %v12006 = vadd.f32 %v11745, %v12005
    %12007 = vmatmul.bf16.gmra.mxu0 %v2492
    %v12008 = vpop.f32.mrf.mxu0
    %v12009 = vadd.f32 %v11748, %v12008
    %v12010 = vpop.f32.mrf.mxu0
    %v12011 = vadd.f32 %v11750, %v12010
    %12012 = vmatmul.bf16.gmra.mxu0 %v2500
    %v12013 = vpop.f32.mrf.mxu0
    %v12014 = vadd.f32 %v11753, %v12013
    %v12015 = vpop.f32.mrf.mxu0
    %v12016 = vadd.f32 %v11755, %v12015
    %12017 = vmatmul.bf16.gmra.mxu0 %v2508
    %v12018 = vpop.f32.mrf.mxu0
    %v12019 = vadd.f32 %v11758, %v12018
    %v12020 = vpop.f32.mrf.mxu0
    %v12021 = vadd.f32 %v11760, %v12020
    %12022 = vmatmul.bf16.gmra.mxu0 %v2516
    %v12023 = vpop.f32.mrf.mxu0
    %v12024 = vadd.f32 %v11763, %v12023
    %v12025 = vpop.f32.mrf.mxu0
    %v12026 = vadd.f32 %v11765, %v12025
    %12027 = vdwg.mxu0
    %12028 = vmatpush.bf16.msra.mxu0 %v8534
    %12029 = vmatpush.bf16.msra.mxu0 %v8532
    %12030 = vmatpush.bf16.msra.mxu0 %v8530
    %12031 = vmatpush.bf16.msra.mxu0 %v8528
    %12032 = vmatpush.bf16.msra.mxu0 %v8526
    %12033 = vmatpush.bf16.msra.mxu0 %v8524
    %12034 = vmatpush.bf16.msra.mxu0 %v8522
    %12035 = vmatpush.bf16.msra.mxu0 %v8520
    %12036 = vmatmul.bf16.gmra.mxu0 %v2109
    %v12037 = vpop.f32.mrf.mxu0
    %v12038 = vpop.f32.mrf.mxu0
    %12039 = vmatmul.bf16.gmra.mxu0 %v2117
    %v12040 = vpop.f32.mrf.mxu0
    %v12041 = vpop.f32.mrf.mxu0
    %12042 = vmatmul.bf16.gmra.mxu0 %v2125
    %v12043 = vpop.f32.mrf.mxu0
    %v12044 = vpop.f32.mrf.mxu0
    %12045 = vmatmul.bf16.gmra.mxu0 %v2133
    %v12046 = vpop.f32.mrf.mxu0
    %v12047 = vpop.f32.mrf.mxu0
    %12048 = vmatmul.bf16.gmra.mxu0 %v2141
    %v12049 = vpop.f32.mrf.mxu0
    %v12050 = vadd.f32 %v11789, %v12049
    %v12051 = vpop.f32.mrf.mxu0
    %v12052 = vadd.f32 %v11791, %v12051
    %12053 = vmatmul.bf16.gmra.mxu0 %v2149
    %v12054 = vpop.f32.mrf.mxu0
    %v12055 = vadd.f32 %v11794, %v12054
    %v12056 = vpop.f32.mrf.mxu0
    %v12057 = vadd.f32 %v11796, %v12056
    %12058 = vmatmul.bf16.gmra.mxu0 %v2157
    %v12059 = vpop.f32.mrf.mxu0
    %v12060 = vadd.f32 %v11799, %v12059
    %v12061 = vpop.f32.mrf.mxu0
    %v12062 = vadd.f32 %v11801, %v12061
    %12063 = vmatmul.bf16.gmra.mxu0 %v2165
    %v12064 = vpop.f32.mrf.mxu0
    %v12065 = vadd.f32 %v11804, %v12064
    %v12066 = vpop.f32.mrf.mxu0
    %v12067 = vadd.f32 %v11806, %v12066
    %12068 = vmatmul.bf16.gmra.mxu0 %v2173
    %v12069 = vpop.f32.mrf.mxu0
    %v12070 = vadd.f32 %v11809, %v12069
    %v12071 = vpop.f32.mrf.mxu0
    %v12072 = vadd.f32 %v11811, %v12071
    %12073 = vmatmul.bf16.gmra.mxu0 %v2181
    %v12074 = vpop.f32.mrf.mxu0
    %v12075 = vadd.f32 %v11814, %v12074
    %v12076 = vpop.f32.mrf.mxu0
    %v12077 = vadd.f32 %v11816, %v12076
    %12078 = vmatmul.bf16.gmra.mxu0 %v2189
    %v12079 = vpop.f32.mrf.mxu0
    %v12080 = vadd.f32 %v11819, %v12079
    %v12081 = vpop.f32.mrf.mxu0
    %v12082 = vadd.f32 %v11821, %v12081
    %12083 = vmatmul.bf16.gmra.mxu0 %v2197
    %v12084 = vpop.f32.mrf.mxu0
    %v12085 = vadd.f32 %v11824, %v12084
    %v12086 = vpop.f32.mrf.mxu0
    %v12087 = vadd.f32 %v11826, %v12086
    %12088 = vmatmul.bf16.gmra.mxu0 %v2205
    %v12089 = vpop.f32.mrf.mxu0
    %v12090 = vadd.f32 %v11829, %v12089
    %v12091 = vpop.f32.mrf.mxu0
    %v12092 = vadd.f32 %v11831, %v12091
    %12093 = vmatmul.bf16.gmra.mxu0 %v2213
    %v12094 = vpop.f32.mrf.mxu0
    %v12095 = vadd.f32 %v11834, %v12094
    %v12096 = vpop.f32.mrf.mxu0
    %v12097 = vadd.f32 %v11836, %v12096
    %12098 = vmatmul.bf16.gmra.mxu0 %v2221
    %v12099 = vpop.f32.mrf.mxu0
    %v12100 = vadd.f32 %v11839, %v12099
    %v12101 = vpop.f32.mrf.mxu0
    %v12102 = vadd.f32 %v11841, %v12101
    %12103 = vmatmul.bf16.gmra.mxu0 %v2229
    %v12104 = vpop.f32.mrf.mxu0
    %v12105 = vadd.f32 %v11844, %v12104
    %v12106 = vpop.f32.mrf.mxu0
    %v12107 = vadd.f32 %v11846, %v12106
    %12108 = vmatmul.bf16.gmra.mxu0 %v2237
    %v12109 = vpop.f32.mrf.mxu0
    %v12110 = vadd.f32 %v11849, %v12109
    %v12111 = vpop.f32.mrf.mxu0
    %v12112 = vadd.f32 %v11851, %v12111
    %12113 = vmatmul.bf16.gmra.mxu0 %v2245
    %v12114 = vpop.f32.mrf.mxu0
    %v12115 = vadd.f32 %v11854, %v12114
    %v12116 = vpop.f32.mrf.mxu0
    %v12117 = vadd.f32 %v11856, %v12116
    %12118 = vmatmul.bf16.gmra.mxu0 %v2253
    %v12119 = vpop.f32.mrf.mxu0
    %v12120 = vadd.f32 %v11859, %v12119
    %v12121 = vpop.f32.mrf.mxu0
    %v12122 = vadd.f32 %v11861, %v12121
    %12123 = vmatmul.bf16.gmra.mxu0 %v2261
    %v12124 = vpop.f32.mrf.mxu0
    %v12125 = vadd.f32 %v11864, %v12124
    %v12126 = vpop.f32.mrf.mxu0
    %v12127 = vadd.f32 %v11866, %v12126
    %12128 = vmatmul.bf16.gmra.mxu0 %v2269
    %v12129 = vpop.f32.mrf.mxu0
    %v12130 = vadd.f32 %v11869, %v12129
    %v12131 = vpop.f32.mrf.mxu0
    %v12132 = vadd.f32 %v11871, %v12131
    %12133 = vmatmul.bf16.gmra.mxu0 %v2277
    %v12134 = vpop.f32.mrf.mxu0
    %v12135 = vadd.f32 %v11874, %v12134
    %v12136 = vpop.f32.mrf.mxu0
    %v12137 = vadd.f32 %v11876, %v12136
    %12138 = vmatmul.bf16.gmra.mxu0 %v2285
    %v12139 = vpop.f32.mrf.mxu0
    %v12140 = vadd.f32 %v11879, %v12139
    %v12141 = vpop.f32.mrf.mxu0
    %v12142 = vadd.f32 %v11881, %v12141
    %12143 = vmatmul.bf16.gmra.mxu0 %v2293
    %v12144 = vpop.f32.mrf.mxu0
    %v12145 = vadd.f32 %v11884, %v12144
    %v12146 = vpop.f32.mrf.mxu0
    %v12147 = vadd.f32 %v11886, %v12146
    %12148 = vmatmul.bf16.gmra.mxu0 %v2301
    %v12149 = vpop.f32.mrf.mxu0
    %v12150 = vadd.f32 %v11889, %v12149
    %v12151 = vpop.f32.mrf.mxu0
    %v12152 = vadd.f32 %v11891, %v12151
    %12153 = vmatmul.bf16.gmra.mxu0 %v2309
    %v12154 = vpop.f32.mrf.mxu0
    %v12155 = vadd.f32 %v11894, %v12154
    %v12156 = vpop.f32.mrf.mxu0
    %v12157 = vadd.f32 %v11896, %v12156
    %12158 = vmatmul.bf16.gmra.mxu0 %v2317
    %v12159 = vpop.f32.mrf.mxu0
    %v12160 = vadd.f32 %v11899, %v12159
    %v12161 = vpop.f32.mrf.mxu0
    %v12162 = vadd.f32 %v11901, %v12161
    %12163 = vmatmul.bf16.gmra.mxu0 %v2325
    %v12164 = vpop.f32.mrf.mxu0
    %v12165 = vadd.f32 %v11904, %v12164
    %v12166 = vpop.f32.mrf.mxu0
    %v12167 = vadd.f32 %v11906, %v12166
    %12168 = vmatmul.bf16.gmra.mxu0 %v2333
    %v12169 = vpop.f32.mrf.mxu0
    %v12170 = vadd.f32 %v11909, %v12169
    %v12171 = vpop.f32.mrf.mxu0
    %v12172 = vadd.f32 %v11911, %v12171
    %12173 = vmatmul.bf16.gmra.mxu0 %v2341
    %v12174 = vpop.f32.mrf.mxu0
    %v12175 = vadd.f32 %v11914, %v12174
    %v12176 = vpop.f32.mrf.mxu0
    %v12177 = vadd.f32 %v11916, %v12176
    %12178 = vmatmul.bf16.gmra.mxu0 %v2349
    %v12179 = vpop.f32.mrf.mxu0
    %v12180 = vadd.f32 %v11919, %v12179
    %v12181 = vpop.f32.mrf.mxu0
    %v12182 = vadd.f32 %v11921, %v12181
    %12183 = vmatmul.bf16.gmra.mxu0 %v2357
    %v12184 = vpop.f32.mrf.mxu0
    %v12185 = vadd.f32 %v11924, %v12184
    %v12186 = vpop.f32.mrf.mxu0
    %v12187 = vadd.f32 %v11926, %v12186
    %12188 = vmatmul.bf16.gmra.mxu0 %v2365
    %v12189 = vpop.f32.mrf.mxu0
    %v12190 = vadd.f32 %v11929, %v12189
    %v12191 = vpop.f32.mrf.mxu0
    %v12192 = vadd.f32 %v11931, %v12191
    %12193 = vmatmul.bf16.gmra.mxu0 %v2373
    %v12194 = vpop.f32.mrf.mxu0
    %v12195 = vadd.f32 %v11934, %v12194
    %v12196 = vpop.f32.mrf.mxu0
    %v12197 = vadd.f32 %v11936, %v12196
    %12198 = vmatmul.bf16.gmra.mxu0 %v2381
    %v12199 = vpop.f32.mrf.mxu0
    %v12200 = vadd.f32 %v11939, %v12199
    %v12201 = vpop.f32.mrf.mxu0
    %v12202 = vadd.f32 %v11941, %v12201
    %12203 = vmatmul.bf16.gmra.mxu0 %v2389
    %v12204 = vpop.f32.mrf.mxu0
    %v12205 = vadd.f32 %v11944, %v12204
    %v12206 = vpop.f32.mrf.mxu0
    %v12207 = vadd.f32 %v11946, %v12206
    %12208 = vmatmul.bf16.gmra.mxu0 %v2397
    %v12209 = vpop.f32.mrf.mxu0
    %v12210 = vadd.f32 %v11949, %v12209
    %v12211 = vpop.f32.mrf.mxu0
    %v12212 = vadd.f32 %v11951, %v12211
    %12213 = vmatmul.bf16.gmra.mxu0 %v2405
    %v12214 = vpop.f32.mrf.mxu0
    %v12215 = vadd.f32 %v11954, %v12214
    %v12216 = vpop.f32.mrf.mxu0
    %v12217 = vadd.f32 %v11956, %v12216
    %12218 = vmatmul.bf16.gmra.mxu0 %v2413
    %v12219 = vpop.f32.mrf.mxu0
    %v12220 = vadd.f32 %v11959, %v12219
    %v12221 = vpop.f32.mrf.mxu0
    %v12222 = vadd.f32 %v11961, %v12221
    %12223 = vmatmul.bf16.gmra.mxu0 %v2421
    %v12224 = vpop.f32.mrf.mxu0
    %v12225 = vadd.f32 %v11964, %v12224
    %v12226 = vpop.f32.mrf.mxu0
    %v12227 = vadd.f32 %v11966, %v12226
    %12228 = vmatmul.bf16.gmra.mxu0 %v2429
    %v12229 = vpop.f32.mrf.mxu0
    %v12230 = vadd.f32 %v11969, %v12229
    %v12231 = vpop.f32.mrf.mxu0
    %v12232 = vadd.f32 %v11971, %v12231
    %12233 = vmatmul.bf16.gmra.mxu0 %v2437
    %v12234 = vpop.f32.mrf.mxu0
    %v12235 = vadd.f32 %v11974, %v12234
    %v12236 = vpop.f32.mrf.mxu0
    %v12237 = vadd.f32 %v11976, %v12236
    %12238 = vmatmul.bf16.gmra.mxu0 %v2445
    %v12239 = vpop.f32.mrf.mxu0
    %v12240 = vadd.f32 %v11979, %v12239
    %v12241 = vpop.f32.mrf.mxu0
    %v12242 = vadd.f32 %v11981, %v12241
    %12243 = vmatmul.bf16.gmra.mxu0 %v2453
    %v12244 = vpop.f32.mrf.mxu0
    %v12245 = vadd.f32 %v11984, %v12244
    %v12246 = vpop.f32.mrf.mxu0
    %v12247 = vadd.f32 %v11986, %v12246
    %12248 = vmatmul.bf16.gmra.mxu0 %v2461
    %v12249 = vpop.f32.mrf.mxu0
    %v12250 = vadd.f32 %v11989, %v12249
    %v12251 = vpop.f32.mrf.mxu0
    %v12252 = vadd.f32 %v11991, %v12251
    %12253 = vmatmul.bf16.gmra.mxu0 %v2469
    %v12254 = vpop.f32.mrf.mxu0
    %v12255 = vadd.f32 %v11994, %v12254
    %v12256 = vpop.f32.mrf.mxu0
    %v12257 = vadd.f32 %v11996, %v12256
    %12258 = vmatmul.bf16.gmra.mxu0 %v2477
    %v12259 = vpop.f32.mrf.mxu0
    %v12260 = vadd.f32 %v11999, %v12259
    %v12261 = vpop.f32.mrf.mxu0
    %v12262 = vadd.f32 %v12001, %v12261
    %12263 = vmatmul.bf16.gmra.mxu0 %v2485
    %v12264 = vpop.f32.mrf.mxu0
    %v12265 = vadd.f32 %v12004, %v12264
    %v12266 = vpop.f32.mrf.mxu0
    %v12267 = vadd.f32 %v12006, %v12266
    %12268 = vmatmul.bf16.gmra.mxu0 %v2493
    %v12269 = vpop.f32.mrf.mxu0
    %v12270 = vadd.f32 %v12009, %v12269
    %v12271 = vpop.f32.mrf.mxu0
    %v12272 = vadd.f32 %v12011, %v12271
    %12273 = vmatmul.bf16.gmra.mxu0 %v2501
    %v12274 = vpop.f32.mrf.mxu0
    %v12275 = vadd.f32 %v12014, %v12274
    %v12276 = vpop.f32.mrf.mxu0
    %v12277 = vadd.f32 %v12016, %v12276
    %12278 = vmatmul.bf16.gmra.mxu0 %v2509
    %v12279 = vpop.f32.mrf.mxu0
    %v12280 = vadd.f32 %v12019, %v12279
    %v12281 = vpop.f32.mrf.mxu0
    %v12282 = vadd.f32 %v12021, %v12281
    %12283 = vmatmul.bf16.gmra.mxu0 %v2517
    %v12284 = vpop.f32.mrf.mxu0
    %v12285 = vadd.f32 %v12024, %v12284
    %v12286 = vpop.f32.mrf.mxu0
    %v12287 = vadd.f32 %v12026, %v12286
    %12288 = vdwg.mxu0
    %12289 = vmatpush.bf16.msra.mxu0 %v8550
    %12290 = vmatpush.bf16.msra.mxu0 %v8548
    %12291 = vmatpush.bf16.msra.mxu0 %v8546
    %12292 = vmatpush.bf16.msra.mxu0 %v8544
    %12293 = vmatpush.bf16.msra.mxu0 %v8542
    %12294 = vmatpush.bf16.msra.mxu0 %v8540
    %12295 = vmatpush.bf16.msra.mxu0 %v8538
    %12296 = vmatpush.bf16.msra.mxu0 %v8536
    %12297 = vmatmul.bf16.gmra.mxu0 %v2110
    %v12298 = vpop.f32.mrf.mxu0
    %v12299 = vpop.f32.mrf.mxu0
    %12300 = vmatmul.bf16.gmra.mxu0 %v2118
    %v12301 = vpop.f32.mrf.mxu0
    %v12302 = vpop.f32.mrf.mxu0
    %12303 = vmatmul.bf16.gmra.mxu0 %v2126
    %v12304 = vpop.f32.mrf.mxu0
    %v12305 = vpop.f32.mrf.mxu0
    %12306 = vmatmul.bf16.gmra.mxu0 %v2134
    %v12307 = vpop.f32.mrf.mxu0
    %v12308 = vpop.f32.mrf.mxu0
    %12309 = vmatmul.bf16.gmra.mxu0 %v2142
    %v12310 = vpop.f32.mrf.mxu0
    %v12311 = vadd.f32 %v12050, %v12310
    %v12312 = vpop.f32.mrf.mxu0
    %v12313 = vadd.f32 %v12052, %v12312
    %12314 = vmatmul.bf16.gmra.mxu0 %v2150
    %v12315 = vpop.f32.mrf.mxu0
    %v12316 = vadd.f32 %v12055, %v12315
    %v12317 = vpop.f32.mrf.mxu0
    %v12318 = vadd.f32 %v12057, %v12317
    %12319 = vmatmul.bf16.gmra.mxu0 %v2158
    %v12320 = vpop.f32.mrf.mxu0
    %v12321 = vadd.f32 %v12060, %v12320
    %v12322 = vpop.f32.mrf.mxu0
    %v12323 = vadd.f32 %v12062, %v12322
    %12324 = vmatmul.bf16.gmra.mxu0 %v2166
    %v12325 = vpop.f32.mrf.mxu0
    %v12326 = vadd.f32 %v12065, %v12325
    %v12327 = vpop.f32.mrf.mxu0
    %v12328 = vadd.f32 %v12067, %v12327
    %12329 = vmatmul.bf16.gmra.mxu0 %v2174
    %v12330 = vpop.f32.mrf.mxu0
    %v12331 = vadd.f32 %v12070, %v12330
    %v12332 = vpop.f32.mrf.mxu0
    %v12333 = vadd.f32 %v12072, %v12332
    %12334 = vmatmul.bf16.gmra.mxu0 %v2182
    %v12335 = vpop.f32.mrf.mxu0
    %v12336 = vadd.f32 %v12075, %v12335
    %v12337 = vpop.f32.mrf.mxu0
    %v12338 = vadd.f32 %v12077, %v12337
    %12339 = vmatmul.bf16.gmra.mxu0 %v2190
    %v12340 = vpop.f32.mrf.mxu0
    %v12341 = vadd.f32 %v12080, %v12340
    %v12342 = vpop.f32.mrf.mxu0
    %v12343 = vadd.f32 %v12082, %v12342
    %12344 = vmatmul.bf16.gmra.mxu0 %v2198
    %v12345 = vpop.f32.mrf.mxu0
    %v12346 = vadd.f32 %v12085, %v12345
    %v12347 = vpop.f32.mrf.mxu0
    %v12348 = vadd.f32 %v12087, %v12347
    %12349 = vmatmul.bf16.gmra.mxu0 %v2206
    %v12350 = vpop.f32.mrf.mxu0
    %v12351 = vadd.f32 %v12090, %v12350
    %v12352 = vpop.f32.mrf.mxu0
    %v12353 = vadd.f32 %v12092, %v12352
    %12354 = vmatmul.bf16.gmra.mxu0 %v2214
    %v12355 = vpop.f32.mrf.mxu0
    %v12356 = vadd.f32 %v12095, %v12355
    %v12357 = vpop.f32.mrf.mxu0
    %v12358 = vadd.f32 %v12097, %v12357
    %12359 = vmatmul.bf16.gmra.mxu0 %v2222
    %v12360 = vpop.f32.mrf.mxu0
    %v12361 = vadd.f32 %v12100, %v12360
    %v12362 = vpop.f32.mrf.mxu0
    %v12363 = vadd.f32 %v12102, %v12362
    %12364 = vmatmul.bf16.gmra.mxu0 %v2230
    %v12365 = vpop.f32.mrf.mxu0
    %v12366 = vadd.f32 %v12105, %v12365
    %v12367 = vpop.f32.mrf.mxu0
    %v12368 = vadd.f32 %v12107, %v12367
    %12369 = vmatmul.bf16.gmra.mxu0 %v2238
    %v12370 = vpop.f32.mrf.mxu0
    %v12371 = vadd.f32 %v12110, %v12370
    %v12372 = vpop.f32.mrf.mxu0
    %v12373 = vadd.f32 %v12112, %v12372
    %12374 = vmatmul.bf16.gmra.mxu0 %v2246
    %v12375 = vpop.f32.mrf.mxu0
    %v12376 = vadd.f32 %v12115, %v12375
    %v12377 = vpop.f32.mrf.mxu0
    %v12378 = vadd.f32 %v12117, %v12377
    %12379 = vmatmul.bf16.gmra.mxu0 %v2254
    %v12380 = vpop.f32.mrf.mxu0
    %v12381 = vadd.f32 %v12120, %v12380
    %v12382 = vpop.f32.mrf.mxu0
    %v12383 = vadd.f32 %v12122, %v12382
    %12384 = vmatmul.bf16.gmra.mxu0 %v2262
    %v12385 = vpop.f32.mrf.mxu0
    %v12386 = vadd.f32 %v12125, %v12385
    %v12387 = vpop.f32.mrf.mxu0
    %v12388 = vadd.f32 %v12127, %v12387
    %12389 = vmatmul.bf16.gmra.mxu0 %v2270
    %v12390 = vpop.f32.mrf.mxu0
    %v12391 = vadd.f32 %v12130, %v12390
    %v12392 = vpop.f32.mrf.mxu0
    %v12393 = vadd.f32 %v12132, %v12392
    %12394 = vmatmul.bf16.gmra.mxu0 %v2278
    %v12395 = vpop.f32.mrf.mxu0
    %v12396 = vadd.f32 %v12135, %v12395
    %v12397 = vpop.f32.mrf.mxu0
    %v12398 = vadd.f32 %v12137, %v12397
    %12399 = vmatmul.bf16.gmra.mxu0 %v2286
    %v12400 = vpop.f32.mrf.mxu0
    %v12401 = vadd.f32 %v12140, %v12400
    %v12402 = vpop.f32.mrf.mxu0
    %v12403 = vadd.f32 %v12142, %v12402
    %12404 = vmatmul.bf16.gmra.mxu0 %v2294
    %v12405 = vpop.f32.mrf.mxu0
    %v12406 = vadd.f32 %v12145, %v12405
    %v12407 = vpop.f32.mrf.mxu0
    %v12408 = vadd.f32 %v12147, %v12407
    %12409 = vmatmul.bf16.gmra.mxu0 %v2302
    %v12410 = vpop.f32.mrf.mxu0
    %v12411 = vadd.f32 %v12150, %v12410
    %v12412 = vpop.f32.mrf.mxu0
    %v12413 = vadd.f32 %v12152, %v12412
    %12414 = vmatmul.bf16.gmra.mxu0 %v2310
    %v12415 = vpop.f32.mrf.mxu0
    %v12416 = vadd.f32 %v12155, %v12415
    %v12417 = vpop.f32.mrf.mxu0
    %v12418 = vadd.f32 %v12157, %v12417
    %12419 = vmatmul.bf16.gmra.mxu0 %v2318
    %v12420 = vpop.f32.mrf.mxu0
    %v12421 = vadd.f32 %v12160, %v12420
    %v12422 = vpop.f32.mrf.mxu0
    %v12423 = vadd.f32 %v12162, %v12422
    %12424 = vmatmul.bf16.gmra.mxu0 %v2326
    %v12425 = vpop.f32.mrf.mxu0
    %v12426 = vadd.f32 %v12165, %v12425
    %v12427 = vpop.f32.mrf.mxu0
    %v12428 = vadd.f32 %v12167, %v12427
    %12429 = vmatmul.bf16.gmra.mxu0 %v2334
    %v12430 = vpop.f32.mrf.mxu0
    %v12431 = vadd.f32 %v12170, %v12430
    %v12432 = vpop.f32.mrf.mxu0
    %v12433 = vadd.f32 %v12172, %v12432
    %12434 = vmatmul.bf16.gmra.mxu0 %v2342
    %v12435 = vpop.f32.mrf.mxu0
    %v12436 = vadd.f32 %v12175, %v12435
    %v12437 = vpop.f32.mrf.mxu0
    %v12438 = vadd.f32 %v12177, %v12437
    %12439 = vmatmul.bf16.gmra.mxu0 %v2350
    %v12440 = vpop.f32.mrf.mxu0
    %v12441 = vadd.f32 %v12180, %v12440
    %v12442 = vpop.f32.mrf.mxu0
    %v12443 = vadd.f32 %v12182, %v12442
    %12444 = vmatmul.bf16.gmra.mxu0 %v2358
    %v12445 = vpop.f32.mrf.mxu0
    %v12446 = vadd.f32 %v12185, %v12445
    %v12447 = vpop.f32.mrf.mxu0
    %v12448 = vadd.f32 %v12187, %v12447
    %12449 = vmatmul.bf16.gmra.mxu0 %v2366
    %v12450 = vpop.f32.mrf.mxu0
    %v12451 = vadd.f32 %v12190, %v12450
    %v12452 = vpop.f32.mrf.mxu0
    %v12453 = vadd.f32 %v12192, %v12452
    %12454 = vmatmul.bf16.gmra.mxu0 %v2374
    %v12455 = vpop.f32.mrf.mxu0
    %v12456 = vadd.f32 %v12195, %v12455
    %v12457 = vpop.f32.mrf.mxu0
    %v12458 = vadd.f32 %v12197, %v12457
    %12459 = vmatmul.bf16.gmra.mxu0 %v2382
    %v12460 = vpop.f32.mrf.mxu0
    %v12461 = vadd.f32 %v12200, %v12460
    %v12462 = vpop.f32.mrf.mxu0
    %v12463 = vadd.f32 %v12202, %v12462
    %12464 = vmatmul.bf16.gmra.mxu0 %v2390
    %v12465 = vpop.f32.mrf.mxu0
    %v12466 = vadd.f32 %v12205, %v12465
    %v12467 = vpop.f32.mrf.mxu0
    %v12468 = vadd.f32 %v12207, %v12467
    %12469 = vmatmul.bf16.gmra.mxu0 %v2398
    %v12470 = vpop.f32.mrf.mxu0
    %v12471 = vadd.f32 %v12210, %v12470
    %v12472 = vpop.f32.mrf.mxu0
    %v12473 = vadd.f32 %v12212, %v12472
    %12474 = vmatmul.bf16.gmra.mxu0 %v2406
    %v12475 = vpop.f32.mrf.mxu0
    %v12476 = vadd.f32 %v12215, %v12475
    %v12477 = vpop.f32.mrf.mxu0
    %v12478 = vadd.f32 %v12217, %v12477
    %12479 = vmatmul.bf16.gmra.mxu0 %v2414
    %v12480 = vpop.f32.mrf.mxu0
    %v12481 = vadd.f32 %v12220, %v12480
    %v12482 = vpop.f32.mrf.mxu0
    %v12483 = vadd.f32 %v12222, %v12482
    %12484 = vmatmul.bf16.gmra.mxu0 %v2422
    %v12485 = vpop.f32.mrf.mxu0
    %v12486 = vadd.f32 %v12225, %v12485
    %v12487 = vpop.f32.mrf.mxu0
    %v12488 = vadd.f32 %v12227, %v12487
    %12489 = vmatmul.bf16.gmra.mxu0 %v2430
    %v12490 = vpop.f32.mrf.mxu0
    %v12491 = vadd.f32 %v12230, %v12490
    %v12492 = vpop.f32.mrf.mxu0
    %v12493 = vadd.f32 %v12232, %v12492
    %12494 = vmatmul.bf16.gmra.mxu0 %v2438
    %v12495 = vpop.f32.mrf.mxu0
    %v12496 = vadd.f32 %v12235, %v12495
    %v12497 = vpop.f32.mrf.mxu0
    %v12498 = vadd.f32 %v12237, %v12497
    %12499 = vmatmul.bf16.gmra.mxu0 %v2446
    %v12500 = vpop.f32.mrf.mxu0
    %v12501 = vadd.f32 %v12240, %v12500
    %v12502 = vpop.f32.mrf.mxu0
    %v12503 = vadd.f32 %v12242, %v12502
    %12504 = vmatmul.bf16.gmra.mxu0 %v2454
    %v12505 = vpop.f32.mrf.mxu0
    %v12506 = vadd.f32 %v12245, %v12505
    %v12507 = vpop.f32.mrf.mxu0
    %v12508 = vadd.f32 %v12247, %v12507
    %12509 = vmatmul.bf16.gmra.mxu0 %v2462
    %v12510 = vpop.f32.mrf.mxu0
    %v12511 = vadd.f32 %v12250, %v12510
    %v12512 = vpop.f32.mrf.mxu0
    %v12513 = vadd.f32 %v12252, %v12512
    %12514 = vmatmul.bf16.gmra.mxu0 %v2470
    %v12515 = vpop.f32.mrf.mxu0
    %v12516 = vadd.f32 %v12255, %v12515
    %v12517 = vpop.f32.mrf.mxu0
    %v12518 = vadd.f32 %v12257, %v12517
    %12519 = vmatmul.bf16.gmra.mxu0 %v2478
    %v12520 = vpop.f32.mrf.mxu0
    %v12521 = vadd.f32 %v12260, %v12520
    %v12522 = vpop.f32.mrf.mxu0
    %v12523 = vadd.f32 %v12262, %v12522
    %12524 = vmatmul.bf16.gmra.mxu0 %v2486
    %v12525 = vpop.f32.mrf.mxu0
    %v12526 = vadd.f32 %v12265, %v12525
    %v12527 = vpop.f32.mrf.mxu0
    %v12528 = vadd.f32 %v12267, %v12527
    %12529 = vmatmul.bf16.gmra.mxu0 %v2494
    %v12530 = vpop.f32.mrf.mxu0
    %v12531 = vadd.f32 %v12270, %v12530
    %v12532 = vpop.f32.mrf.mxu0
    %v12533 = vadd.f32 %v12272, %v12532
    %12534 = vmatmul.bf16.gmra.mxu0 %v2502
    %v12535 = vpop.f32.mrf.mxu0
    %v12536 = vadd.f32 %v12275, %v12535
    %v12537 = vpop.f32.mrf.mxu0
    %v12538 = vadd.f32 %v12277, %v12537
    %12539 = vmatmul.bf16.gmra.mxu0 %v2510
    %v12540 = vpop.f32.mrf.mxu0
    %v12541 = vadd.f32 %v12280, %v12540
    %v12542 = vpop.f32.mrf.mxu0
    %v12543 = vadd.f32 %v12282, %v12542
    %12544 = vmatmul.bf16.gmra.mxu0 %v2518
    %v12545 = vpop.f32.mrf.mxu0
    %v12546 = vadd.f32 %v12285, %v12545
    %v12547 = vpop.f32.mrf.mxu0
    %v12548 = vadd.f32 %v12287, %v12547
    %12549 = vdwg.mxu0
    %12550 = vmatpush.bf16.msra.mxu0 0
    %12551 = vmatpush.bf16.msra.mxu0 %v8569
    %12552 = vmatpush.bf16.msra.mxu0 %v8562
    %12553 = vmatpush.bf16.msra.mxu0 %v8560
    %12554 = vmatpush.bf16.msra.mxu0 %v8558
    %12555 = vmatpush.bf16.msra.mxu0 %v8556
    %12556 = vmatpush.bf16.msra.mxu0 %v8554
    %12557 = vmatpush.bf16.msra.mxu0 %v8552
    %12558 = vmatmul.bf16.gmra.mxu0 %v2886
    %v12559 = vpop.f32.mrf.mxu0
    %v12560 = vpop.f32.mrf.mxu0
    %12561 = vmatmul.bf16.gmra.mxu0 %v2889
    %v12562 = vpop.f32.mrf.mxu0
    %v12563 = vpop.f32.mrf.mxu0
    %12564 = vmatmul.bf16.gmra.mxu0 %v2892
    %v12565 = vpop.f32.mrf.mxu0
    %v12566 = vpop.f32.mrf.mxu0
    %12567 = vmatmul.bf16.gmra.mxu0 %v2895
    %v12568 = vpop.f32.mrf.mxu0
    %v12569 = vpop.f32.mrf.mxu0
    %12570 = vmatmul.bf16.gmra.mxu0 %v2898
    %v12571 = vpop.f32.mrf.mxu0
    %v12572 = vadd.f32 %v12311, %v12571
    %v12573 = vpop.f32.mrf.mxu0
    %v12574 = vadd.f32 %v12313, %v12573
    %12575 = vmatmul.bf16.gmra.mxu0 %v2901
    %v12576 = vpop.f32.mrf.mxu0
    %v12577 = vadd.f32 %v12316, %v12576
    %v12578 = vpop.f32.mrf.mxu0
    %v12579 = vadd.f32 %v12318, %v12578
    %12580 = vmatmul.bf16.gmra.mxu0 %v2904
    %v12581 = vpop.f32.mrf.mxu0
    %v12582 = vadd.f32 %v12321, %v12581
    %v12583 = vpop.f32.mrf.mxu0
    %v12584 = vadd.f32 %v12323, %v12583
    %12585 = vmatmul.bf16.gmra.mxu0 %v2907
    %v12586 = vpop.f32.mrf.mxu0
    %v12587 = vadd.f32 %v12326, %v12586
    %v12588 = vpop.f32.mrf.mxu0
    %v12589 = vadd.f32 %v12328, %v12588
    %12590 = vmatmul.bf16.gmra.mxu0 %v2910
    %v12591 = vpop.f32.mrf.mxu0
    %v12592 = vadd.f32 %v12331, %v12591
    %v12593 = vpop.f32.mrf.mxu0
    %v12594 = vadd.f32 %v12333, %v12593
    %12595 = vmatmul.bf16.gmra.mxu0 %v2913
    %v12596 = vpop.f32.mrf.mxu0
    %v12597 = vadd.f32 %v12336, %v12596
    %v12598 = vpop.f32.mrf.mxu0
    %v12599 = vadd.f32 %v12338, %v12598
    %12600 = vmatmul.bf16.gmra.mxu0 %v2916
    %v12601 = vpop.f32.mrf.mxu0
    %v12602 = vadd.f32 %v12341, %v12601
    %v12603 = vpop.f32.mrf.mxu0
    %v12604 = vadd.f32 %v12343, %v12603
    %12605 = vmatmul.bf16.gmra.mxu0 %v2919
    %v12606 = vpop.f32.mrf.mxu0
    %v12607 = vadd.f32 %v12346, %v12606
    %v12608 = vpop.f32.mrf.mxu0
    %v12609 = vadd.f32 %v12348, %v12608
    %12610 = vmatmul.bf16.gmra.mxu0 %v2922
    %v12611 = vpop.f32.mrf.mxu0
    %v12612 = vadd.f32 %v12351, %v12611
    %v12613 = vpop.f32.mrf.mxu0
    %v12614 = vadd.f32 %v12353, %v12613
    %12615 = vmatmul.bf16.gmra.mxu0 %v2925
    %v12616 = vpop.f32.mrf.mxu0
    %v12617 = vadd.f32 %v12356, %v12616
    %v12618 = vpop.f32.mrf.mxu0
    %v12619 = vadd.f32 %v12358, %v12618
    %12620 = vmatmul.bf16.gmra.mxu0 %v2928
    %v12621 = vpop.f32.mrf.mxu0
    %v12622 = vadd.f32 %v12361, %v12621
    %v12623 = vpop.f32.mrf.mxu0
    %v12624 = vadd.f32 %v12363, %v12623
    %12625 = vmatmul.bf16.gmra.mxu0 %v2931
    %v12626 = vpop.f32.mrf.mxu0
    %v12627 = vadd.f32 %v12366, %v12626
    %v12628 = vpop.f32.mrf.mxu0
    %v12629 = vadd.f32 %v12368, %v12628
    %12630 = vmatmul.bf16.gmra.mxu0 %v2934
    %v12631 = vpop.f32.mrf.mxu0
    %v12632 = vadd.f32 %v12371, %v12631
    %v12633 = vpop.f32.mrf.mxu0
    %v12634 = vadd.f32 %v12373, %v12633
    %12635 = vmatmul.bf16.gmra.mxu0 %v2937
    %v12636 = vpop.f32.mrf.mxu0
    %v12637 = vadd.f32 %v12376, %v12636
    %v12638 = vpop.f32.mrf.mxu0
    %v12639 = vadd.f32 %v12378, %v12638
    %12640 = vmatmul.bf16.gmra.mxu0 %v2940
    %v12641 = vpop.f32.mrf.mxu0
    %v12642 = vadd.f32 %v12381, %v12641
    %v12643 = vpop.f32.mrf.mxu0
    %v12644 = vadd.f32 %v12383, %v12643
    %12645 = vmatmul.bf16.gmra.mxu0 %v2943
    %v12646 = vpop.f32.mrf.mxu0
    %v12647 = vadd.f32 %v12386, %v12646
    %v12648 = vpop.f32.mrf.mxu0
    %v12649 = vadd.f32 %v12388, %v12648
    %12650 = vmatmul.bf16.gmra.mxu0 %v2946
    %v12651 = vpop.f32.mrf.mxu0
    %v12652 = vadd.f32 %v12391, %v12651
    %v12653 = vpop.f32.mrf.mxu0
    %v12654 = vadd.f32 %v12393, %v12653
    %12655 = vmatmul.bf16.gmra.mxu0 %v2949
    %v12656 = vpop.f32.mrf.mxu0
    %v12657 = vadd.f32 %v12396, %v12656
    %v12658 = vpop.f32.mrf.mxu0
    %v12659 = vadd.f32 %v12398, %v12658
    %12660 = vmatmul.bf16.gmra.mxu0 %v2952
    %v12661 = vpop.f32.mrf.mxu0
    %v12662 = vadd.f32 %v12401, %v12661
    %v12663 = vpop.f32.mrf.mxu0
    %v12664 = vadd.f32 %v12403, %v12663
    %12665 = vmatmul.bf16.gmra.mxu0 %v2955
    %v12666 = vpop.f32.mrf.mxu0
    %v12667 = vadd.f32 %v12406, %v12666
    %v12668 = vpop.f32.mrf.mxu0
    %v12669 = vadd.f32 %v12408, %v12668
    %12670 = vmatmul.bf16.gmra.mxu0 %v2958
    %v12671 = vpop.f32.mrf.mxu0
    %v12672 = vadd.f32 %v12411, %v12671
    %v12673 = vpop.f32.mrf.mxu0
    %v12674 = vadd.f32 %v12413, %v12673
    %12675 = vmatmul.bf16.gmra.mxu0 %v2961
    %v12676 = vpop.f32.mrf.mxu0
    %v12677 = vadd.f32 %v12416, %v12676
    %v12678 = vpop.f32.mrf.mxu0
    %v12679 = vadd.f32 %v12418, %v12678
    %12680 = vmatmul.bf16.gmra.mxu0 %v2964
    %v12681 = vpop.f32.mrf.mxu0
    %v12682 = vadd.f32 %v12421, %v12681
    %v12683 = vpop.f32.mrf.mxu0
    %v12684 = vadd.f32 %v12423, %v12683
    %12685 = vmatmul.bf16.gmra.mxu0 %v2967
    %v12686 = vpop.f32.mrf.mxu0
    %v12687 = vadd.f32 %v12426, %v12686
    %v12688 = vpop.f32.mrf.mxu0
    %v12689 = vadd.f32 %v12428, %v12688
    %12690 = vmatmul.bf16.gmra.mxu0 %v2970
    %v12691 = vpop.f32.mrf.mxu0
    %v12692 = vadd.f32 %v12431, %v12691
    %v12693 = vpop.f32.mrf.mxu0
    %v12694 = vadd.f32 %v12433, %v12693
    %12695 = vmatmul.bf16.gmra.mxu0 %v2973
    %v12696 = vpop.f32.mrf.mxu0
    %v12697 = vadd.f32 %v12436, %v12696
    %v12698 = vpop.f32.mrf.mxu0
    %v12699 = vadd.f32 %v12438, %v12698
    %12700 = vmatmul.bf16.gmra.mxu0 %v2976
    %v12701 = vpop.f32.mrf.mxu0
    %v12702 = vadd.f32 %v12441, %v12701
    %v12703 = vpop.f32.mrf.mxu0
    %v12704 = vadd.f32 %v12443, %v12703
    %12705 = vmatmul.bf16.gmra.mxu0 %v2979
    %v12706 = vpop.f32.mrf.mxu0
    %v12707 = vadd.f32 %v12446, %v12706
    %v12708 = vpop.f32.mrf.mxu0
    %v12709 = vadd.f32 %v12448, %v12708
    %12710 = vmatmul.bf16.gmra.mxu0 %v2982
    %v12711 = vpop.f32.mrf.mxu0
    %v12712 = vadd.f32 %v12451, %v12711
    %v12713 = vpop.f32.mrf.mxu0
    %v12714 = vadd.f32 %v12453, %v12713
    %12715 = vmatmul.bf16.gmra.mxu0 %v2985
    %v12716 = vpop.f32.mrf.mxu0
    %v12717 = vadd.f32 %v12456, %v12716
    %v12718 = vpop.f32.mrf.mxu0
    %v12719 = vadd.f32 %v12458, %v12718
    %12720 = vmatmul.bf16.gmra.mxu0 %v2988
    %v12721 = vpop.f32.mrf.mxu0
    %v12722 = vadd.f32 %v12461, %v12721
    %v12723 = vpop.f32.mrf.mxu0
    %v12724 = vadd.f32 %v12463, %v12723
    %12725 = vmatmul.bf16.gmra.mxu0 %v2991
    %v12726 = vpop.f32.mrf.mxu0
    %v12727 = vadd.f32 %v12466, %v12726
    %v12728 = vpop.f32.mrf.mxu0
    %v12729 = vadd.f32 %v12468, %v12728
    %12730 = vmatmul.bf16.gmra.mxu0 %v2994
    %v12731 = vpop.f32.mrf.mxu0
    %v12732 = vadd.f32 %v12471, %v12731
    %v12733 = vpop.f32.mrf.mxu0
    %v12734 = vadd.f32 %v12473, %v12733
    %12735 = vmatmul.bf16.gmra.mxu0 %v2997
    %v12736 = vpop.f32.mrf.mxu0
    %v12737 = vadd.f32 %v12476, %v12736
    %v12738 = vpop.f32.mrf.mxu0
    %v12739 = vadd.f32 %v12478, %v12738
    %12740 = vmatmul.bf16.gmra.mxu0 %v3000
    %v12741 = vpop.f32.mrf.mxu0
    %v12742 = vadd.f32 %v12481, %v12741
    %v12743 = vpop.f32.mrf.mxu0
    %v12744 = vadd.f32 %v12483, %v12743
    %12745 = vmatmul.bf16.gmra.mxu0 %v3003
    %v12746 = vpop.f32.mrf.mxu0
    %v12747 = vadd.f32 %v12486, %v12746
    %v12748 = vpop.f32.mrf.mxu0
    %v12749 = vadd.f32 %v12488, %v12748
    %12750 = vmatmul.bf16.gmra.mxu0 %v3006
    %v12751 = vpop.f32.mrf.mxu0
    %v12752 = vadd.f32 %v12491, %v12751
    %v12753 = vpop.f32.mrf.mxu0
    %v12754 = vadd.f32 %v12493, %v12753
    %12755 = vmatmul.bf16.gmra.mxu0 %v3009
    %v12756 = vpop.f32.mrf.mxu0
    %v12757 = vadd.f32 %v12496, %v12756
    %v12758 = vpop.f32.mrf.mxu0
    %v12759 = vadd.f32 %v12498, %v12758
    %12760 = vmatmul.bf16.gmra.mxu0 %v3012
    %v12761 = vpop.f32.mrf.mxu0
    %v12762 = vadd.f32 %v12501, %v12761
    %v12763 = vpop.f32.mrf.mxu0
    %v12764 = vadd.f32 %v12503, %v12763
    %12765 = vmatmul.bf16.gmra.mxu0 %v3015
    %v12766 = vpop.f32.mrf.mxu0
    %v12767 = vadd.f32 %v12506, %v12766
    %v12768 = vpop.f32.mrf.mxu0
    %v12769 = vadd.f32 %v12508, %v12768
    %12770 = vmatmul.bf16.gmra.mxu0 %v3018
    %v12771 = vpop.f32.mrf.mxu0
    %v12772 = vadd.f32 %v12511, %v12771
    %v12773 = vpop.f32.mrf.mxu0
    %v12774 = vadd.f32 %v12513, %v12773
    %12775 = vmatmul.bf16.gmra.mxu0 %v3021
    %v12776 = vpop.f32.mrf.mxu0
    %v12777 = vadd.f32 %v12516, %v12776
    %v12778 = vpop.f32.mrf.mxu0
    %v12779 = vadd.f32 %v12518, %v12778
    %12780 = vmatmul.bf16.gmra.mxu0 %v3024
    %v12781 = vpop.f32.mrf.mxu0
    %v12782 = vadd.f32 %v12521, %v12781
    %v12783 = vpop.f32.mrf.mxu0
    %v12784 = vadd.f32 %v12523, %v12783
    %12785 = vmatmul.bf16.gmra.mxu0 %v3027
    %v12786 = vpop.f32.mrf.mxu0
    %v12787 = vadd.f32 %v12526, %v12786
    %v12788 = vpop.f32.mrf.mxu0
    %v12789 = vadd.f32 %v12528, %v12788
    %12790 = vmatmul.bf16.gmra.mxu0 %v3030
    %v12791 = vpop.f32.mrf.mxu0
    %v12792 = vadd.f32 %v12531, %v12791
    %v12793 = vpop.f32.mrf.mxu0
    %v12794 = vadd.f32 %v12533, %v12793
    %12795 = vmatmul.bf16.gmra.mxu0 %v3033
    %v12796 = vpop.f32.mrf.mxu0
    %v12797 = vadd.f32 %v12536, %v12796
    %v12798 = vpop.f32.mrf.mxu0
    %v12799 = vadd.f32 %v12538, %v12798
    %12800 = vmatmul.bf16.gmra.mxu0 %v3036
    %v12801 = vpop.f32.mrf.mxu0
    %v12802 = vadd.f32 %v12541, %v12801
    %v12803 = vpop.f32.mrf.mxu0
    %v12804 = vadd.f32 %v12543, %v12803
    %12805 = vmatmul.bf16.gmra.mxu0 %v3039
    %v12806 = vpop.f32.mrf.mxu0
    %v12807 = vadd.f32 %v12546, %v12806
    %v12808 = vpop.f32.mrf.mxu0
    %v12809 = vadd.f32 %v12548, %v12808
    %12810 = vdwg.mxu0
    %v12811 = vadd.f32 %v443, %v10464
    %v12812 = vadd.f32 %v448, %v10466
    %v12813 = vadd.f32 %v453, %v10469
    %v12814 = vadd.f32 %v458, %v10471
    %v12815 = vadd.f32 %v463, %v10474
    %v12816 = vadd.f32 %v468, %v10476
    %v12817 = vadd.f32 %v473, %v10479
    %v12818 = vadd.f32 %v478, %v10481
    %12835 = vrot.lane.b32.xlu0 %v10484, 127
    %v12836 = vpop.permute.xlu0 %12835
    %12837 = vrot.lane.b32.xlu0 %v12572, 127
    %v12838 = vpop.permute.xlu0 %12837
    %12839 = vrot.lane.b32.xlu0 %v10486, 127
    %v12840 = vpop.permute.xlu0 %12839
    %12841 = vrot.lane.b32.xlu0 %v12574, 127
    %v12842 = vpop.permute.xlu0 %12841
    %12843 = vrot.lane.b32.xlu0 %v10489, 127
    %v12844 = vpop.permute.xlu0 %12843
    %12845 = vrot.lane.b32.xlu0 %v12577, 127
    %v12846 = vpop.permute.xlu0 %12845
    %12847 = vrot.lane.b32.xlu0 %v10491, 127
    %v12848 = vpop.permute.xlu0 %12847
    %12849 = vrot.lane.b32.xlu0 %v12579, 127
    %v12850 = vpop.permute.xlu0 %12849
    %12851 = vrot.lane.b32.xlu0 %v10494, 127
    %v12852 = vpop.permute.xlu0 %12851
    %12853 = vrot.lane.b32.xlu0 %v12582, 127
    %v12854 = vpop.permute.xlu0 %12853
    %12855 = vrot.lane.b32.xlu0 %v10496, 127
    %v12856 = vpop.permute.xlu0 %12855
    %12857 = vrot.lane.b32.xlu0 %v12584, 127
    %v12858 = vpop.permute.xlu0 %12857
    %12859 = vrot.lane.b32.xlu0 %v10499, 127
    %v12860 = vpop.permute.xlu0 %12859
    %12861 = vrot.lane.b32.xlu0 %v12587, 127
    %v12862 = vpop.permute.xlu0 %12861
    %12863 = vrot.lane.b32.xlu0 %v10501, 127
    %v12864 = vpop.permute.xlu0 %12863
    %12865 = vrot.lane.b32.xlu0 %v12589, 127
    %v12866 = vpop.permute.xlu0 %12865
    %v12867 = vsel %vm7344, %v12836, %v12838
    %v12868 = vsel %vm7344, %v12840, %v12842
    %v12869 = vsel %vm7344, %v12844, %v12846
    %v12870 = vsel %vm7344, %v12848, %v12850
    %v12871 = vsel %vm7344, %v12852, %v12854
    %v12872 = vsel %vm7344, %v12856, %v12858
    %v12873 = vsel %vm7344, %v12860, %v12862
    %v12874 = vsel %vm7344, %v12864, %v12866
    %v12883 = vadd.f32 %v12811, %v12867
    %v12884 = vadd.f32 %v12812, %v12868
    %v12885 = vadd.f32 %v12813, %v12869
    %v12886 = vadd.f32 %v12814, %v12870
    %v12887 = vadd.f32 %v12815, %v12871
    %v12888 = vadd.f32 %v12816, %v12872
    %v12889 = vadd.f32 %v12817, %v12873
    %v12890 = vadd.f32 %v12818, %v12874
    %12907 = vrot.lane.b32.xlu0 %v10504, 126
    %v12908 = vpop.permute.xlu0 %12907
    %12909 = vrot.lane.b32.xlu0 %v12592, 126
    %v12910 = vpop.permute.xlu0 %12909
    %12911 = vrot.lane.b32.xlu0 %v10506, 126
    %v12912 = vpop.permute.xlu0 %12911
    %12913 = vrot.lane.b32.xlu0 %v12594, 126
    %v12914 = vpop.permute.xlu0 %12913
    %12915 = vrot.lane.b32.xlu0 %v10509, 126
    %v12916 = vpop.permute.xlu0 %12915
    %12917 = vrot.lane.b32.xlu0 %v12597, 126
    %v12918 = vpop.permute.xlu0 %12917
    %12919 = vrot.lane.b32.xlu0 %v10511, 126
    %v12920 = vpop.permute.xlu0 %12919
    %12921 = vrot.lane.b32.xlu0 %v12599, 126
    %v12922 = vpop.permute.xlu0 %12921
    %12923 = vrot.lane.b32.xlu0 %v10514, 126
    %v12924 = vpop.permute.xlu0 %12923
    %12925 = vrot.lane.b32.xlu0 %v12602, 126
    %v12926 = vpop.permute.xlu0 %12925
    %12927 = vrot.lane.b32.xlu0 %v10516, 126
    %v12928 = vpop.permute.xlu0 %12927
    %12929 = vrot.lane.b32.xlu0 %v12604, 126
    %v12930 = vpop.permute.xlu0 %12929
    %12931 = vrot.lane.b32.xlu0 %v10519, 126
    %v12932 = vpop.permute.xlu0 %12931
    %12933 = vrot.lane.b32.xlu0 %v12607, 126
    %v12934 = vpop.permute.xlu0 %12933
    %12935 = vrot.lane.b32.xlu0 %v10521, 126
    %v12936 = vpop.permute.xlu0 %12935
    %12937 = vrot.lane.b32.xlu0 %v12609, 126
    %v12938 = vpop.permute.xlu0 %12937
    %v12939 = vsel %vm7417, %v12908, %v12910
    %v12940 = vsel %vm7417, %v12912, %v12914
    %v12941 = vsel %vm7417, %v12916, %v12918
    %v12942 = vsel %vm7417, %v12920, %v12922
    %v12943 = vsel %vm7417, %v12924, %v12926
    %v12944 = vsel %vm7417, %v12928, %v12930
    %v12945 = vsel %vm7417, %v12932, %v12934
    %v12946 = vsel %vm7417, %v12936, %v12938
    %v12955 = vadd.f32 %v12883, %v12939
    %v12956 = vadd.f32 %v12884, %v12940
    %v12957 = vadd.f32 %v12885, %v12941
    %v12958 = vadd.f32 %v12886, %v12942
    %v12959 = vadd.f32 %v12887, %v12943
    %v12960 = vadd.f32 %v12888, %v12944
    %v12961 = vadd.f32 %v12889, %v12945
    %v12962 = vadd.f32 %v12890, %v12946
    %12979 = vrot.lane.b32.xlu0 %v10524, 125
    %v12980 = vpop.permute.xlu0 %12979
    %12981 = vrot.lane.b32.xlu0 %v12612, 125
    %v12982 = vpop.permute.xlu0 %12981
    %12983 = vrot.lane.b32.xlu0 %v10526, 125
    %v12984 = vpop.permute.xlu0 %12983
    %12985 = vrot.lane.b32.xlu0 %v12614, 125
    %v12986 = vpop.permute.xlu0 %12985
    %12987 = vrot.lane.b32.xlu0 %v10529, 125
    %v12988 = vpop.permute.xlu0 %12987
    %12989 = vrot.lane.b32.xlu0 %v12617, 125
    %v12990 = vpop.permute.xlu0 %12989
    %12991 = vrot.lane.b32.xlu0 %v10531, 125
    %v12992 = vpop.permute.xlu0 %12991
    %12993 = vrot.lane.b32.xlu0 %v12619, 125
    %v12994 = vpop.permute.xlu0 %12993
    %12995 = vrot.lane.b32.xlu0 %v10534, 125
    %v12996 = vpop.permute.xlu0 %12995
    %12997 = vrot.lane.b32.xlu0 %v12622, 125
    %v12998 = vpop.permute.xlu0 %12997
    %12999 = vrot.lane.b32.xlu0 %v10536, 125
    %v13000 = vpop.permute.xlu0 %12999
    %13001 = vrot.lane.b32.xlu0 %v12624, 125
    %v13002 = vpop.permute.xlu0 %13001
    %13003 = vrot.lane.b32.xlu0 %v10539, 125
    %v13004 = vpop.permute.xlu0 %13003
    %13005 = vrot.lane.b32.xlu0 %v12627, 125
    %v13006 = vpop.permute.xlu0 %13005
    %13007 = vrot.lane.b32.xlu0 %v10541, 125
    %v13008 = vpop.permute.xlu0 %13007
    %13009 = vrot.lane.b32.xlu0 %v12629, 125
    %v13010 = vpop.permute.xlu0 %13009
    %v13011 = vsel %vm7490, %v12980, %v12982
    %v13012 = vsel %vm7490, %v12984, %v12986
    %v13013 = vsel %vm7490, %v12988, %v12990
    %v13014 = vsel %vm7490, %v12992, %v12994
    %v13015 = vsel %vm7490, %v12996, %v12998
    %v13016 = vsel %vm7490, %v13000, %v13002
    %v13017 = vsel %vm7490, %v13004, %v13006
    %v13018 = vsel %vm7490, %v13008, %v13010
    %v13027 = vadd.f32 %v12955, %v13011
    %v13028 = vadd.f32 %v12956, %v13012
    %v13029 = vadd.f32 %v12957, %v13013
    %v13030 = vadd.f32 %v12958, %v13014
    %v13031 = vadd.f32 %v12959, %v13015
    %v13032 = vadd.f32 %v12960, %v13016
    %v13033 = vadd.f32 %v12961, %v13017
    %v13034 = vadd.f32 %v12962, %v13018
    %13051 = vrot.lane.b32.xlu0 %v10544, 124
    %v13052 = vpop.permute.xlu0 %13051
    %13053 = vrot.lane.b32.xlu0 %v12632, 124
    %v13054 = vpop.permute.xlu0 %13053
    %13055 = vrot.lane.b32.xlu0 %v10546, 124
    %v13056 = vpop.permute.xlu0 %13055
    %13057 = vrot.lane.b32.xlu0 %v12634, 124
    %v13058 = vpop.permute.xlu0 %13057
    %13059 = vrot.lane.b32.xlu0 %v10549, 124
    %v13060 = vpop.permute.xlu0 %13059
    %13061 = vrot.lane.b32.xlu0 %v12637, 124
    %v13062 = vpop.permute.xlu0 %13061
    %13063 = vrot.lane.b32.xlu0 %v10551, 124
    %v13064 = vpop.permute.xlu0 %13063
    %13065 = vrot.lane.b32.xlu0 %v12639, 124
    %v13066 = vpop.permute.xlu0 %13065
    %13067 = vrot.lane.b32.xlu0 %v10554, 124
    %v13068 = vpop.permute.xlu0 %13067
    %13069 = vrot.lane.b32.xlu0 %v12642, 124
    %v13070 = vpop.permute.xlu0 %13069
    %13071 = vrot.lane.b32.xlu0 %v10556, 124
    %v13072 = vpop.permute.xlu0 %13071
    %13073 = vrot.lane.b32.xlu0 %v12644, 124
    %v13074 = vpop.permute.xlu0 %13073
    %13075 = vrot.lane.b32.xlu0 %v10559, 124
    %v13076 = vpop.permute.xlu0 %13075
    %13077 = vrot.lane.b32.xlu0 %v12647, 124
    %v13078 = vpop.permute.xlu0 %13077
    %13079 = vrot.lane.b32.xlu0 %v10561, 124
    %v13080 = vpop.permute.xlu0 %13079
    %13081 = vrot.lane.b32.xlu0 %v12649, 124
    %v13082 = vpop.permute.xlu0 %13081
    %v13083 = vsel %vm7563, %v13052, %v13054
    %v13084 = vsel %vm7563, %v13056, %v13058
    %v13085 = vsel %vm7563, %v13060, %v13062
    %v13086 = vsel %vm7563, %v13064, %v13066
    %v13087 = vsel %vm7563, %v13068, %v13070
    %v13088 = vsel %vm7563, %v13072, %v13074
    %v13089 = vsel %vm7563, %v13076, %v13078
    %v13090 = vsel %vm7563, %v13080, %v13082
    %v13099 = vadd.f32 %v13027, %v13083
    %v13100 = vadd.f32 %v13028, %v13084
    %v13101 = vadd.f32 %v13029, %v13085
    %v13102 = vadd.f32 %v13030, %v13086
    %v13103 = vadd.f32 %v13031, %v13087
    %v13104 = vadd.f32 %v13032, %v13088
    %v13105 = vadd.f32 %v13033, %v13089
    %v13106 = vadd.f32 %v13034, %v13090
    %13123 = vrot.lane.b32.xlu0 %v10564, 123
    %v13124 = vpop.permute.xlu0 %13123
    %13125 = vrot.lane.b32.xlu0 %v12652, 123
    %v13126 = vpop.permute.xlu0 %13125
    %13127 = vrot.lane.b32.xlu0 %v10566, 123
    %v13128 = vpop.permute.xlu0 %13127
    %13129 = vrot.lane.b32.xlu0 %v12654, 123
    %v13130 = vpop.permute.xlu0 %13129
    %13131 = vrot.lane.b32.xlu0 %v10569, 123
    %v13132 = vpop.permute.xlu0 %13131
    %13133 = vrot.lane.b32.xlu0 %v12657, 123
    %v13134 = vpop.permute.xlu0 %13133
    %13135 = vrot.lane.b32.xlu0 %v10571, 123
    %v13136 = vpop.permute.xlu0 %13135
    %13137 = vrot.lane.b32.xlu0 %v12659, 123
    %v13138 = vpop.permute.xlu0 %13137
    %13139 = vrot.lane.b32.xlu0 %v10574, 123
    %v13140 = vpop.permute.xlu0 %13139
    %13141 = vrot.lane.b32.xlu0 %v12662, 123
    %v13142 = vpop.permute.xlu0 %13141
    %13143 = vrot.lane.b32.xlu0 %v10576, 123
    %v13144 = vpop.permute.xlu0 %13143
    %13145 = vrot.lane.b32.xlu0 %v12664, 123
    %v13146 = vpop.permute.xlu0 %13145
    %13147 = vrot.lane.b32.xlu0 %v10579, 123
    %v13148 = vpop.permute.xlu0 %13147
    %13149 = vrot.lane.b32.xlu0 %v12667, 123
    %v13150 = vpop.permute.xlu0 %13149
    %13151 = vrot.lane.b32.xlu0 %v10581, 123
    %v13152 = vpop.permute.xlu0 %13151
    %13153 = vrot.lane.b32.xlu0 %v12669, 123
    %v13154 = vpop.permute.xlu0 %13153
    %v13155 = vsel %vm7636, %v13124, %v13126
    %v13156 = vsel %vm7636, %v13128, %v13130
    %v13157 = vsel %vm7636, %v13132, %v13134
    %v13158 = vsel %vm7636, %v13136, %v13138
    %v13159 = vsel %vm7636, %v13140, %v13142
    %v13160 = vsel %vm7636, %v13144, %v13146
    %v13161 = vsel %vm7636, %v13148, %v13150
    %v13162 = vsel %vm7636, %v13152, %v13154
    %v13171 = vadd.f32 %v13099, %v13155
    %v13172 = vadd.f32 %v13100, %v13156
    %v13173 = vadd.f32 %v13101, %v13157
    %v13174 = vadd.f32 %v13102, %v13158
    %v13175 = vadd.f32 %v13103, %v13159
    %v13176 = vadd.f32 %v13104, %v13160
    %v13177 = vadd.f32 %v13105, %v13161
    %v13178 = vadd.f32 %v13106, %v13162
    %13195 = vrot.lane.b32.xlu0 %v10584, 122
    %v13196 = vpop.permute.xlu0 %13195
    %13197 = vrot.lane.b32.xlu0 %v12672, 122
    %v13198 = vpop.permute.xlu0 %13197
    %13199 = vrot.lane.b32.xlu0 %v10586, 122
    %v13200 = vpop.permute.xlu0 %13199
    %13201 = vrot.lane.b32.xlu0 %v12674, 122
    %v13202 = vpop.permute.xlu0 %13201
    %13203 = vrot.lane.b32.xlu0 %v10589, 122
    %v13204 = vpop.permute.xlu0 %13203
    %13205 = vrot.lane.b32.xlu0 %v12677, 122
    %v13206 = vpop.permute.xlu0 %13205
    %13207 = vrot.lane.b32.xlu0 %v10591, 122
    %v13208 = vpop.permute.xlu0 %13207
    %13209 = vrot.lane.b32.xlu0 %v12679, 122
    %v13210 = vpop.permute.xlu0 %13209
    %13211 = vrot.lane.b32.xlu0 %v10594, 122
    %v13212 = vpop.permute.xlu0 %13211
    %13213 = vrot.lane.b32.xlu0 %v12682, 122
    %v13214 = vpop.permute.xlu0 %13213
    %13215 = vrot.lane.b32.xlu0 %v10596, 122
    %v13216 = vpop.permute.xlu0 %13215
    %13217 = vrot.lane.b32.xlu0 %v12684, 122
    %v13218 = vpop.permute.xlu0 %13217
    %13219 = vrot.lane.b32.xlu0 %v10599, 122
    %v13220 = vpop.permute.xlu0 %13219
    %13221 = vrot.lane.b32.xlu0 %v12687, 122
    %v13222 = vpop.permute.xlu0 %13221
    %13223 = vrot.lane.b32.xlu0 %v10601, 122
    %v13224 = vpop.permute.xlu0 %13223
    %13225 = vrot.lane.b32.xlu0 %v12689, 122
    %v13226 = vpop.permute.xlu0 %13225
    %v13227 = vsel %vm7709, %v13196, %v13198
    %v13228 = vsel %vm7709, %v13200, %v13202
    %v13229 = vsel %vm7709, %v13204, %v13206
    %v13230 = vsel %vm7709, %v13208, %v13210
    %v13231 = vsel %vm7709, %v13212, %v13214
    %v13232 = vsel %vm7709, %v13216, %v13218
    %v13233 = vsel %vm7709, %v13220, %v13222
    %v13234 = vsel %vm7709, %v13224, %v13226
    %v13243 = vadd.f32 %v13171, %v13227
    %v13244 = vadd.f32 %v13172, %v13228
    %v13245 = vadd.f32 %v13173, %v13229
    %v13246 = vadd.f32 %v13174, %v13230
    %v13247 = vadd.f32 %v13175, %v13231
    %v13248 = vadd.f32 %v13176, %v13232
    %v13249 = vadd.f32 %v13177, %v13233
    %v13250 = vadd.f32 %v13178, %v13234
    %13267 = vrot.lane.b32.xlu0 %v10604, 121
    %v13268 = vpop.permute.xlu0 %13267
    %13269 = vrot.lane.b32.xlu0 %v12692, 121
    %v13270 = vpop.permute.xlu0 %13269
    %13271 = vrot.lane.b32.xlu0 %v10606, 121
    %v13272 = vpop.permute.xlu0 %13271
    %13273 = vrot.lane.b32.xlu0 %v12694, 121
    %v13274 = vpop.permute.xlu0 %13273
    %13275 = vrot.lane.b32.xlu0 %v10609, 121
    %v13276 = vpop.permute.xlu0 %13275
    %13277 = vrot.lane.b32.xlu0 %v12697, 121
    %v13278 = vpop.permute.xlu0 %13277
    %13279 = vrot.lane.b32.xlu0 %v10611, 121
    %v13280 = vpop.permute.xlu0 %13279
    %13281 = vrot.lane.b32.xlu0 %v12699, 121
    %v13282 = vpop.permute.xlu0 %13281
    %13283 = vrot.lane.b32.xlu0 %v10614, 121
    %v13284 = vpop.permute.xlu0 %13283
    %13285 = vrot.lane.b32.xlu0 %v12702, 121
    %v13286 = vpop.permute.xlu0 %13285
    %13287 = vrot.lane.b32.xlu0 %v10616, 121
    %v13288 = vpop.permute.xlu0 %13287
    %13289 = vrot.lane.b32.xlu0 %v12704, 121
    %v13290 = vpop.permute.xlu0 %13289
    %13291 = vrot.lane.b32.xlu0 %v10619, 121
    %v13292 = vpop.permute.xlu0 %13291
    %13293 = vrot.lane.b32.xlu0 %v12707, 121
    %v13294 = vpop.permute.xlu0 %13293
    %13295 = vrot.lane.b32.xlu0 %v10621, 121
    %v13296 = vpop.permute.xlu0 %13295
    %13297 = vrot.lane.b32.xlu0 %v12709, 121
    %v13298 = vpop.permute.xlu0 %13297
    %v13299 = vsel %vm7782, %v13268, %v13270
    %v13300 = vsel %vm7782, %v13272, %v13274
    %v13301 = vsel %vm7782, %v13276, %v13278
    %v13302 = vsel %vm7782, %v13280, %v13282
    %v13303 = vsel %vm7782, %v13284, %v13286
    %v13304 = vsel %vm7782, %v13288, %v13290
    %v13305 = vsel %vm7782, %v13292, %v13294
    %v13306 = vsel %vm7782, %v13296, %v13298
    %v13315 = vadd.f32 %v13243, %v13299
    %v13316 = vadd.f32 %v13244, %v13300
    %v13317 = vadd.f32 %v13245, %v13301
    %v13318 = vadd.f32 %v13246, %v13302
    %v13319 = vadd.f32 %v13247, %v13303
    %v13320 = vadd.f32 %v13248, %v13304
    %v13321 = vadd.f32 %v13249, %v13305
    %v13322 = vadd.f32 %v13250, %v13306
    %13339 = vrot.lane.b32.xlu0 %v10624, 120
    %v13340 = vpop.permute.xlu0 %13339
    %13341 = vrot.lane.b32.xlu0 %v12712, 120
    %v13342 = vpop.permute.xlu0 %13341
    %13343 = vrot.lane.b32.xlu0 %v10626, 120
    %v13344 = vpop.permute.xlu0 %13343
    %13345 = vrot.lane.b32.xlu0 %v12714, 120
    %v13346 = vpop.permute.xlu0 %13345
    %13347 = vrot.lane.b32.xlu0 %v10629, 120
    %v13348 = vpop.permute.xlu0 %13347
    %13349 = vrot.lane.b32.xlu0 %v12717, 120
    %v13350 = vpop.permute.xlu0 %13349
    %13351 = vrot.lane.b32.xlu0 %v10631, 120
    %v13352 = vpop.permute.xlu0 %13351
    %13353 = vrot.lane.b32.xlu0 %v12719, 120
    %v13354 = vpop.permute.xlu0 %13353
    %13355 = vrot.lane.b32.xlu0 %v10634, 120
    %v13356 = vpop.permute.xlu0 %13355
    %13357 = vrot.lane.b32.xlu0 %v12722, 120
    %v13358 = vpop.permute.xlu0 %13357
    %13359 = vrot.lane.b32.xlu0 %v10636, 120
    %v13360 = vpop.permute.xlu0 %13359
    %13361 = vrot.lane.b32.xlu0 %v12724, 120
    %v13362 = vpop.permute.xlu0 %13361
    %13363 = vrot.lane.b32.xlu0 %v10639, 120
    %v13364 = vpop.permute.xlu0 %13363
    %13365 = vrot.lane.b32.xlu0 %v12727, 120
    %v13366 = vpop.permute.xlu0 %13365
    %13367 = vrot.lane.b32.xlu0 %v10641, 120
    %v13368 = vpop.permute.xlu0 %13367
    %13369 = vrot.lane.b32.xlu0 %v12729, 120
    %v13370 = vpop.permute.xlu0 %13369
    %v13371 = vsel %vm7855, %v13340, %v13342
    %v13372 = vsel %vm7855, %v13344, %v13346
    %v13373 = vsel %vm7855, %v13348, %v13350
    %v13374 = vsel %vm7855, %v13352, %v13354
    %v13375 = vsel %vm7855, %v13356, %v13358
    %v13376 = vsel %vm7855, %v13360, %v13362
    %v13377 = vsel %vm7855, %v13364, %v13366
    %v13378 = vsel %vm7855, %v13368, %v13370
    %v13387 = vadd.f32 %v13315, %v13371
    %v13388 = vadd.f32 %v13316, %v13372
    %v13389 = vadd.f32 %v13317, %v13373
    %v13390 = vadd.f32 %v13318, %v13374
    %v13391 = vadd.f32 %v13319, %v13375
    %v13392 = vadd.f32 %v13320, %v13376
    %v13393 = vadd.f32 %v13321, %v13377
    %v13394 = vadd.f32 %v13322, %v13378
    %13411 = vrot.lane.b32.xlu0 %v10644, 119
    %v13412 = vpop.permute.xlu0 %13411
    %13413 = vrot.lane.b32.xlu0 %v12732, 119
    %v13414 = vpop.permute.xlu0 %13413
    %13415 = vrot.lane.b32.xlu0 %v10646, 119
    %v13416 = vpop.permute.xlu0 %13415
    %13417 = vrot.lane.b32.xlu0 %v12734, 119
    %v13418 = vpop.permute.xlu0 %13417
    %13419 = vrot.lane.b32.xlu0 %v10649, 119
    %v13420 = vpop.permute.xlu0 %13419
    %13421 = vrot.lane.b32.xlu0 %v12737, 119
    %v13422 = vpop.permute.xlu0 %13421
    %13423 = vrot.lane.b32.xlu0 %v10651, 119
    %v13424 = vpop.permute.xlu0 %13423
    %13425 = vrot.lane.b32.xlu0 %v12739, 119
    %v13426 = vpop.permute.xlu0 %13425
    %13427 = vrot.lane.b32.xlu0 %v10654, 119
    %v13428 = vpop.permute.xlu0 %13427
    %13429 = vrot.lane.b32.xlu0 %v12742, 119
    %v13430 = vpop.permute.xlu0 %13429
    %13431 = vrot.lane.b32.xlu0 %v10656, 119
    %v13432 = vpop.permute.xlu0 %13431
    %13433 = vrot.lane.b32.xlu0 %v12744, 119
    %v13434 = vpop.permute.xlu0 %13433
    %13435 = vrot.lane.b32.xlu0 %v10659, 119
    %v13436 = vpop.permute.xlu0 %13435
    %13437 = vrot.lane.b32.xlu0 %v12747, 119
    %v13438 = vpop.permute.xlu0 %13437
    %13439 = vrot.lane.b32.xlu0 %v10661, 119
    %v13440 = vpop.permute.xlu0 %13439
    %13441 = vrot.lane.b32.xlu0 %v12749, 119
    %v13442 = vpop.permute.xlu0 %13441
    %v13443 = vsel %vm7928, %v13412, %v13414
    %v13444 = vsel %vm7928, %v13416, %v13418
    %v13445 = vsel %vm7928, %v13420, %v13422
    %v13446 = vsel %vm7928, %v13424, %v13426
    %v13447 = vsel %vm7928, %v13428, %v13430
    %v13448 = vsel %vm7928, %v13432, %v13434
    %v13449 = vsel %vm7928, %v13436, %v13438
    %v13450 = vsel %vm7928, %v13440, %v13442
    %v13459 = vadd.f32 %v13387, %v13443
    %v13460 = vadd.f32 %v13388, %v13444
    %v13461 = vadd.f32 %v13389, %v13445
    %v13462 = vadd.f32 %v13390, %v13446
    %v13463 = vadd.f32 %v13391, %v13447
    %v13464 = vadd.f32 %v13392, %v13448
    %v13465 = vadd.f32 %v13393, %v13449
    %v13466 = vadd.f32 %v13394, %v13450
    %13483 = vrot.lane.b32.xlu0 %v10664, 118
    %v13484 = vpop.permute.xlu0 %13483
    %13485 = vrot.lane.b32.xlu0 %v12752, 118
    %v13486 = vpop.permute.xlu0 %13485
    %13487 = vrot.lane.b32.xlu0 %v10666, 118
    %v13488 = vpop.permute.xlu0 %13487
    %13489 = vrot.lane.b32.xlu0 %v12754, 118
    %v13490 = vpop.permute.xlu0 %13489
    %13491 = vrot.lane.b32.xlu0 %v10669, 118
    %v13492 = vpop.permute.xlu0 %13491
    %13493 = vrot.lane.b32.xlu0 %v12757, 118
    %v13494 = vpop.permute.xlu0 %13493
    %13495 = vrot.lane.b32.xlu0 %v10671, 118
    %v13496 = vpop.permute.xlu0 %13495
    %13497 = vrot.lane.b32.xlu0 %v12759, 118
    %v13498 = vpop.permute.xlu0 %13497
    %13499 = vrot.lane.b32.xlu0 %v10674, 118
    %v13500 = vpop.permute.xlu0 %13499
    %13501 = vrot.lane.b32.xlu0 %v12762, 118
    %v13502 = vpop.permute.xlu0 %13501
    %13503 = vrot.lane.b32.xlu0 %v10676, 118
    %v13504 = vpop.permute.xlu0 %13503
    %13505 = vrot.lane.b32.xlu0 %v12764, 118
    %v13506 = vpop.permute.xlu0 %13505
    %13507 = vrot.lane.b32.xlu0 %v10679, 118
    %v13508 = vpop.permute.xlu0 %13507
    %13509 = vrot.lane.b32.xlu0 %v12767, 118
    %v13510 = vpop.permute.xlu0 %13509
    %13511 = vrot.lane.b32.xlu0 %v10681, 118
    %v13512 = vpop.permute.xlu0 %13511
    %13513 = vrot.lane.b32.xlu0 %v12769, 118
    %v13514 = vpop.permute.xlu0 %13513
    %v13515 = vsel %vm8001, %v13484, %v13486
    %v13516 = vsel %vm8001, %v13488, %v13490
    %v13517 = vsel %vm8001, %v13492, %v13494
    %v13518 = vsel %vm8001, %v13496, %v13498
    %v13519 = vsel %vm8001, %v13500, %v13502
    %v13520 = vsel %vm8001, %v13504, %v13506
    %v13521 = vsel %vm8001, %v13508, %v13510
    %v13522 = vsel %vm8001, %v13512, %v13514
    %v13531 = vadd.f32 %v13459, %v13515
    %v13532 = vadd.f32 %v13460, %v13516
    %v13533 = vadd.f32 %v13461, %v13517
    %v13534 = vadd.f32 %v13462, %v13518
    %v13535 = vadd.f32 %v13463, %v13519
    %v13536 = vadd.f32 %v13464, %v13520
    %v13537 = vadd.f32 %v13465, %v13521
    %v13538 = vadd.f32 %v13466, %v13522
    %13555 = vrot.lane.b32.xlu0 %v10684, 117
    %v13556 = vpop.permute.xlu0 %13555
    %13557 = vrot.lane.b32.xlu0 %v12772, 117
    %v13558 = vpop.permute.xlu0 %13557
    %13559 = vrot.lane.b32.xlu0 %v10686, 117
    %v13560 = vpop.permute.xlu0 %13559
    %13561 = vrot.lane.b32.xlu0 %v12774, 117
    %v13562 = vpop.permute.xlu0 %13561
    %13563 = vrot.lane.b32.xlu0 %v10689, 117
    %v13564 = vpop.permute.xlu0 %13563
    %13565 = vrot.lane.b32.xlu0 %v12777, 117
    %v13566 = vpop.permute.xlu0 %13565
    %13567 = vrot.lane.b32.xlu0 %v10691, 117
    %v13568 = vpop.permute.xlu0 %13567
    %13569 = vrot.lane.b32.xlu0 %v12779, 117
    %v13570 = vpop.permute.xlu0 %13569
    %13571 = vrot.lane.b32.xlu0 %v10694, 117
    %v13572 = vpop.permute.xlu0 %13571
    %13573 = vrot.lane.b32.xlu0 %v12782, 117
    %v13574 = vpop.permute.xlu0 %13573
    %13575 = vrot.lane.b32.xlu0 %v10696, 117
    %v13576 = vpop.permute.xlu0 %13575
    %13577 = vrot.lane.b32.xlu0 %v12784, 117
    %v13578 = vpop.permute.xlu0 %13577
    %13579 = vrot.lane.b32.xlu0 %v10699, 117
    %v13580 = vpop.permute.xlu0 %13579
    %13581 = vrot.lane.b32.xlu0 %v12787, 117
    %v13582 = vpop.permute.xlu0 %13581
    %13583 = vrot.lane.b32.xlu0 %v10701, 117
    %v13584 = vpop.permute.xlu0 %13583
    %13585 = vrot.lane.b32.xlu0 %v12789, 117
    %v13586 = vpop.permute.xlu0 %13585
    %v13587 = vsel %vm8074, %v13556, %v13558
    %v13588 = vsel %vm8074, %v13560, %v13562
    %v13589 = vsel %vm8074, %v13564, %v13566
    %v13590 = vsel %vm8074, %v13568, %v13570
    %v13591 = vsel %vm8074, %v13572, %v13574
    %v13592 = vsel %vm8074, %v13576, %v13578
    %v13593 = vsel %vm8074, %v13580, %v13582
    %v13594 = vsel %vm8074, %v13584, %v13586
    %v13603 = vadd.f32 %v13531, %v13587
    %v13604 = vadd.f32 %v13532, %v13588
    %v13605 = vadd.f32 %v13533, %v13589
    %v13606 = vadd.f32 %v13534, %v13590
    %v13607 = vadd.f32 %v13535, %v13591
    %v13608 = vadd.f32 %v13536, %v13592
    %v13609 = vadd.f32 %v13537, %v13593
    %v13610 = vadd.f32 %v13538, %v13594
    %13627 = vrot.lane.b32.xlu0 %v10704, 116
    %v13628 = vpop.permute.xlu0 %13627
    %13629 = vrot.lane.b32.xlu0 %v12792, 116
    %v13630 = vpop.permute.xlu0 %13629
    %13631 = vrot.lane.b32.xlu0 %v10706, 116
    %v13632 = vpop.permute.xlu0 %13631
    %13633 = vrot.lane.b32.xlu0 %v12794, 116
    %v13634 = vpop.permute.xlu0 %13633
    %13635 = vrot.lane.b32.xlu0 %v10709, 116
    %v13636 = vpop.permute.xlu0 %13635
    %13637 = vrot.lane.b32.xlu0 %v12797, 116
    %v13638 = vpop.permute.xlu0 %13637
    %13639 = vrot.lane.b32.xlu0 %v10711, 116
    %v13640 = vpop.permute.xlu0 %13639
    %13641 = vrot.lane.b32.xlu0 %v12799, 116
    %v13642 = vpop.permute.xlu0 %13641
    %13643 = vrot.lane.b32.xlu0 %v10714, 116
    %v13644 = vpop.permute.xlu0 %13643
    %13645 = vrot.lane.b32.xlu0 %v12802, 116
    %v13646 = vpop.permute.xlu0 %13645
    %13647 = vrot.lane.b32.xlu0 %v10716, 116
    %v13648 = vpop.permute.xlu0 %13647
    %13649 = vrot.lane.b32.xlu0 %v12804, 116
    %v13650 = vpop.permute.xlu0 %13649
    %13651 = vrot.lane.b32.xlu0 %v10719, 116
    %v13652 = vpop.permute.xlu0 %13651
    %13653 = vrot.lane.b32.xlu0 %v12807, 116
    %v13654 = vpop.permute.xlu0 %13653
    %13655 = vrot.lane.b32.xlu0 %v10721, 116
    %v13656 = vpop.permute.xlu0 %13655
    %13657 = vrot.lane.b32.xlu0 %v12809, 116
    %v13658 = vpop.permute.xlu0 %13657
    %v13659 = vsel %vm8147, %v13628, %v13630
    %v13660 = vsel %vm8147, %v13632, %v13634
    %v13661 = vsel %vm8147, %v13636, %v13638
    %v13662 = vsel %vm8147, %v13640, %v13642
    %v13663 = vsel %vm8147, %v13644, %v13646
    %v13664 = vsel %vm8147, %v13648, %v13650
    %v13665 = vsel %vm8147, %v13652, %v13654
    %v13666 = vsel %vm8147, %v13656, %v13658
    %v13675 = vadd.f32 %v13603, %v13659
    %v13676 = vadd.f32 %v13604, %v13660
    %v13677 = vadd.f32 %v13605, %v13661
    %v13678 = vadd.f32 %v13606, %v13662
    %v13679 = vadd.f32 %v13607, %v13663
    %v13680 = vadd.f32 %v13608, %v13664
    %v13681 = vadd.f32 %v13609, %v13665
    %v13682 = vadd.f32 %v13610, %v13666
    %v13683 = vtanh.pop %v13675
    %v13684 = vtanh.pop %v13676
    %v13685 = vtanh.pop %v13677
    %v13686 = vtanh.pop %v13678
    %v13687 = vtanh.pop %v13679
    %v13688 = vtanh.pop %v13680
    %v13689 = vtanh.pop %v13681
    %v13690 = vtanh.pop %v13682
    %s13691 = scalar_lea.vmem [#allocation2], 64
    %13692 = vst [vmem:[%s13691] sm:$0xff] %v13683
    %13693 = vst [vmem:[%s13691 + $0x8] sm:$0xff] %v13684
    %13694 = vst [vmem:[%s13691 + $0x10] sm:$0xff] %v13685
    %13695 = vst [vmem:[%s13691 + $0x18] sm:$0xff] %v13686
    %13696 = vst [vmem:[%s13691 + $0x20] sm:$0xff] %v13687
    %13697 = vst [vmem:[%s13691 + $0x28] sm:$0xff] %v13688
    %13698 = vst [vmem:[%s13691 + $0x30] sm:$0xff] %v13689
    %13699 = vst [vmem:[%s13691 + $0x38] sm:$0xff] %v13690
    // Predicated region
    $region14: #{tpu_custom_call.1} parent=1 // pred_check
      _
    $region15: #{tpu_custom_call.1} parent=1 // pred_check_branch
      %13701 = sbr.rel (0) target = $region17
    $region16: #{tpu_custom_call.1} parent=1 // pred_region
      %13703 = vsyncadd [#allocation3], 0
      %s13704 = sshll.u32 [#allocation2], 4
      %s13705 = int_to_ptr.vmem [resolvable:$true] %s13704
      %s13706 = sshll.u32 %s3, 4
      %s13707 = int_to_ptr.hbm [resolvable:$true] %s13706
      %13712 = dma.vmem_to_hbm [thread:$0]  %s13705, 2048, %s13707, [#allocation3], 128, 128, 8
    $region17: #{tpu_custom_call.1} parent=1 // pred_fallthru
      _
    // Predicated region
    $region18: #{tpu_custom_call.1} parent=1 // pred_check
      _
    $region19: #{tpu_custom_call.1} parent=1 // pred_check_branch
      %13714 = sbr.rel (0) target = $region21
    $region20: #{tpu_custom_call.1} parent=1 // pred_region
      %13716 = dma.done [#allocation3], 2048
    $region21: #{tpu_custom_call.1} parent=1 // pred_fallthru
      _
    %13717 = vsyncpa [#allocation3], 1

</llo_original>
